<compile_context>
chip_gen: v7x
topology: tpu7x:2x2x1
jax: 0.10.0
libtpu: 0.0.40
codegen_flags: <defaults>
</compile_context>

<pallas_src>
import numpy as np
import jax
import jax.numpy as jnp
from jax import lax
from jax.experimental import pallas as pl
from jax.experimental.pallas import tpu as pltpu

NK_TILE = 128      # k-points per grid step (lane-dense)
N_SWEEPS = 8       # cyclic Jacobi sweeps; quadratic convergence, ample for h <= 16 in f32
_R_TINY = 1e-10    # |H[p,q]| below this -> skip the rotation (avoids 0/0)


# ----------------------------- batched complex Jacobi rotation -----------------------------
def _complex_jacobi_rotation(are, aim, p, q, iot_r2, iot_r3, iot_c3):
    """One rotation zeroing H[p,q] for every k-point.  H = are + i*aim, Hermitian.

    are/aim: (h, h, nk) real/imag planes; row index on axis 0, column index on axis 1,
    k-point batch on the 128-lane axis 2.  p < q are Python ints (static).
    """
    # pivot rows (h, nk)
    rp_re = are[p]
    rp_im = aim[p]
    rq_re = are[q]
    rq_im = aim[q]
    # per-k scalars (1, nk)
    app = rp_re[p:p + 1, :]
    aqq = rq_re[q:q + 1, :]
    a = rp_re[q:q + 1, :]                      # Re H[p,q]
    b = rp_im[q:q + 1, :]                      # Im H[p,q]

    r = jnp.sqrt(a * a + b * b)                # |H[p,q]|
    small = r <= _R_TINY
    inv_r = 1.0 / jnp.where(small, 1.0, r)
    cph = jnp.where(small, 1.0, a * inv_r)     # exp(i*phi) = H[p,q] / |H[p,q]|
    sph = jnp.where(small, 0.0, b * inv_r)

    tau = (aqq - app) * (0.5 * inv_r)
    sgn = jnp.where(tau >= 0.0, 1.0, -1.0)
    t = sgn / (jnp.abs(tau) + jnp.sqrt(1.0 + tau * tau))
    c = lax.rsqrt(1.0 + t * t)
    s = jnp.where(small, 0.0, t * c)
    c = jnp.where(small, 1.0, c)
    cs2 = 2.0 * c * s
    new_app = c * c * app - cs2 * r + s * s * aqq
    new_aqq = s * s * app + cs2 * r + c * c * aqq

    # new pivot rows:  H'[p,k] = c*e^{-i phi}*H[p,k] - s*H[q,k]
    #                  H'[q,k] = s*e^{-i phi}*H[p,k] + c*H[q,k]
    wr = cph * rp_re + sph * rp_im
    wi = cph * rp_im - sph * rp_re
    np_re = c * wr - s * rq_re
    np_im = c * wi - s * rq_im
    nq_re = s * wr + c * rq_re
    nq_im = s * wi + c * rq_im
    at_p = iot_r2 == p
    at_q = iot_r2 == q
    at_pq = jnp.logical_or(at_p, at_q)
    np_re = jnp.where(at_p, new_app, jnp.where(at_q, 0.0, np_re))
    nq_re = jnp.where(at_q, new_aqq, jnp.where(at_p, 0.0, nq_re))
    np_im = jnp.where(at_pq, 0.0, np_im)
    nq_im = jnp.where(at_pq, 0.0, nq_im)

    # new pivot columns:  H'[k,p] = c*e^{+i phi}*H[k,p] - s*H[k,q]
    #                     H'[k,q] = s*e^{+i phi}*H[k,p] + c*H[k,q]
    cph3, sph3 = cph[:, None, :], sph[:, None, :]
    c3, s3 = c[:, None, :], s[:, None, :]
    cp_re = are[:, p:p + 1, :]
    cp_im = aim[:, p:p + 1, :]
    cq_re = are[:, q:q + 1, :]
    cq_im = aim[:, q:q + 1, :]
    xr = cph3 * cp_re - sph3 * cp_im
    xi = cph3 * cp_im + sph3 * cp_re
    ncp_re = c3 * xr - s3 * cq_re
    ncp_im = c3 * xi - s3 * cq_im
    ncq_re = s3 * xr + c3 * cq_re
    ncq_im = s3 * xi + c3 * cq_im

    # blend: pivot columns first (computed from old values), pivot rows last so the
    # exact corner values (new_app, 0, 0, new_aqq) win at the intersections.
    col_p = iot_c3 == p
    col_q = iot_c3 == q
    are = jnp.where(col_p, ncp_re, jnp.where(col_q, ncq_re, are))
    aim = jnp.where(col_p, ncp_im, jnp.where(col_q, ncq_im, aim))
    row_p = iot_r3 == p
    row_q = iot_r3 == q
    are = jnp.where(row_p, np_re[None, :, :], jnp.where(row_q, nq_re[None, :, :], are))
    aim = jnp.where(row_p, np_im[None, :, :], jnp.where(row_q, nq_im[None, :, :], aim))
    return are, aim


# ----------------------------- fused assembly + eigensolver kernel -----------------------------
def _tb_kernel(cos_ref, sin_ref, breal_ref, bimag_ref, diag_ref, out_ref):
    # cos_ref / sin_ref : (n_pairs, nk)       cos/sin of the Bloch phases (k on lanes)
    # breal_ref/bimag_ref: (n_pairs, h, h, 1) symmetric / antisymmetric hopping basis
    # diag_ref          : (h, h, 1)           diag(onsite_energies)
    # out_ref           : (h, nk)             unsorted eigenvalues (converged diagonal)
    n_pairs = cos_ref.shape[0]
    h = diag_ref.shape[0]
    nk = cos_ref.shape[1]

    # ---- assemble H(k) = diag + sum_p T_p * exp(i*phase_p): VPU broadcast-FMAs ----
    are = jnp.broadcast_to(diag_ref[...], (h, h, nk))
    aim = jnp.zeros((h, h, nk), jnp.float32)
    for p in range(n_pairs):
        cp = cos_ref[p:p + 1, :][:, None, :]          # (1, 1, nk)
        sp = sin_ref[p:p + 1, :][:, None, :]
        are = are + breal_ref[p] * cp                 # (h, h, 1) * (1, 1, nk)
        aim = aim + bimag_ref[p] * sp

    # ---- batched cyclic complex Jacobi on the k-point lane batch ----
    iot_r2 = lax.broadcasted_iota(jnp.int32, (h, 1), 0)
    iot_r3 = lax.broadcasted_iota(jnp.int32, (h, 1, 1), 0)
    iot_c3 = lax.broadcasted_iota(jnp.int32, (1, h, 1), 1)

    def sweep(_, carry):
        a_re, a_im = carry
        for p in range(h - 1):
            for q in range(p + 1, h):
                a_re, a_im = _complex_jacobi_rotation(a_re, a_im, p, q,
                                                      iot_r2, iot_r3, iot_c3)
        return a_re, a_im

    are, aim = lax.fori_loop(0, N_SWEEPS, sweep, (are, aim))

    # ---- eigenvalues = converged diagonal (h static single-row stores) ----
    for j in range(h):
        out_ref[j:j + 1, :] = are[j][j:j + 1, :]


# ----------------------------- jitted wrapper around the pallas_call -----------------------------
@jax.jit
def _tb_eigenvalues(phase, breal4, bimag4, diag3):
    """phase: (n_k, n_pairs) angles -> (n_k, h) eigenvalues, ascending."""
    nk, n_pairs = phase.shape
    h = diag3.shape[0]
    nk_pad = ((nk + NK_TILE - 1) // NK_TILE) * NK_TILE

    phase_t = jnp.pad(phase.astype(jnp.float32).T, ((0, 0), (0, nk_pad - nk)))
    cosp = jnp.cos(phase_t)                            # tiny (n_pairs, nk_pad) arrays
    sinp = jnp.sin(phase_t)

    diag_out = pl.pallas_call(
        _tb_kernel,
        out_shape=jax.ShapeDtypeStruct((h, nk_pad), jnp.float32),
        grid=(nk_pad // NK_TILE,),
        in_specs=[pl.BlockSpec((n_pairs, NK_TILE), lambda i: (0, i)),
                  pl.BlockSpec((n_pairs, NK_TILE), lambda i: (0, i)),
                  pl.BlockSpec((n_pairs, h, h, 1), lambda i: (0, 0, 0, 0)),
                  pl.BlockSpec((n_pairs, h, h, 1), lambda i: (0, 0, 0, 0)),
                  pl.BlockSpec((h, h, 1), lambda i: (0, 0, 0))],
        out_specs=pl.BlockSpec((h, NK_TILE), lambda i: (0, i)),
        compiler_params=pltpu.CompilerParams(
            dimension_semantics=("parallel",)),        # v7x: both TCs split k-tiles
    )(cosp, sinp, breal4, bimag4, diag3)

    return jnp.sort(diag_out[:, :nk].T, axis=-1)       # (n_k, h), ascending


def tb_fitter_forward(phase, onsite_energies, hopping_energies, n_orbitals):
    """Forward pass of TBFitter: band energies eigvalsh(H(k)) for every k-point."""
    n_orbitals = tuple(int(x) for x in n_orbitals)
    ns = len(n_orbitals)
    h = int(sum(n_orbitals))
    offs = np.concatenate([[0], np.cumsum(n_orbitals)]).astype(int)
    n_pairs = ns * (ns - 1) // 2

    onsite_np = np.asarray(onsite_energies, np.float32)
    hop_np = np.asarray(hopping_energies, np.float32)

    # host-side parameter plumbing: symmetric / antisymmetric hopping basis matrices
    breal = np.zeros((n_pairs, h, h), np.float32)
    bimag = np.zeros((n_pairs, h, h), np.float32)
    hoff, pair = 0, 0
    for i in range(ns):
        for j in range(i + 1, ns):
            ni, nj = n_orbitals[i], n_orbitals[j]
            blk = hop_np[hoff:hoff + ni * nj].reshape(ni, nj)
            oi, oj = int(offs[i]), int(offs[j])
            breal[pair, oi:oi + ni, oj:oj + nj] = blk
            breal[pair, oj:oj + nj, oi:oi + ni] = blk.T
            bimag[pair, oi:oi + ni, oj:oj + nj] = blk
            bimag[pair, oj:oj + nj, oi:oi + ni] = -blk.T
            hoff += ni * nj
            pair += 1
    breal4 = breal.reshape(n_pairs, h, h, 1)           # trailing lane dim of 1 ->
    bimag4 = bimag.reshape(n_pairs, h, h, 1)           # no relayout needed in-kernel
    diag3 = np.diag(onsite_np).astype(np.float32).reshape(h, h, 1)

    return _tb_eigenvalues(jnp.asarray(phase, jnp.float32),
                           jnp.asarray(breal4), jnp.asarray(bimag4),
                           jnp.asarray(diag3))


# ----------------------------- reference (host, numpy, float64) -----------------------------
def reference_eigenvalues(n_orbitals, onsite, hopping, phase):
    n_orbitals = np.asarray(n_orbitals)
    ns = len(n_orbitals)
    h = int(n_orbitals.sum())
    offs = np.concatenate([[0], np.cumsum(n_orbitals)]).astype(int)
    nk = phase.shape[0]
    out = np.zeros((nk, h), dtype=np.float64)
    for k in range(nk):
        H = np.zeros((h, h), dtype=np.complex128)
        H[np.arange(h), np.arange(h)] = onsite
        hoff, pair = 0, 0
        for i in range(ns):
            for j in range(i + 1, ns):
                ni, nj = int(n_orbitals[i]), int(n_orbitals[j])
                blk = hopping[hoff:hoff + ni * nj].reshape(ni, nj)
                ph = np.exp(1j * phase[k, pair])
                H[offs[i]:offs[i] + ni, offs[j]:offs[j] + nj] = blk * ph
                H[offs[j]:offs[j] + nj, offs[i]:offs[i] + ni] = (blk * ph).conj().T
                hoff += ni * nj
                pair += 1
        out[k] = np.linalg.eigvalsh(H)
    return out


# ----------------------------- main -----------------------------
if __name__ == "__main__":
    # TBFitter(n_orbitals=[2, 1, 2]) -> h_dim = 5, hopping length = 2*1 + 2*2 + 1*2 = 8
    n_orbitals = np.array([2, 1, 2], dtype=np.int32)
    ns = len(n_orbitals)
    h_dim = int(n_orbitals.sum())
    n_pairs = ns * (ns - 1) // 2
    hop_len = sum(int(n_orbitals[i]) * int(n_orbitals[j])
                  for i in range(ns) for j in range(i + 1, ns))
    nk = 16

    key = jax.random.PRNGKey(0)
    k1, k2, k3 = jax.random.split(key, 3)
    # Parameters: torch.rand -> uniform [0, 1)
    onsite_energies = jax.random.uniform(k1, (h_dim,), jnp.float32)
    hopping_energies = jax.random.uniform(k2, (hop_len,), jnp.float32)
    # Forward input: Bloch phase angles per (k-point, site-pair)
    phase = jax.random.uniform(k3, (nk, n_pairs), jnp.float32,
                               minval=-np.pi, maxval=np.pi)

    energies = tb_fitter_forward(phase, onsite_energies, hopping_energies, n_orbitals)
    energies = jax.block_until_ready(energies)

    ref = reference_eigenvalues(n_orbitals,
                                np.asarray(onsite_energies, np.float64),
                                np.asarray(hopping_energies, np.float64),
                                np.asarray(phase, np.float64))
    assert energies.shape == (nk, h_dim)
    err = np.max(np.abs(np.asarray(energies) - ref))
    assert np.allclose(np.asarray(energies), ref, atol=5e-3, rtol=1e-3), \
        f"max abs err {err}"
    print("KERNEL_OK")
</pallas_src>

<mosaic_0001>
module attributes {stable_mosaic.version = 11 : i64} {
  func.func @_tb_kernel(%arg0: i32, %arg1: memref<3x128xf32, #tpu.memory_space<vmem>>, %arg2: memref<3x128xf32, #tpu.memory_space<vmem>>, %arg3: memref<3x5x5x1xf32, #tpu.memory_space<vmem>>, %arg4: memref<3x5x5x1xf32, #tpu.memory_space<vmem>>, %arg5: memref<5x5x1xf32, #tpu.memory_space<vmem>>, %arg6: memref<5x128xf32, #tpu.memory_space<vmem>>) attributes {dimension_semantics = [#tpu.dimension_semantics<parallel>], iteration_bounds = array<i64: 1>, scalar_prefetch = 0 : i64, scratch_operands = 0 : i64, tpu.core_type = #tpu.core_type<tc>, window_params = [{transform_indices = @transform_0, window_bounds = array<i64: 3, 128>}, {transform_indices = @transform_1, window_bounds = array<i64: 3, 128>}, {pipeline_mode = #tpu.pipeline_mode<synchronous>, transform_indices = @transform_2, window_bounds = array<i64: 3, 5, 5, 1>}, {pipeline_mode = #tpu.pipeline_mode<synchronous>, transform_indices = @transform_3, window_bounds = array<i64: 3, 5, 5, 1>}, {pipeline_mode = #tpu.pipeline_mode<synchronous>, transform_indices = @transform_4, window_bounds = array<i64: 5, 5, 1>}, {transform_indices = @transform_5, window_bounds = array<i64: 5, 128>}]} {
    %c0 = arith.constant 0 : index
    %c0_0 = arith.constant 0 : index
    %c0_1 = arith.constant 0 : index
    %0 = vector.load %arg5[%c0, %c0_0, %c0_1] : memref<5x5x1xf32, #tpu.memory_space<vmem>>, vector<5x5x1xf32>
    %1 = vector.shape_cast %0 : vector<5x5x1xf32> to vector<5x5x1xf32>
    %2 = vector.broadcast %1 : vector<5x5x1xf32> to vector<5x5x128xf32>
    %cst = arith.constant 0.000000e+00 : f32
    %3 = vector.broadcast %cst : f32 to vector<5x5x128xf32>
    %c0_2 = arith.constant 0 : index
    %c0_3 = arith.constant 0 : index
    %4 = vector.load %arg1[%c0_2, %c0_3] : memref<3x128xf32, #tpu.memory_space<vmem>>, vector<1x128xf32>
    %5 = vector.shape_cast %4 : vector<1x128xf32> to vector<1x1x128xf32>
    %c0_4 = arith.constant 0 : index
    %c0_5 = arith.constant 0 : index
    %6 = vector.load %arg2[%c0_4, %c0_5] : memref<3x128xf32, #tpu.memory_space<vmem>>, vector<1x128xf32>
    %7 = vector.shape_cast %6 : vector<1x128xf32> to vector<1x1x128xf32>
    %c0_6 = arith.constant 0 : index
    %c0_7 = arith.constant 0 : index
    %c0_8 = arith.constant 0 : index
    %c0_9 = arith.constant 0 : index
    %8 = vector.load %arg3[%c0_6, %c0_7, %c0_8, %c0_9] : memref<3x5x5x1xf32, #tpu.memory_space<vmem>>, vector<1x5x5x1xf32>
    %9 = vector.shape_cast %8 : vector<1x5x5x1xf32> to vector<5x5x1xf32>
    %10 = vector.broadcast %9 : vector<5x5x1xf32> to vector<5x5x128xf32>
    %11 = vector.broadcast %5 : vector<1x1x128xf32> to vector<5x5x128xf32>
    %12 = arith.mulf %10, %11 : vector<5x5x128xf32>
    %13 = arith.addf %2, %12 : vector<5x5x128xf32>
    %c0_10 = arith.constant 0 : index
    %c0_11 = arith.constant 0 : index
    %c0_12 = arith.constant 0 : index
    %c0_13 = arith.constant 0 : index
    %14 = vector.load %arg4[%c0_10, %c0_11, %c0_12, %c0_13] : memref<3x5x5x1xf32, #tpu.memory_space<vmem>>, vector<1x5x5x1xf32>
    %15 = vector.shape_cast %14 : vector<1x5x5x1xf32> to vector<5x5x1xf32>
    %16 = vector.broadcast %15 : vector<5x5x1xf32> to vector<5x5x128xf32>
    %17 = vector.broadcast %7 : vector<1x1x128xf32> to vector<5x5x128xf32>
    %18 = arith.mulf %16, %17 : vector<5x5x128xf32>
    %19 = arith.addf %3, %18 : vector<5x5x128xf32>
    %c1 = arith.constant 1 : index
    %c0_14 = arith.constant 0 : index
    %20 = vector.load %arg1[%c1, %c0_14] : memref<3x128xf32, #tpu.memory_space<vmem>>, vector<1x128xf32>
    %21 = vector.shape_cast %20 : vector<1x128xf32> to vector<1x1x128xf32>
    %c1_15 = arith.constant 1 : index
    %c0_16 = arith.constant 0 : index
    %22 = vector.load %arg2[%c1_15, %c0_16] : memref<3x128xf32, #tpu.memory_space<vmem>>, vector<1x128xf32>
    %23 = vector.shape_cast %22 : vector<1x128xf32> to vector<1x1x128xf32>
    %c1_17 = arith.constant 1 : index
    %c0_18 = arith.constant 0 : index
    %c0_19 = arith.constant 0 : index
    %c0_20 = arith.constant 0 : index
    %24 = vector.load %arg3[%c1_17, %c0_18, %c0_19, %c0_20] : memref<3x5x5x1xf32, #tpu.memory_space<vmem>>, vector<1x5x5x1xf32>
    %25 = vector.shape_cast %24 : vector<1x5x5x1xf32> to vector<5x5x1xf32>
    %26 = vector.broadcast %25 : vector<5x5x1xf32> to vector<5x5x128xf32>
    %27 = vector.broadcast %21 : vector<1x1x128xf32> to vector<5x5x128xf32>
    %28 = arith.mulf %26, %27 : vector<5x5x128xf32>
    %29 = arith.addf %13, %28 : vector<5x5x128xf32>
    %c1_21 = arith.constant 1 : index
    %c0_22 = arith.constant 0 : index
    %c0_23 = arith.constant 0 : index
    %c0_24 = arith.constant 0 : index
    %30 = vector.load %arg4[%c1_21, %c0_22, %c0_23, %c0_24] : memref<3x5x5x1xf32, #tpu.memory_space<vmem>>, vector<1x5x5x1xf32>
    %31 = vector.shape_cast %30 : vector<1x5x5x1xf32> to vector<5x5x1xf32>
    %32 = vector.broadcast %31 : vector<5x5x1xf32> to vector<5x5x128xf32>
    %33 = vector.broadcast %23 : vector<1x1x128xf32> to vector<5x5x128xf32>
    %34 = arith.mulf %32, %33 : vector<5x5x128xf32>
    %35 = arith.addf %19, %34 : vector<5x5x128xf32>
    %c2 = arith.constant 2 : index
    %c0_25 = arith.constant 0 : index
    %36 = vector.load %arg1[%c2, %c0_25] : memref<3x128xf32, #tpu.memory_space<vmem>>, vector<1x128xf32>
    %37 = vector.shape_cast %36 : vector<1x128xf32> to vector<1x1x128xf32>
    %c2_26 = arith.constant 2 : index
    %c0_27 = arith.constant 0 : index
    %38 = vector.load %arg2[%c2_26, %c0_27] : memref<3x128xf32, #tpu.memory_space<vmem>>, vector<1x128xf32>
    %39 = vector.shape_cast %38 : vector<1x128xf32> to vector<1x1x128xf32>
    %c2_28 = arith.constant 2 : index
    %c0_29 = arith.constant 0 : index
    %c0_30 = arith.constant 0 : index
    %c0_31 = arith.constant 0 : index
    %40 = vector.load %arg3[%c2_28, %c0_29, %c0_30, %c0_31] : memref<3x5x5x1xf32, #tpu.memory_space<vmem>>, vector<1x5x5x1xf32>
    %41 = vector.shape_cast %40 : vector<1x5x5x1xf32> to vector<5x5x1xf32>
    %42 = vector.broadcast %41 : vector<5x5x1xf32> to vector<5x5x128xf32>
    %43 = vector.broadcast %37 : vector<1x1x128xf32> to vector<5x5x128xf32>
    %44 = arith.mulf %42, %43 : vector<5x5x128xf32>
    %45 = arith.addf %29, %44 : vector<5x5x128xf32>
    %c2_32 = arith.constant 2 : index
    %c0_33 = arith.constant 0 : index
    %c0_34 = arith.constant 0 : index
    %c0_35 = arith.constant 0 : index
    %46 = vector.load %arg4[%c2_32, %c0_33, %c0_34, %c0_35] : memref<3x5x5x1xf32, #tpu.memory_space<vmem>>, vector<1x5x5x1xf32>
    %47 = vector.shape_cast %46 : vector<1x5x5x1xf32> to vector<5x5x1xf32>
    %48 = vector.broadcast %47 : vector<5x5x1xf32> to vector<5x5x128xf32>
    %49 = vector.broadcast %39 : vector<1x1x128xf32> to vector<5x5x128xf32>
    %50 = arith.mulf %48, %49 : vector<5x5x128xf32>
    %51 = arith.addf %35, %50 : vector<5x5x128xf32>
    %52 = tpu.iota {dimensions = array<i32: 0>} : vector<5x1xi32>
    %53 = tpu.iota {dimensions = array<i32: 0>} : vector<5x1x1xi32>
    %54 = tpu.iota {dimensions = array<i32: 1>} : vector<1x5x1xi32>
    %c0_i32 = arith.constant 0 : i32
    %c8_i32 = arith.constant 8 : i32
    %55 = arith.addi %c0_i32, %c8_i32 : i32
    %c1_i32 = arith.constant 1 : i32
    %56:2 = scf.for %arg7 = %c0_i32 to %55 step %c1_i32 iter_args(%arg8 = %45, %arg9 = %51) -> (vector<5x5x128xf32>, vector<5x5x128xf32>)  : i32 {
      %77 = vector.extract_strided_slice %arg8 {offsets = [0, 0, 0], sizes = [1, 5, 128], strides = [1, 1, 1]} : vector<5x5x128xf32> to vector<1x5x128xf32>
      %78 = vector.shape_cast %77 : vector<1x5x128xf32> to vector<5x128xf32>
      %79 = vector.extract_strided_slice %arg9 {offsets = [0, 0, 0], sizes = [1, 5, 128], strides = [1, 1, 1]} : vector<5x5x128xf32> to vector<1x5x128xf32>
      %80 = vector.shape_cast %79 : vector<1x5x128xf32> to vector<5x128xf32>
      %81 = vector.extract_strided_slice %arg8 {offsets = [1, 0, 0], sizes = [1, 5, 128], strides = [1, 1, 1]} : vector<5x5x128xf32> to vector<1x5x128xf32>
      %82 = vector.shape_cast %81 : vector<1x5x128xf32> to vector<5x128xf32>
      %83 = vector.extract_strided_slice %arg9 {offsets = [1, 0, 0], sizes = [1, 5, 128], strides = [1, 1, 1]} : vector<5x5x128xf32> to vector<1x5x128xf32>
      %84 = vector.shape_cast %83 : vector<1x5x128xf32> to vector<5x128xf32>
      %85 = vector.extract_strided_slice %78 {offsets = [0, 0], sizes = [1, 128], strides = [1, 1]} : vector<5x128xf32> to vector<1x128xf32>
      %86 = vector.extract_strided_slice %82 {offsets = [1, 0], sizes = [1, 128], strides = [1, 1]} : vector<5x128xf32> to vector<1x128xf32>
      %87 = vector.extract_strided_slice %78 {offsets = [1, 0], sizes = [1, 128], strides = [1, 1]} : vector<5x128xf32> to vector<1x128xf32>
      %88 = vector.extract_strided_slice %80 {offsets = [1, 0], sizes = [1, 128], strides = [1, 1]} : vector<5x128xf32> to vector<1x128xf32>
      %89 = arith.mulf %87, %87 : vector<1x128xf32>
      %90 = arith.mulf %88, %88 : vector<1x128xf32>
      %91 = arith.addf %89, %90 : vector<1x128xf32>
      %92 = math.sqrt %91 : vector<1x128xf32>
      %cst_44 = arith.constant 1.000000e-10 : f32
      %93 = vector.broadcast %cst_44 : f32 to vector<1x128xf32>
      %94 = arith.cmpf ole, %92, %93 : vector<1x128xf32>
      %cst_45 = arith.constant 1.000000e+00 : f32
      %95 = vector.broadcast %cst_45 : f32 to vector<1x128xf32>
      %96 = arith.select %94, %95, %92 : vector<1x128xi1>, vector<1x128xf32>
      %cst_46 = arith.constant 1.000000e+00 : f32
      %97 = vector.broadcast %cst_46 : f32 to vector<1x128xf32>
      %98 = arith.divf %97, %96 : vector<1x128xf32>
      %99 = arith.mulf %87, %98 : vector<1x128xf32>
      %cst_47 = arith.constant 1.000000e+00 : f32
      %100 = vector.broadcast %cst_47 : f32 to vector<1x128xf32>
      %101 = arith.select %94, %100, %99 : vector<1x128xi1>, vector<1x128xf32>
      %102 = arith.mulf %88, %98 : vector<1x128xf32>
      %cst_48 = arith.constant 0.000000e+00 : f32
      %103 = vector.broadcast %cst_48 : f32 to vector<1x128xf32>
      %104 = arith.select %94, %103, %102 : vector<1x128xi1>, vector<1x128xf32>
      %105 = arith.subf %86, %85 : vector<1x128xf32>
      %cst_49 = arith.constant 5.000000e-01 : f32
      %106 = vector.broadcast %cst_49 : f32 to vector<1x128xf32>
      %107 = arith.mulf %106, %98 : vector<1x128xf32>
      %108 = arith.mulf %105, %107 : vector<1x128xf32>
      %cst_50 = arith.constant 0.000000e+00 : f32
      %109 = vector.broadcast %cst_50 : f32 to vector<1x128xf32>
      %110 = arith.cmpf oge, %108, %109 : vector<1x128xf32>
      %cst_51 = arith.constant 1.000000e+00 : f32
      %cst_52 = arith.constant -1.000000e+00 : f32
      %111 = vector.broadcast %cst_51 : f32 to vector<1x128xf32>
      %112 = vector.broadcast %cst_52 : f32 to vector<1x128xf32>
      %113 = arith.select %110, %111, %112 : vector<1x128xi1>, vector<1x128xf32>
      %114 = math.absf %108 : vector<1x128xf32>
      %115 = arith.mulf %108, %108 : vector<1x128xf32>
      %cst_53 = arith.constant 1.000000e+00 : f32
      %116 = vector.broadcast %cst_53 : f32 to vector<1x128xf32>
      %117 = arith.addf %116, %115 : vector<1x128xf32>
      %118 = math.sqrt %117 : vector<1x128xf32>
      %119 = arith.addf %114, %118 : vector<1x128xf32>
      %120 = arith.divf %113, %119 : vector<1x128xf32>
      %121 = arith.mulf %120, %120 : vector<1x128xf32>
      %cst_54 = arith.constant 1.000000e+00 : f32
      %122 = vector.broadcast %cst_54 : f32 to vector<1x128xf32>
      %123 = arith.addf %122, %121 : vector<1x128xf32>
      %124 = math.rsqrt %123 : vector<1x128xf32>
      %125 = arith.mulf %120, %124 : vector<1x128xf32>
      %cst_55 = arith.constant 0.000000e+00 : f32
      %126 = vector.broadcast %cst_55 : f32 to vector<1x128xf32>
      %127 = arith.select %94, %126, %125 : vector<1x128xi1>, vector<1x128xf32>
      %cst_56 = arith.constant 1.000000e+00 : f32
      %128 = vector.broadcast %cst_56 : f32 to vector<1x128xf32>
      %129 = arith.select %94, %128, %124 : vector<1x128xi1>, vector<1x128xf32>
      %cst_57 = arith.constant 2.000000e+00 : f32
      %130 = vector.broadcast %cst_57 : f32 to vector<1x128xf32>
      %131 = arith.mulf %130, %129 : vector<1x128xf32>
      %132 = arith.mulf %131, %127 : vector<1x128xf32>
      %133 = arith.mulf %129, %129 : vector<1x128xf32>
      %134 = arith.mulf %133, %85 : vector<1x128xf32>
      %135 = arith.mulf %132, %92 : vector<1x128xf32>
      %136 = arith.subf %134, %135 : vector<1x128xf32>
      %137 = arith.mulf %127, %127 : vector<1x128xf32>
      %138 = arith.mulf %137, %86 : vector<1x128xf32>
      %139 = arith.addf %136, %138 : vector<1x128xf32>
      %140 = arith.mulf %127, %127 : vector<1x128xf32>
      %141 = arith.mulf %140, %85 : vector<1x128xf32>
      %142 = arith.mulf %132, %92 : vector<1x128xf32>
      %143 = arith.addf %141, %142 : vector<1x128xf32>
      %144 = arith.mulf %129, %129 : vector<1x128xf32>
      %145 = arith.mulf %144, %86 : vector<1x128xf32>
      %146 = arith.addf %143, %145 : vector<1x128xf32>
      %147 = vector.broadcast %101 : vector<1x128xf32> to vector<5x128xf32>
      %148 = arith.mulf %147, %78 : vector<5x128xf32>
      %149 = vector.broadcast %104 : vector<1x128xf32> to vector<5x128xf32>
      %150 = arith.mulf %149, %80 : vector<5x128xf32>
      %151 = arith.addf %148, %150 : vector<5x128xf32>
      %152 = vector.broadcast %101 : vector<1x128xf32> to vector<5x128xf32>
      %153 = arith.mulf %152, %80 : vector<5x128xf32>
      %154 = vector.broadcast %104 : vector<1x128xf32> to vector<5x128xf32>
      %155 = arith.mulf %154, %78 : vector<5x128xf32>
      %156 = arith.subf %153, %155 : vector<5x128xf32>
      %157 = vector.broadcast %129 : vector<1x128xf32> to vector<5x128xf32>
      %158 = arith.mulf %157, %151 : vector<5x128xf32>
      %159 = vector.broadcast %127 : vector<1x128xf32> to vector<5x128xf32>
      %160 = arith.mulf %159, %82 : vector<5x128xf32>
      %161 = arith.subf %158, %160 : vector<5x128xf32>
      %162 = vector.broadcast %129 : vector<1x128xf32> to vector<5x128xf32>
      %163 = arith.mulf %162, %156 : vector<5x128xf32>
      %164 = vector.broadcast %127 : vector<1x128xf32> to vector<5x128xf32>
      %165 = arith.mulf %164, %84 : vector<5x128xf32>
      %166 = arith.subf %163, %165 : vector<5x128xf32>
      %167 = vector.broadcast %127 : vector<1x128xf32> to vector<5x128xf32>
      %168 = arith.mulf %167, %151 : vector<5x128xf32>
      %169 = vector.broadcast %129 : vector<1x128xf32> to vector<5x128xf32>
      %170 = arith.mulf %169, %82 : vector<5x128xf32>
      %171 = arith.addf %168, %170 : vector<5x128xf32>
      %172 = vector.broadcast %127 : vector<1x128xf32> to vector<5x128xf32>
      %173 = arith.mulf %172, %156 : vector<5x128xf32>
      %174 = vector.broadcast %129 : vector<1x128xf32> to vector<5x128xf32>
      %175 = arith.mulf %174, %84 : vector<5x128xf32>
      %176 = arith.addf %173, %175 : vector<5x128xf32>
      %c0_i32_58 = arith.constant 0 : i32
      %177 = vector.broadcast %c0_i32_58 : i32 to vector<5x1xi32>
      %178 = arith.cmpi eq, %52, %177 : vector<5x1xi32>
      %c1_i32_59 = arith.constant 1 : i32
      %179 = vector.broadcast %c1_i32_59 : i32 to vector<5x1xi32>
      %180 = arith.cmpi eq, %52, %179 : vector<5x1xi32>
      %181 = arith.ori %178, %180 : vector<5x1xi1>
      %cst_60 = arith.constant 0.000000e+00 : f32
      %182 = vector.shape_cast %180 : vector<5x1xi1> to vector<5x1xi1>
      %183 = vector.broadcast %182 : vector<5x1xi1> to vector<5x128xi1>
      %184 = vector.broadcast %cst_60 : f32 to vector<5x128xf32>
      %185 = arith.select %183, %184, %161 : vector<5x128xi1>, vector<5x128xf32>
      %186 = vector.shape_cast %178 : vector<5x1xi1> to vector<5x1xi1>
      %187 = vector.broadcast %186 : vector<5x1xi1> to vector<5x128xi1>
      %188 = vector.shape_cast %139 : vector<1x128xf32> to vector<1x128xf32>
      %189 = vector.broadcast %188 : vector<1x128xf32> to vector<5x128xf32>
      %190 = arith.select %187, %189, %185 : vector<5x128xi1>, vector<5x128xf32>
      %cst_61 = arith.constant 0.000000e+00 : f32
      %191 = vector.shape_cast %178 : vector<5x1xi1> to vector<5x1xi1>
      %192 = vector.broadcast %191 : vector<5x1xi1> to vector<5x128xi1>
      %193 = vector.broadcast %cst_61 : f32 to vector<5x128xf32>
      %194 = arith.select %192, %193, %171 : vector<5x128xi1>, vector<5x128xf32>
      %195 = vector.shape_cast %180 : vector<5x1xi1> to vector<5x1xi1>
      %196 = vector.broadcast %195 : vector<5x1xi1> to vector<5x128xi1>
      %197 = vector.shape_cast %146 : vector<1x128xf32> to vector<1x128xf32>
      %198 = vector.broadcast %197 : vector<1x128xf32> to vector<5x128xf32>
      %199 = arith.select %196, %198, %194 : vector<5x128xi1>, vector<5x128xf32>
      %cst_62 = arith.constant 0.000000e+00 : f32
      %200 = vector.shape_cast %181 : vector<5x1xi1> to vector<5x1xi1>
      %201 = vector.broadcast %200 : vector<5x1xi1> to vector<5x128xi1>
      %202 = vector.broadcast %cst_62 : f32 to vector<5x128xf32>
      %203 = arith.select %201, %202, %166 : vector<5x128xi1>, vector<5x128xf32>
      %cst_63 = arith.constant 0.000000e+00 : f32
      %204 = vector.shape_cast %181 : vector<5x1xi1> to vector<5x1xi1>
      %205 = vector.broadcast %204 : vector<5x1xi1> to vector<5x128xi1>
      %206 = vector.broadcast %cst_63 : f32 to vector<5x128xf32>
      %207 = arith.select %205, %206, %176 : vector<5x128xi1>, vector<5x128xf32>
      %208 = vector.shape_cast %101 : vector<1x128xf32> to vector<1x1x128xf32>
      %209 = vector.shape_cast %104 : vector<1x128xf32> to vector<1x1x128xf32>
      %210 = vector.shape_cast %129 : vector<1x128xf32> to vector<1x1x128xf32>
      %211 = vector.shape_cast %127 : vector<1x128xf32> to vector<1x1x128xf32>
      %212 = vector.extract_strided_slice %arg8 {offsets = [0, 0, 0], sizes = [5, 1, 128], strides = [1, 1, 1]} : vector<5x5x128xf32> to vector<5x1x128xf32>
      %213 = vector.extract_strided_slice %arg9 {offsets = [0, 0, 0], sizes = [5, 1, 128], strides = [1, 1, 1]} : vector<5x5x128xf32> to vector<5x1x128xf32>
      %214 = vector.extract_strided_slice %arg8 {offsets = [0, 1, 0], sizes = [5, 1, 128], strides = [1, 1, 1]} : vector<5x5x128xf32> to vector<5x1x128xf32>
      %215 = vector.extract_strided_slice %arg9 {offsets = [0, 1, 0], sizes = [5, 1, 128], strides = [1, 1, 1]} : vector<5x5x128xf32> to vector<5x1x128xf32>
      %216 = vector.broadcast %208 : vector<1x1x128xf32> to vector<5x1x128xf32>
      %217 = arith.mulf %216, %212 : vector<5x1x128xf32>
      %218 = vector.broadcast %209 : vector<1x1x128xf32> to vector<5x1x128xf32>
      %219 = arith.mulf %218, %213 : vector<5x1x128xf32>
      %220 = arith.subf %217, %219 : vector<5x1x128xf32>
      %221 = vector.broadcast %208 : vector<1x1x128xf32> to vector<5x1x128xf32>
      %222 = arith.mulf %221, %213 : vector<5x1x128xf32>
      %223 = vector.broadcast %209 : vector<1x1x128xf32> to vector<5x1x128xf32>
      %224 = arith.mulf %223, %212 : vector<5x1x128xf32>
      %225 = arith.addf %222, %224 : vector<5x1x128xf32>
      %226 = vector.broadcast %210 : vector<1x1x128xf32> to vector<5x1x128xf32>
      %227 = arith.mulf %226, %220 : vector<5x1x128xf32>
      %228 = vector.broadcast %211 : vector<1x1x128xf32> to vector<5x1x128xf32>
      %229 = arith.mulf %228, %214 : vector<5x1x128xf32>
      %230 = arith.subf %227, %229 : vector<5x1x128xf32>
      %231 = vector.broadcast %210 : vector<1x1x128xf32> to vector<5x1x128xf32>
      %232 = arith.mulf %231, %225 : vector<5x1x128xf32>
      %233 = vector.broadcast %211 : vector<1x1x128xf32> to vector<5x1x128xf32>
      %234 = arith.mulf %233, %215 : vector<5x1x128xf32>
      %235 = arith.subf %232, %234 : vector<5x1x128xf32>
      %236 = vector.broadcast %211 : vector<1x1x128xf32> to vector<5x1x128xf32>
      %237 = arith.mulf %236, %220 : vector<5x1x128xf32>
      %238 = vector.broadcast %210 : vector<1x1x128xf32> to vector<5x1x128xf32>
      %239 = arith.mulf %238, %214 : vector<5x1x128xf32>
      %240 = arith.addf %237, %239 : vector<5x1x128xf32>
      %241 = vector.broadcast %211 : vector<1x1x128xf32> to vector<5x1x128xf32>
      %242 = arith.mulf %241, %225 : vector<5x1x128xf32>
      %243 = vector.broadcast %210 : vector<1x1x128xf32> to vector<5x1x128xf32>
      %244 = arith.mulf %243, %215 : vector<5x1x128xf32>
      %245 = arith.addf %242, %244 : vector<5x1x128xf32>
      %c0_i32_64 = arith.constant 0 : i32
      %246 = vector.broadcast %c0_i32_64 : i32 to vector<1x5x1xi32>
      %247 = arith.cmpi eq, %54, %246 : vector<1x5x1xi32>
      %c1_i32_65 = arith.constant 1 : i32
      %248 = vector.broadcast %c1_i32_65 : i32 to vector<1x5x1xi32>
      %249 = arith.cmpi eq, %54, %248 : vector<1x5x1xi32>
      %250 = vector.shape_cast %249 : vector<1x5x1xi1> to vector<1x5x1xi1>
      %251 = vector.broadcast %250 : vector<1x5x1xi1> to vector<5x5x128xi1>
      %252 = vector.shape_cast %240 : vector<5x1x128xf32> to vector<5x1x128xf32>
      %253 = vector.broadcast %252 : vector<5x1x128xf32> to vector<5x5x128xf32>
      %254 = arith.select %251, %253, %arg8 : vector<5x5x128xi1>, vector<5x5x128xf32>
      %255 = vector.shape_cast %247 : vector<1x5x1xi1> to vector<1x5x1xi1>
      %256 = vector.broadcast %255 : vector<1x5x1xi1> to vector<5x5x128xi1>
      %257 = vector.shape_cast %230 : vector<5x1x128xf32> to vector<5x1x128xf32>
      %258 = vector.broadcast %257 : vector<5x1x128xf32> to vector<5x5x128xf32>
      %259 = arith.select %256, %258, %254 : vector<5x5x128xi1>, vector<5x5x128xf32>
      %260 = vector.shape_cast %249 : vector<1x5x1xi1> to vector<1x5x1xi1>
      %261 = vector.broadcast %260 : vector<1x5x1xi1> to vector<5x5x128xi1>
      %262 = vector.shape_cast %245 : vector<5x1x128xf32> to vector<5x1x128xf32>
      %263 = vector.broadcast %262 : vector<5x1x128xf32> to vector<5x5x128xf32>
      %264 = arith.select %261, %263, %arg9 : vector<5x5x128xi1>, vector<5x5x128xf32>
      %265 = vector.shape_cast %247 : vector<1x5x1xi1> to vector<1x5x1xi1>
      %266 = vector.broadcast %265 : vector<1x5x1xi1> to vector<5x5x128xi1>
      %267 = vector.shape_cast %235 : vector<5x1x128xf32> to vector<5x1x128xf32>
      %268 = vector.broadcast %267 : vector<5x1x128xf32> to vector<5x5x128xf32>
      %269 = arith.select %266, %268, %264 : vector<5x5x128xi1>, vector<5x5x128xf32>
      %c0_i32_66 = arith.constant 0 : i32
      %270 = vector.broadcast %c0_i32_66 : i32 to vector<5x1x1xi32>
      %271 = arith.cmpi eq, %53, %270 : vector<5x1x1xi32>
      %c1_i32_67 = arith.constant 1 : i32
      %272 = vector.broadcast %c1_i32_67 : i32 to vector<5x1x1xi32>
      %273 = arith.cmpi eq, %53, %272 : vector<5x1x1xi32>
      %274 = vector.shape_cast %190 : vector<5x128xf32> to vector<1x5x128xf32>
      %275 = vector.shape_cast %199 : vector<5x128xf32> to vector<1x5x128xf32>
      %276 = vector.shape_cast %273 : vector<5x1x1xi1> to vector<5x1x1xi1>
      %277 = vector.broadcast %276 : vector<5x1x1xi1> to vector<5x5x128xi1>
      %278 = vector.shape_cast %275 : vector<1x5x128xf32> to vector<1x5x128xf32>
      %279 = vector.broadcast %278 : vector<1x5x128xf32> to vector<5x5x128xf32>
      %280 = arith.select %277, %279, %259 : vector<5x5x128xi1>, vector<5x5x128xf32>
      %281 = vector.shape_cast %271 : vector<5x1x1xi1> to vector<5x1x1xi1>
      %282 = vector.broadcast %281 : vector<5x1x1xi1> to vector<5x5x128xi1>
      %283 = vector.shape_cast %274 : vector<1x5x128xf32> to vector<1x5x128xf32>
      %284 = vector.broadcast %283 : vector<1x5x128xf32> to vector<5x5x128xf32>
      %285 = arith.select %282, %284, %280 : vector<5x5x128xi1>, vector<5x5x128xf32>
      %286 = vector.shape_cast %203 : vector<5x128xf32> to vector<1x5x128xf32>
      %287 = vector.shape_cast %207 : vector<5x128xf32> to vector<1x5x128xf32>
      %288 = vector.shape_cast %273 : vector<5x1x1xi1> to vector<5x1x1xi1>
      %289 = vector.broadcast %288 : vector<5x1x1xi1> to vector<5x5x128xi1>
      %290 = vector.shape_cast %287 : vector<1x5x128xf32> to vector<1x5x128xf32>
      %291 = vector.broadcast %290 : vector<1x5x128xf32> to vector<5x5x128xf32>
      %292 = arith.select %289, %291, %269 : vector<5x5x128xi1>, vector<5x5x128xf32>
      %293 = vector.shape_cast %271 : vector<5x1x1xi1> to vector<5x1x1xi1>
      %294 = vector.broadcast %293 : vector<5x1x1xi1> to vector<5x5x128xi1>
      %295 = vector.shape_cast %286 : vector<1x5x128xf32> to vector<1x5x128xf32>
      %296 = vector.broadcast %295 : vector<1x5x128xf32> to vector<5x5x128xf32>
      %297 = arith.select %294, %296, %292 : vector<5x5x128xi1>, vector<5x5x128xf32>
      %298 = vector.extract_strided_slice %285 {offsets = [0, 0, 0], sizes = [1, 5, 128], strides = [1, 1, 1]} : vector<5x5x128xf32> to vector<1x5x128xf32>
      %299 = vector.shape_cast %298 : vector<1x5x128xf32> to vector<5x128xf32>
      %300 = vector.extract_strided_slice %297 {offsets = [0, 0, 0], sizes = [1, 5, 128], strides = [1, 1, 1]} : vector<5x5x128xf32> to vector<1x5x128xf32>
      %301 = vector.shape_cast %300 : vector<1x5x128xf32> to vector<5x128xf32>
      %302 = vector.extract_strided_slice %285 {offsets = [2, 0, 0], sizes = [1, 5, 128], strides = [1, 1, 1]} : vector<5x5x128xf32> to vector<1x5x128xf32>
      %303 = vector.shape_cast %302 : vector<1x5x128xf32> to vector<5x128xf32>
      %304 = vector.extract_strided_slice %297 {offsets = [2, 0, 0], sizes = [1, 5, 128], strides = [1, 1, 1]} : vector<5x5x128xf32> to vector<1x5x128xf32>
      %305 = vector.shape_cast %304 : vector<1x5x128xf32> to vector<5x128xf32>
      %306 = vector.extract_strided_slice %299 {offsets = [0, 0], sizes = [1, 128], strides = [1, 1]} : vector<5x128xf32> to vector<1x128xf32>
      %307 = vector.extract_strided_slice %303 {offsets = [2, 0], sizes = [1, 128], strides = [1, 1]} : vector<5x128xf32> to vector<1x128xf32>
      %308 = vector.extract_strided_slice %299 {offsets = [2, 0], sizes = [1, 128], strides = [1, 1]} : vector<5x128xf32> to vector<1x128xf32>
      %309 = vector.extract_strided_slice %301 {offsets = [2, 0], sizes = [1, 128], strides = [1, 1]} : vector<5x128xf32> to vector<1x128xf32>
      %310 = arith.mulf %308, %308 : vector<1x128xf32>
      %311 = arith.mulf %309, %309 : vector<1x128xf32>
      %312 = arith.addf %310, %311 : vector<1x128xf32>
      %313 = math.sqrt %312 : vector<1x128xf32>
      %cst_68 = arith.constant 1.000000e-10 : f32
      %314 = vector.broadcast %cst_68 : f32 to vector<1x128xf32>
      %315 = arith.cmpf ole, %313, %314 : vector<1x128xf32>
      %cst_69 = arith.constant 1.000000e+00 : f32
      %316 = vector.broadcast %cst_69 : f32 to vector<1x128xf32>
      %317 = arith.select %315, %316, %313 : vector<1x128xi1>, vector<1x128xf32>
      %cst_70 = arith.constant 1.000000e+00 : f32
      %318 = vector.broadcast %cst_70 : f32 to vector<1x128xf32>
      %319 = arith.divf %318, %317 : vector<1x128xf32>
      %320 = arith.mulf %308, %319 : vector<1x128xf32>
      %cst_71 = arith.constant 1.000000e+00 : f32
      %321 = vector.broadcast %cst_71 : f32 to vector<1x128xf32>
      %322 = arith.select %315, %321, %320 : vector<1x128xi1>, vector<1x128xf32>
      %323 = arith.mulf %309, %319 : vector<1x128xf32>
      %cst_72 = arith.constant 0.000000e+00 : f32
      %324 = vector.broadcast %cst_72 : f32 to vector<1x128xf32>
      %325 = arith.select %315, %324, %323 : vector<1x128xi1>, vector<1x128xf32>
      %326 = arith.subf %307, %306 : vector<1x128xf32>
      %cst_73 = arith.constant 5.000000e-01 : f32
      %327 = vector.broadcast %cst_73 : f32 to vector<1x128xf32>
      %328 = arith.mulf %327, %319 : vector<1x128xf32>
      %329 = arith.mulf %326, %328 : vector<1x128xf32>
      %cst_74 = arith.constant 0.000000e+00 : f32
      %330 = vector.broadcast %cst_74 : f32 to vector<1x128xf32>
      %331 = arith.cmpf oge, %329, %330 : vector<1x128xf32>
      %cst_75 = arith.constant 1.000000e+00 : f32
      %cst_76 = arith.constant -1.000000e+00 : f32
      %332 = vector.broadcast %cst_75 : f32 to vector<1x128xf32>
      %333 = vector.broadcast %cst_76 : f32 to vector<1x128xf32>
      %334 = arith.select %331, %332, %333 : vector<1x128xi1>, vector<1x128xf32>
      %335 = math.absf %329 : vector<1x128xf32>
      %336 = arith.mulf %329, %329 : vector<1x128xf32>
      %cst_77 = arith.constant 1.000000e+00 : f32
      %337 = vector.broadcast %cst_77 : f32 to vector<1x128xf32>
      %338 = arith.addf %337, %336 : vector<1x128xf32>
      %339 = math.sqrt %338 : vector<1x128xf32>
      %340 = arith.addf %335, %339 : vector<1x128xf32>
      %341 = arith.divf %334, %340 : vector<1x128xf32>
      %342 = arith.mulf %341, %341 : vector<1x128xf32>
      %cst_78 = arith.constant 1.000000e+00 : f32
      %343 = vector.broadcast %cst_78 : f32 to vector<1x128xf32>
      %344 = arith.addf %343, %342 : vector<1x128xf32>
      %345 = math.rsqrt %344 : vector<1x128xf32>
      %346 = arith.mulf %341, %345 : vector<1x128xf32>
      %cst_79 = arith.constant 0.000000e+00 : f32
      %347 = vector.broadcast %cst_79 : f32 to vector<1x128xf32>
      %348 = arith.select %315, %347, %346 : vector<1x128xi1>, vector<1x128xf32>
      %cst_80 = arith.constant 1.000000e+00 : f32
      %349 = vector.broadcast %cst_80 : f32 to vector<1x128xf32>
      %350 = arith.select %315, %349, %345 : vector<1x128xi1>, vector<1x128xf32>
      %cst_81 = arith.constant 2.000000e+00 : f32
      %351 = vector.broadcast %cst_81 : f32 to vector<1x128xf32>
      %352 = arith.mulf %351, %350 : vector<1x128xf32>
      %353 = arith.mulf %352, %348 : vector<1x128xf32>
      %354 = arith.mulf %350, %350 : vector<1x128xf32>
      %355 = arith.mulf %354, %306 : vector<1x128xf32>
      %356 = arith.mulf %353, %313 : vector<1x128xf32>
      %357 = arith.subf %355, %356 : vector<1x128xf32>
      %358 = arith.mulf %348, %348 : vector<1x128xf32>
      %359 = arith.mulf %358, %307 : vector<1x128xf32>
      %360 = arith.addf %357, %359 : vector<1x128xf32>
      %361 = arith.mulf %348, %348 : vector<1x128xf32>
      %362 = arith.mulf %361, %306 : vector<1x128xf32>
      %363 = arith.mulf %353, %313 : vector<1x128xf32>
      %364 = arith.addf %362, %363 : vector<1x128xf32>
      %365 = arith.mulf %350, %350 : vector<1x128xf32>
      %366 = arith.mulf %365, %307 : vector<1x128xf32>
      %367 = arith.addf %364, %366 : vector<1x128xf32>
      %368 = vector.broadcast %322 : vector<1x128xf32> to vector<5x128xf32>
      %369 = arith.mulf %368, %299 : vector<5x128xf32>
      %370 = vector.broadcast %325 : vector<1x128xf32> to vector<5x128xf32>
      %371 = arith.mulf %370, %301 : vector<5x128xf32>
      %372 = arith.addf %369, %371 : vector<5x128xf32>
      %373 = vector.broadcast %322 : vector<1x128xf32> to vector<5x128xf32>
      %374 = arith.mulf %373, %301 : vector<5x128xf32>
      %375 = vector.broadcast %325 : vector<1x128xf32> to vector<5x128xf32>
      %376 = arith.mulf %375, %299 : vector<5x128xf32>
      %377 = arith.subf %374, %376 : vector<5x128xf32>
      %378 = vector.broadcast %350 : vector<1x128xf32> to vector<5x128xf32>
      %379 = arith.mulf %378, %372 : vector<5x128xf32>
      %380 = vector.broadcast %348 : vector<1x128xf32> to vector<5x128xf32>
      %381 = arith.mulf %380, %303 : vector<5x128xf32>
      %382 = arith.subf %379, %381 : vector<5x128xf32>
      %383 = vector.broadcast %350 : vector<1x128xf32> to vector<5x128xf32>
      %384 = arith.mulf %383, %377 : vector<5x128xf32>
      %385 = vector.broadcast %348 : vector<1x128xf32> to vector<5x128xf32>
      %386 = arith.mulf %385, %305 : vector<5x128xf32>
      %387 = arith.subf %384, %386 : vector<5x128xf32>
      %388 = vector.broadcast %348 : vector<1x128xf32> to vector<5x128xf32>
      %389 = arith.mulf %388, %372 : vector<5x128xf32>
      %390 = vector.broadcast %350 : vector<1x128xf32> to vector<5x128xf32>
      %391 = arith.mulf %390, %303 : vector<5x128xf32>
      %392 = arith.addf %389, %391 : vector<5x128xf32>
      %393 = vector.broadcast %348 : vector<1x128xf32> to vector<5x128xf32>
      %394 = arith.mulf %393, %377 : vector<5x128xf32>
      %395 = vector.broadcast %350 : vector<1x128xf32> to vector<5x128xf32>
      %396 = arith.mulf %395, %305 : vector<5x128xf32>
      %397 = arith.addf %394, %396 : vector<5x128xf32>
      %c0_i32_82 = arith.constant 0 : i32
      %398 = vector.broadcast %c0_i32_82 : i32 to vector<5x1xi32>
      %399 = arith.cmpi eq, %52, %398 : vector<5x1xi32>
      %c2_i32 = arith.constant 2 : i32
      %400 = vector.broadcast %c2_i32 : i32 to vector<5x1xi32>
      %401 = arith.cmpi eq, %52, %400 : vector<5x1xi32>
      %402 = arith.ori %399, %401 : vector<5x1xi1>
      %cst_83 = arith.constant 0.000000e+00 : f32
      %403 = vector.shape_cast %401 : vector<5x1xi1> to vector<5x1xi1>
      %404 = vector.broadcast %403 : vector<5x1xi1> to vector<5x128xi1>
      %405 = vector.broadcast %cst_83 : f32 to vector<5x128xf32>
      %406 = arith.select %404, %405, %382 : vector<5x128xi1>, vector<5x128xf32>
      %407 = vector.shape_cast %399 : vector<5x1xi1> to vector<5x1xi1>
      %408 = vector.broadcast %407 : vector<5x1xi1> to vector<5x128xi1>
      %409 = vector.shape_cast %360 : vector<1x128xf32> to vector<1x128xf32>
      %410 = vector.broadcast %409 : vector<1x128xf32> to vector<5x128xf32>
      %411 = arith.select %408, %410, %406 : vector<5x128xi1>, vector<5x128xf32>
      %cst_84 = arith.constant 0.000000e+00 : f32
      %412 = vector.shape_cast %399 : vector<5x1xi1> to vector<5x1xi1>
      %413 = vector.broadcast %412 : vector<5x1xi1> to vector<5x128xi1>
      %414 = vector.broadcast %cst_84 : f32 to vector<5x128xf32>
      %415 = arith.select %413, %414, %392 : vector<5x128xi1>, vector<5x128xf32>
      %416 = vector.shape_cast %401 : vector<5x1xi1> to vector<5x1xi1>
      %417 = vector.broadcast %416 : vector<5x1xi1> to vector<5x128xi1>
      %418 = vector.shape_cast %367 : vector<1x128xf32> to vector<1x128xf32>
      %419 = vector.broadcast %418 : vector<1x128xf32> to vector<5x128xf32>
      %420 = arith.select %417, %419, %415 : vector<5x128xi1>, vector<5x128xf32>
      %cst_85 = arith.constant 0.000000e+00 : f32
      %421 = vector.shape_cast %402 : vector<5x1xi1> to vector<5x1xi1>
      %422 = vector.broadcast %421 : vector<5x1xi1> to vector<5x128xi1>
      %423 = vector.broadcast %cst_85 : f32 to vector<5x128xf32>
      %424 = arith.select %422, %423, %387 : vector<5x128xi1>, vector<5x128xf32>
      %cst_86 = arith.constant 0.000000e+00 : f32
      %425 = vector.shape_cast %402 : vector<5x1xi1> to vector<5x1xi1>
      %426 = vector.broadcast %425 : vector<5x1xi1> to vector<5x128xi1>
      %427 = vector.broadcast %cst_86 : f32 to vector<5x128xf32>
      %428 = arith.select %426, %427, %397 : vector<5x128xi1>, vector<5x128xf32>
      %429 = vector.shape_cast %322 : vector<1x128xf32> to vector<1x1x128xf32>
      %430 = vector.shape_cast %325 : vector<1x128xf32> to vector<1x1x128xf32>
      %431 = vector.shape_cast %350 : vector<1x128xf32> to vector<1x1x128xf32>
      %432 = vector.shape_cast %348 : vector<1x128xf32> to vector<1x1x128xf32>
      %433 = vector.extract_strided_slice %285 {offsets = [0, 0, 0], sizes = [5, 1, 128], strides = [1, 1, 1]} : vector<5x5x128xf32> to vector<5x1x128xf32>
      %434 = vector.extract_strided_slice %297 {offsets = [0, 0, 0], sizes = [5, 1, 128], strides = [1, 1, 1]} : vector<5x5x128xf32> to vector<5x1x128xf32>
      %435 = vector.extract_strided_slice %285 {offsets = [0, 2, 0], sizes = [5, 1, 128], strides = [1, 1, 1]} : vector<5x5x128xf32> to vector<5x1x128xf32>
      %436 = vector.extract_strided_slice %297 {offsets = [0, 2, 0], sizes = [5, 1, 128], strides = [1, 1, 1]} : vector<5x5x128xf32> to vector<5x1x128xf32>
      %437 = vector.broadcast %429 : vector<1x1x128xf32> to vector<5x1x128xf32>
      %438 = arith.mulf %437, %433 : vector<5x1x128xf32>
      %439 = vector.broadcast %430 : vector<1x1x128xf32> to vector<5x1x128xf32>
      %440 = arith.mulf %439, %434 : vector<5x1x128xf32>
      %441 = arith.subf %438, %440 : vector<5x1x128xf32>
      %442 = vector.broadcast %429 : vector<1x1x128xf32> to vector<5x1x128xf32>
      %443 = arith.mulf %442, %434 : vector<5x1x128xf32>
      %444 = vector.broadcast %430 : vector<1x1x128xf32> to vector<5x1x128xf32>
      %445 = arith.mulf %444, %433 : vector<5x1x128xf32>
      %446 = arith.addf %443, %445 : vector<5x1x128xf32>
      %447 = vector.broadcast %431 : vector<1x1x128xf32> to vector<5x1x128xf32>
      %448 = arith.mulf %447, %441 : vector<5x1x128xf32>
      %449 = vector.broadcast %432 : vector<1x1x128xf32> to vector<5x1x128xf32>
      %450 = arith.mulf %449, %435 : vector<5x1x128xf32>
      %451 = arith.subf %448, %450 : vector<5x1x128xf32>
      %452 = vector.broadcast %431 : vector<1x1x128xf32> to vector<5x1x128xf32>
      %453 = arith.mulf %452, %446 : vector<5x1x128xf32>
      %454 = vector.broadcast %432 : vector<1x1x128xf32> to vector<5x1x128xf32>
      %455 = arith.mulf %454, %436 : vector<5x1x128xf32>
      %456 = arith.subf %453, %455 : vector<5x1x128xf32>
      %457 = vector.broadcast %432 : vector<1x1x128xf32> to vector<5x1x128xf32>
      %458 = arith.mulf %457, %441 : vector<5x1x128xf32>
      %459 = vector.broadcast %431 : vector<1x1x128xf32> to vector<5x1x128xf32>
      %460 = arith.mulf %459, %435 : vector<5x1x128xf32>
      %461 = arith.addf %458, %460 : vector<5x1x128xf32>
      %462 = vector.broadcast %432 : vector<1x1x128xf32> to vector<5x1x128xf32>
      %463 = arith.mulf %462, %446 : vector<5x1x128xf32>
      %464 = vector.broadcast %431 : vector<1x1x128xf32> to vector<5x1x128xf32>
      %465 = arith.mulf %464, %436 : vector<5x1x128xf32>
      %466 = arith.addf %463, %465 : vector<5x1x128xf32>
      %c0_i32_87 = arith.constant 0 : i32
      %467 = vector.broadcast %c0_i32_87 : i32 to vector<1x5x1xi32>
      %468 = arith.cmpi eq, %54, %467 : vector<1x5x1xi32>
      %c2_i32_88 = arith.constant 2 : i32
      %469 = vector.broadcast %c2_i32_88 : i32 to vector<1x5x1xi32>
      %470 = arith.cmpi eq, %54, %469 : vector<1x5x1xi32>
      %471 = vector.shape_cast %470 : vector<1x5x1xi1> to vector<1x5x1xi1>
      %472 = vector.broadcast %471 : vector<1x5x1xi1> to vector<5x5x128xi1>
      %473 = vector.shape_cast %461 : vector<5x1x128xf32> to vector<5x1x128xf32>
      %474 = vector.broadcast %473 : vector<5x1x128xf32> to vector<5x5x128xf32>
      %475 = arith.select %472, %474, %285 : vector<5x5x128xi1>, vector<5x5x128xf32>
      %476 = vector.shape_cast %468 : vector<1x5x1xi1> to vector<1x5x1xi1>
      %477 = vector.broadcast %476 : vector<1x5x1xi1> to vector<5x5x128xi1>
      %478 = vector.shape_cast %451 : vector<5x1x128xf32> to vector<5x1x128xf32>
      %479 = vector.broadcast %478 : vector<5x1x128xf32> to vector<5x5x128xf32>
      %480 = arith.select %477, %479, %475 : vector<5x5x128xi1>, vector<5x5x128xf32>
      %481 = vector.shape_cast %470 : vector<1x5x1xi1> to vector<1x5x1xi1>
      %482 = vector.broadcast %481 : vector<1x5x1xi1> to vector<5x5x128xi1>
      %483 = vector.shape_cast %466 : vector<5x1x128xf32> to vector<5x1x128xf32>
      %484 = vector.broadcast %483 : vector<5x1x128xf32> to vector<5x5x128xf32>
      %485 = arith.select %482, %484, %297 : vector<5x5x128xi1>, vector<5x5x128xf32>
      %486 = vector.shape_cast %468 : vector<1x5x1xi1> to vector<1x5x1xi1>
      %487 = vector.broadcast %486 : vector<1x5x1xi1> to vector<5x5x128xi1>
      %488 = vector.shape_cast %456 : vector<5x1x128xf32> to vector<5x1x128xf32>
      %489 = vector.broadcast %488 : vector<5x1x128xf32> to vector<5x5x128xf32>
      %490 = arith.select %487, %489, %485 : vector<5x5x128xi1>, vector<5x5x128xf32>
      %c0_i32_89 = arith.constant 0 : i32
      %491 = vector.broadcast %c0_i32_89 : i32 to vector<5x1x1xi32>
      %492 = arith.cmpi eq, %53, %491 : vector<5x1x1xi32>
      %c2_i32_90 = arith.constant 2 : i32
      %493 = vector.broadcast %c2_i32_90 : i32 to vector<5x1x1xi32>
      %494 = arith.cmpi eq, %53, %493 : vector<5x1x1xi32>
      %495 = vector.shape_cast %411 : vector<5x128xf32> to vector<1x5x128xf32>
      %496 = vector.shape_cast %420 : vector<5x128xf32> to vector<1x5x128xf32>
      %497 = vector.shape_cast %494 : vector<5x1x1xi1> to vector<5x1x1xi1>
      %498 = vector.broadcast %497 : vector<5x1x1xi1> to vector<5x5x128xi1>
      %499 = vector.shape_cast %496 : vector<1x5x128xf32> to vector<1x5x128xf32>
      %500 = vector.broadcast %499 : vector<1x5x128xf32> to vector<5x5x128xf32>
      %501 = arith.select %498, %500, %480 : vector<5x5x128xi1>, vector<5x5x128xf32>
      %502 = vector.shape_cast %492 : vector<5x1x1xi1> to vector<5x1x1xi1>
      %503 = vector.broadcast %502 : vector<5x1x1xi1> to vector<5x5x128xi1>
      %504 = vector.shape_cast %495 : vector<1x5x128xf32> to vector<1x5x128xf32>
      %505 = vector.broadcast %504 : vector<1x5x128xf32> to vector<5x5x128xf32>
      %506 = arith.select %503, %505, %501 : vector<5x5x128xi1>, vector<5x5x128xf32>
      %507 = vector.shape_cast %424 : vector<5x128xf32> to vector<1x5x128xf32>
      %508 = vector.shape_cast %428 : vector<5x128xf32> to vector<1x5x128xf32>
      %509 = vector.shape_cast %494 : vector<5x1x1xi1> to vector<5x1x1xi1>
      %510 = vector.broadcast %509 : vector<5x1x1xi1> to vector<5x5x128xi1>
      %511 = vector.shape_cast %508 : vector<1x5x128xf32> to vector<1x5x128xf32>
      %512 = vector.broadcast %511 : vector<1x5x128xf32> to vector<5x5x128xf32>
      %513 = arith.select %510, %512, %490 : vector<5x5x128xi1>, vector<5x5x128xf32>
      %514 = vector.shape_cast %492 : vector<5x1x1xi1> to vector<5x1x1xi1>
      %515 = vector.broadcast %514 : vector<5x1x1xi1> to vector<5x5x128xi1>
      %516 = vector.shape_cast %507 : vector<1x5x128xf32> to vector<1x5x128xf32>
      %517 = vector.broadcast %516 : vector<1x5x128xf32> to vector<5x5x128xf32>
      %518 = arith.select %515, %517, %513 : vector<5x5x128xi1>, vector<5x5x128xf32>
      %519 = vector.extract_strided_slice %506 {offsets = [0, 0, 0], sizes = [1, 5, 128], strides = [1, 1, 1]} : vector<5x5x128xf32> to vector<1x5x128xf32>
      %520 = vector.shape_cast %519 : vector<1x5x128xf32> to vector<5x128xf32>
      %521 = vector.extract_strided_slice %518 {offsets = [0, 0, 0], sizes = [1, 5, 128], strides = [1, 1, 1]} : vector<5x5x128xf32> to vector<1x5x128xf32>
      %522 = vector.shape_cast %521 : vector<1x5x128xf32> to vector<5x128xf32>
      %523 = vector.extract_strided_slice %506 {offsets = [3, 0, 0], sizes = [1, 5, 128], strides = [1, 1, 1]} : vector<5x5x128xf32> to vector<1x5x128xf32>
      %524 = vector.shape_cast %523 : vector<1x5x128xf32> to vector<5x128xf32>
      %525 = vector.extract_strided_slice %518 {offsets = [3, 0, 0], sizes = [1, 5, 128], strides = [1, 1, 1]} : vector<5x5x128xf32> to vector<1x5x128xf32>
      %526 = vector.shape_cast %525 : vector<1x5x128xf32> to vector<5x128xf32>
      %527 = vector.extract_strided_slice %520 {offsets = [0, 0], sizes = [1, 128], strides = [1, 1]} : vector<5x128xf32> to vector<1x128xf32>
      %528 = vector.extract_strided_slice %524 {offsets = [3, 0], sizes = [1, 128], strides = [1, 1]} : vector<5x128xf32> to vector<1x128xf32>
      %529 = vector.extract_strided_slice %520 {offsets = [3, 0], sizes = [1, 128], strides = [1, 1]} : vector<5x128xf32> to vector<1x128xf32>
      %530 = vector.extract_strided_slice %522 {offsets = [3, 0], sizes = [1, 128], strides = [1, 1]} : vector<5x128xf32> to vector<1x128xf32>
      %531 = arith.mulf %529, %529 : vector<1x128xf32>
      %532 = arith.mulf %530, %530 : vector<1x128xf32>
      %533 = arith.addf %531, %532 : vector<1x128xf32>
      %534 = math.sqrt %533 : vector<1x128xf32>
      %cst_91 = arith.constant 1.000000e-10 : f32
      %535 = vector.broadcast %cst_91 : f32 to vector<1x128xf32>
      %536 = arith.cmpf ole, %534, %535 : vector<1x128xf32>
      %cst_92 = arith.constant 1.000000e+00 : f32
      %537 = vector.broadcast %cst_92 : f32 to vector<1x128xf32>
      %538 = arith.select %536, %537, %534 : vector<1x128xi1>, vector<1x128xf32>
      %cst_93 = arith.constant 1.000000e+00 : f32
      %539 = vector.broadcast %cst_93 : f32 to vector<1x128xf32>
      %540 = arith.divf %539, %538 : vector<1x128xf32>
      %541 = arith.mulf %529, %540 : vector<1x128xf32>
      %cst_94 = arith.constant 1.000000e+00 : f32
      %542 = vector.broadcast %cst_94 : f32 to vector<1x128xf32>
      %543 = arith.select %536, %542, %541 : vector<1x128xi1>, vector<1x128xf32>
      %544 = arith.mulf %530, %540 : vector<1x128xf32>
      %cst_95 = arith.constant 0.000000e+00 : f32
      %545 = vector.broadcast %cst_95 : f32 to vector<1x128xf32>
      %546 = arith.select %536, %545, %544 : vector<1x128xi1>, vector<1x128xf32>
      %547 = arith.subf %528, %527 : vector<1x128xf32>
      %cst_96 = arith.constant 5.000000e-01 : f32
      %548 = vector.broadcast %cst_96 : f32 to vector<1x128xf32>
      %549 = arith.mulf %548, %540 : vector<1x128xf32>
      %550 = arith.mulf %547, %549 : vector<1x128xf32>
      %cst_97 = arith.constant 0.000000e+00 : f32
      %551 = vector.broadcast %cst_97 : f32 to vector<1x128xf32>
      %552 = arith.cmpf oge, %550, %551 : vector<1x128xf32>
      %cst_98 = arith.constant 1.000000e+00 : f32
      %cst_99 = arith.constant -1.000000e+00 : f32
      %553 = vector.broadcast %cst_98 : f32 to vector<1x128xf32>
      %554 = vector.broadcast %cst_99 : f32 to vector<1x128xf32>
      %555 = arith.select %552, %553, %554 : vector<1x128xi1>, vector<1x128xf32>
      %556 = math.absf %550 : vector<1x128xf32>
      %557 = arith.mulf %550, %550 : vector<1x128xf32>
      %cst_100 = arith.constant 1.000000e+00 : f32
      %558 = vector.broadcast %cst_100 : f32 to vector<1x128xf32>
      %559 = arith.addf %558, %557 : vector<1x128xf32>
      %560 = math.sqrt %559 : vector<1x128xf32>
      %561 = arith.addf %556, %560 : vector<1x128xf32>
      %562 = arith.divf %555, %561 : vector<1x128xf32>
      %563 = arith.mulf %562, %562 : vector<1x128xf32>
      %cst_101 = arith.constant 1.000000e+00 : f32
      %564 = vector.broadcast %cst_101 : f32 to vector<1x128xf32>
      %565 = arith.addf %564, %563 : vector<1x128xf32>
      %566 = math.rsqrt %565 : vector<1x128xf32>
      %567 = arith.mulf %562, %566 : vector<1x128xf32>
      %cst_102 = arith.constant 0.000000e+00 : f32
      %568 = vector.broadcast %cst_102 : f32 to vector<1x128xf32>
      %569 = arith.select %536, %568, %567 : vector<1x128xi1>, vector<1x128xf32>
      %cst_103 = arith.constant 1.000000e+00 : f32
      %570 = vector.broadcast %cst_103 : f32 to vector<1x128xf32>
      %571 = arith.select %536, %570, %566 : vector<1x128xi1>, vector<1x128xf32>
      %cst_104 = arith.constant 2.000000e+00 : f32
      %572 = vector.broadcast %cst_104 : f32 to vector<1x128xf32>
      %573 = arith.mulf %572, %571 : vector<1x128xf32>
      %574 = arith.mulf %573, %569 : vector<1x128xf32>
      %575 = arith.mulf %571, %571 : vector<1x128xf32>
      %576 = arith.mulf %575, %527 : vector<1x128xf32>
      %577 = arith.mulf %574, %534 : vector<1x128xf32>
      %578 = arith.subf %576, %577 : vector<1x128xf32>
      %579 = arith.mulf %569, %569 : vector<1x128xf32>
      %580 = arith.mulf %579, %528 : vector<1x128xf32>
      %581 = arith.addf %578, %580 : vector<1x128xf32>
      %582 = arith.mulf %569, %569 : vector<1x128xf32>
      %583 = arith.mulf %582, %527 : vector<1x128xf32>
      %584 = arith.mulf %574, %534 : vector<1x128xf32>
      %585 = arith.addf %583, %584 : vector<1x128xf32>
      %586 = arith.mulf %571, %571 : vector<1x128xf32>
      %587 = arith.mulf %586, %528 : vector<1x128xf32>
      %588 = arith.addf %585, %587 : vector<1x128xf32>
      %589 = vector.broadcast %543 : vector<1x128xf32> to vector<5x128xf32>
      %590 = arith.mulf %589, %520 : vector<5x128xf32>
      %591 = vector.broadcast %546 : vector<1x128xf32> to vector<5x128xf32>
      %592 = arith.mulf %591, %522 : vector<5x128xf32>
      %593 = arith.addf %590, %592 : vector<5x128xf32>
      %594 = vector.broadcast %543 : vector<1x128xf32> to vector<5x128xf32>
      %595 = arith.mulf %594, %522 : vector<5x128xf32>
      %596 = vector.broadcast %546 : vector<1x128xf32> to vector<5x128xf32>
      %597 = arith.mulf %596, %520 : vector<5x128xf32>
      %598 = arith.subf %595, %597 : vector<5x128xf32>
      %599 = vector.broadcast %571 : vector<1x128xf32> to vector<5x128xf32>
      %600 = arith.mulf %599, %593 : vector<5x128xf32>
      %601 = vector.broadcast %569 : vector<1x128xf32> to vector<5x128xf32>
      %602 = arith.mulf %601, %524 : vector<5x128xf32>
      %603 = arith.subf %600, %602 : vector<5x128xf32>
      %604 = vector.broadcast %571 : vector<1x128xf32> to vector<5x128xf32>
      %605 = arith.mulf %604, %598 : vector<5x128xf32>
      %606 = vector.broadcast %569 : vector<1x128xf32> to vector<5x128xf32>
      %607 = arith.mulf %606, %526 : vector<5x128xf32>
      %608 = arith.subf %605, %607 : vector<5x128xf32>
      %609 = vector.broadcast %569 : vector<1x128xf32> to vector<5x128xf32>
      %610 = arith.mulf %609, %593 : vector<5x128xf32>
      %611 = vector.broadcast %571 : vector<1x128xf32> to vector<5x128xf32>
      %612 = arith.mulf %611, %524 : vector<5x128xf32>
      %613 = arith.addf %610, %612 : vector<5x128xf32>
      %614 = vector.broadcast %569 : vector<1x128xf32> to vector<5x128xf32>
      %615 = arith.mulf %614, %598 : vector<5x128xf32>
      %616 = vector.broadcast %571 : vector<1x128xf32> to vector<5x128xf32>
      %617 = arith.mulf %616, %526 : vector<5x128xf32>
      %618 = arith.addf %615, %617 : vector<5x128xf32>
      %c0_i32_105 = arith.constant 0 : i32
      %619 = vector.broadcast %c0_i32_105 : i32 to vector<5x1xi32>
      %620 = arith.cmpi eq, %52, %619 : vector<5x1xi32>
      %c3_i32 = arith.constant 3 : i32
      %621 = vector.broadcast %c3_i32 : i32 to vector<5x1xi32>
      %622 = arith.cmpi eq, %52, %621 : vector<5x1xi32>
      %623 = arith.ori %620, %622 : vector<5x1xi1>
      %cst_106 = arith.constant 0.000000e+00 : f32
      %624 = vector.shape_cast %622 : vector<5x1xi1> to vector<5x1xi1>
      %625 = vector.broadcast %624 : vector<5x1xi1> to vector<5x128xi1>
      %626 = vector.broadcast %cst_106 : f32 to vector<5x128xf32>
      %627 = arith.select %625, %626, %603 : vector<5x128xi1>, vector<5x128xf32>
      %628 = vector.shape_cast %620 : vector<5x1xi1> to vector<5x1xi1>
      %629 = vector.broadcast %628 : vector<5x1xi1> to vector<5x128xi1>
      %630 = vector.shape_cast %581 : vector<1x128xf32> to vector<1x128xf32>
      %631 = vector.broadcast %630 : vector<1x128xf32> to vector<5x128xf32>
      %632 = arith.select %629, %631, %627 : vector<5x128xi1>, vector<5x128xf32>
      %cst_107 = arith.constant 0.000000e+00 : f32
      %633 = vector.shape_cast %620 : vector<5x1xi1> to vector<5x1xi1>
      %634 = vector.broadcast %633 : vector<5x1xi1> to vector<5x128xi1>
      %635 = vector.broadcast %cst_107 : f32 to vector<5x128xf32>
      %636 = arith.select %634, %635, %613 : vector<5x128xi1>, vector<5x128xf32>
      %637 = vector.shape_cast %622 : vector<5x1xi1> to vector<5x1xi1>
      %638 = vector.broadcast %637 : vector<5x1xi1> to vector<5x128xi1>
      %639 = vector.shape_cast %588 : vector<1x128xf32> to vector<1x128xf32>
      %640 = vector.broadcast %639 : vector<1x128xf32> to vector<5x128xf32>
      %641 = arith.select %638, %640, %636 : vector<5x128xi1>, vector<5x128xf32>
      %cst_108 = arith.constant 0.000000e+00 : f32
      %642 = vector.shape_cast %623 : vector<5x1xi1> to vector<5x1xi1>
      %643 = vector.broadcast %642 : vector<5x1xi1> to vector<5x128xi1>
      %644 = vector.broadcast %cst_108 : f32 to vector<5x128xf32>
      %645 = arith.select %643, %644, %608 : vector<5x128xi1>, vector<5x128xf32>
      %cst_109 = arith.constant 0.000000e+00 : f32
      %646 = vector.shape_cast %623 : vector<5x1xi1> to vector<5x1xi1>
      %647 = vector.broadcast %646 : vector<5x1xi1> to vector<5x128xi1>
      %648 = vector.broadcast %cst_109 : f32 to vector<5x128xf32>
      %649 = arith.select %647, %648, %618 : vector<5x128xi1>, vector<5x128xf32>
      %650 = vector.shape_cast %543 : vector<1x128xf32> to vector<1x1x128xf32>
      %651 = vector.shape_cast %546 : vector<1x128xf32> to vector<1x1x128xf32>
      %652 = vector.shape_cast %571 : vector<1x128xf32> to vector<1x1x128xf32>
      %653 = vector.shape_cast %569 : vector<1x128xf32> to vector<1x1x128xf32>
      %654 = vector.extract_strided_slice %506 {offsets = [0, 0, 0], sizes = [5, 1, 128], strides = [1, 1, 1]} : vector<5x5x128xf32> to vector<5x1x128xf32>
      %655 = vector.extract_strided_slice %518 {offsets = [0, 0, 0], sizes = [5, 1, 128], strides = [1, 1, 1]} : vector<5x5x128xf32> to vector<5x1x128xf32>
      %656 = vector.extract_strided_slice %506 {offsets = [0, 3, 0], sizes = [5, 1, 128], strides = [1, 1, 1]} : vector<5x5x128xf32> to vector<5x1x128xf32>
      %657 = vector.extract_strided_slice %518 {offsets = [0, 3, 0], sizes = [5, 1, 128], strides = [1, 1, 1]} : vector<5x5x128xf32> to vector<5x1x128xf32>
      %658 = vector.broadcast %650 : vector<1x1x128xf32> to vector<5x1x128xf32>
      %659 = arith.mulf %658, %654 : vector<5x1x128xf32>
      %660 = vector.broadcast %651 : vector<1x1x128xf32> to vector<5x1x128xf32>
      %661 = arith.mulf %660, %655 : vector<5x1x128xf32>
      %662 = arith.subf %659, %661 : vector<5x1x128xf32>
      %663 = vector.broadcast %650 : vector<1x1x128xf32> to vector<5x1x128xf32>
      %664 = arith.mulf %663, %655 : vector<5x1x128xf32>
      %665 = vector.broadcast %651 : vector<1x1x128xf32> to vector<5x1x128xf32>
      %666 = arith.mulf %665, %654 : vector<5x1x128xf32>
      %667 = arith.addf %664, %666 : vector<5x1x128xf32>
      %668 = vector.broadcast %652 : vector<1x1x128xf32> to vector<5x1x128xf32>
      %669 = arith.mulf %668, %662 : vector<5x1x128xf32>
      %670 = vector.broadcast %653 : vector<1x1x128xf32> to vector<5x1x128xf32>
      %671 = arith.mulf %670, %656 : vector<5x1x128xf32>
      %672 = arith.subf %669, %671 : vector<5x1x128xf32>
      %673 = vector.broadcast %652 : vector<1x1x128xf32> to vector<5x1x128xf32>
      %674 = arith.mulf %673, %667 : vector<5x1x128xf32>
      %675 = vector.broadcast %653 : vector<1x1x128xf32> to vector<5x1x128xf32>
      %676 = arith.mulf %675, %657 : vector<5x1x128xf32>
      %677 = arith.subf %674, %676 : vector<5x1x128xf32>
      %678 = vector.broadcast %653 : vector<1x1x128xf32> to vector<5x1x128xf32>
      %679 = arith.mulf %678, %662 : vector<5x1x128xf32>
      %680 = vector.broadcast %652 : vector<1x1x128xf32> to vector<5x1x128xf32>
      %681 = arith.mulf %680, %656 : vector<5x1x128xf32>
      %682 = arith.addf %679, %681 : vector<5x1x128xf32>
      %683 = vector.broadcast %653 : vector<1x1x128xf32> to vector<5x1x128xf32>
      %684 = arith.mulf %683, %667 : vector<5x1x128xf32>
      %685 = vector.broadcast %652 : vector<1x1x128xf32> to vector<5x1x128xf32>
      %686 = arith.mulf %685, %657 : vector<5x1x128xf32>
      %687 = arith.addf %684, %686 : vector<5x1x128xf32>
      %c0_i32_110 = arith.constant 0 : i32
      %688 = vector.broadcast %c0_i32_110 : i32 to vector<1x5x1xi32>
      %689 = arith.cmpi eq, %54, %688 : vector<1x5x1xi32>
      %c3_i32_111 = arith.constant 3 : i32
      %690 = vector.broadcast %c3_i32_111 : i32 to vector<1x5x1xi32>
      %691 = arith.cmpi eq, %54, %690 : vector<1x5x1xi32>
      %692 = vector.shape_cast %691 : vector<1x5x1xi1> to vector<1x5x1xi1>
      %693 = vector.broadcast %692 : vector<1x5x1xi1> to vector<5x5x128xi1>
      %694 = vector.shape_cast %682 : vector<5x1x128xf32> to vector<5x1x128xf32>
      %695 = vector.broadcast %694 : vector<5x1x128xf32> to vector<5x5x128xf32>
      %696 = arith.select %693, %695, %506 : vector<5x5x128xi1>, vector<5x5x128xf32>
      %697 = vector.shape_cast %689 : vector<1x5x1xi1> to vector<1x5x1xi1>
      %698 = vector.broadcast %697 : vector<1x5x1xi1> to vector<5x5x128xi1>
      %699 = vector.shape_cast %672 : vector<5x1x128xf32> to vector<5x1x128xf32>
      %700 = vector.broadcast %699 : vector<5x1x128xf32> to vector<5x5x128xf32>
      %701 = arith.select %698, %700, %696 : vector<5x5x128xi1>, vector<5x5x128xf32>
      %702 = vector.shape_cast %691 : vector<1x5x1xi1> to vector<1x5x1xi1>
      %703 = vector.broadcast %702 : vector<1x5x1xi1> to vector<5x5x128xi1>
      %704 = vector.shape_cast %687 : vector<5x1x128xf32> to vector<5x1x128xf32>
      %705 = vector.broadcast %704 : vector<5x1x128xf32> to vector<5x5x128xf32>
      %706 = arith.select %703, %705, %518 : vector<5x5x128xi1>, vector<5x5x128xf32>
      %707 = vector.shape_cast %689 : vector<1x5x1xi1> to vector<1x5x1xi1>
      %708 = vector.broadcast %707 : vector<1x5x1xi1> to vector<5x5x128xi1>
      %709 = vector.shape_cast %677 : vector<5x1x128xf32> to vector<5x1x128xf32>
      %710 = vector.broadcast %709 : vector<5x1x128xf32> to vector<5x5x128xf32>
      %711 = arith.select %708, %710, %706 : vector<5x5x128xi1>, vector<5x5x128xf32>
      %c0_i32_112 = arith.constant 0 : i32
      %712 = vector.broadcast %c0_i32_112 : i32 to vector<5x1x1xi32>
      %713 = arith.cmpi eq, %53, %712 : vector<5x1x1xi32>
      %c3_i32_113 = arith.constant 3 : i32
      %714 = vector.broadcast %c3_i32_113 : i32 to vector<5x1x1xi32>
      %715 = arith.cmpi eq, %53, %714 : vector<5x1x1xi32>
      %716 = vector.shape_cast %632 : vector<5x128xf32> to vector<1x5x128xf32>
      %717 = vector.shape_cast %641 : vector<5x128xf32> to vector<1x5x128xf32>
      %718 = vector.shape_cast %715 : vector<5x1x1xi1> to vector<5x1x1xi1>
      %719 = vector.broadcast %718 : vector<5x1x1xi1> to vector<5x5x128xi1>
      %720 = vector.shape_cast %717 : vector<1x5x128xf32> to vector<1x5x128xf32>
      %721 = vector.broadcast %720 : vector<1x5x128xf32> to vector<5x5x128xf32>
      %722 = arith.select %719, %721, %701 : vector<5x5x128xi1>, vector<5x5x128xf32>
      %723 = vector.shape_cast %713 : vector<5x1x1xi1> to vector<5x1x1xi1>
      %724 = vector.broadcast %723 : vector<5x1x1xi1> to vector<5x5x128xi1>
      %725 = vector.shape_cast %716 : vector<1x5x128xf32> to vector<1x5x128xf32>
      %726 = vector.broadcast %725 : vector<1x5x128xf32> to vector<5x5x128xf32>
      %727 = arith.select %724, %726, %722 : vector<5x5x128xi1>, vector<5x5x128xf32>
      %728 = vector.shape_cast %645 : vector<5x128xf32> to vector<1x5x128xf32>
      %729 = vector.shape_cast %649 : vector<5x128xf32> to vector<1x5x128xf32>
      %730 = vector.shape_cast %715 : vector<5x1x1xi1> to vector<5x1x1xi1>
      %731 = vector.broadcast %730 : vector<5x1x1xi1> to vector<5x5x128xi1>
      %732 = vector.shape_cast %729 : vector<1x5x128xf32> to vector<1x5x128xf32>
      %733 = vector.broadcast %732 : vector<1x5x128xf32> to vector<5x5x128xf32>
      %734 = arith.select %731, %733, %711 : vector<5x5x128xi1>, vector<5x5x128xf32>
      %735 = vector.shape_cast %713 : vector<5x1x1xi1> to vector<5x1x1xi1>
      %736 = vector.broadcast %735 : vector<5x1x1xi1> to vector<5x5x128xi1>
      %737 = vector.shape_cast %728 : vector<1x5x128xf32> to vector<1x5x128xf32>
      %738 = vector.broadcast %737 : vector<1x5x128xf32> to vector<5x5x128xf32>
      %739 = arith.select %736, %738, %734 : vector<5x5x128xi1>, vector<5x5x128xf32>
      %740 = vector.extract_strided_slice %727 {offsets = [0, 0, 0], sizes = [1, 5, 128], strides = [1, 1, 1]} : vector<5x5x128xf32> to vector<1x5x128xf32>
      %741 = vector.shape_cast %740 : vector<1x5x128xf32> to vector<5x128xf32>
      %742 = vector.extract_strided_slice %739 {offsets = [0, 0, 0], sizes = [1, 5, 128], strides = [1, 1, 1]} : vector<5x5x128xf32> to vector<1x5x128xf32>
      %743 = vector.shape_cast %742 : vector<1x5x128xf32> to vector<5x128xf32>
      %744 = vector.extract_strided_slice %727 {offsets = [4, 0, 0], sizes = [1, 5, 128], strides = [1, 1, 1]} : vector<5x5x128xf32> to vector<1x5x128xf32>
      %745 = vector.shape_cast %744 : vector<1x5x128xf32> to vector<5x128xf32>
      %746 = vector.extract_strided_slice %739 {offsets = [4, 0, 0], sizes = [1, 5, 128], strides = [1, 1, 1]} : vector<5x5x128xf32> to vector<1x5x128xf32>
      %747 = vector.shape_cast %746 : vector<1x5x128xf32> to vector<5x128xf32>
      %748 = vector.extract_strided_slice %741 {offsets = [0, 0], sizes = [1, 128], strides = [1, 1]} : vector<5x128xf32> to vector<1x128xf32>
      %749 = vector.extract_strided_slice %745 {offsets = [4, 0], sizes = [1, 128], strides = [1, 1]} : vector<5x128xf32> to vector<1x128xf32>
      %750 = vector.extract_strided_slice %741 {offsets = [4, 0], sizes = [1, 128], strides = [1, 1]} : vector<5x128xf32> to vector<1x128xf32>
      %751 = vector.extract_strided_slice %743 {offsets = [4, 0], sizes = [1, 128], strides = [1, 1]} : vector<5x128xf32> to vector<1x128xf32>
      %752 = arith.mulf %750, %750 : vector<1x128xf32>
      %753 = arith.mulf %751, %751 : vector<1x128xf32>
      %754 = arith.addf %752, %753 : vector<1x128xf32>
      %755 = math.sqrt %754 : vector<1x128xf32>
      %cst_114 = arith.constant 1.000000e-10 : f32
      %756 = vector.broadcast %cst_114 : f32 to vector<1x128xf32>
      %757 = arith.cmpf ole, %755, %756 : vector<1x128xf32>
      %cst_115 = arith.constant 1.000000e+00 : f32
      %758 = vector.broadcast %cst_115 : f32 to vector<1x128xf32>
      %759 = arith.select %757, %758, %755 : vector<1x128xi1>, vector<1x128xf32>
      %cst_116 = arith.constant 1.000000e+00 : f32
      %760 = vector.broadcast %cst_116 : f32 to vector<1x128xf32>
      %761 = arith.divf %760, %759 : vector<1x128xf32>
      %762 = arith.mulf %750, %761 : vector<1x128xf32>
      %cst_117 = arith.constant 1.000000e+00 : f32
      %763 = vector.broadcast %cst_117 : f32 to vector<1x128xf32>
      %764 = arith.select %757, %763, %762 : vector<1x128xi1>, vector<1x128xf32>
      %765 = arith.mulf %751, %761 : vector<1x128xf32>
      %cst_118 = arith.constant 0.000000e+00 : f32
      %766 = vector.broadcast %cst_118 : f32 to vector<1x128xf32>
      %767 = arith.select %757, %766, %765 : vector<1x128xi1>, vector<1x128xf32>
      %768 = arith.subf %749, %748 : vector<1x128xf32>
      %cst_119 = arith.constant 5.000000e-01 : f32
      %769 = vector.broadcast %cst_119 : f32 to vector<1x128xf32>
      %770 = arith.mulf %769, %761 : vector<1x128xf32>
      %771 = arith.mulf %768, %770 : vector<1x128xf32>
      %cst_120 = arith.constant 0.000000e+00 : f32
      %772 = vector.broadcast %cst_120 : f32 to vector<1x128xf32>
      %773 = arith.cmpf oge, %771, %772 : vector<1x128xf32>
      %cst_121 = arith.constant 1.000000e+00 : f32
      %cst_122 = arith.constant -1.000000e+00 : f32
      %774 = vector.broadcast %cst_121 : f32 to vector<1x128xf32>
      %775 = vector.broadcast %cst_122 : f32 to vector<1x128xf32>
      %776 = arith.select %773, %774, %775 : vector<1x128xi1>, vector<1x128xf32>
      %777 = math.absf %771 : vector<1x128xf32>
      %778 = arith.mulf %771, %771 : vector<1x128xf32>
      %cst_123 = arith.constant 1.000000e+00 : f32
      %779 = vector.broadcast %cst_123 : f32 to vector<1x128xf32>
      %780 = arith.addf %779, %778 : vector<1x128xf32>
      %781 = math.sqrt %780 : vector<1x128xf32>
      %782 = arith.addf %777, %781 : vector<1x128xf32>
      %783 = arith.divf %776, %782 : vector<1x128xf32>
      %784 = arith.mulf %783, %783 : vector<1x128xf32>
      %cst_124 = arith.constant 1.000000e+00 : f32
      %785 = vector.broadcast %cst_124 : f32 to vector<1x128xf32>
      %786 = arith.addf %785, %784 : vector<1x128xf32>
      %787 = math.rsqrt %786 : vector<1x128xf32>
      %788 = arith.mulf %783, %787 : vector<1x128xf32>
      %cst_125 = arith.constant 0.000000e+00 : f32
      %789 = vector.broadcast %cst_125 : f32 to vector<1x128xf32>
      %790 = arith.select %757, %789, %788 : vector<1x128xi1>, vector<1x128xf32>
      %cst_126 = arith.constant 1.000000e+00 : f32
      %791 = vector.broadcast %cst_126 : f32 to vector<1x128xf32>
      %792 = arith.select %757, %791, %787 : vector<1x128xi1>, vector<1x128xf32>
      %cst_127 = arith.constant 2.000000e+00 : f32
      %793 = vector.broadcast %cst_127 : f32 to vector<1x128xf32>
      %794 = arith.mulf %793, %792 : vector<1x128xf32>
      %795 = arith.mulf %794, %790 : vector<1x128xf32>
      %796 = arith.mulf %792, %792 : vector<1x128xf32>
      %797 = arith.mulf %796, %748 : vector<1x128xf32>
      %798 = arith.mulf %795, %755 : vector<1x128xf32>
      %799 = arith.subf %797, %798 : vector<1x128xf32>
      %800 = arith.mulf %790, %790 : vector<1x128xf32>
      %801 = arith.mulf %800, %749 : vector<1x128xf32>
      %802 = arith.addf %799, %801 : vector<1x128xf32>
      %803 = arith.mulf %790, %790 : vector<1x128xf32>
      %804 = arith.mulf %803, %748 : vector<1x128xf32>
      %805 = arith.mulf %795, %755 : vector<1x128xf32>
      %806 = arith.addf %804, %805 : vector<1x128xf32>
      %807 = arith.mulf %792, %792 : vector<1x128xf32>
      %808 = arith.mulf %807, %749 : vector<1x128xf32>
      %809 = arith.addf %806, %808 : vector<1x128xf32>
      %810 = vector.broadcast %764 : vector<1x128xf32> to vector<5x128xf32>
      %811 = arith.mulf %810, %741 : vector<5x128xf32>
      %812 = vector.broadcast %767 : vector<1x128xf32> to vector<5x128xf32>
      %813 = arith.mulf %812, %743 : vector<5x128xf32>
      %814 = arith.addf %811, %813 : vector<5x128xf32>
      %815 = vector.broadcast %764 : vector<1x128xf32> to vector<5x128xf32>
      %816 = arith.mulf %815, %743 : vector<5x128xf32>
      %817 = vector.broadcast %767 : vector<1x128xf32> to vector<5x128xf32>
      %818 = arith.mulf %817, %741 : vector<5x128xf32>
      %819 = arith.subf %816, %818 : vector<5x128xf32>
      %820 = vector.broadcast %792 : vector<1x128xf32> to vector<5x128xf32>
      %821 = arith.mulf %820, %814 : vector<5x128xf32>
      %822 = vector.broadcast %790 : vector<1x128xf32> to vector<5x128xf32>
      %823 = arith.mulf %822, %745 : vector<5x128xf32>
      %824 = arith.subf %821, %823 : vector<5x128xf32>
      %825 = vector.broadcast %792 : vector<1x128xf32> to vector<5x128xf32>
      %826 = arith.mulf %825, %819 : vector<5x128xf32>
      %827 = vector.broadcast %790 : vector<1x128xf32> to vector<5x128xf32>
      %828 = arith.mulf %827, %747 : vector<5x128xf32>
      %829 = arith.subf %826, %828 : vector<5x128xf32>
      %830 = vector.broadcast %790 : vector<1x128xf32> to vector<5x128xf32>
      %831 = arith.mulf %830, %814 : vector<5x128xf32>
      %832 = vector.broadcast %792 : vector<1x128xf32> to vector<5x128xf32>
      %833 = arith.mulf %832, %745 : vector<5x128xf32>
      %834 = arith.addf %831, %833 : vector<5x128xf32>
      %835 = vector.broadcast %790 : vector<1x128xf32> to vector<5x128xf32>
      %836 = arith.mulf %835, %819 : vector<5x128xf32>
      %837 = vector.broadcast %792 : vector<1x128xf32> to vector<5x128xf32>
      %838 = arith.mulf %837, %747 : vector<5x128xf32>
      %839 = arith.addf %836, %838 : vector<5x128xf32>
      %c0_i32_128 = arith.constant 0 : i32
      %840 = vector.broadcast %c0_i32_128 : i32 to vector<5x1xi32>
      %841 = arith.cmpi eq, %52, %840 : vector<5x1xi32>
      %c4_i32 = arith.constant 4 : i32
      %842 = vector.broadcast %c4_i32 : i32 to vector<5x1xi32>
      %843 = arith.cmpi eq, %52, %842 : vector<5x1xi32>
      %844 = arith.ori %841, %843 : vector<5x1xi1>
      %cst_129 = arith.constant 0.000000e+00 : f32
      %845 = vector.shape_cast %843 : vector<5x1xi1> to vector<5x1xi1>
      %846 = vector.broadcast %845 : vector<5x1xi1> to vector<5x128xi1>
      %847 = vector.broadcast %cst_129 : f32 to vector<5x128xf32>
      %848 = arith.select %846, %847, %824 : vector<5x128xi1>, vector<5x128xf32>
      %849 = vector.shape_cast %841 : vector<5x1xi1> to vector<5x1xi1>
      %850 = vector.broadcast %849 : vector<5x1xi1> to vector<5x128xi1>
      %851 = vector.shape_cast %802 : vector<1x128xf32> to vector<1x128xf32>
      %852 = vector.broadcast %851 : vector<1x128xf32> to vector<5x128xf32>
      %853 = arith.select %850, %852, %848 : vector<5x128xi1>, vector<5x128xf32>
      %cst_130 = arith.constant 0.000000e+00 : f32
      %854 = vector.shape_cast %841 : vector<5x1xi1> to vector<5x1xi1>
      %855 = vector.broadcast %854 : vector<5x1xi1> to vector<5x128xi1>
      %856 = vector.broadcast %cst_130 : f32 to vector<5x128xf32>
      %857 = arith.select %855, %856, %834 : vector<5x128xi1>, vector<5x128xf32>
      %858 = vector.shape_cast %843 : vector<5x1xi1> to vector<5x1xi1>
      %859 = vector.broadcast %858 : vector<5x1xi1> to vector<5x128xi1>
      %860 = vector.shape_cast %809 : vector<1x128xf32> to vector<1x128xf32>
      %861 = vector.broadcast %860 : vector<1x128xf32> to vector<5x128xf32>
      %862 = arith.select %859, %861, %857 : vector<5x128xi1>, vector<5x128xf32>
      %cst_131 = arith.constant 0.000000e+00 : f32
      %863 = vector.shape_cast %844 : vector<5x1xi1> to vector<5x1xi1>
      %864 = vector.broadcast %863 : vector<5x1xi1> to vector<5x128xi1>
      %865 = vector.broadcast %cst_131 : f32 to vector<5x128xf32>
      %866 = arith.select %864, %865, %829 : vector<5x128xi1>, vector<5x128xf32>
      %cst_132 = arith.constant 0.000000e+00 : f32
      %867 = vector.shape_cast %844 : vector<5x1xi1> to vector<5x1xi1>
      %868 = vector.broadcast %867 : vector<5x1xi1> to vector<5x128xi1>
      %869 = vector.broadcast %cst_132 : f32 to vector<5x128xf32>
      %870 = arith.select %868, %869, %839 : vector<5x128xi1>, vector<5x128xf32>
      %871 = vector.shape_cast %764 : vector<1x128xf32> to vector<1x1x128xf32>
      %872 = vector.shape_cast %767 : vector<1x128xf32> to vector<1x1x128xf32>
      %873 = vector.shape_cast %792 : vector<1x128xf32> to vector<1x1x128xf32>
      %874 = vector.shape_cast %790 : vector<1x128xf32> to vector<1x1x128xf32>
      %875 = vector.extract_strided_slice %727 {offsets = [0, 0, 0], sizes = [5, 1, 128], strides = [1, 1, 1]} : vector<5x5x128xf32> to vector<5x1x128xf32>
      %876 = vector.extract_strided_slice %739 {offsets = [0, 0, 0], sizes = [5, 1, 128], strides = [1, 1, 1]} : vector<5x5x128xf32> to vector<5x1x128xf32>
      %877 = vector.extract_strided_slice %727 {offsets = [0, 4, 0], sizes = [5, 1, 128], strides = [1, 1, 1]} : vector<5x5x128xf32> to vector<5x1x128xf32>
      %878 = vector.extract_strided_slice %739 {offsets = [0, 4, 0], sizes = [5, 1, 128], strides = [1, 1, 1]} : vector<5x5x128xf32> to vector<5x1x128xf32>
      %879 = vector.broadcast %871 : vector<1x1x128xf32> to vector<5x1x128xf32>
      %880 = arith.mulf %879, %875 : vector<5x1x128xf32>
      %881 = vector.broadcast %872 : vector<1x1x128xf32> to vector<5x1x128xf32>
      %882 = arith.mulf %881, %876 : vector<5x1x128xf32>
      %883 = arith.subf %880, %882 : vector<5x1x128xf32>
      %884 = vector.broadcast %871 : vector<1x1x128xf32> to vector<5x1x128xf32>
      %885 = arith.mulf %884, %876 : vector<5x1x128xf32>
      %886 = vector.broadcast %872 : vector<1x1x128xf32> to vector<5x1x128xf32>
      %887 = arith.mulf %886, %875 : vector<5x1x128xf32>
      %888 = arith.addf %885, %887 : vector<5x1x128xf32>
      %889 = vector.broadcast %873 : vector<1x1x128xf32> to vector<5x1x128xf32>
      %890 = arith.mulf %889, %883 : vector<5x1x128xf32>
      %891 = vector.broadcast %874 : vector<1x1x128xf32> to vector<5x1x128xf32>
      %892 = arith.mulf %891, %877 : vector<5x1x128xf32>
      %893 = arith.subf %890, %892 : vector<5x1x128xf32>
      %894 = vector.broadcast %873 : vector<1x1x128xf32> to vector<5x1x128xf32>
      %895 = arith.mulf %894, %888 : vector<5x1x128xf32>
      %896 = vector.broadcast %874 : vector<1x1x128xf32> to vector<5x1x128xf32>
      %897 = arith.mulf %896, %878 : vector<5x1x128xf32>
      %898 = arith.subf %895, %897 : vector<5x1x128xf32>
      %899 = vector.broadcast %874 : vector<1x1x128xf32> to vector<5x1x128xf32>
      %900 = arith.mulf %899, %883 : vector<5x1x128xf32>
      %901 = vector.broadcast %873 : vector<1x1x128xf32> to vector<5x1x128xf32>
      %902 = arith.mulf %901, %877 : vector<5x1x128xf32>
      %903 = arith.addf %900, %902 : vector<5x1x128xf32>
      %904 = vector.broadcast %874 : vector<1x1x128xf32> to vector<5x1x128xf32>
      %905 = arith.mulf %904, %888 : vector<5x1x128xf32>
      %906 = vector.broadcast %873 : vector<1x1x128xf32> to vector<5x1x128xf32>
      %907 = arith.mulf %906, %878 : vector<5x1x128xf32>
      %908 = arith.addf %905, %907 : vector<5x1x128xf32>
      %c0_i32_133 = arith.constant 0 : i32
      %909 = vector.broadcast %c0_i32_133 : i32 to vector<1x5x1xi32>
      %910 = arith.cmpi eq, %54, %909 : vector<1x5x1xi32>
      %c4_i32_134 = arith.constant 4 : i32
      %911 = vector.broadcast %c4_i32_134 : i32 to vector<1x5x1xi32>
      %912 = arith.cmpi eq, %54, %911 : vector<1x5x1xi32>
      %913 = vector.shape_cast %912 : vector<1x5x1xi1> to vector<1x5x1xi1>
      %914 = vector.broadcast %913 : vector<1x5x1xi1> to vector<5x5x128xi1>
      %915 = vector.shape_cast %903 : vector<5x1x128xf32> to vector<5x1x128xf32>
      %916 = vector.broadcast %915 : vector<5x1x128xf32> to vector<5x5x128xf32>
      %917 = arith.select %914, %916, %727 : vector<5x5x128xi1>, vector<5x5x128xf32>
      %918 = vector.shape_cast %910 : vector<1x5x1xi1> to vector<1x5x1xi1>
      %919 = vector.broadcast %918 : vector<1x5x1xi1> to vector<5x5x128xi1>
      %920 = vector.shape_cast %893 : vector<5x1x128xf32> to vector<5x1x128xf32>
      %921 = vector.broadcast %920 : vector<5x1x128xf32> to vector<5x5x128xf32>
      %922 = arith.select %919, %921, %917 : vector<5x5x128xi1>, vector<5x5x128xf32>
      %923 = vector.shape_cast %912 : vector<1x5x1xi1> to vector<1x5x1xi1>
      %924 = vector.broadcast %923 : vector<1x5x1xi1> to vector<5x5x128xi1>
      %925 = vector.shape_cast %908 : vector<5x1x128xf32> to vector<5x1x128xf32>
      %926 = vector.broadcast %925 : vector<5x1x128xf32> to vector<5x5x128xf32>
      %927 = arith.select %924, %926, %739 : vector<5x5x128xi1>, vector<5x5x128xf32>
      %928 = vector.shape_cast %910 : vector<1x5x1xi1> to vector<1x5x1xi1>
      %929 = vector.broadcast %928 : vector<1x5x1xi1> to vector<5x5x128xi1>
      %930 = vector.shape_cast %898 : vector<5x1x128xf32> to vector<5x1x128xf32>
      %931 = vector.broadcast %930 : vector<5x1x128xf32> to vector<5x5x128xf32>
      %932 = arith.select %929, %931, %927 : vector<5x5x128xi1>, vector<5x5x128xf32>
      %c0_i32_135 = arith.constant 0 : i32
      %933 = vector.broadcast %c0_i32_135 : i32 to vector<5x1x1xi32>
      %934 = arith.cmpi eq, %53, %933 : vector<5x1x1xi32>
      %c4_i32_136 = arith.constant 4 : i32
      %935 = vector.broadcast %c4_i32_136 : i32 to vector<5x1x1xi32>
      %936 = arith.cmpi eq, %53, %935 : vector<5x1x1xi32>
      %937 = vector.shape_cast %853 : vector<5x128xf32> to vector<1x5x128xf32>
      %938 = vector.shape_cast %862 : vector<5x128xf32> to vector<1x5x128xf32>
      %939 = vector.shape_cast %936 : vector<5x1x1xi1> to vector<5x1x1xi1>
      %940 = vector.broadcast %939 : vector<5x1x1xi1> to vector<5x5x128xi1>
      %941 = vector.shape_cast %938 : vector<1x5x128xf32> to vector<1x5x128xf32>
      %942 = vector.broadcast %941 : vector<1x5x128xf32> to vector<5x5x128xf32>
      %943 = arith.select %940, %942, %922 : vector<5x5x128xi1>, vector<5x5x128xf32>
      %944 = vector.shape_cast %934 : vector<5x1x1xi1> to vector<5x1x1xi1>
      %945 = vector.broadcast %944 : vector<5x1x1xi1> to vector<5x5x128xi1>
      %946 = vector.shape_cast %937 : vector<1x5x128xf32> to vector<1x5x128xf32>
      %947 = vector.broadcast %946 : vector<1x5x128xf32> to vector<5x5x128xf32>
      %948 = arith.select %945, %947, %943 : vector<5x5x128xi1>, vector<5x5x128xf32>
      %949 = vector.shape_cast %866 : vector<5x128xf32> to vector<1x5x128xf32>
      %950 = vector.shape_cast %870 : vector<5x128xf32> to vector<1x5x128xf32>
      %951 = vector.shape_cast %936 : vector<5x1x1xi1> to vector<5x1x1xi1>
      %952 = vector.broadcast %951 : vector<5x1x1xi1> to vector<5x5x128xi1>
      %953 = vector.shape_cast %950 : vector<1x5x128xf32> to vector<1x5x128xf32>
      %954 = vector.broadcast %953 : vector<1x5x128xf32> to vector<5x5x128xf32>
      %955 = arith.select %952, %954, %932 : vector<5x5x128xi1>, vector<5x5x128xf32>
      %956 = vector.shape_cast %934 : vector<5x1x1xi1> to vector<5x1x1xi1>
      %957 = vector.broadcast %956 : vector<5x1x1xi1> to vector<5x5x128xi1>
      %958 = vector.shape_cast %949 : vector<1x5x128xf32> to vector<1x5x128xf32>
      %959 = vector.broadcast %958 : vector<1x5x128xf32> to vector<5x5x128xf32>
      %960 = arith.select %957, %959, %955 : vector<5x5x128xi1>, vector<5x5x128xf32>
      %961 = vector.extract_strided_slice %948 {offsets = [1, 0, 0], sizes = [1, 5, 128], strides = [1, 1, 1]} : vector<5x5x128xf32> to vector<1x5x128xf32>
      %962 = vector.shape_cast %961 : vector<1x5x128xf32> to vector<5x128xf32>
      %963 = vector.extract_strided_slice %960 {offsets = [1, 0, 0], sizes = [1, 5, 128], strides = [1, 1, 1]} : vector<5x5x128xf32> to vector<1x5x128xf32>
      %964 = vector.shape_cast %963 : vector<1x5x128xf32> to vector<5x128xf32>
      %965 = vector.extract_strided_slice %948 {offsets = [2, 0, 0], sizes = [1, 5, 128], strides = [1, 1, 1]} : vector<5x5x128xf32> to vector<1x5x128xf32>
      %966 = vector.shape_cast %965 : vector<1x5x128xf32> to vector<5x128xf32>
      %967 = vector.extract_strided_slice %960 {offsets = [2, 0, 0], sizes = [1, 5, 128], strides = [1, 1, 1]} : vector<5x5x128xf32> to vector<1x5x128xf32>
      %968 = vector.shape_cast %967 : vector<1x5x128xf32> to vector<5x128xf32>
      %969 = vector.extract_strided_slice %962 {offsets = [1, 0], sizes = [1, 128], strides = [1, 1]} : vector<5x128xf32> to vector<1x128xf32>
      %970 = vector.extract_strided_slice %966 {offsets = [2, 0], sizes = [1, 128], strides = [1, 1]} : vector<5x128xf32> to vector<1x128xf32>
      %971 = vector.extract_strided_slice %962 {offsets = [2, 0], sizes = [1, 128], strides = [1, 1]} : vector<5x128xf32> to vector<1x128xf32>
      %972 = vector.extract_strided_slice %964 {offsets = [2, 0], sizes = [1, 128], strides = [1, 1]} : vector<5x128xf32> to vector<1x128xf32>
      %973 = arith.mulf %971, %971 : vector<1x128xf32>
      %974 = arith.mulf %972, %972 : vector<1x128xf32>
      %975 = arith.addf %973, %974 : vector<1x128xf32>
      %976 = math.sqrt %975 : vector<1x128xf32>
      %cst_137 = arith.constant 1.000000e-10 : f32
      %977 = vector.broadcast %cst_137 : f32 to vector<1x128xf32>
      %978 = arith.cmpf ole, %976, %977 : vector<1x128xf32>
      %cst_138 = arith.constant 1.000000e+00 : f32
      %979 = vector.broadcast %cst_138 : f32 to vector<1x128xf32>
      %980 = arith.select %978, %979, %976 : vector<1x128xi1>, vector<1x128xf32>
      %cst_139 = arith.constant 1.000000e+00 : f32
      %981 = vector.broadcast %cst_139 : f32 to vector<1x128xf32>
      %982 = arith.divf %981, %980 : vector<1x128xf32>
      %983 = arith.mulf %971, %982 : vector<1x128xf32>
      %cst_140 = arith.constant 1.000000e+00 : f32
      %984 = vector.broadcast %cst_140 : f32 to vector<1x128xf32>
      %985 = arith.select %978, %984, %983 : vector<1x128xi1>, vector<1x128xf32>
      %986 = arith.mulf %972, %982 : vector<1x128xf32>
      %cst_141 = arith.constant 0.000000e+00 : f32
      %987 = vector.broadcast %cst_141 : f32 to vector<1x128xf32>
      %988 = arith.select %978, %987, %986 : vector<1x128xi1>, vector<1x128xf32>
      %989 = arith.subf %970, %969 : vector<1x128xf32>
      %cst_142 = arith.constant 5.000000e-01 : f32
      %990 = vector.broadcast %cst_142 : f32 to vector<1x128xf32>
      %991 = arith.mulf %990, %982 : vector<1x128xf32>
      %992 = arith.mulf %989, %991 : vector<1x128xf32>
      %cst_143 = arith.constant 0.000000e+00 : f32
      %993 = vector.broadcast %cst_143 : f32 to vector<1x128xf32>
      %994 = arith.cmpf oge, %992, %993 : vector<1x128xf32>
      %cst_144 = arith.constant 1.000000e+00 : f32
      %cst_145 = arith.constant -1.000000e+00 : f32
      %995 = vector.broadcast %cst_144 : f32 to vector<1x128xf32>
      %996 = vector.broadcast %cst_145 : f32 to vector<1x128xf32>
      %997 = arith.select %994, %995, %996 : vector<1x128xi1>, vector<1x128xf32>
      %998 = math.absf %992 : vector<1x128xf32>
      %999 = arith.mulf %992, %992 : vector<1x128xf32>
      %cst_146 = arith.constant 1.000000e+00 : f32
      %1000 = vector.broadcast %cst_146 : f32 to vector<1x128xf32>
      %1001 = arith.addf %1000, %999 : vector<1x128xf32>
      %1002 = math.sqrt %1001 : vector<1x128xf32>
      %1003 = arith.addf %998, %1002 : vector<1x128xf32>
      %1004 = arith.divf %997, %1003 : vector<1x128xf32>
      %1005 = arith.mulf %1004, %1004 : vector<1x128xf32>
      %cst_147 = arith.constant 1.000000e+00 : f32
      %1006 = vector.broadcast %cst_147 : f32 to vector<1x128xf32>
      %1007 = arith.addf %1006, %1005 : vector<1x128xf32>
      %1008 = math.rsqrt %1007 : vector<1x128xf32>
      %1009 = arith.mulf %1004, %1008 : vector<1x128xf32>
      %cst_148 = arith.constant 0.000000e+00 : f32
      %1010 = vector.broadcast %cst_148 : f32 to vector<1x128xf32>
      %1011 = arith.select %978, %1010, %1009 : vector<1x128xi1>, vector<1x128xf32>
      %cst_149 = arith.constant 1.000000e+00 : f32
      %1012 = vector.broadcast %cst_149 : f32 to vector<1x128xf32>
      %1013 = arith.select %978, %1012, %1008 : vector<1x128xi1>, vector<1x128xf32>
      %cst_150 = arith.constant 2.000000e+00 : f32
      %1014 = vector.broadcast %cst_150 : f32 to vector<1x128xf32>
      %1015 = arith.mulf %1014, %1013 : vector<1x128xf32>
      %1016 = arith.mulf %1015, %1011 : vector<1x128xf32>
      %1017 = arith.mulf %1013, %1013 : vector<1x128xf32>
      %1018 = arith.mulf %1017, %969 : vector<1x128xf32>
      %1019 = arith.mulf %1016, %976 : vector<1x128xf32>
      %1020 = arith.subf %1018, %1019 : vector<1x128xf32>
      %1021 = arith.mulf %1011, %1011 : vector<1x128xf32>
      %1022 = arith.mulf %1021, %970 : vector<1x128xf32>
      %1023 = arith.addf %1020, %1022 : vector<1x128xf32>
      %1024 = arith.mulf %1011, %1011 : vector<1x128xf32>
      %1025 = arith.mulf %1024, %969 : vector<1x128xf32>
      %1026 = arith.mulf %1016, %976 : vector<1x128xf32>
      %1027 = arith.addf %1025, %1026 : vector<1x128xf32>
      %1028 = arith.mulf %1013, %1013 : vector<1x128xf32>
      %1029 = arith.mulf %1028, %970 : vector<1x128xf32>
      %1030 = arith.addf %1027, %1029 : vector<1x128xf32>
      %1031 = vector.broadcast %985 : vector<1x128xf32> to vector<5x128xf32>
      %1032 = arith.mulf %1031, %962 : vector<5x128xf32>
      %1033 = vector.broadcast %988 : vector<1x128xf32> to vector<5x128xf32>
      %1034 = arith.mulf %1033, %964 : vector<5x128xf32>
      %1035 = arith.addf %1032, %1034 : vector<5x128xf32>
      %1036 = vector.broadcast %985 : vector<1x128xf32> to vector<5x128xf32>
      %1037 = arith.mulf %1036, %964 : vector<5x128xf32>
      %1038 = vector.broadcast %988 : vector<1x128xf32> to vector<5x128xf32>
      %1039 = arith.mulf %1038, %962 : vector<5x128xf32>
      %1040 = arith.subf %1037, %1039 : vector<5x128xf32>
      %1041 = vector.broadcast %1013 : vector<1x128xf32> to vector<5x128xf32>
      %1042 = arith.mulf %1041, %1035 : vector<5x128xf32>
      %1043 = vector.broadcast %1011 : vector<1x128xf32> to vector<5x128xf32>
      %1044 = arith.mulf %1043, %966 : vector<5x128xf32>
      %1045 = arith.subf %1042, %1044 : vector<5x128xf32>
      %1046 = vector.broadcast %1013 : vector<1x128xf32> to vector<5x128xf32>
      %1047 = arith.mulf %1046, %1040 : vector<5x128xf32>
      %1048 = vector.broadcast %1011 : vector<1x128xf32> to vector<5x128xf32>
      %1049 = arith.mulf %1048, %968 : vector<5x128xf32>
      %1050 = arith.subf %1047, %1049 : vector<5x128xf32>
      %1051 = vector.broadcast %1011 : vector<1x128xf32> to vector<5x128xf32>
      %1052 = arith.mulf %1051, %1035 : vector<5x128xf32>
      %1053 = vector.broadcast %1013 : vector<1x128xf32> to vector<5x128xf32>
      %1054 = arith.mulf %1053, %966 : vector<5x128xf32>
      %1055 = arith.addf %1052, %1054 : vector<5x128xf32>
      %1056 = vector.broadcast %1011 : vector<1x128xf32> to vector<5x128xf32>
      %1057 = arith.mulf %1056, %1040 : vector<5x128xf32>
      %1058 = vector.broadcast %1013 : vector<1x128xf32> to vector<5x128xf32>
      %1059 = arith.mulf %1058, %968 : vector<5x128xf32>
      %1060 = arith.addf %1057, %1059 : vector<5x128xf32>
      %c1_i32_151 = arith.constant 1 : i32
      %1061 = vector.broadcast %c1_i32_151 : i32 to vector<5x1xi32>
      %1062 = arith.cmpi eq, %52, %1061 : vector<5x1xi32>
      %c2_i32_152 = arith.constant 2 : i32
      %1063 = vector.broadcast %c2_i32_152 : i32 to vector<5x1xi32>
      %1064 = arith.cmpi eq, %52, %1063 : vector<5x1xi32>
      %1065 = arith.ori %1062, %1064 : vector<5x1xi1>
      %cst_153 = arith.constant 0.000000e+00 : f32
      %1066 = vector.shape_cast %1064 : vector<5x1xi1> to vector<5x1xi1>
      %1067 = vector.broadcast %1066 : vector<5x1xi1> to vector<5x128xi1>
      %1068 = vector.broadcast %cst_153 : f32 to vector<5x128xf32>
      %1069 = arith.select %1067, %1068, %1045 : vector<5x128xi1>, vector<5x128xf32>
      %1070 = vector.shape_cast %1062 : vector<5x1xi1> to vector<5x1xi1>
      %1071 = vector.broadcast %1070 : vector<5x1xi1> to vector<5x128xi1>
      %1072 = vector.shape_cast %1023 : vector<1x128xf32> to vector<1x128xf32>
      %1073 = vector.broadcast %1072 : vector<1x128xf32> to vector<5x128xf32>
      %1074 = arith.select %1071, %1073, %1069 : vector<5x128xi1>, vector<5x128xf32>
      %cst_154 = arith.constant 0.000000e+00 : f32
      %1075 = vector.shape_cast %1062 : vector<5x1xi1> to vector<5x1xi1>
      %1076 = vector.broadcast %1075 : vector<5x1xi1> to vector<5x128xi1>
      %1077 = vector.broadcast %cst_154 : f32 to vector<5x128xf32>
      %1078 = arith.select %1076, %1077, %1055 : vector<5x128xi1>, vector<5x128xf32>
      %1079 = vector.shape_cast %1064 : vector<5x1xi1> to vector<5x1xi1>
      %1080 = vector.broadcast %1079 : vector<5x1xi1> to vector<5x128xi1>
      %1081 = vector.shape_cast %1030 : vector<1x128xf32> to vector<1x128xf32>
      %1082 = vector.broadcast %1081 : vector<1x128xf32> to vector<5x128xf32>
      %1083 = arith.select %1080, %1082, %1078 : vector<5x128xi1>, vector<5x128xf32>
      %cst_155 = arith.constant 0.000000e+00 : f32
      %1084 = vector.shape_cast %1065 : vector<5x1xi1> to vector<5x1xi1>
      %1085 = vector.broadcast %1084 : vector<5x1xi1> to vector<5x128xi1>
      %1086 = vector.broadcast %cst_155 : f32 to vector<5x128xf32>
      %1087 = arith.select %1085, %1086, %1050 : vector<5x128xi1>, vector<5x128xf32>
      %cst_156 = arith.constant 0.000000e+00 : f32
      %1088 = vector.shape_cast %1065 : vector<5x1xi1> to vector<5x1xi1>
      %1089 = vector.broadcast %1088 : vector<5x1xi1> to vector<5x128xi1>
      %1090 = vector.broadcast %cst_156 : f32 to vector<5x128xf32>
      %1091 = arith.select %1089, %1090, %1060 : vector<5x128xi1>, vector<5x128xf32>
      %1092 = vector.shape_cast %985 : vector<1x128xf32> to vector<1x1x128xf32>
      %1093 = vector.shape_cast %988 : vector<1x128xf32> to vector<1x1x128xf32>
      %1094 = vector.shape_cast %1013 : vector<1x128xf32> to vector<1x1x128xf32>
      %1095 = vector.shape_cast %1011 : vector<1x128xf32> to vector<1x1x128xf32>
      %1096 = vector.extract_strided_slice %948 {offsets = [0, 1, 0], sizes = [5, 1, 128], strides = [1, 1, 1]} : vector<5x5x128xf32> to vector<5x1x128xf32>
      %1097 = vector.extract_strided_slice %960 {offsets = [0, 1, 0], sizes = [5, 1, 128], strides = [1, 1, 1]} : vector<5x5x128xf32> to vector<5x1x128xf32>
      %1098 = vector.extract_strided_slice %948 {offsets = [0, 2, 0], sizes = [5, 1, 128], strides = [1, 1, 1]} : vector<5x5x128xf32> to vector<5x1x128xf32>
      %1099 = vector.extract_strided_slice %960 {offsets = [0, 2, 0], sizes = [5, 1, 128], strides = [1, 1, 1]} : vector<5x5x128xf32> to vector<5x1x128xf32>
      %1100 = vector.broadcast %1092 : vector<1x1x128xf32> to vector<5x1x128xf32>
      %1101 = arith.mulf %1100, %1096 : vector<5x1x128xf32>
      %1102 = vector.broadcast %1093 : vector<1x1x128xf32> to vector<5x1x128xf32>
      %1103 = arith.mulf %1102, %1097 : vector<5x1x128xf32>
      %1104 = arith.subf %1101, %1103 : vector<5x1x128xf32>
      %1105 = vector.broadcast %1092 : vector<1x1x128xf32> to vector<5x1x128xf32>
      %1106 = arith.mulf %1105, %1097 : vector<5x1x128xf32>
      %1107 = vector.broadcast %1093 : vector<1x1x128xf32> to vector<5x1x128xf32>
      %1108 = arith.mulf %1107, %1096 : vector<5x1x128xf32>
      %1109 = arith.addf %1106, %1108 : vector<5x1x128xf32>
      %1110 = vector.broadcast %1094 : vector<1x1x128xf32> to vector<5x1x128xf32>
      %1111 = arith.mulf %1110, %1104 : vector<5x1x128xf32>
      %1112 = vector.broadcast %1095 : vector<1x1x128xf32> to vector<5x1x128xf32>
      %1113 = arith.mulf %1112, %1098 : vector<5x1x128xf32>
      %1114 = arith.subf %1111, %1113 : vector<5x1x128xf32>
      %1115 = vector.broadcast %1094 : vector<1x1x128xf32> to vector<5x1x128xf32>
      %1116 = arith.mulf %1115, %1109 : vector<5x1x128xf32>
      %1117 = vector.broadcast %1095 : vector<1x1x128xf32> to vector<5x1x128xf32>
      %1118 = arith.mulf %1117, %1099 : vector<5x1x128xf32>
      %1119 = arith.subf %1116, %1118 : vector<5x1x128xf32>
      %1120 = vector.broadcast %1095 : vector<1x1x128xf32> to vector<5x1x128xf32>
      %1121 = arith.mulf %1120, %1104 : vector<5x1x128xf32>
      %1122 = vector.broadcast %1094 : vector<1x1x128xf32> to vector<5x1x128xf32>
      %1123 = arith.mulf %1122, %1098 : vector<5x1x128xf32>
      %1124 = arith.addf %1121, %1123 : vector<5x1x128xf32>
      %1125 = vector.broadcast %1095 : vector<1x1x128xf32> to vector<5x1x128xf32>
      %1126 = arith.mulf %1125, %1109 : vector<5x1x128xf32>
      %1127 = vector.broadcast %1094 : vector<1x1x128xf32> to vector<5x1x128xf32>
      %1128 = arith.mulf %1127, %1099 : vector<5x1x128xf32>
      %1129 = arith.addf %1126, %1128 : vector<5x1x128xf32>
      %c1_i32_157 = arith.constant 1 : i32
      %1130 = vector.broadcast %c1_i32_157 : i32 to vector<1x5x1xi32>
      %1131 = arith.cmpi eq, %54, %1130 : vector<1x5x1xi32>
      %c2_i32_158 = arith.constant 2 : i32
      %1132 = vector.broadcast %c2_i32_158 : i32 to vector<1x5x1xi32>
      %1133 = arith.cmpi eq, %54, %1132 : vector<1x5x1xi32>
      %1134 = vector.shape_cast %1133 : vector<1x5x1xi1> to vector<1x5x1xi1>
      %1135 = vector.broadcast %1134 : vector<1x5x1xi1> to vector<5x5x128xi1>
      %1136 = vector.shape_cast %1124 : vector<5x1x128xf32> to vector<5x1x128xf32>
      %1137 = vector.broadcast %1136 : vector<5x1x128xf32> to vector<5x5x128xf32>
      %1138 = arith.select %1135, %1137, %948 : vector<5x5x128xi1>, vector<5x5x128xf32>
      %1139 = vector.shape_cast %1131 : vector<1x5x1xi1> to vector<1x5x1xi1>
      %1140 = vector.broadcast %1139 : vector<1x5x1xi1> to vector<5x5x128xi1>
      %1141 = vector.shape_cast %1114 : vector<5x1x128xf32> to vector<5x1x128xf32>
      %1142 = vector.broadcast %1141 : vector<5x1x128xf32> to vector<5x5x128xf32>
      %1143 = arith.select %1140, %1142, %1138 : vector<5x5x128xi1>, vector<5x5x128xf32>
      %1144 = vector.shape_cast %1133 : vector<1x5x1xi1> to vector<1x5x1xi1>
      %1145 = vector.broadcast %1144 : vector<1x5x1xi1> to vector<5x5x128xi1>
      %1146 = vector.shape_cast %1129 : vector<5x1x128xf32> to vector<5x1x128xf32>
      %1147 = vector.broadcast %1146 : vector<5x1x128xf32> to vector<5x5x128xf32>
      %1148 = arith.select %1145, %1147, %960 : vector<5x5x128xi1>, vector<5x5x128xf32>
      %1149 = vector.shape_cast %1131 : vector<1x5x1xi1> to vector<1x5x1xi1>
      %1150 = vector.broadcast %1149 : vector<1x5x1xi1> to vector<5x5x128xi1>
      %1151 = vector.shape_cast %1119 : vector<5x1x128xf32> to vector<5x1x128xf32>
      %1152 = vector.broadcast %1151 : vector<5x1x128xf32> to vector<5x5x128xf32>
      %1153 = arith.select %1150, %1152, %1148 : vector<5x5x128xi1>, vector<5x5x128xf32>
      %c1_i32_159 = arith.constant 1 : i32
      %1154 = vector.broadcast %c1_i32_159 : i32 to vector<5x1x1xi32>
      %1155 = arith.cmpi eq, %53, %1154 : vector<5x1x1xi32>
      %c2_i32_160 = arith.constant 2 : i32
      %1156 = vector.broadcast %c2_i32_160 : i32 to vector<5x1x1xi32>
      %1157 = arith.cmpi eq, %53, %1156 : vector<5x1x1xi32>
      %1158 = vector.shape_cast %1074 : vector<5x128xf32> to vector<1x5x128xf32>
      %1159 = vector.shape_cast %1083 : vector<5x128xf32> to vector<1x5x128xf32>
      %1160 = vector.shape_cast %1157 : vector<5x1x1xi1> to vector<5x1x1xi1>
      %1161 = vector.broadcast %1160 : vector<5x1x1xi1> to vector<5x5x128xi1>
      %1162 = vector.shape_cast %1159 : vector<1x5x128xf32> to vector<1x5x128xf32>
      %1163 = vector.broadcast %1162 : vector<1x5x128xf32> to vector<5x5x128xf32>
      %1164 = arith.select %1161, %1163, %1143 : vector<5x5x128xi1>, vector<5x5x128xf32>
      %1165 = vector.shape_cast %1155 : vector<5x1x1xi1> to vector<5x1x1xi1>
      %1166 = vector.broadcast %1165 : vector<5x1x1xi1> to vector<5x5x128xi1>
      %1167 = vector.shape_cast %1158 : vector<1x5x128xf32> to vector<1x5x128xf32>
      %1168 = vector.broadcast %1167 : vector<1x5x128xf32> to vector<5x5x128xf32>
      %1169 = arith.select %1166, %1168, %1164 : vector<5x5x128xi1>, vector<5x5x128xf32>
      %1170 = vector.shape_cast %1087 : vector<5x128xf32> to vector<1x5x128xf32>
      %1171 = vector.shape_cast %1091 : vector<5x128xf32> to vector<1x5x128xf32>
      %1172 = vector.shape_cast %1157 : vector<5x1x1xi1> to vector<5x1x1xi1>
      %1173 = vector.broadcast %1172 : vector<5x1x1xi1> to vector<5x5x128xi1>
      %1174 = vector.shape_cast %1171 : vector<1x5x128xf32> to vector<1x5x128xf32>
      %1175 = vector.broadcast %1174 : vector<1x5x128xf32> to vector<5x5x128xf32>
      %1176 = arith.select %1173, %1175, %1153 : vector<5x5x128xi1>, vector<5x5x128xf32>
      %1177 = vector.shape_cast %1155 : vector<5x1x1xi1> to vector<5x1x1xi1>
      %1178 = vector.broadcast %1177 : vector<5x1x1xi1> to vector<5x5x128xi1>
      %1179 = vector.shape_cast %1170 : vector<1x5x128xf32> to vector<1x5x128xf32>
      %1180 = vector.broadcast %1179 : vector<1x5x128xf32> to vector<5x5x128xf32>
      %1181 = arith.select %1178, %1180, %1176 : vector<5x5x128xi1>, vector<5x5x128xf32>
      %1182 = vector.extract_strided_slice %1169 {offsets = [1, 0, 0], sizes = [1, 5, 128], strides = [1, 1, 1]} : vector<5x5x128xf32> to vector<1x5x128xf32>
      %1183 = vector.shape_cast %1182 : vector<1x5x128xf32> to vector<5x128xf32>
      %1184 = vector.extract_strided_slice %1181 {offsets = [1, 0, 0], sizes = [1, 5, 128], strides = [1, 1, 1]} : vector<5x5x128xf32> to vector<1x5x128xf32>
      %1185 = vector.shape_cast %1184 : vector<1x5x128xf32> to vector<5x128xf32>
      %1186 = vector.extract_strided_slice %1169 {offsets = [3, 0, 0], sizes = [1, 5, 128], strides = [1, 1, 1]} : vector<5x5x128xf32> to vector<1x5x128xf32>
      %1187 = vector.shape_cast %1186 : vector<1x5x128xf32> to vector<5x128xf32>
      %1188 = vector.extract_strided_slice %1181 {offsets = [3, 0, 0], sizes = [1, 5, 128], strides = [1, 1, 1]} : vector<5x5x128xf32> to vector<1x5x128xf32>
      %1189 = vector.shape_cast %1188 : vector<1x5x128xf32> to vector<5x128xf32>
      %1190 = vector.extract_strided_slice %1183 {offsets = [1, 0], sizes = [1, 128], strides = [1, 1]} : vector<5x128xf32> to vector<1x128xf32>
      %1191 = vector.extract_strided_slice %1187 {offsets = [3, 0], sizes = [1, 128], strides = [1, 1]} : vector<5x128xf32> to vector<1x128xf32>
      %1192 = vector.extract_strided_slice %1183 {offsets = [3, 0], sizes = [1, 128], strides = [1, 1]} : vector<5x128xf32> to vector<1x128xf32>
      %1193 = vector.extract_strided_slice %1185 {offsets = [3, 0], sizes = [1, 128], strides = [1, 1]} : vector<5x128xf32> to vector<1x128xf32>
      %1194 = arith.mulf %1192, %1192 : vector<1x128xf32>
      %1195 = arith.mulf %1193, %1193 : vector<1x128xf32>
      %1196 = arith.addf %1194, %1195 : vector<1x128xf32>
      %1197 = math.sqrt %1196 : vector<1x128xf32>
      %cst_161 = arith.constant 1.000000e-10 : f32
      %1198 = vector.broadcast %cst_161 : f32 to vector<1x128xf32>
      %1199 = arith.cmpf ole, %1197, %1198 : vector<1x128xf32>
      %cst_162 = arith.constant 1.000000e+00 : f32
      %1200 = vector.broadcast %cst_162 : f32 to vector<1x128xf32>
      %1201 = arith.select %1199, %1200, %1197 : vector<1x128xi1>, vector<1x128xf32>
      %cst_163 = arith.constant 1.000000e+00 : f32
      %1202 = vector.broadcast %cst_163 : f32 to vector<1x128xf32>
      %1203 = arith.divf %1202, %1201 : vector<1x128xf32>
      %1204 = arith.mulf %1192, %1203 : vector<1x128xf32>
      %cst_164 = arith.constant 1.000000e+00 : f32
      %1205 = vector.broadcast %cst_164 : f32 to vector<1x128xf32>
      %1206 = arith.select %1199, %1205, %1204 : vector<1x128xi1>, vector<1x128xf32>
      %1207 = arith.mulf %1193, %1203 : vector<1x128xf32>
      %cst_165 = arith.constant 0.000000e+00 : f32
      %1208 = vector.broadcast %cst_165 : f32 to vector<1x128xf32>
      %1209 = arith.select %1199, %1208, %1207 : vector<1x128xi1>, vector<1x128xf32>
      %1210 = arith.subf %1191, %1190 : vector<1x128xf32>
      %cst_166 = arith.constant 5.000000e-01 : f32
      %1211 = vector.broadcast %cst_166 : f32 to vector<1x128xf32>
      %1212 = arith.mulf %1211, %1203 : vector<1x128xf32>
      %1213 = arith.mulf %1210, %1212 : vector<1x128xf32>
      %cst_167 = arith.constant 0.000000e+00 : f32
      %1214 = vector.broadcast %cst_167 : f32 to vector<1x128xf32>
      %1215 = arith.cmpf oge, %1213, %1214 : vector<1x128xf32>
      %cst_168 = arith.constant 1.000000e+00 : f32
      %cst_169 = arith.constant -1.000000e+00 : f32
      %1216 = vector.broadcast %cst_168 : f32 to vector<1x128xf32>
      %1217 = vector.broadcast %cst_169 : f32 to vector<1x128xf32>
      %1218 = arith.select %1215, %1216, %1217 : vector<1x128xi1>, vector<1x128xf32>
      %1219 = math.absf %1213 : vector<1x128xf32>
      %1220 = arith.mulf %1213, %1213 : vector<1x128xf32>
      %cst_170 = arith.constant 1.000000e+00 : f32
      %1221 = vector.broadcast %cst_170 : f32 to vector<1x128xf32>
      %1222 = arith.addf %1221, %1220 : vector<1x128xf32>
      %1223 = math.sqrt %1222 : vector<1x128xf32>
      %1224 = arith.addf %1219, %1223 : vector<1x128xf32>
      %1225 = arith.divf %1218, %1224 : vector<1x128xf32>
      %1226 = arith.mulf %1225, %1225 : vector<1x128xf32>
      %cst_171 = arith.constant 1.000000e+00 : f32
      %1227 = vector.broadcast %cst_171 : f32 to vector<1x128xf32>
      %1228 = arith.addf %1227, %1226 : vector<1x128xf32>
      %1229 = math.rsqrt %1228 : vector<1x128xf32>
      %1230 = arith.mulf %1225, %1229 : vector<1x128xf32>
      %cst_172 = arith.constant 0.000000e+00 : f32
      %1231 = vector.broadcast %cst_172 : f32 to vector<1x128xf32>
      %1232 = arith.select %1199, %1231, %1230 : vector<1x128xi1>, vector<1x128xf32>
      %cst_173 = arith.constant 1.000000e+00 : f32
      %1233 = vector.broadcast %cst_173 : f32 to vector<1x128xf32>
      %1234 = arith.select %1199, %1233, %1229 : vector<1x128xi1>, vector<1x128xf32>
      %cst_174 = arith.constant 2.000000e+00 : f32
      %1235 = vector.broadcast %cst_174 : f32 to vector<1x128xf32>
      %1236 = arith.mulf %1235, %1234 : vector<1x128xf32>
      %1237 = arith.mulf %1236, %1232 : vector<1x128xf32>
      %1238 = arith.mulf %1234, %1234 : vector<1x128xf32>
      %1239 = arith.mulf %1238, %1190 : vector<1x128xf32>
      %1240 = arith.mulf %1237, %1197 : vector<1x128xf32>
      %1241 = arith.subf %1239, %1240 : vector<1x128xf32>
      %1242 = arith.mulf %1232, %1232 : vector<1x128xf32>
      %1243 = arith.mulf %1242, %1191 : vector<1x128xf32>
      %1244 = arith.addf %1241, %1243 : vector<1x128xf32>
      %1245 = arith.mulf %1232, %1232 : vector<1x128xf32>
      %1246 = arith.mulf %1245, %1190 : vector<1x128xf32>
      %1247 = arith.mulf %1237, %1197 : vector<1x128xf32>
      %1248 = arith.addf %1246, %1247 : vector<1x128xf32>
      %1249 = arith.mulf %1234, %1234 : vector<1x128xf32>
      %1250 = arith.mulf %1249, %1191 : vector<1x128xf32>
      %1251 = arith.addf %1248, %1250 : vector<1x128xf32>
      %1252 = vector.broadcast %1206 : vector<1x128xf32> to vector<5x128xf32>
      %1253 = arith.mulf %1252, %1183 : vector<5x128xf32>
      %1254 = vector.broadcast %1209 : vector<1x128xf32> to vector<5x128xf32>
      %1255 = arith.mulf %1254, %1185 : vector<5x128xf32>
      %1256 = arith.addf %1253, %1255 : vector<5x128xf32>
      %1257 = vector.broadcast %1206 : vector<1x128xf32> to vector<5x128xf32>
      %1258 = arith.mulf %1257, %1185 : vector<5x128xf32>
      %1259 = vector.broadcast %1209 : vector<1x128xf32> to vector<5x128xf32>
      %1260 = arith.mulf %1259, %1183 : vector<5x128xf32>
      %1261 = arith.subf %1258, %1260 : vector<5x128xf32>
      %1262 = vector.broadcast %1234 : vector<1x128xf32> to vector<5x128xf32>
      %1263 = arith.mulf %1262, %1256 : vector<5x128xf32>
      %1264 = vector.broadcast %1232 : vector<1x128xf32> to vector<5x128xf32>
      %1265 = arith.mulf %1264, %1187 : vector<5x128xf32>
      %1266 = arith.subf %1263, %1265 : vector<5x128xf32>
      %1267 = vector.broadcast %1234 : vector<1x128xf32> to vector<5x128xf32>
      %1268 = arith.mulf %1267, %1261 : vector<5x128xf32>
      %1269 = vector.broadcast %1232 : vector<1x128xf32> to vector<5x128xf32>
      %1270 = arith.mulf %1269, %1189 : vector<5x128xf32>
      %1271 = arith.subf %1268, %1270 : vector<5x128xf32>
      %1272 = vector.broadcast %1232 : vector<1x128xf32> to vector<5x128xf32>
      %1273 = arith.mulf %1272, %1256 : vector<5x128xf32>
      %1274 = vector.broadcast %1234 : vector<1x128xf32> to vector<5x128xf32>
      %1275 = arith.mulf %1274, %1187 : vector<5x128xf32>
      %1276 = arith.addf %1273, %1275 : vector<5x128xf32>
      %1277 = vector.broadcast %1232 : vector<1x128xf32> to vector<5x128xf32>
      %1278 = arith.mulf %1277, %1261 : vector<5x128xf32>
      %1279 = vector.broadcast %1234 : vector<1x128xf32> to vector<5x128xf32>
      %1280 = arith.mulf %1279, %1189 : vector<5x128xf32>
      %1281 = arith.addf %1278, %1280 : vector<5x128xf32>
      %c1_i32_175 = arith.constant 1 : i32
      %1282 = vector.broadcast %c1_i32_175 : i32 to vector<5x1xi32>
      %1283 = arith.cmpi eq, %52, %1282 : vector<5x1xi32>
      %c3_i32_176 = arith.constant 3 : i32
      %1284 = vector.broadcast %c3_i32_176 : i32 to vector<5x1xi32>
      %1285 = arith.cmpi eq, %52, %1284 : vector<5x1xi32>
      %1286 = arith.ori %1283, %1285 : vector<5x1xi1>
      %cst_177 = arith.constant 0.000000e+00 : f32
      %1287 = vector.shape_cast %1285 : vector<5x1xi1> to vector<5x1xi1>
      %1288 = vector.broadcast %1287 : vector<5x1xi1> to vector<5x128xi1>
      %1289 = vector.broadcast %cst_177 : f32 to vector<5x128xf32>
      %1290 = arith.select %1288, %1289, %1266 : vector<5x128xi1>, vector<5x128xf32>
      %1291 = vector.shape_cast %1283 : vector<5x1xi1> to vector<5x1xi1>
      %1292 = vector.broadcast %1291 : vector<5x1xi1> to vector<5x128xi1>
      %1293 = vector.shape_cast %1244 : vector<1x128xf32> to vector<1x128xf32>
      %1294 = vector.broadcast %1293 : vector<1x128xf32> to vector<5x128xf32>
      %1295 = arith.select %1292, %1294, %1290 : vector<5x128xi1>, vector<5x128xf32>
      %cst_178 = arith.constant 0.000000e+00 : f32
      %1296 = vector.shape_cast %1283 : vector<5x1xi1> to vector<5x1xi1>
      %1297 = vector.broadcast %1296 : vector<5x1xi1> to vector<5x128xi1>
      %1298 = vector.broadcast %cst_178 : f32 to vector<5x128xf32>
      %1299 = arith.select %1297, %1298, %1276 : vector<5x128xi1>, vector<5x128xf32>
      %1300 = vector.shape_cast %1285 : vector<5x1xi1> to vector<5x1xi1>
      %1301 = vector.broadcast %1300 : vector<5x1xi1> to vector<5x128xi1>
      %1302 = vector.shape_cast %1251 : vector<1x128xf32> to vector<1x128xf32>
      %1303 = vector.broadcast %1302 : vector<1x128xf32> to vector<5x128xf32>
      %1304 = arith.select %1301, %1303, %1299 : vector<5x128xi1>, vector<5x128xf32>
      %cst_179 = arith.constant 0.000000e+00 : f32
      %1305 = vector.shape_cast %1286 : vector<5x1xi1> to vector<5x1xi1>
      %1306 = vector.broadcast %1305 : vector<5x1xi1> to vector<5x128xi1>
      %1307 = vector.broadcast %cst_179 : f32 to vector<5x128xf32>
      %1308 = arith.select %1306, %1307, %1271 : vector<5x128xi1>, vector<5x128xf32>
      %cst_180 = arith.constant 0.000000e+00 : f32
      %1309 = vector.shape_cast %1286 : vector<5x1xi1> to vector<5x1xi1>
      %1310 = vector.broadcast %1309 : vector<5x1xi1> to vector<5x128xi1>
      %1311 = vector.broadcast %cst_180 : f32 to vector<5x128xf32>
      %1312 = arith.select %1310, %1311, %1281 : vector<5x128xi1>, vector<5x128xf32>
      %1313 = vector.shape_cast %1206 : vector<1x128xf32> to vector<1x1x128xf32>
      %1314 = vector.shape_cast %1209 : vector<1x128xf32> to vector<1x1x128xf32>
      %1315 = vector.shape_cast %1234 : vector<1x128xf32> to vector<1x1x128xf32>
      %1316 = vector.shape_cast %1232 : vector<1x128xf32> to vector<1x1x128xf32>
      %1317 = vector.extract_strided_slice %1169 {offsets = [0, 1, 0], sizes = [5, 1, 128], strides = [1, 1, 1]} : vector<5x5x128xf32> to vector<5x1x128xf32>
      %1318 = vector.extract_strided_slice %1181 {offsets = [0, 1, 0], sizes = [5, 1, 128], strides = [1, 1, 1]} : vector<5x5x128xf32> to vector<5x1x128xf32>
      %1319 = vector.extract_strided_slice %1169 {offsets = [0, 3, 0], sizes = [5, 1, 128], strides = [1, 1, 1]} : vector<5x5x128xf32> to vector<5x1x128xf32>
      %1320 = vector.extract_strided_slice %1181 {offsets = [0, 3, 0], sizes = [5, 1, 128], strides = [1, 1, 1]} : vector<5x5x128xf32> to vector<5x1x128xf32>
      %1321 = vector.broadcast %1313 : vector<1x1x128xf32> to vector<5x1x128xf32>
      %1322 = arith.mulf %1321, %1317 : vector<5x1x128xf32>
      %1323 = vector.broadcast %1314 : vector<1x1x128xf32> to vector<5x1x128xf32>
      %1324 = arith.mulf %1323, %1318 : vector<5x1x128xf32>
      %1325 = arith.subf %1322, %1324 : vector<5x1x128xf32>
      %1326 = vector.broadcast %1313 : vector<1x1x128xf32> to vector<5x1x128xf32>
      %1327 = arith.mulf %1326, %1318 : vector<5x1x128xf32>
      %1328 = vector.broadcast %1314 : vector<1x1x128xf32> to vector<5x1x128xf32>
      %1329 = arith.mulf %1328, %1317 : vector<5x1x128xf32>
      %1330 = arith.addf %1327, %1329 : vector<5x1x128xf32>
      %1331 = vector.broadcast %1315 : vector<1x1x128xf32> to vector<5x1x128xf32>
      %1332 = arith.mulf %1331, %1325 : vector<5x1x128xf32>
      %1333 = vector.broadcast %1316 : vector<1x1x128xf32> to vector<5x1x128xf32>
      %1334 = arith.mulf %1333, %1319 : vector<5x1x128xf32>
      %1335 = arith.subf %1332, %1334 : vector<5x1x128xf32>
      %1336 = vector.broadcast %1315 : vector<1x1x128xf32> to vector<5x1x128xf32>
      %1337 = arith.mulf %1336, %1330 : vector<5x1x128xf32>
      %1338 = vector.broadcast %1316 : vector<1x1x128xf32> to vector<5x1x128xf32>
      %1339 = arith.mulf %1338, %1320 : vector<5x1x128xf32>
      %1340 = arith.subf %1337, %1339 : vector<5x1x128xf32>
      %1341 = vector.broadcast %1316 : vector<1x1x128xf32> to vector<5x1x128xf32>
      %1342 = arith.mulf %1341, %1325 : vector<5x1x128xf32>
      %1343 = vector.broadcast %1315 : vector<1x1x128xf32> to vector<5x1x128xf32>
      %1344 = arith.mulf %1343, %1319 : vector<5x1x128xf32>
      %1345 = arith.addf %1342, %1344 : vector<5x1x128xf32>
      %1346 = vector.broadcast %1316 : vector<1x1x128xf32> to vector<5x1x128xf32>
      %1347 = arith.mulf %1346, %1330 : vector<5x1x128xf32>
      %1348 = vector.broadcast %1315 : vector<1x1x128xf32> to vector<5x1x128xf32>
      %1349 = arith.mulf %1348, %1320 : vector<5x1x128xf32>
      %1350 = arith.addf %1347, %1349 : vector<5x1x128xf32>
      %c1_i32_181 = arith.constant 1 : i32
      %1351 = vector.broadcast %c1_i32_181 : i32 to vector<1x5x1xi32>
      %1352 = arith.cmpi eq, %54, %1351 : vector<1x5x1xi32>
      %c3_i32_182 = arith.constant 3 : i32
      %1353 = vector.broadcast %c3_i32_182 : i32 to vector<1x5x1xi32>
      %1354 = arith.cmpi eq, %54, %1353 : vector<1x5x1xi32>
      %1355 = vector.shape_cast %1354 : vector<1x5x1xi1> to vector<1x5x1xi1>
      %1356 = vector.broadcast %1355 : vector<1x5x1xi1> to vector<5x5x128xi1>
      %1357 = vector.shape_cast %1345 : vector<5x1x128xf32> to vector<5x1x128xf32>
      %1358 = vector.broadcast %1357 : vector<5x1x128xf32> to vector<5x5x128xf32>
      %1359 = arith.select %1356, %1358, %1169 : vector<5x5x128xi1>, vector<5x5x128xf32>
      %1360 = vector.shape_cast %1352 : vector<1x5x1xi1> to vector<1x5x1xi1>
      %1361 = vector.broadcast %1360 : vector<1x5x1xi1> to vector<5x5x128xi1>
      %1362 = vector.shape_cast %1335 : vector<5x1x128xf32> to vector<5x1x128xf32>
      %1363 = vector.broadcast %1362 : vector<5x1x128xf32> to vector<5x5x128xf32>
      %1364 = arith.select %1361, %1363, %1359 : vector<5x5x128xi1>, vector<5x5x128xf32>
      %1365 = vector.shape_cast %1354 : vector<1x5x1xi1> to vector<1x5x1xi1>
      %1366 = vector.broadcast %1365 : vector<1x5x1xi1> to vector<5x5x128xi1>
      %1367 = vector.shape_cast %1350 : vector<5x1x128xf32> to vector<5x1x128xf32>
      %1368 = vector.broadcast %1367 : vector<5x1x128xf32> to vector<5x5x128xf32>
      %1369 = arith.select %1366, %1368, %1181 : vector<5x5x128xi1>, vector<5x5x128xf32>
      %1370 = vector.shape_cast %1352 : vector<1x5x1xi1> to vector<1x5x1xi1>
      %1371 = vector.broadcast %1370 : vector<1x5x1xi1> to vector<5x5x128xi1>
      %1372 = vector.shape_cast %1340 : vector<5x1x128xf32> to vector<5x1x128xf32>
      %1373 = vector.broadcast %1372 : vector<5x1x128xf32> to vector<5x5x128xf32>
      %1374 = arith.select %1371, %1373, %1369 : vector<5x5x128xi1>, vector<5x5x128xf32>
      %c1_i32_183 = arith.constant 1 : i32
      %1375 = vector.broadcast %c1_i32_183 : i32 to vector<5x1x1xi32>
      %1376 = arith.cmpi eq, %53, %1375 : vector<5x1x1xi32>
      %c3_i32_184 = arith.constant 3 : i32
      %1377 = vector.broadcast %c3_i32_184 : i32 to vector<5x1x1xi32>
      %1378 = arith.cmpi eq, %53, %1377 : vector<5x1x1xi32>
      %1379 = vector.shape_cast %1295 : vector<5x128xf32> to vector<1x5x128xf32>
      %1380 = vector.shape_cast %1304 : vector<5x128xf32> to vector<1x5x128xf32>
      %1381 = vector.shape_cast %1378 : vector<5x1x1xi1> to vector<5x1x1xi1>
      %1382 = vector.broadcast %1381 : vector<5x1x1xi1> to vector<5x5x128xi1>
      %1383 = vector.shape_cast %1380 : vector<1x5x128xf32> to vector<1x5x128xf32>
      %1384 = vector.broadcast %1383 : vector<1x5x128xf32> to vector<5x5x128xf32>
      %1385 = arith.select %1382, %1384, %1364 : vector<5x5x128xi1>, vector<5x5x128xf32>
      %1386 = vector.shape_cast %1376 : vector<5x1x1xi1> to vector<5x1x1xi1>
      %1387 = vector.broadcast %1386 : vector<5x1x1xi1> to vector<5x5x128xi1>
      %1388 = vector.shape_cast %1379 : vector<1x5x128xf32> to vector<1x5x128xf32>
      %1389 = vector.broadcast %1388 : vector<1x5x128xf32> to vector<5x5x128xf32>
      %1390 = arith.select %1387, %1389, %1385 : vector<5x5x128xi1>, vector<5x5x128xf32>
      %1391 = vector.shape_cast %1308 : vector<5x128xf32> to vector<1x5x128xf32>
      %1392 = vector.shape_cast %1312 : vector<5x128xf32> to vector<1x5x128xf32>
      %1393 = vector.shape_cast %1378 : vector<5x1x1xi1> to vector<5x1x1xi1>
      %1394 = vector.broadcast %1393 : vector<5x1x1xi1> to vector<5x5x128xi1>
      %1395 = vector.shape_cast %1392 : vector<1x5x128xf32> to vector<1x5x128xf32>
      %1396 = vector.broadcast %1395 : vector<1x5x128xf32> to vector<5x5x128xf32>
      %1397 = arith.select %1394, %1396, %1374 : vector<5x5x128xi1>, vector<5x5x128xf32>
      %1398 = vector.shape_cast %1376 : vector<5x1x1xi1> to vector<5x1x1xi1>
      %1399 = vector.broadcast %1398 : vector<5x1x1xi1> to vector<5x5x128xi1>
      %1400 = vector.shape_cast %1391 : vector<1x5x128xf32> to vector<1x5x128xf32>
      %1401 = vector.broadcast %1400 : vector<1x5x128xf32> to vector<5x5x128xf32>
      %1402 = arith.select %1399, %1401, %1397 : vector<5x5x128xi1>, vector<5x5x128xf32>
      %1403 = vector.extract_strided_slice %1390 {offsets = [1, 0, 0], sizes = [1, 5, 128], strides = [1, 1, 1]} : vector<5x5x128xf32> to vector<1x5x128xf32>
      %1404 = vector.shape_cast %1403 : vector<1x5x128xf32> to vector<5x128xf32>
      %1405 = vector.extract_strided_slice %1402 {offsets = [1, 0, 0], sizes = [1, 5, 128], strides = [1, 1, 1]} : vector<5x5x128xf32> to vector<1x5x128xf32>
      %1406 = vector.shape_cast %1405 : vector<1x5x128xf32> to vector<5x128xf32>
      %1407 = vector.extract_strided_slice %1390 {offsets = [4, 0, 0], sizes = [1, 5, 128], strides = [1, 1, 1]} : vector<5x5x128xf32> to vector<1x5x128xf32>
      %1408 = vector.shape_cast %1407 : vector<1x5x128xf32> to vector<5x128xf32>
      %1409 = vector.extract_strided_slice %1402 {offsets = [4, 0, 0], sizes = [1, 5, 128], strides = [1, 1, 1]} : vector<5x5x128xf32> to vector<1x5x128xf32>
      %1410 = vector.shape_cast %1409 : vector<1x5x128xf32> to vector<5x128xf32>
      %1411 = vector.extract_strided_slice %1404 {offsets = [1, 0], sizes = [1, 128], strides = [1, 1]} : vector<5x128xf32> to vector<1x128xf32>
      %1412 = vector.extract_strided_slice %1408 {offsets = [4, 0], sizes = [1, 128], strides = [1, 1]} : vector<5x128xf32> to vector<1x128xf32>
      %1413 = vector.extract_strided_slice %1404 {offsets = [4, 0], sizes = [1, 128], strides = [1, 1]} : vector<5x128xf32> to vector<1x128xf32>
      %1414 = vector.extract_strided_slice %1406 {offsets = [4, 0], sizes = [1, 128], strides = [1, 1]} : vector<5x128xf32> to vector<1x128xf32>
      %1415 = arith.mulf %1413, %1413 : vector<1x128xf32>
      %1416 = arith.mulf %1414, %1414 : vector<1x128xf32>
      %1417 = arith.addf %1415, %1416 : vector<1x128xf32>
      %1418 = math.sqrt %1417 : vector<1x128xf32>
      %cst_185 = arith.constant 1.000000e-10 : f32
      %1419 = vector.broadcast %cst_185 : f32 to vector<1x128xf32>
      %1420 = arith.cmpf ole, %1418, %1419 : vector<1x128xf32>
      %cst_186 = arith.constant 1.000000e+00 : f32
      %1421 = vector.broadcast %cst_186 : f32 to vector<1x128xf32>
      %1422 = arith.select %1420, %1421, %1418 : vector<1x128xi1>, vector<1x128xf32>
      %cst_187 = arith.constant 1.000000e+00 : f32
      %1423 = vector.broadcast %cst_187 : f32 to vector<1x128xf32>
      %1424 = arith.divf %1423, %1422 : vector<1x128xf32>
      %1425 = arith.mulf %1413, %1424 : vector<1x128xf32>
      %cst_188 = arith.constant 1.000000e+00 : f32
      %1426 = vector.broadcast %cst_188 : f32 to vector<1x128xf32>
      %1427 = arith.select %1420, %1426, %1425 : vector<1x128xi1>, vector<1x128xf32>
      %1428 = arith.mulf %1414, %1424 : vector<1x128xf32>
      %cst_189 = arith.constant 0.000000e+00 : f32
      %1429 = vector.broadcast %cst_189 : f32 to vector<1x128xf32>
      %1430 = arith.select %1420, %1429, %1428 : vector<1x128xi1>, vector<1x128xf32>
      %1431 = arith.subf %1412, %1411 : vector<1x128xf32>
      %cst_190 = arith.constant 5.000000e-01 : f32
      %1432 = vector.broadcast %cst_190 : f32 to vector<1x128xf32>
      %1433 = arith.mulf %1432, %1424 : vector<1x128xf32>
      %1434 = arith.mulf %1431, %1433 : vector<1x128xf32>
      %cst_191 = arith.constant 0.000000e+00 : f32
      %1435 = vector.broadcast %cst_191 : f32 to vector<1x128xf32>
      %1436 = arith.cmpf oge, %1434, %1435 : vector<1x128xf32>
      %cst_192 = arith.constant 1.000000e+00 : f32
      %cst_193 = arith.constant -1.000000e+00 : f32
      %1437 = vector.broadcast %cst_192 : f32 to vector<1x128xf32>
      %1438 = vector.broadcast %cst_193 : f32 to vector<1x128xf32>
      %1439 = arith.select %1436, %1437, %1438 : vector<1x128xi1>, vector<1x128xf32>
      %1440 = math.absf %1434 : vector<1x128xf32>
      %1441 = arith.mulf %1434, %1434 : vector<1x128xf32>
      %cst_194 = arith.constant 1.000000e+00 : f32
      %1442 = vector.broadcast %cst_194 : f32 to vector<1x128xf32>
      %1443 = arith.addf %1442, %1441 : vector<1x128xf32>
      %1444 = math.sqrt %1443 : vector<1x128xf32>
      %1445 = arith.addf %1440, %1444 : vector<1x128xf32>
      %1446 = arith.divf %1439, %1445 : vector<1x128xf32>
      %1447 = arith.mulf %1446, %1446 : vector<1x128xf32>
      %cst_195 = arith.constant 1.000000e+00 : f32
      %1448 = vector.broadcast %cst_195 : f32 to vector<1x128xf32>
      %1449 = arith.addf %1448, %1447 : vector<1x128xf32>
      %1450 = math.rsqrt %1449 : vector<1x128xf32>
      %1451 = arith.mulf %1446, %1450 : vector<1x128xf32>
      %cst_196 = arith.constant 0.000000e+00 : f32
      %1452 = vector.broadcast %cst_196 : f32 to vector<1x128xf32>
      %1453 = arith.select %1420, %1452, %1451 : vector<1x128xi1>, vector<1x128xf32>
      %cst_197 = arith.constant 1.000000e+00 : f32
      %1454 = vector.broadcast %cst_197 : f32 to vector<1x128xf32>
      %1455 = arith.select %1420, %1454, %1450 : vector<1x128xi1>, vector<1x128xf32>
      %cst_198 = arith.constant 2.000000e+00 : f32
      %1456 = vector.broadcast %cst_198 : f32 to vector<1x128xf32>
      %1457 = arith.mulf %1456, %1455 : vector<1x128xf32>
      %1458 = arith.mulf %1457, %1453 : vector<1x128xf32>
      %1459 = arith.mulf %1455, %1455 : vector<1x128xf32>
      %1460 = arith.mulf %1459, %1411 : vector<1x128xf32>
      %1461 = arith.mulf %1458, %1418 : vector<1x128xf32>
      %1462 = arith.subf %1460, %1461 : vector<1x128xf32>
      %1463 = arith.mulf %1453, %1453 : vector<1x128xf32>
      %1464 = arith.mulf %1463, %1412 : vector<1x128xf32>
      %1465 = arith.addf %1462, %1464 : vector<1x128xf32>
      %1466 = arith.mulf %1453, %1453 : vector<1x128xf32>
      %1467 = arith.mulf %1466, %1411 : vector<1x128xf32>
      %1468 = arith.mulf %1458, %1418 : vector<1x128xf32>
      %1469 = arith.addf %1467, %1468 : vector<1x128xf32>
      %1470 = arith.mulf %1455, %1455 : vector<1x128xf32>
      %1471 = arith.mulf %1470, %1412 : vector<1x128xf32>
      %1472 = arith.addf %1469, %1471 : vector<1x128xf32>
      %1473 = vector.broadcast %1427 : vector<1x128xf32> to vector<5x128xf32>
      %1474 = arith.mulf %1473, %1404 : vector<5x128xf32>
      %1475 = vector.broadcast %1430 : vector<1x128xf32> to vector<5x128xf32>
      %1476 = arith.mulf %1475, %1406 : vector<5x128xf32>
      %1477 = arith.addf %1474, %1476 : vector<5x128xf32>
      %1478 = vector.broadcast %1427 : vector<1x128xf32> to vector<5x128xf32>
      %1479 = arith.mulf %1478, %1406 : vector<5x128xf32>
      %1480 = vector.broadcast %1430 : vector<1x128xf32> to vector<5x128xf32>
      %1481 = arith.mulf %1480, %1404 : vector<5x128xf32>
      %1482 = arith.subf %1479, %1481 : vector<5x128xf32>
      %1483 = vector.broadcast %1455 : vector<1x128xf32> to vector<5x128xf32>
      %1484 = arith.mulf %1483, %1477 : vector<5x128xf32>
      %1485 = vector.broadcast %1453 : vector<1x128xf32> to vector<5x128xf32>
      %1486 = arith.mulf %1485, %1408 : vector<5x128xf32>
      %1487 = arith.subf %1484, %1486 : vector<5x128xf32>
      %1488 = vector.broadcast %1455 : vector<1x128xf32> to vector<5x128xf32>
      %1489 = arith.mulf %1488, %1482 : vector<5x128xf32>
      %1490 = vector.broadcast %1453 : vector<1x128xf32> to vector<5x128xf32>
      %1491 = arith.mulf %1490, %1410 : vector<5x128xf32>
      %1492 = arith.subf %1489, %1491 : vector<5x128xf32>
      %1493 = vector.broadcast %1453 : vector<1x128xf32> to vector<5x128xf32>
      %1494 = arith.mulf %1493, %1477 : vector<5x128xf32>
      %1495 = vector.broadcast %1455 : vector<1x128xf32> to vector<5x128xf32>
      %1496 = arith.mulf %1495, %1408 : vector<5x128xf32>
      %1497 = arith.addf %1494, %1496 : vector<5x128xf32>
      %1498 = vector.broadcast %1453 : vector<1x128xf32> to vector<5x128xf32>
      %1499 = arith.mulf %1498, %1482 : vector<5x128xf32>
      %1500 = vector.broadcast %1455 : vector<1x128xf32> to vector<5x128xf32>
      %1501 = arith.mulf %1500, %1410 : vector<5x128xf32>
      %1502 = arith.addf %1499, %1501 : vector<5x128xf32>
      %c1_i32_199 = arith.constant 1 : i32
      %1503 = vector.broadcast %c1_i32_199 : i32 to vector<5x1xi32>
      %1504 = arith.cmpi eq, %52, %1503 : vector<5x1xi32>
      %c4_i32_200 = arith.constant 4 : i32
      %1505 = vector.broadcast %c4_i32_200 : i32 to vector<5x1xi32>
      %1506 = arith.cmpi eq, %52, %1505 : vector<5x1xi32>
      %1507 = arith.ori %1504, %1506 : vector<5x1xi1>
      %cst_201 = arith.constant 0.000000e+00 : f32
      %1508 = vector.shape_cast %1506 : vector<5x1xi1> to vector<5x1xi1>
      %1509 = vector.broadcast %1508 : vector<5x1xi1> to vector<5x128xi1>
      %1510 = vector.broadcast %cst_201 : f32 to vector<5x128xf32>
      %1511 = arith.select %1509, %1510, %1487 : vector<5x128xi1>, vector<5x128xf32>
      %1512 = vector.shape_cast %1504 : vector<5x1xi1> to vector<5x1xi1>
      %1513 = vector.broadcast %1512 : vector<5x1xi1> to vector<5x128xi1>
      %1514 = vector.shape_cast %1465 : vector<1x128xf32> to vector<1x128xf32>
      %1515 = vector.broadcast %1514 : vector<1x128xf32> to vector<5x128xf32>
      %1516 = arith.select %1513, %1515, %1511 : vector<5x128xi1>, vector<5x128xf32>
      %cst_202 = arith.constant 0.000000e+00 : f32
      %1517 = vector.shape_cast %1504 : vector<5x1xi1> to vector<5x1xi1>
      %1518 = vector.broadcast %1517 : vector<5x1xi1> to vector<5x128xi1>
      %1519 = vector.broadcast %cst_202 : f32 to vector<5x128xf32>
      %1520 = arith.select %1518, %1519, %1497 : vector<5x128xi1>, vector<5x128xf32>
      %1521 = vector.shape_cast %1506 : vector<5x1xi1> to vector<5x1xi1>
      %1522 = vector.broadcast %1521 : vector<5x1xi1> to vector<5x128xi1>
      %1523 = vector.shape_cast %1472 : vector<1x128xf32> to vector<1x128xf32>
      %1524 = vector.broadcast %1523 : vector<1x128xf32> to vector<5x128xf32>
      %1525 = arith.select %1522, %1524, %1520 : vector<5x128xi1>, vector<5x128xf32>
      %cst_203 = arith.constant 0.000000e+00 : f32
      %1526 = vector.shape_cast %1507 : vector<5x1xi1> to vector<5x1xi1>
      %1527 = vector.broadcast %1526 : vector<5x1xi1> to vector<5x128xi1>
      %1528 = vector.broadcast %cst_203 : f32 to vector<5x128xf32>
      %1529 = arith.select %1527, %1528, %1492 : vector<5x128xi1>, vector<5x128xf32>
      %cst_204 = arith.constant 0.000000e+00 : f32
      %1530 = vector.shape_cast %1507 : vector<5x1xi1> to vector<5x1xi1>
      %1531 = vector.broadcast %1530 : vector<5x1xi1> to vector<5x128xi1>
      %1532 = vector.broadcast %cst_204 : f32 to vector<5x128xf32>
      %1533 = arith.select %1531, %1532, %1502 : vector<5x128xi1>, vector<5x128xf32>
      %1534 = vector.shape_cast %1427 : vector<1x128xf32> to vector<1x1x128xf32>
      %1535 = vector.shape_cast %1430 : vector<1x128xf32> to vector<1x1x128xf32>
      %1536 = vector.shape_cast %1455 : vector<1x128xf32> to vector<1x1x128xf32>
      %1537 = vector.shape_cast %1453 : vector<1x128xf32> to vector<1x1x128xf32>
      %1538 = vector.extract_strided_slice %1390 {offsets = [0, 1, 0], sizes = [5, 1, 128], strides = [1, 1, 1]} : vector<5x5x128xf32> to vector<5x1x128xf32>
      %1539 = vector.extract_strided_slice %1402 {offsets = [0, 1, 0], sizes = [5, 1, 128], strides = [1, 1, 1]} : vector<5x5x128xf32> to vector<5x1x128xf32>
      %1540 = vector.extract_strided_slice %1390 {offsets = [0, 4, 0], sizes = [5, 1, 128], strides = [1, 1, 1]} : vector<5x5x128xf32> to vector<5x1x128xf32>
      %1541 = vector.extract_strided_slice %1402 {offsets = [0, 4, 0], sizes = [5, 1, 128], strides = [1, 1, 1]} : vector<5x5x128xf32> to vector<5x1x128xf32>
      %1542 = vector.broadcast %1534 : vector<1x1x128xf32> to vector<5x1x128xf32>
      %1543 = arith.mulf %1542, %1538 : vector<5x1x128xf32>
      %1544 = vector.broadcast %1535 : vector<1x1x128xf32> to vector<5x1x128xf32>
      %1545 = arith.mulf %1544, %1539 : vector<5x1x128xf32>
      %1546 = arith.subf %1543, %1545 : vector<5x1x128xf32>
      %1547 = vector.broadcast %1534 : vector<1x1x128xf32> to vector<5x1x128xf32>
      %1548 = arith.mulf %1547, %1539 : vector<5x1x128xf32>
      %1549 = vector.broadcast %1535 : vector<1x1x128xf32> to vector<5x1x128xf32>
      %1550 = arith.mulf %1549, %1538 : vector<5x1x128xf32>
      %1551 = arith.addf %1548, %1550 : vector<5x1x128xf32>
      %1552 = vector.broadcast %1536 : vector<1x1x128xf32> to vector<5x1x128xf32>
      %1553 = arith.mulf %1552, %1546 : vector<5x1x128xf32>
      %1554 = vector.broadcast %1537 : vector<1x1x128xf32> to vector<5x1x128xf32>
      %1555 = arith.mulf %1554, %1540 : vector<5x1x128xf32>
      %1556 = arith.subf %1553, %1555 : vector<5x1x128xf32>
      %1557 = vector.broadcast %1536 : vector<1x1x128xf32> to vector<5x1x128xf32>
      %1558 = arith.mulf %1557, %1551 : vector<5x1x128xf32>
      %1559 = vector.broadcast %1537 : vector<1x1x128xf32> to vector<5x1x128xf32>
      %1560 = arith.mulf %1559, %1541 : vector<5x1x128xf32>
      %1561 = arith.subf %1558, %1560 : vector<5x1x128xf32>
      %1562 = vector.broadcast %1537 : vector<1x1x128xf32> to vector<5x1x128xf32>
      %1563 = arith.mulf %1562, %1546 : vector<5x1x128xf32>
      %1564 = vector.broadcast %1536 : vector<1x1x128xf32> to vector<5x1x128xf32>
      %1565 = arith.mulf %1564, %1540 : vector<5x1x128xf32>
      %1566 = arith.addf %1563, %1565 : vector<5x1x128xf32>
      %1567 = vector.broadcast %1537 : vector<1x1x128xf32> to vector<5x1x128xf32>
      %1568 = arith.mulf %1567, %1551 : vector<5x1x128xf32>
      %1569 = vector.broadcast %1536 : vector<1x1x128xf32> to vector<5x1x128xf32>
      %1570 = arith.mulf %1569, %1541 : vector<5x1x128xf32>
      %1571 = arith.addf %1568, %1570 : vector<5x1x128xf32>
      %c1_i32_205 = arith.constant 1 : i32
      %1572 = vector.broadcast %c1_i32_205 : i32 to vector<1x5x1xi32>
      %1573 = arith.cmpi eq, %54, %1572 : vector<1x5x1xi32>
      %c4_i32_206 = arith.constant 4 : i32
      %1574 = vector.broadcast %c4_i32_206 : i32 to vector<1x5x1xi32>
      %1575 = arith.cmpi eq, %54, %1574 : vector<1x5x1xi32>
      %1576 = vector.shape_cast %1575 : vector<1x5x1xi1> to vector<1x5x1xi1>
      %1577 = vector.broadcast %1576 : vector<1x5x1xi1> to vector<5x5x128xi1>
      %1578 = vector.shape_cast %1566 : vector<5x1x128xf32> to vector<5x1x128xf32>
      %1579 = vector.broadcast %1578 : vector<5x1x128xf32> to vector<5x5x128xf32>
      %1580 = arith.select %1577, %1579, %1390 : vector<5x5x128xi1>, vector<5x5x128xf32>
      %1581 = vector.shape_cast %1573 : vector<1x5x1xi1> to vector<1x5x1xi1>
      %1582 = vector.broadcast %1581 : vector<1x5x1xi1> to vector<5x5x128xi1>
      %1583 = vector.shape_cast %1556 : vector<5x1x128xf32> to vector<5x1x128xf32>
      %1584 = vector.broadcast %1583 : vector<5x1x128xf32> to vector<5x5x128xf32>
      %1585 = arith.select %1582, %1584, %1580 : vector<5x5x128xi1>, vector<5x5x128xf32>
      %1586 = vector.shape_cast %1575 : vector<1x5x1xi1> to vector<1x5x1xi1>
      %1587 = vector.broadcast %1586 : vector<1x5x1xi1> to vector<5x5x128xi1>
      %1588 = vector.shape_cast %1571 : vector<5x1x128xf32> to vector<5x1x128xf32>
      %1589 = vector.broadcast %1588 : vector<5x1x128xf32> to vector<5x5x128xf32>
      %1590 = arith.select %1587, %1589, %1402 : vector<5x5x128xi1>, vector<5x5x128xf32>
      %1591 = vector.shape_cast %1573 : vector<1x5x1xi1> to vector<1x5x1xi1>
      %1592 = vector.broadcast %1591 : vector<1x5x1xi1> to vector<5x5x128xi1>
      %1593 = vector.shape_cast %1561 : vector<5x1x128xf32> to vector<5x1x128xf32>
      %1594 = vector.broadcast %1593 : vector<5x1x128xf32> to vector<5x5x128xf32>
      %1595 = arith.select %1592, %1594, %1590 : vector<5x5x128xi1>, vector<5x5x128xf32>
      %c1_i32_207 = arith.constant 1 : i32
      %1596 = vector.broadcast %c1_i32_207 : i32 to vector<5x1x1xi32>
      %1597 = arith.cmpi eq, %53, %1596 : vector<5x1x1xi32>
      %c4_i32_208 = arith.constant 4 : i32
      %1598 = vector.broadcast %c4_i32_208 : i32 to vector<5x1x1xi32>
      %1599 = arith.cmpi eq, %53, %1598 : vector<5x1x1xi32>
      %1600 = vector.shape_cast %1516 : vector<5x128xf32> to vector<1x5x128xf32>
      %1601 = vector.shape_cast %1525 : vector<5x128xf32> to vector<1x5x128xf32>
      %1602 = vector.shape_cast %1599 : vector<5x1x1xi1> to vector<5x1x1xi1>
      %1603 = vector.broadcast %1602 : vector<5x1x1xi1> to vector<5x5x128xi1>
      %1604 = vector.shape_cast %1601 : vector<1x5x128xf32> to vector<1x5x128xf32>
      %1605 = vector.broadcast %1604 : vector<1x5x128xf32> to vector<5x5x128xf32>
      %1606 = arith.select %1603, %1605, %1585 : vector<5x5x128xi1>, vector<5x5x128xf32>
      %1607 = vector.shape_cast %1597 : vector<5x1x1xi1> to vector<5x1x1xi1>
      %1608 = vector.broadcast %1607 : vector<5x1x1xi1> to vector<5x5x128xi1>
      %1609 = vector.shape_cast %1600 : vector<1x5x128xf32> to vector<1x5x128xf32>
      %1610 = vector.broadcast %1609 : vector<1x5x128xf32> to vector<5x5x128xf32>
      %1611 = arith.select %1608, %1610, %1606 : vector<5x5x128xi1>, vector<5x5x128xf32>
      %1612 = vector.shape_cast %1529 : vector<5x128xf32> to vector<1x5x128xf32>
      %1613 = vector.shape_cast %1533 : vector<5x128xf32> to vector<1x5x128xf32>
      %1614 = vector.shape_cast %1599 : vector<5x1x1xi1> to vector<5x1x1xi1>
      %1615 = vector.broadcast %1614 : vector<5x1x1xi1> to vector<5x5x128xi1>
      %1616 = vector.shape_cast %1613 : vector<1x5x128xf32> to vector<1x5x128xf32>
      %1617 = vector.broadcast %1616 : vector<1x5x128xf32> to vector<5x5x128xf32>
      %1618 = arith.select %1615, %1617, %1595 : vector<5x5x128xi1>, vector<5x5x128xf32>
      %1619 = vector.shape_cast %1597 : vector<5x1x1xi1> to vector<5x1x1xi1>
      %1620 = vector.broadcast %1619 : vector<5x1x1xi1> to vector<5x5x128xi1>
      %1621 = vector.shape_cast %1612 : vector<1x5x128xf32> to vector<1x5x128xf32>
      %1622 = vector.broadcast %1621 : vector<1x5x128xf32> to vector<5x5x128xf32>
      %1623 = arith.select %1620, %1622, %1618 : vector<5x5x128xi1>, vector<5x5x128xf32>
      %1624 = vector.extract_strided_slice %1611 {offsets = [2, 0, 0], sizes = [1, 5, 128], strides = [1, 1, 1]} : vector<5x5x128xf32> to vector<1x5x128xf32>
      %1625 = vector.shape_cast %1624 : vector<1x5x128xf32> to vector<5x128xf32>
      %1626 = vector.extract_strided_slice %1623 {offsets = [2, 0, 0], sizes = [1, 5, 128], strides = [1, 1, 1]} : vector<5x5x128xf32> to vector<1x5x128xf32>
      %1627 = vector.shape_cast %1626 : vector<1x5x128xf32> to vector<5x128xf32>
      %1628 = vector.extract_strided_slice %1611 {offsets = [3, 0, 0], sizes = [1, 5, 128], strides = [1, 1, 1]} : vector<5x5x128xf32> to vector<1x5x128xf32>
      %1629 = vector.shape_cast %1628 : vector<1x5x128xf32> to vector<5x128xf32>
      %1630 = vector.extract_strided_slice %1623 {offsets = [3, 0, 0], sizes = [1, 5, 128], strides = [1, 1, 1]} : vector<5x5x128xf32> to vector<1x5x128xf32>
      %1631 = vector.shape_cast %1630 : vector<1x5x128xf32> to vector<5x128xf32>
      %1632 = vector.extract_strided_slice %1625 {offsets = [2, 0], sizes = [1, 128], strides = [1, 1]} : vector<5x128xf32> to vector<1x128xf32>
      %1633 = vector.extract_strided_slice %1629 {offsets = [3, 0], sizes = [1, 128], strides = [1, 1]} : vector<5x128xf32> to vector<1x128xf32>
      %1634 = vector.extract_strided_slice %1625 {offsets = [3, 0], sizes = [1, 128], strides = [1, 1]} : vector<5x128xf32> to vector<1x128xf32>
      %1635 = vector.extract_strided_slice %1627 {offsets = [3, 0], sizes = [1, 128], strides = [1, 1]} : vector<5x128xf32> to vector<1x128xf32>
      %1636 = arith.mulf %1634, %1634 : vector<1x128xf32>
      %1637 = arith.mulf %1635, %1635 : vector<1x128xf32>
      %1638 = arith.addf %1636, %1637 : vector<1x128xf32>
      %1639 = math.sqrt %1638 : vector<1x128xf32>
      %cst_209 = arith.constant 1.000000e-10 : f32
      %1640 = vector.broadcast %cst_209 : f32 to vector<1x128xf32>
      %1641 = arith.cmpf ole, %1639, %1640 : vector<1x128xf32>
      %cst_210 = arith.constant 1.000000e+00 : f32
      %1642 = vector.broadcast %cst_210 : f32 to vector<1x128xf32>
      %1643 = arith.select %1641, %1642, %1639 : vector<1x128xi1>, vector<1x128xf32>
      %cst_211 = arith.constant 1.000000e+00 : f32
      %1644 = vector.broadcast %cst_211 : f32 to vector<1x128xf32>
      %1645 = arith.divf %1644, %1643 : vector<1x128xf32>
      %1646 = arith.mulf %1634, %1645 : vector<1x128xf32>
      %cst_212 = arith.constant 1.000000e+00 : f32
      %1647 = vector.broadcast %cst_212 : f32 to vector<1x128xf32>
      %1648 = arith.select %1641, %1647, %1646 : vector<1x128xi1>, vector<1x128xf32>
      %1649 = arith.mulf %1635, %1645 : vector<1x128xf32>
      %cst_213 = arith.constant 0.000000e+00 : f32
      %1650 = vector.broadcast %cst_213 : f32 to vector<1x128xf32>
      %1651 = arith.select %1641, %1650, %1649 : vector<1x128xi1>, vector<1x128xf32>
      %1652 = arith.subf %1633, %1632 : vector<1x128xf32>
      %cst_214 = arith.constant 5.000000e-01 : f32
      %1653 = vector.broadcast %cst_214 : f32 to vector<1x128xf32>
      %1654 = arith.mulf %1653, %1645 : vector<1x128xf32>
      %1655 = arith.mulf %1652, %1654 : vector<1x128xf32>
      %cst_215 = arith.constant 0.000000e+00 : f32
      %1656 = vector.broadcast %cst_215 : f32 to vector<1x128xf32>
      %1657 = arith.cmpf oge, %1655, %1656 : vector<1x128xf32>
      %cst_216 = arith.constant 1.000000e+00 : f32
      %cst_217 = arith.constant -1.000000e+00 : f32
      %1658 = vector.broadcast %cst_216 : f32 to vector<1x128xf32>
      %1659 = vector.broadcast %cst_217 : f32 to vector<1x128xf32>
      %1660 = arith.select %1657, %1658, %1659 : vector<1x128xi1>, vector<1x128xf32>
      %1661 = math.absf %1655 : vector<1x128xf32>
      %1662 = arith.mulf %1655, %1655 : vector<1x128xf32>
      %cst_218 = arith.constant 1.000000e+00 : f32
      %1663 = vector.broadcast %cst_218 : f32 to vector<1x128xf32>
      %1664 = arith.addf %1663, %1662 : vector<1x128xf32>
      %1665 = math.sqrt %1664 : vector<1x128xf32>
      %1666 = arith.addf %1661, %1665 : vector<1x128xf32>
      %1667 = arith.divf %1660, %1666 : vector<1x128xf32>
      %1668 = arith.mulf %1667, %1667 : vector<1x128xf32>
      %cst_219 = arith.constant 1.000000e+00 : f32
      %1669 = vector.broadcast %cst_219 : f32 to vector<1x128xf32>
      %1670 = arith.addf %1669, %1668 : vector<1x128xf32>
      %1671 = math.rsqrt %1670 : vector<1x128xf32>
      %1672 = arith.mulf %1667, %1671 : vector<1x128xf32>
      %cst_220 = arith.constant 0.000000e+00 : f32
      %1673 = vector.broadcast %cst_220 : f32 to vector<1x128xf32>
      %1674 = arith.select %1641, %1673, %1672 : vector<1x128xi1>, vector<1x128xf32>
      %cst_221 = arith.constant 1.000000e+00 : f32
      %1675 = vector.broadcast %cst_221 : f32 to vector<1x128xf32>
      %1676 = arith.select %1641, %1675, %1671 : vector<1x128xi1>, vector<1x128xf32>
      %cst_222 = arith.constant 2.000000e+00 : f32
      %1677 = vector.broadcast %cst_222 : f32 to vector<1x128xf32>
      %1678 = arith.mulf %1677, %1676 : vector<1x128xf32>
      %1679 = arith.mulf %1678, %1674 : vector<1x128xf32>
      %1680 = arith.mulf %1676, %1676 : vector<1x128xf32>
      %1681 = arith.mulf %1680, %1632 : vector<1x128xf32>
      %1682 = arith.mulf %1679, %1639 : vector<1x128xf32>
      %1683 = arith.subf %1681, %1682 : vector<1x128xf32>
      %1684 = arith.mulf %1674, %1674 : vector<1x128xf32>
      %1685 = arith.mulf %1684, %1633 : vector<1x128xf32>
      %1686 = arith.addf %1683, %1685 : vector<1x128xf32>
      %1687 = arith.mulf %1674, %1674 : vector<1x128xf32>
      %1688 = arith.mulf %1687, %1632 : vector<1x128xf32>
      %1689 = arith.mulf %1679, %1639 : vector<1x128xf32>
      %1690 = arith.addf %1688, %1689 : vector<1x128xf32>
      %1691 = arith.mulf %1676, %1676 : vector<1x128xf32>
      %1692 = arith.mulf %1691, %1633 : vector<1x128xf32>
      %1693 = arith.addf %1690, %1692 : vector<1x128xf32>
      %1694 = vector.broadcast %1648 : vector<1x128xf32> to vector<5x128xf32>
      %1695 = arith.mulf %1694, %1625 : vector<5x128xf32>
      %1696 = vector.broadcast %1651 : vector<1x128xf32> to vector<5x128xf32>
      %1697 = arith.mulf %1696, %1627 : vector<5x128xf32>
      %1698 = arith.addf %1695, %1697 : vector<5x128xf32>
      %1699 = vector.broadcast %1648 : vector<1x128xf32> to vector<5x128xf32>
      %1700 = arith.mulf %1699, %1627 : vector<5x128xf32>
      %1701 = vector.broadcast %1651 : vector<1x128xf32> to vector<5x128xf32>
      %1702 = arith.mulf %1701, %1625 : vector<5x128xf32>
      %1703 = arith.subf %1700, %1702 : vector<5x128xf32>
      %1704 = vector.broadcast %1676 : vector<1x128xf32> to vector<5x128xf32>
      %1705 = arith.mulf %1704, %1698 : vector<5x128xf32>
      %1706 = vector.broadcast %1674 : vector<1x128xf32> to vector<5x128xf32>
      %1707 = arith.mulf %1706, %1629 : vector<5x128xf32>
      %1708 = arith.subf %1705, %1707 : vector<5x128xf32>
      %1709 = vector.broadcast %1676 : vector<1x128xf32> to vector<5x128xf32>
      %1710 = arith.mulf %1709, %1703 : vector<5x128xf32>
      %1711 = vector.broadcast %1674 : vector<1x128xf32> to vector<5x128xf32>
      %1712 = arith.mulf %1711, %1631 : vector<5x128xf32>
      %1713 = arith.subf %1710, %1712 : vector<5x128xf32>
      %1714 = vector.broadcast %1674 : vector<1x128xf32> to vector<5x128xf32>
      %1715 = arith.mulf %1714, %1698 : vector<5x128xf32>
      %1716 = vector.broadcast %1676 : vector<1x128xf32> to vector<5x128xf32>
      %1717 = arith.mulf %1716, %1629 : vector<5x128xf32>
      %1718 = arith.addf %1715, %1717 : vector<5x128xf32>
      %1719 = vector.broadcast %1674 : vector<1x128xf32> to vector<5x128xf32>
      %1720 = arith.mulf %1719, %1703 : vector<5x128xf32>
      %1721 = vector.broadcast %1676 : vector<1x128xf32> to vector<5x128xf32>
      %1722 = arith.mulf %1721, %1631 : vector<5x128xf32>
      %1723 = arith.addf %1720, %1722 : vector<5x128xf32>
      %c2_i32_223 = arith.constant 2 : i32
      %1724 = vector.broadcast %c2_i32_223 : i32 to vector<5x1xi32>
      %1725 = arith.cmpi eq, %52, %1724 : vector<5x1xi32>
      %c3_i32_224 = arith.constant 3 : i32
      %1726 = vector.broadcast %c3_i32_224 : i32 to vector<5x1xi32>
      %1727 = arith.cmpi eq, %52, %1726 : vector<5x1xi32>
      %1728 = arith.ori %1725, %1727 : vector<5x1xi1>
      %cst_225 = arith.constant 0.000000e+00 : f32
      %1729 = vector.shape_cast %1727 : vector<5x1xi1> to vector<5x1xi1>
      %1730 = vector.broadcast %1729 : vector<5x1xi1> to vector<5x128xi1>
      %1731 = vector.broadcast %cst_225 : f32 to vector<5x128xf32>
      %1732 = arith.select %1730, %1731, %1708 : vector<5x128xi1>, vector<5x128xf32>
      %1733 = vector.shape_cast %1725 : vector<5x1xi1> to vector<5x1xi1>
      %1734 = vector.broadcast %1733 : vector<5x1xi1> to vector<5x128xi1>
      %1735 = vector.shape_cast %1686 : vector<1x128xf32> to vector<1x128xf32>
      %1736 = vector.broadcast %1735 : vector<1x128xf32> to vector<5x128xf32>
      %1737 = arith.select %1734, %1736, %1732 : vector<5x128xi1>, vector<5x128xf32>
      %cst_226 = arith.constant 0.000000e+00 : f32
      %1738 = vector.shape_cast %1725 : vector<5x1xi1> to vector<5x1xi1>
      %1739 = vector.broadcast %1738 : vector<5x1xi1> to vector<5x128xi1>
      %1740 = vector.broadcast %cst_226 : f32 to vector<5x128xf32>
      %1741 = arith.select %1739, %1740, %1718 : vector<5x128xi1>, vector<5x128xf32>
      %1742 = vector.shape_cast %1727 : vector<5x1xi1> to vector<5x1xi1>
      %1743 = vector.broadcast %1742 : vector<5x1xi1> to vector<5x128xi1>
      %1744 = vector.shape_cast %1693 : vector<1x128xf32> to vector<1x128xf32>
      %1745 = vector.broadcast %1744 : vector<1x128xf32> to vector<5x128xf32>
      %1746 = arith.select %1743, %1745, %1741 : vector<5x128xi1>, vector<5x128xf32>
      %cst_227 = arith.constant 0.000000e+00 : f32
      %1747 = vector.shape_cast %1728 : vector<5x1xi1> to vector<5x1xi1>
      %1748 = vector.broadcast %1747 : vector<5x1xi1> to vector<5x128xi1>
      %1749 = vector.broadcast %cst_227 : f32 to vector<5x128xf32>
      %1750 = arith.select %1748, %1749, %1713 : vector<5x128xi1>, vector<5x128xf32>
      %cst_228 = arith.constant 0.000000e+00 : f32
      %1751 = vector.shape_cast %1728 : vector<5x1xi1> to vector<5x1xi1>
      %1752 = vector.broadcast %1751 : vector<5x1xi1> to vector<5x128xi1>
      %1753 = vector.broadcast %cst_228 : f32 to vector<5x128xf32>
      %1754 = arith.select %1752, %1753, %1723 : vector<5x128xi1>, vector<5x128xf32>
      %1755 = vector.shape_cast %1648 : vector<1x128xf32> to vector<1x1x128xf32>
      %1756 = vector.shape_cast %1651 : vector<1x128xf32> to vector<1x1x128xf32>
      %1757 = vector.shape_cast %1676 : vector<1x128xf32> to vector<1x1x128xf32>
      %1758 = vector.shape_cast %1674 : vector<1x128xf32> to vector<1x1x128xf32>
      %1759 = vector.extract_strided_slice %1611 {offsets = [0, 2, 0], sizes = [5, 1, 128], strides = [1, 1, 1]} : vector<5x5x128xf32> to vector<5x1x128xf32>
      %1760 = vector.extract_strided_slice %1623 {offsets = [0, 2, 0], sizes = [5, 1, 128], strides = [1, 1, 1]} : vector<5x5x128xf32> to vector<5x1x128xf32>
      %1761 = vector.extract_strided_slice %1611 {offsets = [0, 3, 0], sizes = [5, 1, 128], strides = [1, 1, 1]} : vector<5x5x128xf32> to vector<5x1x128xf32>
      %1762 = vector.extract_strided_slice %1623 {offsets = [0, 3, 0], sizes = [5, 1, 128], strides = [1, 1, 1]} : vector<5x5x128xf32> to vector<5x1x128xf32>
      %1763 = vector.broadcast %1755 : vector<1x1x128xf32> to vector<5x1x128xf32>
      %1764 = arith.mulf %1763, %1759 : vector<5x1x128xf32>
      %1765 = vector.broadcast %1756 : vector<1x1x128xf32> to vector<5x1x128xf32>
      %1766 = arith.mulf %1765, %1760 : vector<5x1x128xf32>
      %1767 = arith.subf %1764, %1766 : vector<5x1x128xf32>
      %1768 = vector.broadcast %1755 : vector<1x1x128xf32> to vector<5x1x128xf32>
      %1769 = arith.mulf %1768, %1760 : vector<5x1x128xf32>
      %1770 = vector.broadcast %1756 : vector<1x1x128xf32> to vector<5x1x128xf32>
      %1771 = arith.mulf %1770, %1759 : vector<5x1x128xf32>
      %1772 = arith.addf %1769, %1771 : vector<5x1x128xf32>
      %1773 = vector.broadcast %1757 : vector<1x1x128xf32> to vector<5x1x128xf32>
      %1774 = arith.mulf %1773, %1767 : vector<5x1x128xf32>
      %1775 = vector.broadcast %1758 : vector<1x1x128xf32> to vector<5x1x128xf32>
      %1776 = arith.mulf %1775, %1761 : vector<5x1x128xf32>
      %1777 = arith.subf %1774, %1776 : vector<5x1x128xf32>
      %1778 = vector.broadcast %1757 : vector<1x1x128xf32> to vector<5x1x128xf32>
      %1779 = arith.mulf %1778, %1772 : vector<5x1x128xf32>
      %1780 = vector.broadcast %1758 : vector<1x1x128xf32> to vector<5x1x128xf32>
      %1781 = arith.mulf %1780, %1762 : vector<5x1x128xf32>
      %1782 = arith.subf %1779, %1781 : vector<5x1x128xf32>
      %1783 = vector.broadcast %1758 : vector<1x1x128xf32> to vector<5x1x128xf32>
      %1784 = arith.mulf %1783, %1767 : vector<5x1x128xf32>
      %1785 = vector.broadcast %1757 : vector<1x1x128xf32> to vector<5x1x128xf32>
      %1786 = arith.mulf %1785, %1761 : vector<5x1x128xf32>
      %1787 = arith.addf %1784, %1786 : vector<5x1x128xf32>
      %1788 = vector.broadcast %1758 : vector<1x1x128xf32> to vector<5x1x128xf32>
      %1789 = arith.mulf %1788, %1772 : vector<5x1x128xf32>
      %1790 = vector.broadcast %1757 : vector<1x1x128xf32> to vector<5x1x128xf32>
      %1791 = arith.mulf %1790, %1762 : vector<5x1x128xf32>
      %1792 = arith.addf %1789, %1791 : vector<5x1x128xf32>
      %c2_i32_229 = arith.constant 2 : i32
      %1793 = vector.broadcast %c2_i32_229 : i32 to vector<1x5x1xi32>
      %1794 = arith.cmpi eq, %54, %1793 : vector<1x5x1xi32>
      %c3_i32_230 = arith.constant 3 : i32
      %1795 = vector.broadcast %c3_i32_230 : i32 to vector<1x5x1xi32>
      %1796 = arith.cmpi eq, %54, %1795 : vector<1x5x1xi32>
      %1797 = vector.shape_cast %1796 : vector<1x5x1xi1> to vector<1x5x1xi1>
      %1798 = vector.broadcast %1797 : vector<1x5x1xi1> to vector<5x5x128xi1>
      %1799 = vector.shape_cast %1787 : vector<5x1x128xf32> to vector<5x1x128xf32>
      %1800 = vector.broadcast %1799 : vector<5x1x128xf32> to vector<5x5x128xf32>
      %1801 = arith.select %1798, %1800, %1611 : vector<5x5x128xi1>, vector<5x5x128xf32>
      %1802 = vector.shape_cast %1794 : vector<1x5x1xi1> to vector<1x5x1xi1>
      %1803 = vector.broadcast %1802 : vector<1x5x1xi1> to vector<5x5x128xi1>
      %1804 = vector.shape_cast %1777 : vector<5x1x128xf32> to vector<5x1x128xf32>
      %1805 = vector.broadcast %1804 : vector<5x1x128xf32> to vector<5x5x128xf32>
      %1806 = arith.select %1803, %1805, %1801 : vector<5x5x128xi1>, vector<5x5x128xf32>
      %1807 = vector.shape_cast %1796 : vector<1x5x1xi1> to vector<1x5x1xi1>
      %1808 = vector.broadcast %1807 : vector<1x5x1xi1> to vector<5x5x128xi1>
      %1809 = vector.shape_cast %1792 : vector<5x1x128xf32> to vector<5x1x128xf32>
      %1810 = vector.broadcast %1809 : vector<5x1x128xf32> to vector<5x5x128xf32>
      %1811 = arith.select %1808, %1810, %1623 : vector<5x5x128xi1>, vector<5x5x128xf32>
      %1812 = vector.shape_cast %1794 : vector<1x5x1xi1> to vector<1x5x1xi1>
      %1813 = vector.broadcast %1812 : vector<1x5x1xi1> to vector<5x5x128xi1>
      %1814 = vector.shape_cast %1782 : vector<5x1x128xf32> to vector<5x1x128xf32>
      %1815 = vector.broadcast %1814 : vector<5x1x128xf32> to vector<5x5x128xf32>
      %1816 = arith.select %1813, %1815, %1811 : vector<5x5x128xi1>, vector<5x5x128xf32>
      %c2_i32_231 = arith.constant 2 : i32
      %1817 = vector.broadcast %c2_i32_231 : i32 to vector<5x1x1xi32>
      %1818 = arith.cmpi eq, %53, %1817 : vector<5x1x1xi32>
      %c3_i32_232 = arith.constant 3 : i32
      %1819 = vector.broadcast %c3_i32_232 : i32 to vector<5x1x1xi32>
      %1820 = arith.cmpi eq, %53, %1819 : vector<5x1x1xi32>
      %1821 = vector.shape_cast %1737 : vector<5x128xf32> to vector<1x5x128xf32>
      %1822 = vector.shape_cast %1746 : vector<5x128xf32> to vector<1x5x128xf32>
      %1823 = vector.shape_cast %1820 : vector<5x1x1xi1> to vector<5x1x1xi1>
      %1824 = vector.broadcast %1823 : vector<5x1x1xi1> to vector<5x5x128xi1>
      %1825 = vector.shape_cast %1822 : vector<1x5x128xf32> to vector<1x5x128xf32>
      %1826 = vector.broadcast %1825 : vector<1x5x128xf32> to vector<5x5x128xf32>
      %1827 = arith.select %1824, %1826, %1806 : vector<5x5x128xi1>, vector<5x5x128xf32>
      %1828 = vector.shape_cast %1818 : vector<5x1x1xi1> to vector<5x1x1xi1>
      %1829 = vector.broadcast %1828 : vector<5x1x1xi1> to vector<5x5x128xi1>
      %1830 = vector.shape_cast %1821 : vector<1x5x128xf32> to vector<1x5x128xf32>
      %1831 = vector.broadcast %1830 : vector<1x5x128xf32> to vector<5x5x128xf32>
      %1832 = arith.select %1829, %1831, %1827 : vector<5x5x128xi1>, vector<5x5x128xf32>
      %1833 = vector.shape_cast %1750 : vector<5x128xf32> to vector<1x5x128xf32>
      %1834 = vector.shape_cast %1754 : vector<5x128xf32> to vector<1x5x128xf32>
      %1835 = vector.shape_cast %1820 : vector<5x1x1xi1> to vector<5x1x1xi1>
      %1836 = vector.broadcast %1835 : vector<5x1x1xi1> to vector<5x5x128xi1>
      %1837 = vector.shape_cast %1834 : vector<1x5x128xf32> to vector<1x5x128xf32>
      %1838 = vector.broadcast %1837 : vector<1x5x128xf32> to vector<5x5x128xf32>
      %1839 = arith.select %1836, %1838, %1816 : vector<5x5x128xi1>, vector<5x5x128xf32>
      %1840 = vector.shape_cast %1818 : vector<5x1x1xi1> to vector<5x1x1xi1>
      %1841 = vector.broadcast %1840 : vector<5x1x1xi1> to vector<5x5x128xi1>
      %1842 = vector.shape_cast %1833 : vector<1x5x128xf32> to vector<1x5x128xf32>
      %1843 = vector.broadcast %1842 : vector<1x5x128xf32> to vector<5x5x128xf32>
      %1844 = arith.select %1841, %1843, %1839 : vector<5x5x128xi1>, vector<5x5x128xf32>
      %1845 = vector.extract_strided_slice %1832 {offsets = [2, 0, 0], sizes = [1, 5, 128], strides = [1, 1, 1]} : vector<5x5x128xf32> to vector<1x5x128xf32>
      %1846 = vector.shape_cast %1845 : vector<1x5x128xf32> to vector<5x128xf32>
      %1847 = vector.extract_strided_slice %1844 {offsets = [2, 0, 0], sizes = [1, 5, 128], strides = [1, 1, 1]} : vector<5x5x128xf32> to vector<1x5x128xf32>
      %1848 = vector.shape_cast %1847 : vector<1x5x128xf32> to vector<5x128xf32>
      %1849 = vector.extract_strided_slice %1832 {offsets = [4, 0, 0], sizes = [1, 5, 128], strides = [1, 1, 1]} : vector<5x5x128xf32> to vector<1x5x128xf32>
      %1850 = vector.shape_cast %1849 : vector<1x5x128xf32> to vector<5x128xf32>
      %1851 = vector.extract_strided_slice %1844 {offsets = [4, 0, 0], sizes = [1, 5, 128], strides = [1, 1, 1]} : vector<5x5x128xf32> to vector<1x5x128xf32>
      %1852 = vector.shape_cast %1851 : vector<1x5x128xf32> to vector<5x128xf32>
      %1853 = vector.extract_strided_slice %1846 {offsets = [2, 0], sizes = [1, 128], strides = [1, 1]} : vector<5x128xf32> to vector<1x128xf32>
      %1854 = vector.extract_strided_slice %1850 {offsets = [4, 0], sizes = [1, 128], strides = [1, 1]} : vector<5x128xf32> to vector<1x128xf32>
      %1855 = vector.extract_strided_slice %1846 {offsets = [4, 0], sizes = [1, 128], strides = [1, 1]} : vector<5x128xf32> to vector<1x128xf32>
      %1856 = vector.extract_strided_slice %1848 {offsets = [4, 0], sizes = [1, 128], strides = [1, 1]} : vector<5x128xf32> to vector<1x128xf32>
      %1857 = arith.mulf %1855, %1855 : vector<1x128xf32>
      %1858 = arith.mulf %1856, %1856 : vector<1x128xf32>
      %1859 = arith.addf %1857, %1858 : vector<1x128xf32>
      %1860 = math.sqrt %1859 : vector<1x128xf32>
      %cst_233 = arith.constant 1.000000e-10 : f32
      %1861 = vector.broadcast %cst_233 : f32 to vector<1x128xf32>
      %1862 = arith.cmpf ole, %1860, %1861 : vector<1x128xf32>
      %cst_234 = arith.constant 1.000000e+00 : f32
      %1863 = vector.broadcast %cst_234 : f32 to vector<1x128xf32>
      %1864 = arith.select %1862, %1863, %1860 : vector<1x128xi1>, vector<1x128xf32>
      %cst_235 = arith.constant 1.000000e+00 : f32
      %1865 = vector.broadcast %cst_235 : f32 to vector<1x128xf32>
      %1866 = arith.divf %1865, %1864 : vector<1x128xf32>
      %1867 = arith.mulf %1855, %1866 : vector<1x128xf32>
      %cst_236 = arith.constant 1.000000e+00 : f32
      %1868 = vector.broadcast %cst_236 : f32 to vector<1x128xf32>
      %1869 = arith.select %1862, %1868, %1867 : vector<1x128xi1>, vector<1x128xf32>
      %1870 = arith.mulf %1856, %1866 : vector<1x128xf32>
      %cst_237 = arith.constant 0.000000e+00 : f32
      %1871 = vector.broadcast %cst_237 : f32 to vector<1x128xf32>
      %1872 = arith.select %1862, %1871, %1870 : vector<1x128xi1>, vector<1x128xf32>
      %1873 = arith.subf %1854, %1853 : vector<1x128xf32>
      %cst_238 = arith.constant 5.000000e-01 : f32
      %1874 = vector.broadcast %cst_238 : f32 to vector<1x128xf32>
      %1875 = arith.mulf %1874, %1866 : vector<1x128xf32>
      %1876 = arith.mulf %1873, %1875 : vector<1x128xf32>
      %cst_239 = arith.constant 0.000000e+00 : f32
      %1877 = vector.broadcast %cst_239 : f32 to vector<1x128xf32>
      %1878 = arith.cmpf oge, %1876, %1877 : vector<1x128xf32>
      %cst_240 = arith.constant 1.000000e+00 : f32
      %cst_241 = arith.constant -1.000000e+00 : f32
      %1879 = vector.broadcast %cst_240 : f32 to vector<1x128xf32>
      %1880 = vector.broadcast %cst_241 : f32 to vector<1x128xf32>
      %1881 = arith.select %1878, %1879, %1880 : vector<1x128xi1>, vector<1x128xf32>
      %1882 = math.absf %1876 : vector<1x128xf32>
      %1883 = arith.mulf %1876, %1876 : vector<1x128xf32>
      %cst_242 = arith.constant 1.000000e+00 : f32
      %1884 = vector.broadcast %cst_242 : f32 to vector<1x128xf32>
      %1885 = arith.addf %1884, %1883 : vector<1x128xf32>
      %1886 = math.sqrt %1885 : vector<1x128xf32>
      %1887 = arith.addf %1882, %1886 : vector<1x128xf32>
      %1888 = arith.divf %1881, %1887 : vector<1x128xf32>
      %1889 = arith.mulf %1888, %1888 : vector<1x128xf32>
      %cst_243 = arith.constant 1.000000e+00 : f32
      %1890 = vector.broadcast %cst_243 : f32 to vector<1x128xf32>
      %1891 = arith.addf %1890, %1889 : vector<1x128xf32>
      %1892 = math.rsqrt %1891 : vector<1x128xf32>
      %1893 = arith.mulf %1888, %1892 : vector<1x128xf32>
      %cst_244 = arith.constant 0.000000e+00 : f32
      %1894 = vector.broadcast %cst_244 : f32 to vector<1x128xf32>
      %1895 = arith.select %1862, %1894, %1893 : vector<1x128xi1>, vector<1x128xf32>
      %cst_245 = arith.constant 1.000000e+00 : f32
      %1896 = vector.broadcast %cst_245 : f32 to vector<1x128xf32>
      %1897 = arith.select %1862, %1896, %1892 : vector<1x128xi1>, vector<1x128xf32>
      %cst_246 = arith.constant 2.000000e+00 : f32
      %1898 = vector.broadcast %cst_246 : f32 to vector<1x128xf32>
      %1899 = arith.mulf %1898, %1897 : vector<1x128xf32>
      %1900 = arith.mulf %1899, %1895 : vector<1x128xf32>
      %1901 = arith.mulf %1897, %1897 : vector<1x128xf32>
      %1902 = arith.mulf %1901, %1853 : vector<1x128xf32>
      %1903 = arith.mulf %1900, %1860 : vector<1x128xf32>
      %1904 = arith.subf %1902, %1903 : vector<1x128xf32>
      %1905 = arith.mulf %1895, %1895 : vector<1x128xf32>
      %1906 = arith.mulf %1905, %1854 : vector<1x128xf32>
      %1907 = arith.addf %1904, %1906 : vector<1x128xf32>
      %1908 = arith.mulf %1895, %1895 : vector<1x128xf32>
      %1909 = arith.mulf %1908, %1853 : vector<1x128xf32>
      %1910 = arith.mulf %1900, %1860 : vector<1x128xf32>
      %1911 = arith.addf %1909, %1910 : vector<1x128xf32>
      %1912 = arith.mulf %1897, %1897 : vector<1x128xf32>
      %1913 = arith.mulf %1912, %1854 : vector<1x128xf32>
      %1914 = arith.addf %1911, %1913 : vector<1x128xf32>
      %1915 = vector.broadcast %1869 : vector<1x128xf32> to vector<5x128xf32>
      %1916 = arith.mulf %1915, %1846 : vector<5x128xf32>
      %1917 = vector.broadcast %1872 : vector<1x128xf32> to vector<5x128xf32>
      %1918 = arith.mulf %1917, %1848 : vector<5x128xf32>
      %1919 = arith.addf %1916, %1918 : vector<5x128xf32>
      %1920 = vector.broadcast %1869 : vector<1x128xf32> to vector<5x128xf32>
      %1921 = arith.mulf %1920, %1848 : vector<5x128xf32>
      %1922 = vector.broadcast %1872 : vector<1x128xf32> to vector<5x128xf32>
      %1923 = arith.mulf %1922, %1846 : vector<5x128xf32>
      %1924 = arith.subf %1921, %1923 : vector<5x128xf32>
      %1925 = vector.broadcast %1897 : vector<1x128xf32> to vector<5x128xf32>
      %1926 = arith.mulf %1925, %1919 : vector<5x128xf32>
      %1927 = vector.broadcast %1895 : vector<1x128xf32> to vector<5x128xf32>
      %1928 = arith.mulf %1927, %1850 : vector<5x128xf32>
      %1929 = arith.subf %1926, %1928 : vector<5x128xf32>
      %1930 = vector.broadcast %1897 : vector<1x128xf32> to vector<5x128xf32>
      %1931 = arith.mulf %1930, %1924 : vector<5x128xf32>
      %1932 = vector.broadcast %1895 : vector<1x128xf32> to vector<5x128xf32>
      %1933 = arith.mulf %1932, %1852 : vector<5x128xf32>
      %1934 = arith.subf %1931, %1933 : vector<5x128xf32>
      %1935 = vector.broadcast %1895 : vector<1x128xf32> to vector<5x128xf32>
      %1936 = arith.mulf %1935, %1919 : vector<5x128xf32>
      %1937 = vector.broadcast %1897 : vector<1x128xf32> to vector<5x128xf32>
      %1938 = arith.mulf %1937, %1850 : vector<5x128xf32>
      %1939 = arith.addf %1936, %1938 : vector<5x128xf32>
      %1940 = vector.broadcast %1895 : vector<1x128xf32> to vector<5x128xf32>
      %1941 = arith.mulf %1940, %1924 : vector<5x128xf32>
      %1942 = vector.broadcast %1897 : vector<1x128xf32> to vector<5x128xf32>
      %1943 = arith.mulf %1942, %1852 : vector<5x128xf32>
      %1944 = arith.addf %1941, %1943 : vector<5x128xf32>
      %c2_i32_247 = arith.constant 2 : i32
      %1945 = vector.broadcast %c2_i32_247 : i32 to vector<5x1xi32>
      %1946 = arith.cmpi eq, %52, %1945 : vector<5x1xi32>
      %c4_i32_248 = arith.constant 4 : i32
      %1947 = vector.broadcast %c4_i32_248 : i32 to vector<5x1xi32>
      %1948 = arith.cmpi eq, %52, %1947 : vector<5x1xi32>
      %1949 = arith.ori %1946, %1948 : vector<5x1xi1>
      %cst_249 = arith.constant 0.000000e+00 : f32
      %1950 = vector.shape_cast %1948 : vector<5x1xi1> to vector<5x1xi1>
      %1951 = vector.broadcast %1950 : vector<5x1xi1> to vector<5x128xi1>
      %1952 = vector.broadcast %cst_249 : f32 to vector<5x128xf32>
      %1953 = arith.select %1951, %1952, %1929 : vector<5x128xi1>, vector<5x128xf32>
      %1954 = vector.shape_cast %1946 : vector<5x1xi1> to vector<5x1xi1>
      %1955 = vector.broadcast %1954 : vector<5x1xi1> to vector<5x128xi1>
      %1956 = vector.shape_cast %1907 : vector<1x128xf32> to vector<1x128xf32>
      %1957 = vector.broadcast %1956 : vector<1x128xf32> to vector<5x128xf32>
      %1958 = arith.select %1955, %1957, %1953 : vector<5x128xi1>, vector<5x128xf32>
      %cst_250 = arith.constant 0.000000e+00 : f32
      %1959 = vector.shape_cast %1946 : vector<5x1xi1> to vector<5x1xi1>
      %1960 = vector.broadcast %1959 : vector<5x1xi1> to vector<5x128xi1>
      %1961 = vector.broadcast %cst_250 : f32 to vector<5x128xf32>
      %1962 = arith.select %1960, %1961, %1939 : vector<5x128xi1>, vector<5x128xf32>
      %1963 = vector.shape_cast %1948 : vector<5x1xi1> to vector<5x1xi1>
      %1964 = vector.broadcast %1963 : vector<5x1xi1> to vector<5x128xi1>
      %1965 = vector.shape_cast %1914 : vector<1x128xf32> to vector<1x128xf32>
      %1966 = vector.broadcast %1965 : vector<1x128xf32> to vector<5x128xf32>
      %1967 = arith.select %1964, %1966, %1962 : vector<5x128xi1>, vector<5x128xf32>
      %cst_251 = arith.constant 0.000000e+00 : f32
      %1968 = vector.shape_cast %1949 : vector<5x1xi1> to vector<5x1xi1>
      %1969 = vector.broadcast %1968 : vector<5x1xi1> to vector<5x128xi1>
      %1970 = vector.broadcast %cst_251 : f32 to vector<5x128xf32>
      %1971 = arith.select %1969, %1970, %1934 : vector<5x128xi1>, vector<5x128xf32>
      %cst_252 = arith.constant 0.000000e+00 : f32
      %1972 = vector.shape_cast %1949 : vector<5x1xi1> to vector<5x1xi1>
      %1973 = vector.broadcast %1972 : vector<5x1xi1> to vector<5x128xi1>
      %1974 = vector.broadcast %cst_252 : f32 to vector<5x128xf32>
      %1975 = arith.select %1973, %1974, %1944 : vector<5x128xi1>, vector<5x128xf32>
      %1976 = vector.shape_cast %1869 : vector<1x128xf32> to vector<1x1x128xf32>
      %1977 = vector.shape_cast %1872 : vector<1x128xf32> to vector<1x1x128xf32>
      %1978 = vector.shape_cast %1897 : vector<1x128xf32> to vector<1x1x128xf32>
      %1979 = vector.shape_cast %1895 : vector<1x128xf32> to vector<1x1x128xf32>
      %1980 = vector.extract_strided_slice %1832 {offsets = [0, 2, 0], sizes = [5, 1, 128], strides = [1, 1, 1]} : vector<5x5x128xf32> to vector<5x1x128xf32>
      %1981 = vector.extract_strided_slice %1844 {offsets = [0, 2, 0], sizes = [5, 1, 128], strides = [1, 1, 1]} : vector<5x5x128xf32> to vector<5x1x128xf32>
      %1982 = vector.extract_strided_slice %1832 {offsets = [0, 4, 0], sizes = [5, 1, 128], strides = [1, 1, 1]} : vector<5x5x128xf32> to vector<5x1x128xf32>
      %1983 = vector.extract_strided_slice %1844 {offsets = [0, 4, 0], sizes = [5, 1, 128], strides = [1, 1, 1]} : vector<5x5x128xf32> to vector<5x1x128xf32>
      %1984 = vector.broadcast %1976 : vector<1x1x128xf32> to vector<5x1x128xf32>
      %1985 = arith.mulf %1984, %1980 : vector<5x1x128xf32>
      %1986 = vector.broadcast %1977 : vector<1x1x128xf32> to vector<5x1x128xf32>
      %1987 = arith.mulf %1986, %1981 : vector<5x1x128xf32>
      %1988 = arith.subf %1985, %1987 : vector<5x1x128xf32>
      %1989 = vector.broadcast %1976 : vector<1x1x128xf32> to vector<5x1x128xf32>
      %1990 = arith.mulf %1989, %1981 : vector<5x1x128xf32>
      %1991 = vector.broadcast %1977 : vector<1x1x128xf32> to vector<5x1x128xf32>
      %1992 = arith.mulf %1991, %1980 : vector<5x1x128xf32>
      %1993 = arith.addf %1990, %1992 : vector<5x1x128xf32>
      %1994 = vector.broadcast %1978 : vector<1x1x128xf32> to vector<5x1x128xf32>
      %1995 = arith.mulf %1994, %1988 : vector<5x1x128xf32>
      %1996 = vector.broadcast %1979 : vector<1x1x128xf32> to vector<5x1x128xf32>
      %1997 = arith.mulf %1996, %1982 : vector<5x1x128xf32>
      %1998 = arith.subf %1995, %1997 : vector<5x1x128xf32>
      %1999 = vector.broadcast %1978 : vector<1x1x128xf32> to vector<5x1x128xf32>
      %2000 = arith.mulf %1999, %1993 : vector<5x1x128xf32>
      %2001 = vector.broadcast %1979 : vector<1x1x128xf32> to vector<5x1x128xf32>
      %2002 = arith.mulf %2001, %1983 : vector<5x1x128xf32>
      %2003 = arith.subf %2000, %2002 : vector<5x1x128xf32>
      %2004 = vector.broadcast %1979 : vector<1x1x128xf32> to vector<5x1x128xf32>
      %2005 = arith.mulf %2004, %1988 : vector<5x1x128xf32>
      %2006 = vector.broadcast %1978 : vector<1x1x128xf32> to vector<5x1x128xf32>
      %2007 = arith.mulf %2006, %1982 : vector<5x1x128xf32>
      %2008 = arith.addf %2005, %2007 : vector<5x1x128xf32>
      %2009 = vector.broadcast %1979 : vector<1x1x128xf32> to vector<5x1x128xf32>
      %2010 = arith.mulf %2009, %1993 : vector<5x1x128xf32>
      %2011 = vector.broadcast %1978 : vector<1x1x128xf32> to vector<5x1x128xf32>
      %2012 = arith.mulf %2011, %1983 : vector<5x1x128xf32>
      %2013 = arith.addf %2010, %2012 : vector<5x1x128xf32>
      %c2_i32_253 = arith.constant 2 : i32
      %2014 = vector.broadcast %c2_i32_253 : i32 to vector<1x5x1xi32>
      %2015 = arith.cmpi eq, %54, %2014 : vector<1x5x1xi32>
      %c4_i32_254 = arith.constant 4 : i32
      %2016 = vector.broadcast %c4_i32_254 : i32 to vector<1x5x1xi32>
      %2017 = arith.cmpi eq, %54, %2016 : vector<1x5x1xi32>
      %2018 = vector.shape_cast %2017 : vector<1x5x1xi1> to vector<1x5x1xi1>
      %2019 = vector.broadcast %2018 : vector<1x5x1xi1> to vector<5x5x128xi1>
      %2020 = vector.shape_cast %2008 : vector<5x1x128xf32> to vector<5x1x128xf32>
      %2021 = vector.broadcast %2020 : vector<5x1x128xf32> to vector<5x5x128xf32>
      %2022 = arith.select %2019, %2021, %1832 : vector<5x5x128xi1>, vector<5x5x128xf32>
      %2023 = vector.shape_cast %2015 : vector<1x5x1xi1> to vector<1x5x1xi1>
      %2024 = vector.broadcast %2023 : vector<1x5x1xi1> to vector<5x5x128xi1>
      %2025 = vector.shape_cast %1998 : vector<5x1x128xf32> to vector<5x1x128xf32>
      %2026 = vector.broadcast %2025 : vector<5x1x128xf32> to vector<5x5x128xf32>
      %2027 = arith.select %2024, %2026, %2022 : vector<5x5x128xi1>, vector<5x5x128xf32>
      %2028 = vector.shape_cast %2017 : vector<1x5x1xi1> to vector<1x5x1xi1>
      %2029 = vector.broadcast %2028 : vector<1x5x1xi1> to vector<5x5x128xi1>
      %2030 = vector.shape_cast %2013 : vector<5x1x128xf32> to vector<5x1x128xf32>
      %2031 = vector.broadcast %2030 : vector<5x1x128xf32> to vector<5x5x128xf32>
      %2032 = arith.select %2029, %2031, %1844 : vector<5x5x128xi1>, vector<5x5x128xf32>
      %2033 = vector.shape_cast %2015 : vector<1x5x1xi1> to vector<1x5x1xi1>
      %2034 = vector.broadcast %2033 : vector<1x5x1xi1> to vector<5x5x128xi1>
      %2035 = vector.shape_cast %2003 : vector<5x1x128xf32> to vector<5x1x128xf32>
      %2036 = vector.broadcast %2035 : vector<5x1x128xf32> to vector<5x5x128xf32>
      %2037 = arith.select %2034, %2036, %2032 : vector<5x5x128xi1>, vector<5x5x128xf32>
      %c2_i32_255 = arith.constant 2 : i32
      %2038 = vector.broadcast %c2_i32_255 : i32 to vector<5x1x1xi32>
      %2039 = arith.cmpi eq, %53, %2038 : vector<5x1x1xi32>
      %c4_i32_256 = arith.constant 4 : i32
      %2040 = vector.broadcast %c4_i32_256 : i32 to vector<5x1x1xi32>
      %2041 = arith.cmpi eq, %53, %2040 : vector<5x1x1xi32>
      %2042 = vector.shape_cast %1958 : vector<5x128xf32> to vector<1x5x128xf32>
      %2043 = vector.shape_cast %1967 : vector<5x128xf32> to vector<1x5x128xf32>
      %2044 = vector.shape_cast %2041 : vector<5x1x1xi1> to vector<5x1x1xi1>
      %2045 = vector.broadcast %2044 : vector<5x1x1xi1> to vector<5x5x128xi1>
      %2046 = vector.shape_cast %2043 : vector<1x5x128xf32> to vector<1x5x128xf32>
      %2047 = vector.broadcast %2046 : vector<1x5x128xf32> to vector<5x5x128xf32>
      %2048 = arith.select %2045, %2047, %2027 : vector<5x5x128xi1>, vector<5x5x128xf32>
      %2049 = vector.shape_cast %2039 : vector<5x1x1xi1> to vector<5x1x1xi1>
      %2050 = vector.broadcast %2049 : vector<5x1x1xi1> to vector<5x5x128xi1>
      %2051 = vector.shape_cast %2042 : vector<1x5x128xf32> to vector<1x5x128xf32>
      %2052 = vector.broadcast %2051 : vector<1x5x128xf32> to vector<5x5x128xf32>
      %2053 = arith.select %2050, %2052, %2048 : vector<5x5x128xi1>, vector<5x5x128xf32>
      %2054 = vector.shape_cast %1971 : vector<5x128xf32> to vector<1x5x128xf32>
      %2055 = vector.shape_cast %1975 : vector<5x128xf32> to vector<1x5x128xf32>
      %2056 = vector.shape_cast %2041 : vector<5x1x1xi1> to vector<5x1x1xi1>
      %2057 = vector.broadcast %2056 : vector<5x1x1xi1> to vector<5x5x128xi1>
      %2058 = vector.shape_cast %2055 : vector<1x5x128xf32> to vector<1x5x128xf32>
      %2059 = vector.broadcast %2058 : vector<1x5x128xf32> to vector<5x5x128xf32>
      %2060 = arith.select %2057, %2059, %2037 : vector<5x5x128xi1>, vector<5x5x128xf32>
      %2061 = vector.shape_cast %2039 : vector<5x1x1xi1> to vector<5x1x1xi1>
      %2062 = vector.broadcast %2061 : vector<5x1x1xi1> to vector<5x5x128xi1>
      %2063 = vector.shape_cast %2054 : vector<1x5x128xf32> to vector<1x5x128xf32>
      %2064 = vector.broadcast %2063 : vector<1x5x128xf32> to vector<5x5x128xf32>
      %2065 = arith.select %2062, %2064, %2060 : vector<5x5x128xi1>, vector<5x5x128xf32>
      %2066 = vector.extract_strided_slice %2053 {offsets = [3, 0, 0], sizes = [1, 5, 128], strides = [1, 1, 1]} : vector<5x5x128xf32> to vector<1x5x128xf32>
      %2067 = vector.shape_cast %2066 : vector<1x5x128xf32> to vector<5x128xf32>
      %2068 = vector.extract_strided_slice %2065 {offsets = [3, 0, 0], sizes = [1, 5, 128], strides = [1, 1, 1]} : vector<5x5x128xf32> to vector<1x5x128xf32>
      %2069 = vector.shape_cast %2068 : vector<1x5x128xf32> to vector<5x128xf32>
      %2070 = vector.extract_strided_slice %2053 {offsets = [4, 0, 0], sizes = [1, 5, 128], strides = [1, 1, 1]} : vector<5x5x128xf32> to vector<1x5x128xf32>
      %2071 = vector.shape_cast %2070 : vector<1x5x128xf32> to vector<5x128xf32>
      %2072 = vector.extract_strided_slice %2065 {offsets = [4, 0, 0], sizes = [1, 5, 128], strides = [1, 1, 1]} : vector<5x5x128xf32> to vector<1x5x128xf32>
      %2073 = vector.shape_cast %2072 : vector<1x5x128xf32> to vector<5x128xf32>
      %2074 = vector.extract_strided_slice %2067 {offsets = [3, 0], sizes = [1, 128], strides = [1, 1]} : vector<5x128xf32> to vector<1x128xf32>
      %2075 = vector.extract_strided_slice %2071 {offsets = [4, 0], sizes = [1, 128], strides = [1, 1]} : vector<5x128xf32> to vector<1x128xf32>
      %2076 = vector.extract_strided_slice %2067 {offsets = [4, 0], sizes = [1, 128], strides = [1, 1]} : vector<5x128xf32> to vector<1x128xf32>
      %2077 = vector.extract_strided_slice %2069 {offsets = [4, 0], sizes = [1, 128], strides = [1, 1]} : vector<5x128xf32> to vector<1x128xf32>
      %2078 = arith.mulf %2076, %2076 : vector<1x128xf32>
      %2079 = arith.mulf %2077, %2077 : vector<1x128xf32>
      %2080 = arith.addf %2078, %2079 : vector<1x128xf32>
      %2081 = math.sqrt %2080 : vector<1x128xf32>
      %cst_257 = arith.constant 1.000000e-10 : f32
      %2082 = vector.broadcast %cst_257 : f32 to vector<1x128xf32>
      %2083 = arith.cmpf ole, %2081, %2082 : vector<1x128xf32>
      %cst_258 = arith.constant 1.000000e+00 : f32
      %2084 = vector.broadcast %cst_258 : f32 to vector<1x128xf32>
      %2085 = arith.select %2083, %2084, %2081 : vector<1x128xi1>, vector<1x128xf32>
      %cst_259 = arith.constant 1.000000e+00 : f32
      %2086 = vector.broadcast %cst_259 : f32 to vector<1x128xf32>
      %2087 = arith.divf %2086, %2085 : vector<1x128xf32>
      %2088 = arith.mulf %2076, %2087 : vector<1x128xf32>
      %cst_260 = arith.constant 1.000000e+00 : f32
      %2089 = vector.broadcast %cst_260 : f32 to vector<1x128xf32>
      %2090 = arith.select %2083, %2089, %2088 : vector<1x128xi1>, vector<1x128xf32>
      %2091 = arith.mulf %2077, %2087 : vector<1x128xf32>
      %cst_261 = arith.constant 0.000000e+00 : f32
      %2092 = vector.broadcast %cst_261 : f32 to vector<1x128xf32>
      %2093 = arith.select %2083, %2092, %2091 : vector<1x128xi1>, vector<1x128xf32>
      %2094 = arith.subf %2075, %2074 : vector<1x128xf32>
      %cst_262 = arith.constant 5.000000e-01 : f32
      %2095 = vector.broadcast %cst_262 : f32 to vector<1x128xf32>
      %2096 = arith.mulf %2095, %2087 : vector<1x128xf32>
      %2097 = arith.mulf %2094, %2096 : vector<1x128xf32>
      %cst_263 = arith.constant 0.000000e+00 : f32
      %2098 = vector.broadcast %cst_263 : f32 to vector<1x128xf32>
      %2099 = arith.cmpf oge, %2097, %2098 : vector<1x128xf32>
      %cst_264 = arith.constant 1.000000e+00 : f32
      %cst_265 = arith.constant -1.000000e+00 : f32
      %2100 = vector.broadcast %cst_264 : f32 to vector<1x128xf32>
      %2101 = vector.broadcast %cst_265 : f32 to vector<1x128xf32>
      %2102 = arith.select %2099, %2100, %2101 : vector<1x128xi1>, vector<1x128xf32>
      %2103 = math.absf %2097 : vector<1x128xf32>
      %2104 = arith.mulf %2097, %2097 : vector<1x128xf32>
      %cst_266 = arith.constant 1.000000e+00 : f32
      %2105 = vector.broadcast %cst_266 : f32 to vector<1x128xf32>
      %2106 = arith.addf %2105, %2104 : vector<1x128xf32>
      %2107 = math.sqrt %2106 : vector<1x128xf32>
      %2108 = arith.addf %2103, %2107 : vector<1x128xf32>
      %2109 = arith.divf %2102, %2108 : vector<1x128xf32>
      %2110 = arith.mulf %2109, %2109 : vector<1x128xf32>
      %cst_267 = arith.constant 1.000000e+00 : f32
      %2111 = vector.broadcast %cst_267 : f32 to vector<1x128xf32>
      %2112 = arith.addf %2111, %2110 : vector<1x128xf32>
      %2113 = math.rsqrt %2112 : vector<1x128xf32>
      %2114 = arith.mulf %2109, %2113 : vector<1x128xf32>
      %cst_268 = arith.constant 0.000000e+00 : f32
      %2115 = vector.broadcast %cst_268 : f32 to vector<1x128xf32>
      %2116 = arith.select %2083, %2115, %2114 : vector<1x128xi1>, vector<1x128xf32>
      %cst_269 = arith.constant 1.000000e+00 : f32
      %2117 = vector.broadcast %cst_269 : f32 to vector<1x128xf32>
      %2118 = arith.select %2083, %2117, %2113 : vector<1x128xi1>, vector<1x128xf32>
      %cst_270 = arith.constant 2.000000e+00 : f32
      %2119 = vector.broadcast %cst_270 : f32 to vector<1x128xf32>
      %2120 = arith.mulf %2119, %2118 : vector<1x128xf32>
      %2121 = arith.mulf %2120, %2116 : vector<1x128xf32>
      %2122 = arith.mulf %2118, %2118 : vector<1x128xf32>
      %2123 = arith.mulf %2122, %2074 : vector<1x128xf32>
      %2124 = arith.mulf %2121, %2081 : vector<1x128xf32>
      %2125 = arith.subf %2123, %2124 : vector<1x128xf32>
      %2126 = arith.mulf %2116, %2116 : vector<1x128xf32>
      %2127 = arith.mulf %2126, %2075 : vector<1x128xf32>
      %2128 = arith.addf %2125, %2127 : vector<1x128xf32>
      %2129 = arith.mulf %2116, %2116 : vector<1x128xf32>
      %2130 = arith.mulf %2129, %2074 : vector<1x128xf32>
      %2131 = arith.mulf %2121, %2081 : vector<1x128xf32>
      %2132 = arith.addf %2130, %2131 : vector<1x128xf32>
      %2133 = arith.mulf %2118, %2118 : vector<1x128xf32>
      %2134 = arith.mulf %2133, %2075 : vector<1x128xf32>
      %2135 = arith.addf %2132, %2134 : vector<1x128xf32>
      %2136 = vector.broadcast %2090 : vector<1x128xf32> to vector<5x128xf32>
      %2137 = arith.mulf %2136, %2067 : vector<5x128xf32>
      %2138 = vector.broadcast %2093 : vector<1x128xf32> to vector<5x128xf32>
      %2139 = arith.mulf %2138, %2069 : vector<5x128xf32>
      %2140 = arith.addf %2137, %2139 : vector<5x128xf32>
      %2141 = vector.broadcast %2090 : vector<1x128xf32> to vector<5x128xf32>
      %2142 = arith.mulf %2141, %2069 : vector<5x128xf32>
      %2143 = vector.broadcast %2093 : vector<1x128xf32> to vector<5x128xf32>
      %2144 = arith.mulf %2143, %2067 : vector<5x128xf32>
      %2145 = arith.subf %2142, %2144 : vector<5x128xf32>
      %2146 = vector.broadcast %2118 : vector<1x128xf32> to vector<5x128xf32>
      %2147 = arith.mulf %2146, %2140 : vector<5x128xf32>
      %2148 = vector.broadcast %2116 : vector<1x128xf32> to vector<5x128xf32>
      %2149 = arith.mulf %2148, %2071 : vector<5x128xf32>
      %2150 = arith.subf %2147, %2149 : vector<5x128xf32>
      %2151 = vector.broadcast %2118 : vector<1x128xf32> to vector<5x128xf32>
      %2152 = arith.mulf %2151, %2145 : vector<5x128xf32>
      %2153 = vector.broadcast %2116 : vector<1x128xf32> to vector<5x128xf32>
      %2154 = arith.mulf %2153, %2073 : vector<5x128xf32>
      %2155 = arith.subf %2152, %2154 : vector<5x128xf32>
      %2156 = vector.broadcast %2116 : vector<1x128xf32> to vector<5x128xf32>
      %2157 = arith.mulf %2156, %2140 : vector<5x128xf32>
      %2158 = vector.broadcast %2118 : vector<1x128xf32> to vector<5x128xf32>
      %2159 = arith.mulf %2158, %2071 : vector<5x128xf32>
      %2160 = arith.addf %2157, %2159 : vector<5x128xf32>
      %2161 = vector.broadcast %2116 : vector<1x128xf32> to vector<5x128xf32>
      %2162 = arith.mulf %2161, %2145 : vector<5x128xf32>
      %2163 = vector.broadcast %2118 : vector<1x128xf32> to vector<5x128xf32>
      %2164 = arith.mulf %2163, %2073 : vector<5x128xf32>
      %2165 = arith.addf %2162, %2164 : vector<5x128xf32>
      %c3_i32_271 = arith.constant 3 : i32
      %2166 = vector.broadcast %c3_i32_271 : i32 to vector<5x1xi32>
      %2167 = arith.cmpi eq, %52, %2166 : vector<5x1xi32>
      %c4_i32_272 = arith.constant 4 : i32
      %2168 = vector.broadcast %c4_i32_272 : i32 to vector<5x1xi32>
      %2169 = arith.cmpi eq, %52, %2168 : vector<5x1xi32>
      %2170 = arith.ori %2167, %2169 : vector<5x1xi1>
      %cst_273 = arith.constant 0.000000e+00 : f32
      %2171 = vector.shape_cast %2169 : vector<5x1xi1> to vector<5x1xi1>
      %2172 = vector.broadcast %2171 : vector<5x1xi1> to vector<5x128xi1>
      %2173 = vector.broadcast %cst_273 : f32 to vector<5x128xf32>
      %2174 = arith.select %2172, %2173, %2150 : vector<5x128xi1>, vector<5x128xf32>
      %2175 = vector.shape_cast %2167 : vector<5x1xi1> to vector<5x1xi1>
      %2176 = vector.broadcast %2175 : vector<5x1xi1> to vector<5x128xi1>
      %2177 = vector.shape_cast %2128 : vector<1x128xf32> to vector<1x128xf32>
      %2178 = vector.broadcast %2177 : vector<1x128xf32> to vector<5x128xf32>
      %2179 = arith.select %2176, %2178, %2174 : vector<5x128xi1>, vector<5x128xf32>
      %cst_274 = arith.constant 0.000000e+00 : f32
      %2180 = vector.shape_cast %2167 : vector<5x1xi1> to vector<5x1xi1>
      %2181 = vector.broadcast %2180 : vector<5x1xi1> to vector<5x128xi1>
      %2182 = vector.broadcast %cst_274 : f32 to vector<5x128xf32>
      %2183 = arith.select %2181, %2182, %2160 : vector<5x128xi1>, vector<5x128xf32>
      %2184 = vector.shape_cast %2169 : vector<5x1xi1> to vector<5x1xi1>
      %2185 = vector.broadcast %2184 : vector<5x1xi1> to vector<5x128xi1>
      %2186 = vector.shape_cast %2135 : vector<1x128xf32> to vector<1x128xf32>
      %2187 = vector.broadcast %2186 : vector<1x128xf32> to vector<5x128xf32>
      %2188 = arith.select %2185, %2187, %2183 : vector<5x128xi1>, vector<5x128xf32>
      %cst_275 = arith.constant 0.000000e+00 : f32
      %2189 = vector.shape_cast %2170 : vector<5x1xi1> to vector<5x1xi1>
      %2190 = vector.broadcast %2189 : vector<5x1xi1> to vector<5x128xi1>
      %2191 = vector.broadcast %cst_275 : f32 to vector<5x128xf32>
      %2192 = arith.select %2190, %2191, %2155 : vector<5x128xi1>, vector<5x128xf32>
      %cst_276 = arith.constant 0.000000e+00 : f32
      %2193 = vector.shape_cast %2170 : vector<5x1xi1> to vector<5x1xi1>
      %2194 = vector.broadcast %2193 : vector<5x1xi1> to vector<5x128xi1>
      %2195 = vector.broadcast %cst_276 : f32 to vector<5x128xf32>
      %2196 = arith.select %2194, %2195, %2165 : vector<5x128xi1>, vector<5x128xf32>
      %2197 = vector.shape_cast %2090 : vector<1x128xf32> to vector<1x1x128xf32>
      %2198 = vector.shape_cast %2093 : vector<1x128xf32> to vector<1x1x128xf32>
      %2199 = vector.shape_cast %2118 : vector<1x128xf32> to vector<1x1x128xf32>
      %2200 = vector.shape_cast %2116 : vector<1x128xf32> to vector<1x1x128xf32>
      %2201 = vector.extract_strided_slice %2053 {offsets = [0, 3, 0], sizes = [5, 1, 128], strides = [1, 1, 1]} : vector<5x5x128xf32> to vector<5x1x128xf32>
      %2202 = vector.extract_strided_slice %2065 {offsets = [0, 3, 0], sizes = [5, 1, 128], strides = [1, 1, 1]} : vector<5x5x128xf32> to vector<5x1x128xf32>
      %2203 = vector.extract_strided_slice %2053 {offsets = [0, 4, 0], sizes = [5, 1, 128], strides = [1, 1, 1]} : vector<5x5x128xf32> to vector<5x1x128xf32>
      %2204 = vector.extract_strided_slice %2065 {offsets = [0, 4, 0], sizes = [5, 1, 128], strides = [1, 1, 1]} : vector<5x5x128xf32> to vector<5x1x128xf32>
      %2205 = vector.broadcast %2197 : vector<1x1x128xf32> to vector<5x1x128xf32>
      %2206 = arith.mulf %2205, %2201 : vector<5x1x128xf32>
      %2207 = vector.broadcast %2198 : vector<1x1x128xf32> to vector<5x1x128xf32>
      %2208 = arith.mulf %2207, %2202 : vector<5x1x128xf32>
      %2209 = arith.subf %2206, %2208 : vector<5x1x128xf32>
      %2210 = vector.broadcast %2197 : vector<1x1x128xf32> to vector<5x1x128xf32>
      %2211 = arith.mulf %2210, %2202 : vector<5x1x128xf32>
      %2212 = vector.broadcast %2198 : vector<1x1x128xf32> to vector<5x1x128xf32>
      %2213 = arith.mulf %2212, %2201 : vector<5x1x128xf32>
      %2214 = arith.addf %2211, %2213 : vector<5x1x128xf32>
      %2215 = vector.broadcast %2199 : vector<1x1x128xf32> to vector<5x1x128xf32>
      %2216 = arith.mulf %2215, %2209 : vector<5x1x128xf32>
      %2217 = vector.broadcast %2200 : vector<1x1x128xf32> to vector<5x1x128xf32>
      %2218 = arith.mulf %2217, %2203 : vector<5x1x128xf32>
      %2219 = arith.subf %2216, %2218 : vector<5x1x128xf32>
      %2220 = vector.broadcast %2199 : vector<1x1x128xf32> to vector<5x1x128xf32>
      %2221 = arith.mulf %2220, %2214 : vector<5x1x128xf32>
      %2222 = vector.broadcast %2200 : vector<1x1x128xf32> to vector<5x1x128xf32>
      %2223 = arith.mulf %2222, %2204 : vector<5x1x128xf32>
      %2224 = arith.subf %2221, %2223 : vector<5x1x128xf32>
      %2225 = vector.broadcast %2200 : vector<1x1x128xf32> to vector<5x1x128xf32>
      %2226 = arith.mulf %2225, %2209 : vector<5x1x128xf32>
      %2227 = vector.broadcast %2199 : vector<1x1x128xf32> to vector<5x1x128xf32>
      %2228 = arith.mulf %2227, %2203 : vector<5x1x128xf32>
      %2229 = arith.addf %2226, %2228 : vector<5x1x128xf32>
      %2230 = vector.broadcast %2200 : vector<1x1x128xf32> to vector<5x1x128xf32>
      %2231 = arith.mulf %2230, %2214 : vector<5x1x128xf32>
      %2232 = vector.broadcast %2199 : vector<1x1x128xf32> to vector<5x1x128xf32>
      %2233 = arith.mulf %2232, %2204 : vector<5x1x128xf32>
      %2234 = arith.addf %2231, %2233 : vector<5x1x128xf32>
      %c3_i32_277 = arith.constant 3 : i32
      %2235 = vector.broadcast %c3_i32_277 : i32 to vector<1x5x1xi32>
      %2236 = arith.cmpi eq, %54, %2235 : vector<1x5x1xi32>
      %c4_i32_278 = arith.constant 4 : i32
      %2237 = vector.broadcast %c4_i32_278 : i32 to vector<1x5x1xi32>
      %2238 = arith.cmpi eq, %54, %2237 : vector<1x5x1xi32>
      %2239 = vector.shape_cast %2238 : vector<1x5x1xi1> to vector<1x5x1xi1>
      %2240 = vector.broadcast %2239 : vector<1x5x1xi1> to vector<5x5x128xi1>
      %2241 = vector.shape_cast %2229 : vector<5x1x128xf32> to vector<5x1x128xf32>
      %2242 = vector.broadcast %2241 : vector<5x1x128xf32> to vector<5x5x128xf32>
      %2243 = arith.select %2240, %2242, %2053 : vector<5x5x128xi1>, vector<5x5x128xf32>
      %2244 = vector.shape_cast %2236 : vector<1x5x1xi1> to vector<1x5x1xi1>
      %2245 = vector.broadcast %2244 : vector<1x5x1xi1> to vector<5x5x128xi1>
      %2246 = vector.shape_cast %2219 : vector<5x1x128xf32> to vector<5x1x128xf32>
      %2247 = vector.broadcast %2246 : vector<5x1x128xf32> to vector<5x5x128xf32>
      %2248 = arith.select %2245, %2247, %2243 : vector<5x5x128xi1>, vector<5x5x128xf32>
      %2249 = vector.shape_cast %2238 : vector<1x5x1xi1> to vector<1x5x1xi1>
      %2250 = vector.broadcast %2249 : vector<1x5x1xi1> to vector<5x5x128xi1>
      %2251 = vector.shape_cast %2234 : vector<5x1x128xf32> to vector<5x1x128xf32>
      %2252 = vector.broadcast %2251 : vector<5x1x128xf32> to vector<5x5x128xf32>
      %2253 = arith.select %2250, %2252, %2065 : vector<5x5x128xi1>, vector<5x5x128xf32>
      %2254 = vector.shape_cast %2236 : vector<1x5x1xi1> to vector<1x5x1xi1>
      %2255 = vector.broadcast %2254 : vector<1x5x1xi1> to vector<5x5x128xi1>
      %2256 = vector.shape_cast %2224 : vector<5x1x128xf32> to vector<5x1x128xf32>
      %2257 = vector.broadcast %2256 : vector<5x1x128xf32> to vector<5x5x128xf32>
      %2258 = arith.select %2255, %2257, %2253 : vector<5x5x128xi1>, vector<5x5x128xf32>
      %c3_i32_279 = arith.constant 3 : i32
      %2259 = vector.broadcast %c3_i32_279 : i32 to vector<5x1x1xi32>
      %2260 = arith.cmpi eq, %53, %2259 : vector<5x1x1xi32>
      %c4_i32_280 = arith.constant 4 : i32
      %2261 = vector.broadcast %c4_i32_280 : i32 to vector<5x1x1xi32>
      %2262 = arith.cmpi eq, %53, %2261 : vector<5x1x1xi32>
      %2263 = vector.shape_cast %2179 : vector<5x128xf32> to vector<1x5x128xf32>
      %2264 = vector.shape_cast %2188 : vector<5x128xf32> to vector<1x5x128xf32>
      %2265 = vector.shape_cast %2262 : vector<5x1x1xi1> to vector<5x1x1xi1>
      %2266 = vector.broadcast %2265 : vector<5x1x1xi1> to vector<5x5x128xi1>
      %2267 = vector.shape_cast %2264 : vector<1x5x128xf32> to vector<1x5x128xf32>
      %2268 = vector.broadcast %2267 : vector<1x5x128xf32> to vector<5x5x128xf32>
      %2269 = arith.select %2266, %2268, %2248 : vector<5x5x128xi1>, vector<5x5x128xf32>
      %2270 = vector.shape_cast %2260 : vector<5x1x1xi1> to vector<5x1x1xi1>
      %2271 = vector.broadcast %2270 : vector<5x1x1xi1> to vector<5x5x128xi1>
      %2272 = vector.shape_cast %2263 : vector<1x5x128xf32> to vector<1x5x128xf32>
      %2273 = vector.broadcast %2272 : vector<1x5x128xf32> to vector<5x5x128xf32>
      %2274 = arith.select %2271, %2273, %2269 : vector<5x5x128xi1>, vector<5x5x128xf32>
      %2275 = vector.shape_cast %2192 : vector<5x128xf32> to vector<1x5x128xf32>
      %2276 = vector.shape_cast %2196 : vector<5x128xf32> to vector<1x5x128xf32>
      %2277 = vector.shape_cast %2262 : vector<5x1x1xi1> to vector<5x1x1xi1>
      %2278 = vector.broadcast %2277 : vector<5x1x1xi1> to vector<5x5x128xi1>
      %2279 = vector.shape_cast %2276 : vector<1x5x128xf32> to vector<1x5x128xf32>
      %2280 = vector.broadcast %2279 : vector<1x5x128xf32> to vector<5x5x128xf32>
      %2281 = arith.select %2278, %2280, %2258 : vector<5x5x128xi1>, vector<5x5x128xf32>
      %2282 = vector.shape_cast %2260 : vector<5x1x1xi1> to vector<5x1x1xi1>
      %2283 = vector.broadcast %2282 : vector<5x1x1xi1> to vector<5x5x128xi1>
      %2284 = vector.shape_cast %2275 : vector<1x5x128xf32> to vector<1x5x128xf32>
      %2285 = vector.broadcast %2284 : vector<1x5x128xf32> to vector<5x5x128xf32>
      %2286 = arith.select %2283, %2285, %2281 : vector<5x5x128xi1>, vector<5x5x128xf32>
      scf.yield %2274, %2286 : vector<5x5x128xf32>, vector<5x5x128xf32>
    }
    %57 = vector.extract_strided_slice %56#0 {offsets = [0, 0, 0], sizes = [1, 5, 128], strides = [1, 1, 1]} : vector<5x5x128xf32> to vector<1x5x128xf32>
    %58 = vector.shape_cast %57 : vector<1x5x128xf32> to vector<5x128xf32>
    %59 = vector.extract_strided_slice %58 {offsets = [0, 0], sizes = [1, 128], strides = [1, 1]} : vector<5x128xf32> to vector<1x128xf32>
    %c0_36 = arith.constant 0 : index
    %c0_37 = arith.constant 0 : index
    %60 = vector.load %arg6[%c0_36, %c0_37] : memref<5x128xf32, #tpu.memory_space<vmem>>, vector<1x128xf32>
    tpu.vector_store %arg6[%c0_36, %c0_37], %59 {strides = array<i32>} : memref<5x128xf32, #tpu.memory_space<vmem>>, vector<1x128xf32>,
    %61 = vector.extract_strided_slice %56#0 {offsets = [1, 0, 0], sizes = [1, 5, 128], strides = [1, 1, 1]} : vector<5x5x128xf32> to vector<1x5x128xf32>
    %62 = vector.shape_cast %61 : vector<1x5x128xf32> to vector<5x128xf32>
    %63 = vector.extract_strided_slice %62 {offsets = [1, 0], sizes = [1, 128], strides = [1, 1]} : vector<5x128xf32> to vector<1x128xf32>
    %c1_38 = arith.constant 1 : index
    %c0_39 = arith.constant 0 : index
    %64 = vector.load %arg6[%c1_38, %c0_39] : memref<5x128xf32, #tpu.memory_space<vmem>>, vector<1x128xf32>
    tpu.vector_store %arg6[%c1_38, %c0_39], %63 {strides = array<i32>} : memref<5x128xf32, #tpu.memory_space<vmem>>, vector<1x128xf32>,
    %65 = vector.extract_strided_slice %56#0 {offsets = [2, 0, 0], sizes = [1, 5, 128], strides = [1, 1, 1]} : vector<5x5x128xf32> to vector<1x5x128xf32>
    %66 = vector.shape_cast %65 : vector<1x5x128xf32> to vector<5x128xf32>
    %67 = vector.extract_strided_slice %66 {offsets = [2, 0], sizes = [1, 128], strides = [1, 1]} : vector<5x128xf32> to vector<1x128xf32>
    %c2_40 = arith.constant 2 : index
    %c0_41 = arith.constant 0 : index
    %68 = vector.load %arg6[%c2_40, %c0_41] : memref<5x128xf32, #tpu.memory_space<vmem>>, vector<1x128xf32>
    tpu.vector_store %arg6[%c2_40, %c0_41], %67 {strides = array<i32>} : memref<5x128xf32, #tpu.memory_space<vmem>>, vector<1x128xf32>,
    %69 = vector.extract_strided_slice %56#0 {offsets = [3, 0, 0], sizes = [1, 5, 128], strides = [1, 1, 1]} : vector<5x5x128xf32> to vector<1x5x128xf32>
    %70 = vector.shape_cast %69 : vector<1x5x128xf32> to vector<5x128xf32>
    %71 = vector.extract_strided_slice %70 {offsets = [3, 0], sizes = [1, 128], strides = [1, 1]} : vector<5x128xf32> to vector<1x128xf32>
    %c3 = arith.constant 3 : index
    %c0_42 = arith.constant 0 : index
    %72 = vector.load %arg6[%c3, %c0_42] : memref<5x128xf32, #tpu.memory_space<vmem>>, vector<1x128xf32>
    tpu.vector_store %arg6[%c3, %c0_42], %71 {strides = array<i32>} : memref<5x128xf32, #tpu.memory_space<vmem>>, vector<1x128xf32>,
    %73 = vector.extract_strided_slice %56#0 {offsets = [4, 0, 0], sizes = [1, 5, 128], strides = [1, 1, 1]} : vector<5x5x128xf32> to vector<1x5x128xf32>
    %74 = vector.shape_cast %73 : vector<1x5x128xf32> to vector<5x128xf32>
    %75 = vector.extract_strided_slice %74 {offsets = [4, 0], sizes = [1, 128], strides = [1, 1]} : vector<5x128xf32> to vector<1x128xf32>
    %c4 = arith.constant 4 : index
    %c0_43 = arith.constant 0 : index
    %76 = vector.load %arg6[%c4, %c0_43] : memref<5x128xf32, #tpu.memory_space<vmem>>, vector<1x128xf32>
    tpu.vector_store %arg6[%c4, %c0_43], %75 {strides = array<i32>} : memref<5x128xf32, #tpu.memory_space<vmem>>, vector<1x128xf32>,
    return
  }
  func.func @transform_0(%arg0: i32) -> (i32, i32) {
    %c0_i32 = arith.constant 0 : i32
    %c0_i32_0 = arith.constant 0 : i32
    return %c0_i32, %arg0 : i32, i32
  }
  func.func @transform_1(%arg0: i32) -> (i32, i32) {
    %c0_i32 = arith.constant 0 : i32
    %c0_i32_0 = arith.constant 0 : i32
    return %c0_i32, %arg0 : i32, i32
  }
  func.func @transform_2(%arg0: i32) -> (i32, i32, i32, i32) {
    %c0_i32 = arith.constant 0 : i32
    %c0_i32_0 = arith.constant 0 : i32
    %c0_i32_1 = arith.constant 0 : i32
    %c0_i32_2 = arith.constant 0 : i32
    %c0_i32_3 = arith.constant 0 : i32
    return %c0_i32, %c0_i32_0, %c0_i32_1, %c0_i32_2 : i32, i32, i32, i32
  }
  func.func @transform_3(%arg0: i32) -> (i32, i32, i32, i32) {
    %c0_i32 = arith.constant 0 : i32
    %c0_i32_0 = arith.constant 0 : i32
    %c0_i32_1 = arith.constant 0 : i32
    %c0_i32_2 = arith.constant 0 : i32
    %c0_i32_3 = arith.constant 0 : i32
    return %c0_i32, %c0_i32_0, %c0_i32_1, %c0_i32_2 : i32, i32, i32, i32
  }
  func.func @transform_4(%arg0: i32) -> (i32, i32, i32) {
    %c0_i32 = arith.constant 0 : i32
    %c0_i32_0 = arith.constant 0 : i32
    %c0_i32_1 = arith.constant 0 : i32
    %c0_i32_2 = arith.constant 0 : i32
    return %c0_i32, %c0_i32_0, %c0_i32_1 : i32, i32, i32
  }
  func.func @transform_5(%arg0: i32) -> (i32, i32) {
    %c0_i32 = arith.constant 0 : i32
    %c0_i32_0 = arith.constant 0 : i32
    return %c0_i32, %arg0 : i32, i32
  }
}

</mosaic_0001>

<llo_original>
// kernel: _tb_eigenvalues.1
$region0: #{_tb_eigenvalues.1}
  #allocation0 [shape = 'u32[]', space=smem, size = 0x4, offset = 0x4, fixed_abs, tag = 'smem constant byte address 0x4 - core index']
  #allocation1 [shape = 'u32[144,128]{1,0:T(1,128)}', space=vmem, size = 0x12000, scoped, tag = 'internal scratch']
  %s0 = inlined_call_operand.vmem [shape: f32[3,128], index: 0, kind: input, shape index: {}]
  %s1 = inlined_call_operand.vmem [shape: f32[3,128], index: 1, kind: input, shape index: {}]
  %s2 = inlined_call_operand.vmem [shape: f32[3,5,5,1], index: 2, kind: input, shape index: {}]
  %s3 = inlined_call_operand.vmem [shape: f32[3,5,5,1], index: 3, kind: input, shape index: {}]
  %s4 = inlined_call_operand.vmem [shape: f32[5,5,1], index: 4, kind: input, shape index: {}]
  %s5 = inlined_call_operand.vmem [shape: f32[5,128], index: 5, kind: output, shape index: {}]
  %s6 = sld [smem:[#allocation0]]
  $region37: #{_tb_eigenvalues.1} parent=0
    _
  %s8 = ssub.s32 1, %s6
  %s9 = scalar_select 0, %s8, %s6
  // Predicated region
  $region2: #{_tb_eigenvalues.1} parent=0 // pred_check
    _
  $region3: #{_tb_eigenvalues.1} parent=0 // pred_check_branch
    %11 = sbr.rel (0) target = $region5
  $region4: #{_tb_eigenvalues.1} parent=0 // pred_region
    _
  $region5: #{_tb_eigenvalues.1} parent=0 // pred_fallthru
    _
  // Predicated region
  $region6: #{_tb_eigenvalues.1} parent=0 // pred_check
    _
  $region7: #{_tb_eigenvalues.1} parent=0 // pred_check_branch
    %13 = sbr.rel (0) target = $region9
  $region8: #{_tb_eigenvalues.1} parent=0 // pred_region
    _
  $region9: #{_tb_eigenvalues.1} parent=0 // pred_fallthru
    _
  // Predicated region
  $region10: #{_tb_eigenvalues.1} parent=0 // pred_check
    _
  $region11: #{_tb_eigenvalues.1} parent=0 // pred_check_branch
    %15 = sbr.rel (0) target = $region13
  $region12: #{_tb_eigenvalues.1} parent=0 // pred_region
    _
  $region13: #{_tb_eigenvalues.1} parent=0 // pred_fallthru
    _
  // Predicated region
  $region14: #{_tb_eigenvalues.1} parent=0 // pred_check
    _
  $region15: #{_tb_eigenvalues.1} parent=0 // pred_check_branch
    %17 = sbr.rel (0) target = $region17
  $region16: #{_tb_eigenvalues.1} parent=0 // pred_region
    _
  $region17: #{_tb_eigenvalues.1} parent=0 // pred_fallthru
    _
  // Predicated region
  $region18: #{_tb_eigenvalues.1} parent=0 // pred_check
    _
  $region19: #{_tb_eigenvalues.1} parent=0 // pred_check_branch
    %19 = sbr.rel (0) target = $region21
  $region20: #{_tb_eigenvalues.1} parent=0 // pred_region
    _
  $region21: #{_tb_eigenvalues.1} parent=0 // pred_fallthru
    _
  %v20 = vld [vmem:[%s4] sm:$0x1f]
  %v21 = vld [vmem:[%s4 + $0x8] sm:$0x1f]
  %v22 = vld [vmem:[%s4 + $0x10] sm:$0x1f]
  %v23 = vld [vmem:[%s4 + $0x18] sm:$0x1f]
  %v24 = vld [vmem:[%s4 + $0x20] sm:$0x1f]
  %26 = vset.pattern.permute.xlu0 0
  %27 = vperm.xlu0 %26, %v20
  %v28 = vpop.permute.xlu0 %27
  %31 = vset.pattern.permute.xlu0 0
  %32 = vperm.xlu0 %31, %v21
  %v33 = vpop.permute.xlu0 %32
  %36 = vset.pattern.permute.xlu0 0
  %37 = vperm.xlu0 %36, %v22
  %v38 = vpop.permute.xlu0 %37
  %41 = vset.pattern.permute.xlu0 0
  %42 = vperm.xlu0 %41, %v23
  %v43 = vpop.permute.xlu0 %42
  %46 = vset.pattern.permute.xlu0 0
  %47 = vperm.xlu0 %46, %v24
  %v48 = vpop.permute.xlu0 %47
  %v50 = vld [vmem:[%s0] sm:$0x1]
  %v51 = vld [vmem:[%s1] sm:$0x1]
  %v52 = vld [vmem:[%s2] sm:$0x1f]
  %v53 = vld [vmem:[%s2 + $0x8] sm:$0x1f]
  %v54 = vld [vmem:[%s2 + $0x10] sm:$0x1f]
  %v55 = vld [vmem:[%s2 + $0x18] sm:$0x1f]
  %v56 = vld [vmem:[%s2 + $0x20] sm:$0x1f]
  %58 = vset.pattern.permute.xlu0 0
  %59 = vperm.xlu0 %58, %v52
  %v60 = vpop.permute.xlu0 %59
  %63 = vset.pattern.permute.xlu0 0
  %64 = vperm.xlu0 %63, %v53
  %v65 = vpop.permute.xlu0 %64
  %68 = vset.pattern.permute.xlu0 0
  %69 = vperm.xlu0 %68, %v54
  %v70 = vpop.permute.xlu0 %69
  %73 = vset.pattern.permute.xlu0 0
  %74 = vperm.xlu0 %73, %v55
  %v75 = vpop.permute.xlu0 %74
  %78 = vset.pattern.permute.xlu0 0
  %79 = vperm.xlu0 %78, %v56
  %v80 = vpop.permute.xlu0 %79
  %v82 = vlaneseq
  %v83 = vshrl.u32 %v82, 7
  %v84 = vsub.s32 0, %v83
  %v85 = vrot.slane %v50, %v84
  %v86 = vmul.f32 %v60, %v85
  %v87 = vmul.f32 %v65, %v85
  %v88 = vmul.f32 %v70, %v85
  %v89 = vmul.f32 %v75, %v85
  %v90 = vmul.f32 %v80, %v85
  %v91 = vadd.f32 %v28, %v86
  %v92 = vadd.f32 %v33, %v87
  %v93 = vadd.f32 %v38, %v88
  %v94 = vadd.f32 %v43, %v89
  %v95 = vadd.f32 %v48, %v90
  %v96 = vld [vmem:[%s3] sm:$0x1f]
  %v97 = vld [vmem:[%s3 + $0x8] sm:$0x1f]
  %v98 = vld [vmem:[%s3 + $0x10] sm:$0x1f]
  %v99 = vld [vmem:[%s3 + $0x18] sm:$0x1f]
  %v100 = vld [vmem:[%s3 + $0x20] sm:$0x1f]
  %102 = vset.pattern.permute.xlu0 0
  %103 = vperm.xlu0 %102, %v96
  %v104 = vpop.permute.xlu0 %103
  %107 = vset.pattern.permute.xlu0 0
  %108 = vperm.xlu0 %107, %v97
  %v109 = vpop.permute.xlu0 %108
  %112 = vset.pattern.permute.xlu0 0
  %113 = vperm.xlu0 %112, %v98
  %v114 = vpop.permute.xlu0 %113
  %117 = vset.pattern.permute.xlu0 0
  %118 = vperm.xlu0 %117, %v99
  %v119 = vpop.permute.xlu0 %118
  %122 = vset.pattern.permute.xlu0 0
  %123 = vperm.xlu0 %122, %v100
  %v124 = vpop.permute.xlu0 %123
  %v126 = vlaneseq
  %v127 = vshrl.u32 %v126, 7
  %v128 = vsub.s32 0, %v127
  %v129 = vrot.slane %v51, %v128
  %v130 = vmul.f32 %v104, %v129
  %v131 = vmul.f32 %v109, %v129
  %v132 = vmul.f32 %v114, %v129
  %v133 = vmul.f32 %v119, %v129
  %v134 = vmul.f32 %v124, %v129
  %v135 = vadd.f32 %v130, 0.0
  %v136 = vadd.f32 %v131, 0.0
  %v137 = vadd.f32 %v132, 0.0
  %v138 = vadd.f32 %v133, 0.0
  %v139 = vadd.f32 %v134, 0.0
  %v140 = vld [vmem:[%s0 + $0x1] sm:$0x1]
  %v141 = vld [vmem:[%s1 + $0x1] sm:$0x1]
  %s142 = scalar_lea.vmem %s2, 40
  %v143 = vld [vmem:[%s142] sm:$0x1f]
  %v144 = vld [vmem:[%s142 + $0x8] sm:$0x1f]
  %v145 = vld [vmem:[%s142 + $0x10] sm:$0x1f]
  %v146 = vld [vmem:[%s142 + $0x18] sm:$0x1f]
  %v147 = vld [vmem:[%s142 + $0x20] sm:$0x1f]
  %149 = vset.pattern.permute.xlu0 0
  %150 = vperm.xlu0 %149, %v143
  %v151 = vpop.permute.xlu0 %150
  %154 = vset.pattern.permute.xlu0 0
  %155 = vperm.xlu0 %154, %v144
  %v156 = vpop.permute.xlu0 %155
  %159 = vset.pattern.permute.xlu0 0
  %160 = vperm.xlu0 %159, %v145
  %v161 = vpop.permute.xlu0 %160
  %164 = vset.pattern.permute.xlu0 0
  %165 = vperm.xlu0 %164, %v146
  %v166 = vpop.permute.xlu0 %165
  %169 = vset.pattern.permute.xlu0 0
  %170 = vperm.xlu0 %169, %v147
  %v171 = vpop.permute.xlu0 %170
  %v173 = vlaneseq
  %v174 = vshrl.u32 %v173, 7
  %v175 = vsub.s32 0, %v174
  %v176 = vrot.slane %v140, %v175
  %v177 = vmul.f32 %v151, %v176
  %v178 = vmul.f32 %v156, %v176
  %v179 = vmul.f32 %v161, %v176
  %v180 = vmul.f32 %v166, %v176
  %v181 = vmul.f32 %v171, %v176
  %v182 = vadd.f32 %v91, %v177
  %v183 = vadd.f32 %v92, %v178
  %v184 = vadd.f32 %v93, %v179
  %v185 = vadd.f32 %v94, %v180
  %v186 = vadd.f32 %v95, %v181
  %s187 = scalar_lea.vmem %s3, 40
  %v188 = vld [vmem:[%s187] sm:$0x1f]
  %v189 = vld [vmem:[%s187 + $0x8] sm:$0x1f]
  %v190 = vld [vmem:[%s187 + $0x10] sm:$0x1f]
  %v191 = vld [vmem:[%s187 + $0x18] sm:$0x1f]
  %v192 = vld [vmem:[%s187 + $0x20] sm:$0x1f]
  %194 = vset.pattern.permute.xlu0 0
  %195 = vperm.xlu0 %194, %v188
  %v196 = vpop.permute.xlu0 %195
  %199 = vset.pattern.permute.xlu0 0
  %200 = vperm.xlu0 %199, %v189
  %v201 = vpop.permute.xlu0 %200
  %204 = vset.pattern.permute.xlu0 0
  %205 = vperm.xlu0 %204, %v190
  %v206 = vpop.permute.xlu0 %205
  %209 = vset.pattern.permute.xlu0 0
  %210 = vperm.xlu0 %209, %v191
  %v211 = vpop.permute.xlu0 %210
  %214 = vset.pattern.permute.xlu0 0
  %215 = vperm.xlu0 %214, %v192
  %v216 = vpop.permute.xlu0 %215
  %v218 = vlaneseq
  %v219 = vshrl.u32 %v218, 7
  %v220 = vsub.s32 0, %v219
  %v221 = vrot.slane %v141, %v220
  %v222 = vmul.f32 %v196, %v221
  %v223 = vmul.f32 %v201, %v221
  %v224 = vmul.f32 %v206, %v221
  %v225 = vmul.f32 %v211, %v221
  %v226 = vmul.f32 %v216, %v221
  %v227 = vadd.f32 %v135, %v222
  %v228 = vadd.f32 %v136, %v223
  %v229 = vadd.f32 %v137, %v224
  %v230 = vadd.f32 %v138, %v225
  %v231 = vadd.f32 %v139, %v226
  %v232 = vld [vmem:[%s0 + $0x2] sm:$0x1]
  %v233 = vld [vmem:[%s1 + $0x2] sm:$0x1]
  %s234 = scalar_lea.vmem %s2, 80
  %v235 = vld [vmem:[%s234] sm:$0x1f]
  %v236 = vld [vmem:[%s234 + $0x8] sm:$0x1f]
  %v237 = vld [vmem:[%s234 + $0x10] sm:$0x1f]
  %v238 = vld [vmem:[%s234 + $0x18] sm:$0x1f]
  %v239 = vld [vmem:[%s234 + $0x20] sm:$0x1f]
  %241 = vset.pattern.permute.xlu0 0
  %242 = vperm.xlu0 %241, %v235
  %v243 = vpop.permute.xlu0 %242
  %246 = vset.pattern.permute.xlu0 0
  %247 = vperm.xlu0 %246, %v236
  %v248 = vpop.permute.xlu0 %247
  %251 = vset.pattern.permute.xlu0 0
  %252 = vperm.xlu0 %251, %v237
  %v253 = vpop.permute.xlu0 %252
  %256 = vset.pattern.permute.xlu0 0
  %257 = vperm.xlu0 %256, %v238
  %v258 = vpop.permute.xlu0 %257
  %261 = vset.pattern.permute.xlu0 0
  %262 = vperm.xlu0 %261, %v239
  %v263 = vpop.permute.xlu0 %262
  %v265 = vlaneseq
  %v266 = vshrl.u32 %v265, 7
  %v267 = vsub.s32 0, %v266
  %v268 = vrot.slane %v232, %v267
  %v269 = vmul.f32 %v243, %v268
  %v270 = vmul.f32 %v248, %v268
  %v271 = vmul.f32 %v253, %v268
  %v272 = vmul.f32 %v258, %v268
  %v273 = vmul.f32 %v263, %v268
  %v274 = vadd.f32 %v182, %v269
  %v275 = vadd.f32 %v183, %v270
  %v276 = vadd.f32 %v184, %v271
  %v277 = vadd.f32 %v185, %v272
  %v278 = vadd.f32 %v186, %v273
  %s279 = scalar_lea.vmem %s3, 80
  %v280 = vld [vmem:[%s279] sm:$0x1f]
  %v281 = vld [vmem:[%s279 + $0x8] sm:$0x1f]
  %v282 = vld [vmem:[%s279 + $0x10] sm:$0x1f]
  %v283 = vld [vmem:[%s279 + $0x18] sm:$0x1f]
  %v284 = vld [vmem:[%s279 + $0x20] sm:$0x1f]
  %286 = vset.pattern.permute.xlu0 0
  %287 = vperm.xlu0 %286, %v280
  %v288 = vpop.permute.xlu0 %287
  %291 = vset.pattern.permute.xlu0 0
  %292 = vperm.xlu0 %291, %v281
  %v293 = vpop.permute.xlu0 %292
  %296 = vset.pattern.permute.xlu0 0
  %297 = vperm.xlu0 %296, %v282
  %v298 = vpop.permute.xlu0 %297
  %301 = vset.pattern.permute.xlu0 0
  %302 = vperm.xlu0 %301, %v283
  %v303 = vpop.permute.xlu0 %302
  %306 = vset.pattern.permute.xlu0 0
  %307 = vperm.xlu0 %306, %v284
  %v308 = vpop.permute.xlu0 %307
  %v310 = vlaneseq
  %v311 = vshrl.u32 %v310, 7
  %v312 = vsub.s32 0, %v311
  %v313 = vrot.slane %v233, %v312
  %v314 = vmul.f32 %v288, %v313
  %v315 = vmul.f32 %v293, %v313
  %v316 = vmul.f32 %v298, %v313
  %v317 = vmul.f32 %v303, %v313
  %v318 = vmul.f32 %v308, %v313
  %v319 = vadd.f32 %v227, %v314
  %v320 = vadd.f32 %v228, %v315
  %v321 = vadd.f32 %v229, %v316
  %v322 = vadd.f32 %v230, %v317
  %v323 = vadd.f32 %v231, %v318
  %v324 = vlaneseq
  %v325 = vshrl.u32 %v324, 7
  loop: start=0, step=1, limit=8
  $region22: #{_tb_eigenvalues.1} parent=0 // loop_pre_header
    _
  $region23: #{_tb_eigenvalues.1} parent=0 // loop_header
    %s327 = sphi 0, %s331
    %p328 = scmp.ge.s32.totalorder %s327, 8
    %v332 = vphi %v274, %v3802
    %v333 = vphi %v275, %v3803
    %v334 = vphi %v276, %v3804
    %v335 = vphi %v277, %v3805
    %v336 = vphi %v278, %v3806
    %v337 = vphi %v319, %v3812
    %v338 = vphi %v320, %v3813
    %v339 = vphi %v321, %v3814
    %v340 = vphi %v322, %v3815
    %v341 = vphi %v323, %v3816
  $region24: #{_tb_eigenvalues.1} parent=0 // loop_header_branch
    %330 = sbr.rel (%p328) target = $region28
  $region25: #{_tb_eigenvalues.1} parent=0 // loop_body
    %v342 = vmul.f32 %v332, %v332
    %v343 = vmul.f32 %v337, %v337
    %v344 = vadd.f32 %v342, %v343
    %v345 = vrsqrt.pop %v344
    %v346 = vmul.f32 %v344, %v345
    %vm347 = vcmp.eq.f32.partialorder %v344, inf
    %v348 = vsel %vm347, %v344, %v346
    %vm349 = vcmp.eq.f32.partialorder %v344, 0.0
    %v350 = vand.u32 %v344, 2147483648
    %v351 = vsel %vm349, %v350, %v348
    %vm352 = vcmp.le.f32.partialorder %v351, 1e-10
    %v353 = vsel %vm352, 1.0, %v351
    %v354 = vrcp.pop %v353
    %v355 = vmul.f32 1.0, %v354
    %v356 = vmul.f32 %v332, %v355
    %v357 = vsel %vm352, 1.0, %v356
    %v358 = vmul.f32 %v337, %v355
    %v359 = vsel %vm352, 0.0, %v358
    %v361 = vrot.slane %v332, 7
    %v363 = vsub.f32 %v333, %v361
    %v364 = vmul.f32 %v355, 0.5
    %v365 = vmul.f32 %v363, %v364
    %vm366 = vcmp.ge.f32.partialorder %v365, 0.0
    %v367 = vsel %vm366, 1.0, -1.0
    %v368 = vand.u32 2147483647, %v365
    %v369 = vmul.f32 %v365, %v365
    %v370 = vadd.f32 %v369, 1.0
    %v371 = vrsqrt.pop %v370
    %v372 = vmul.f32 %v370, %v371
    %vm373 = vcmp.eq.f32.partialorder %v370, inf
    %v374 = vsel %vm373, %v370, %v372
    %vm375 = vcmp.eq.f32.partialorder %v370, 0.0
    %v376 = vand.u32 %v370, 2147483648
    %v377 = vsel %vm375, %v376, %v374
    %v378 = vadd.f32 %v368, %v377
    %v379 = vrcp.pop %v378
    %v380 = vmul.f32 %v367, %v379
    %v381 = vmul.f32 %v380, %v380
    %v382 = vadd.f32 %v381, 1.0
    %v383 = vrsqrt.pop %v382
    %v384 = vmul.f32 %v380, %v383
    %v385 = vsel %vm352, 0.0, %v384
    %v386 = vsel %vm352, 1.0, %v383
    %v387 = vmul.f32 %v386, 2.0
    %v388 = vmul.f32 %v387, %v385
    %v389 = vmul.f32 %v386, %v386
    %v390 = vmul.f32 %v389, %v361
    %v391 = vmul.f32 %v388, %v351
    %v392 = vsub.f32 %v390, %v391
    %v393 = vmul.f32 %v385, %v385
    %v394 = vmul.f32 %v393, %v333
    %v395 = vadd.f32 %v392, %v394
    %v396 = vmul.f32 %v393, %v361
    %v397 = vadd.f32 %v396, %v391
    %v398 = vmul.f32 %v389, %v333
    %v399 = vadd.f32 %v397, %v398
    %v400 = vlaneseq
    %v401 = vshrl.u32 %v400, 7
    %v402 = vsub.s32 1, %v401
    %v403 = vrot.slane %v357, %v402
    %v404 = vmul.f32 %v403, %v332
    %v405 = vlaneseq
    %v406 = vshrl.u32 %v405, 7
    %v407 = vsub.s32 1, %v406
    %v408 = vrot.slane %v359, %v407
    %v409 = vmul.f32 %v408, %v337
    %v410 = vadd.f32 %v404, %v409
    %v411 = vmul.f32 %v403, %v337
    %v412 = vmul.f32 %v408, %v332
    %v413 = vsub.f32 %v411, %v412
    %v414 = vlaneseq
    %v415 = vshrl.u32 %v414, 7
    %v416 = vsub.s32 1, %v415
    %v417 = vrot.slane %v386, %v416
    %v418 = vmul.f32 %v417, %v410
    %v419 = vlaneseq
    %v420 = vshrl.u32 %v419, 7
    %v421 = vsub.s32 1, %v420
    %v422 = vrot.slane %v385, %v421
    %v423 = vmul.f32 %v422, %v333
    %v424 = vsub.f32 %v418, %v423
    %v425 = vmul.f32 %v417, %v413
    %v426 = vmul.f32 %v422, %v338
    %v427 = vsub.f32 %v425, %v426
    %v428 = vmul.f32 %v422, %v410
    %v429 = vmul.f32 %v417, %v333
    %v430 = vadd.f32 %v428, %v429
    %v431 = vmul.f32 %v422, %v413
    %v432 = vmul.f32 %v417, %v338
    %v433 = vadd.f32 %v431, %v432
    %vm434 = vcmp.eq.s32.totalorder %v325, 0
    %vm435 = vcmp.eq.s32.totalorder %v325, 1
    %vm436 = vmor %vm434, %vm435
    %v437 = vsel %vm435, 1, 0
    %vm438 = vcmp.eq.s32.totalorder %v437, 1
    %v439 = vsel %vm438, 0.0, %v424
    %v440 = vsel %vm434, 1, 0
    %vm441 = vcmp.eq.s32.totalorder %v440, 1
    %v442 = vlaneseq
    %v443 = vshrl.u32 %v442, 7
    %v444 = vsub.s32 1, %v443
    %v445 = vrot.slane %v395, %v444
    %v446 = vsel %vm441, %v445, %v439
    %v447 = vsel %vm441, 0.0, %v430
    %v448 = vlaneseq
    %v449 = vshrl.u32 %v448, 7
    %v450 = vsub.s32 1, %v449
    %v451 = vrot.slane %v399, %v450
    %v452 = vsel %vm438, %v451, %v447
    %v453 = vsel %vm436, 1, 0
    %vm454 = vcmp.eq.s32.totalorder %v453, 1
    %v455 = vsel %vm454, 0.0, %v427
    %v456 = vsel %vm454, 0.0, %v433
    %v461 = vrot.slane %v333, 7
    %v462 = vrot.slane %v334, 7
    %v463 = vrot.slane %v335, 7
    %v464 = vrot.slane %v336, 7
    %v469 = vmul.f32 %v357, %v361
    %v470 = vmul.f32 %v357, %v461
    %v471 = vmul.f32 %v357, %v462
    %v472 = vmul.f32 %v357, %v463
    %v473 = vmul.f32 %v357, %v464
    %v479 = vrot.slane %v337, 7
    %v480 = vrot.slane %v338, 7
    %v481 = vrot.slane %v339, 7
    %v482 = vrot.slane %v340, 7
    %v483 = vrot.slane %v341, 7
    %v489 = vmul.f32 %v359, %v479
    %v490 = vmul.f32 %v359, %v480
    %v491 = vmul.f32 %v359, %v481
    %v492 = vmul.f32 %v359, %v482
    %v493 = vmul.f32 %v359, %v483
    %v494 = vsub.f32 %v469, %v489
    %v495 = vsub.f32 %v470, %v490
    %v496 = vsub.f32 %v471, %v491
    %v497 = vsub.f32 %v472, %v492
    %v498 = vsub.f32 %v473, %v493
    %v499 = vmul.f32 %v357, %v479
    %v500 = vmul.f32 %v357, %v480
    %v501 = vmul.f32 %v357, %v481
    %v502 = vmul.f32 %v357, %v482
    %v503 = vmul.f32 %v357, %v483
    %v504 = vmul.f32 %v359, %v361
    %v505 = vmul.f32 %v359, %v461
    %v506 = vmul.f32 %v359, %v462
    %v507 = vmul.f32 %v359, %v463
    %v508 = vmul.f32 %v359, %v464
    %v509 = vadd.f32 %v499, %v504
    %v510 = vadd.f32 %v500, %v505
    %v511 = vadd.f32 %v501, %v506
    %v512 = vadd.f32 %v502, %v507
    %v513 = vadd.f32 %v503, %v508
    %v514 = vmul.f32 %v386, %v494
    %v515 = vmul.f32 %v386, %v495
    %v516 = vmul.f32 %v386, %v496
    %v517 = vmul.f32 %v386, %v497
    %v518 = vmul.f32 %v386, %v498
    %v519 = vmul.f32 %v385, %v332
    %v520 = vmul.f32 %v385, %v333
    %v521 = vmul.f32 %v385, %v334
    %v522 = vmul.f32 %v385, %v335
    %v523 = vmul.f32 %v385, %v336
    %v524 = vsub.f32 %v514, %v519
    %v525 = vsub.f32 %v515, %v520
    %v526 = vsub.f32 %v516, %v521
    %v527 = vsub.f32 %v517, %v522
    %v528 = vsub.f32 %v518, %v523
    %v529 = vmul.f32 %v386, %v509
    %v530 = vmul.f32 %v386, %v510
    %v531 = vmul.f32 %v386, %v511
    %v532 = vmul.f32 %v386, %v512
    %v533 = vmul.f32 %v386, %v513
    %v534 = vmul.f32 %v385, %v337
    %v535 = vmul.f32 %v385, %v338
    %v536 = vmul.f32 %v385, %v339
    %v537 = vmul.f32 %v385, %v340
    %v538 = vmul.f32 %v385, %v341
    %v539 = vsub.f32 %v529, %v534
    %v540 = vsub.f32 %v530, %v535
    %v541 = vsub.f32 %v531, %v536
    %v542 = vsub.f32 %v532, %v537
    %v543 = vsub.f32 %v533, %v538
    %v544 = vmul.f32 %v385, %v494
    %v545 = vmul.f32 %v385, %v495
    %v546 = vmul.f32 %v385, %v496
    %v547 = vmul.f32 %v385, %v497
    %v548 = vmul.f32 %v385, %v498
    %v549 = vmul.f32 %v386, %v332
    %v550 = vmul.f32 %v386, %v333
    %v551 = vmul.f32 %v386, %v334
    %v552 = vmul.f32 %v386, %v335
    %v553 = vmul.f32 %v386, %v336
    %v554 = vadd.f32 %v544, %v549
    %v555 = vadd.f32 %v545, %v550
    %v556 = vadd.f32 %v546, %v551
    %v557 = vadd.f32 %v547, %v552
    %v558 = vadd.f32 %v548, %v553
    %v559 = vmul.f32 %v385, %v509
    %v560 = vmul.f32 %v385, %v510
    %v561 = vmul.f32 %v385, %v511
    %v562 = vmul.f32 %v385, %v512
    %v563 = vmul.f32 %v385, %v513
    %v564 = vmul.f32 %v386, %v337
    %v565 = vmul.f32 %v386, %v338
    %v566 = vmul.f32 %v386, %v339
    %v567 = vmul.f32 %v386, %v340
    %v568 = vmul.f32 %v386, %v341
    %v569 = vadd.f32 %v559, %v564
    %v570 = vadd.f32 %v560, %v565
    %v571 = vadd.f32 %v561, %v566
    %v572 = vadd.f32 %v562, %v567
    %v573 = vadd.f32 %v563, %v568
    %v574 = vlaneseq
    %v575 = vshrl.u32 %v574, 7
    %v576 = vsub.s32 1, %v575
    %v577 = vrot.slane %v554, %v576
    %v578 = vlaneseq
    %v579 = vshrl.u32 %v578, 7
    %v580 = vsub.s32 1, %v579
    %v581 = vrot.slane %v555, %v580
    %v582 = vlaneseq
    %v583 = vshrl.u32 %v582, 7
    %v584 = vsub.s32 1, %v583
    %v585 = vrot.slane %v556, %v584
    %v586 = vlaneseq
    %v587 = vshrl.u32 %v586, 7
    %v588 = vsub.s32 1, %v587
    %v589 = vrot.slane %v557, %v588
    %v590 = vlaneseq
    %v591 = vshrl.u32 %v590, 7
    %v592 = vsub.s32 1, %v591
    %v593 = vrot.slane %v558, %v592
    %v594 = vsel %vm438, %v577, %v332
    %v595 = vsel %vm438, %v581, %v333
    %v596 = vsel %vm438, %v585, %v334
    %v597 = vsel %vm438, %v589, %v335
    %v598 = vsel %vm438, %v593, %v336
    %v599 = vlaneseq
    %v600 = vshrl.u32 %v599, 7
    %v601 = vsub.s32 1, %v600
    %v602 = vrot.slane %v524, %v601
    %v603 = vlaneseq
    %v604 = vshrl.u32 %v603, 7
    %v605 = vsub.s32 1, %v604
    %v606 = vrot.slane %v525, %v605
    %v607 = vlaneseq
    %v608 = vshrl.u32 %v607, 7
    %v609 = vsub.s32 1, %v608
    %v610 = vrot.slane %v526, %v609
    %v611 = vlaneseq
    %v612 = vshrl.u32 %v611, 7
    %v613 = vsub.s32 1, %v612
    %v614 = vrot.slane %v527, %v613
    %v615 = vlaneseq
    %v616 = vshrl.u32 %v615, 7
    %v617 = vsub.s32 1, %v616
    %v618 = vrot.slane %v528, %v617
    %v619 = vsel %vm441, %v602, %v594
    %v620 = vsel %vm441, %v606, %v595
    %v621 = vsel %vm441, %v610, %v596
    %v622 = vsel %vm441, %v614, %v597
    %v623 = vsel %vm441, %v618, %v598
    %v624 = vlaneseq
    %v625 = vshrl.u32 %v624, 7
    %v626 = vsub.s32 1, %v625
    %v627 = vrot.slane %v569, %v626
    %v628 = vlaneseq
    %v629 = vshrl.u32 %v628, 7
    %v630 = vsub.s32 1, %v629
    %v631 = vrot.slane %v570, %v630
    %v632 = vlaneseq
    %v633 = vshrl.u32 %v632, 7
    %v634 = vsub.s32 1, %v633
    %v635 = vrot.slane %v571, %v634
    %v636 = vlaneseq
    %v637 = vshrl.u32 %v636, 7
    %v638 = vsub.s32 1, %v637
    %v639 = vrot.slane %v572, %v638
    %v640 = vlaneseq
    %v641 = vshrl.u32 %v640, 7
    %v642 = vsub.s32 1, %v641
    %v643 = vrot.slane %v573, %v642
    %v644 = vsel %vm438, %v627, %v337
    %v645 = vsel %vm438, %v631, %v338
    %v646 = vsel %vm438, %v635, %v339
    %v647 = vsel %vm438, %v639, %v340
    %v648 = vsel %vm438, %v643, %v341
    %v649 = vlaneseq
    %v650 = vshrl.u32 %v649, 7
    %v651 = vsub.s32 1, %v650
    %v652 = vrot.slane %v539, %v651
    %v653 = vlaneseq
    %v654 = vshrl.u32 %v653, 7
    %v655 = vsub.s32 1, %v654
    %v656 = vrot.slane %v540, %v655
    %v657 = vlaneseq
    %v658 = vshrl.u32 %v657, 7
    %v659 = vsub.s32 1, %v658
    %v660 = vrot.slane %v541, %v659
    %v661 = vlaneseq
    %v662 = vshrl.u32 %v661, 7
    %v663 = vsub.s32 1, %v662
    %v664 = vrot.slane %v542, %v663
    %v665 = vlaneseq
    %v666 = vshrl.u32 %v665, 7
    %v667 = vsub.s32 1, %v666
    %v668 = vrot.slane %v543, %v667
    %v669 = vsel %vm441, %v652, %v644
    %v670 = vsel %vm441, %v656, %v645
    %v671 = vsel %vm441, %v660, %v646
    %v672 = vsel %vm441, %v664, %v647
    %v673 = vsel %vm441, %v668, %v648
    %v674 = vsel 0, %v452, %v619
    %v675 = vsel 1, %v452, %v620
    %v676 = vsel 0, %v452, %v621
    %v677 = vsel 0, %v452, %v622
    %v678 = vsel 0, %v452, %v623
    %v679 = vsel 1, %v446, %v674
    %v680 = vsel 0, %v446, %v675
    %v681 = vsel 0, %v446, %v676
    %v682 = vsel 0, %v446, %v677
    %v683 = vsel 0, %v446, %v678
    %v684 = vsel 0, %v456, %v669
    %v685 = vsel 1, %v456, %v670
    %v686 = vsel 0, %v456, %v671
    %v687 = vsel 0, %v456, %v672
    %v688 = vsel 0, %v456, %v673
    %v689 = vsel 1, %v455, %v684
    %v690 = vsel 0, %v455, %v685
    %v691 = vsel 0, %v455, %v686
    %v692 = vsel 0, %v455, %v687
    %v693 = vsel 0, %v455, %v688
    %v694 = vmul.f32 %v679, %v679
    %v695 = vmul.f32 %v689, %v689
    %v696 = vadd.f32 %v694, %v695
    %v697 = vrsqrt.pop %v696
    %v698 = vmul.f32 %v696, %v697
    %vm699 = vcmp.eq.f32.partialorder %v696, inf
    %v700 = vsel %vm699, %v696, %v698
    %vm701 = vcmp.eq.f32.partialorder %v696, 0.0
    %v702 = vand.u32 %v696, 2147483648
    %v703 = vsel %vm701, %v702, %v700
    %vm704 = vcmp.le.f32.partialorder %v703, 1e-10
    %v705 = vsel %vm704, 1.0, %v703
    %v706 = vrcp.pop %v705
    %v707 = vmul.f32 1.0, %v706
    %v708 = vmul.f32 %v679, %v707
    %v709 = vsel %vm704, 1.0, %v708
    %v710 = vmul.f32 %v689, %v707
    %v711 = vsel %vm704, 0.0, %v710
    %v713 = vrot.slane %v679, 6
    %v715 = vsub.f32 %v681, %v713
    %v716 = vmul.f32 %v707, 0.5
    %v717 = vmul.f32 %v715, %v716
    %vm718 = vcmp.ge.f32.partialorder %v717, 0.0
    %v719 = vsel %vm718, 1.0, -1.0
    %v720 = vand.u32 2147483647, %v717
    %v721 = vmul.f32 %v717, %v717
    %v722 = vadd.f32 %v721, 1.0
    %v723 = vrsqrt.pop %v722
    %v724 = vmul.f32 %v722, %v723
    %vm725 = vcmp.eq.f32.partialorder %v722, inf
    %v726 = vsel %vm725, %v722, %v724
    %vm727 = vcmp.eq.f32.partialorder %v722, 0.0
    %v728 = vand.u32 %v722, 2147483648
    %v729 = vsel %vm727, %v728, %v726
    %v730 = vadd.f32 %v720, %v729
    %v731 = vrcp.pop %v730
    %v732 = vmul.f32 %v719, %v731
    %v733 = vmul.f32 %v732, %v732
    %v734 = vadd.f32 %v733, 1.0
    %v735 = vrsqrt.pop %v734
    %v736 = vmul.f32 %v732, %v735
    %v737 = vsel %vm704, 0.0, %v736
    %v738 = vsel %vm704, 1.0, %v735
    %v739 = vmul.f32 %v738, 2.0
    %v740 = vmul.f32 %v739, %v737
    %v741 = vmul.f32 %v738, %v738
    %v742 = vmul.f32 %v741, %v713
    %v743 = vmul.f32 %v740, %v703
    %v744 = vsub.f32 %v742, %v743
    %v745 = vmul.f32 %v737, %v737
    %v746 = vmul.f32 %v745, %v681
    %v747 = vadd.f32 %v744, %v746
    %v748 = vmul.f32 %v745, %v713
    %v749 = vadd.f32 %v748, %v743
    %v750 = vmul.f32 %v741, %v681
    %v751 = vadd.f32 %v749, %v750
    %v752 = vlaneseq
    %v753 = vshrl.u32 %v752, 7
    %v754 = vsub.s32 2, %v753
    %v755 = vrot.slane %v709, %v754
    %v756 = vmul.f32 %v755, %v679
    %v757 = vlaneseq
    %v758 = vshrl.u32 %v757, 7
    %v759 = vsub.s32 2, %v758
    %v760 = vrot.slane %v711, %v759
    %v761 = vmul.f32 %v760, %v689
    %v762 = vadd.f32 %v756, %v761
    %v763 = vmul.f32 %v755, %v689
    %v764 = vmul.f32 %v760, %v679
    %v765 = vsub.f32 %v763, %v764
    %v766 = vlaneseq
    %v767 = vshrl.u32 %v766, 7
    %v768 = vsub.s32 2, %v767
    %v769 = vrot.slane %v738, %v768
    %v770 = vmul.f32 %v769, %v762
    %v771 = vlaneseq
    %v772 = vshrl.u32 %v771, 7
    %v773 = vsub.s32 2, %v772
    %v774 = vrot.slane %v737, %v773
    %v775 = vmul.f32 %v774, %v681
    %v776 = vsub.f32 %v770, %v775
    %v777 = vmul.f32 %v769, %v765
    %v778 = vmul.f32 %v774, %v691
    %v779 = vsub.f32 %v777, %v778
    %v780 = vmul.f32 %v774, %v762
    %v781 = vmul.f32 %v769, %v681
    %v782 = vadd.f32 %v780, %v781
    %v783 = vmul.f32 %v774, %v765
    %v784 = vmul.f32 %v769, %v691
    %v785 = vadd.f32 %v783, %v784
    %vm786 = vcmp.eq.s32.totalorder %v325, 2
    %vm787 = vmor %vm434, %vm786
    %v788 = vsel %vm786, 1, 0
    %vm789 = vcmp.eq.s32.totalorder %v788, 1
    %v790 = vsel %vm789, 0.0, %v776
    %v791 = vlaneseq
    %v792 = vshrl.u32 %v791, 7
    %v793 = vsub.s32 2, %v792
    %v794 = vrot.slane %v747, %v793
    %v795 = vsel %vm441, %v794, %v790
    %v796 = vsel %vm441, 0.0, %v782
    %v797 = vlaneseq
    %v798 = vshrl.u32 %v797, 7
    %v799 = vsub.s32 2, %v798
    %v800 = vrot.slane %v751, %v799
    %v801 = vsel %vm789, %v800, %v796
    %v802 = vsel %vm787, 1, 0
    %vm803 = vcmp.eq.s32.totalorder %v802, 1
    %v804 = vsel %vm803, 0.0, %v779
    %v805 = vsel %vm803, 0.0, %v785
    %v810 = vrot.slane %v680, 6
    %v811 = vrot.slane %v681, 6
    %v812 = vrot.slane %v682, 6
    %v813 = vrot.slane %v683, 6
    %v818 = vmul.f32 %v709, %v713
    %v819 = vmul.f32 %v709, %v810
    %v820 = vmul.f32 %v709, %v811
    %v821 = vmul.f32 %v709, %v812
    %v822 = vmul.f32 %v709, %v813
    %v828 = vrot.slane %v689, 6
    %v829 = vrot.slane %v690, 6
    %v830 = vrot.slane %v691, 6
    %v831 = vrot.slane %v692, 6
    %v832 = vrot.slane %v693, 6
    %v838 = vmul.f32 %v711, %v828
    %v839 = vmul.f32 %v711, %v829
    %v840 = vmul.f32 %v711, %v830
    %v841 = vmul.f32 %v711, %v831
    %v842 = vmul.f32 %v711, %v832
    %v843 = vsub.f32 %v818, %v838
    %v844 = vsub.f32 %v819, %v839
    %v845 = vsub.f32 %v820, %v840
    %v846 = vsub.f32 %v821, %v841
    %v847 = vsub.f32 %v822, %v842
    %v848 = vmul.f32 %v709, %v828
    %v849 = vmul.f32 %v709, %v829
    %v850 = vmul.f32 %v709, %v830
    %v851 = vmul.f32 %v709, %v831
    %v852 = vmul.f32 %v709, %v832
    %v853 = vmul.f32 %v711, %v713
    %v854 = vmul.f32 %v711, %v810
    %v855 = vmul.f32 %v711, %v811
    %v856 = vmul.f32 %v711, %v812
    %v857 = vmul.f32 %v711, %v813
    %v858 = vadd.f32 %v848, %v853
    %v859 = vadd.f32 %v849, %v854
    %v860 = vadd.f32 %v850, %v855
    %v861 = vadd.f32 %v851, %v856
    %v862 = vadd.f32 %v852, %v857
    %v863 = vmul.f32 %v738, %v843
    %v864 = vmul.f32 %v738, %v844
    %v865 = vmul.f32 %v738, %v845
    %v866 = vmul.f32 %v738, %v846
    %v867 = vmul.f32 %v738, %v847
    %v868 = vmul.f32 %v737, %v679
    %v869 = vmul.f32 %v737, %v680
    %v870 = vmul.f32 %v737, %v681
    %v871 = vmul.f32 %v737, %v682
    %v872 = vmul.f32 %v737, %v683
    %v873 = vsub.f32 %v863, %v868
    %v874 = vsub.f32 %v864, %v869
    %v875 = vsub.f32 %v865, %v870
    %v876 = vsub.f32 %v866, %v871
    %v877 = vsub.f32 %v867, %v872
    %v878 = vmul.f32 %v738, %v858
    %v879 = vmul.f32 %v738, %v859
    %v880 = vmul.f32 %v738, %v860
    %v881 = vmul.f32 %v738, %v861
    %v882 = vmul.f32 %v738, %v862
    %v883 = vmul.f32 %v737, %v689
    %v884 = vmul.f32 %v737, %v690
    %v885 = vmul.f32 %v737, %v691
    %v886 = vmul.f32 %v737, %v692
    %v887 = vmul.f32 %v737, %v693
    %v888 = vsub.f32 %v878, %v883
    %v889 = vsub.f32 %v879, %v884
    %v890 = vsub.f32 %v880, %v885
    %v891 = vsub.f32 %v881, %v886
    %v892 = vsub.f32 %v882, %v887
    %v893 = vmul.f32 %v737, %v843
    %v894 = vmul.f32 %v737, %v844
    %v895 = vmul.f32 %v737, %v845
    %v896 = vmul.f32 %v737, %v846
    %v897 = vmul.f32 %v737, %v847
    %v898 = vmul.f32 %v738, %v679
    %v899 = vmul.f32 %v738, %v680
    %v900 = vmul.f32 %v738, %v681
    %v901 = vmul.f32 %v738, %v682
    %v902 = vmul.f32 %v738, %v683
    %v903 = vadd.f32 %v893, %v898
    %v904 = vadd.f32 %v894, %v899
    %v905 = vadd.f32 %v895, %v900
    %v906 = vadd.f32 %v896, %v901
    %v907 = vadd.f32 %v897, %v902
    %v908 = vmul.f32 %v737, %v858
    %v909 = vmul.f32 %v737, %v859
    %v910 = vmul.f32 %v737, %v860
    %v911 = vmul.f32 %v737, %v861
    %v912 = vmul.f32 %v737, %v862
    %v913 = vmul.f32 %v738, %v689
    %v914 = vmul.f32 %v738, %v690
    %v915 = vmul.f32 %v738, %v691
    %v916 = vmul.f32 %v738, %v692
    %v917 = vmul.f32 %v738, %v693
    %v918 = vadd.f32 %v908, %v913
    %v919 = vadd.f32 %v909, %v914
    %v920 = vadd.f32 %v910, %v915
    %v921 = vadd.f32 %v911, %v916
    %v922 = vadd.f32 %v912, %v917
    %v923 = vlaneseq
    %v924 = vshrl.u32 %v923, 7
    %v925 = vsub.s32 2, %v924
    %v926 = vrot.slane %v903, %v925
    %v927 = vlaneseq
    %v928 = vshrl.u32 %v927, 7
    %v929 = vsub.s32 2, %v928
    %v930 = vrot.slane %v904, %v929
    %v931 = vlaneseq
    %v932 = vshrl.u32 %v931, 7
    %v933 = vsub.s32 2, %v932
    %v934 = vrot.slane %v905, %v933
    %v935 = vlaneseq
    %v936 = vshrl.u32 %v935, 7
    %v937 = vsub.s32 2, %v936
    %v938 = vrot.slane %v906, %v937
    %v939 = vlaneseq
    %v940 = vshrl.u32 %v939, 7
    %v941 = vsub.s32 2, %v940
    %v942 = vrot.slane %v907, %v941
    %v943 = vsel %vm789, %v926, %v679
    %v944 = vsel %vm789, %v930, %v680
    %v945 = vsel %vm789, %v934, %v681
    %v946 = vsel %vm789, %v938, %v682
    %v947 = vsel %vm789, %v942, %v683
    %v948 = vlaneseq
    %v949 = vshrl.u32 %v948, 7
    %v950 = vsub.s32 2, %v949
    %v951 = vrot.slane %v873, %v950
    %v952 = vlaneseq
    %v953 = vshrl.u32 %v952, 7
    %v954 = vsub.s32 2, %v953
    %v955 = vrot.slane %v874, %v954
    %v956 = vlaneseq
    %v957 = vshrl.u32 %v956, 7
    %v958 = vsub.s32 2, %v957
    %v959 = vrot.slane %v875, %v958
    %v960 = vlaneseq
    %v961 = vshrl.u32 %v960, 7
    %v962 = vsub.s32 2, %v961
    %v963 = vrot.slane %v876, %v962
    %v964 = vlaneseq
    %v965 = vshrl.u32 %v964, 7
    %v966 = vsub.s32 2, %v965
    %v967 = vrot.slane %v877, %v966
    %v968 = vsel %vm441, %v951, %v943
    %v969 = vsel %vm441, %v955, %v944
    %v970 = vsel %vm441, %v959, %v945
    %v971 = vsel %vm441, %v963, %v946
    %v972 = vsel %vm441, %v967, %v947
    %v973 = vlaneseq
    %v974 = vshrl.u32 %v973, 7
    %v975 = vsub.s32 2, %v974
    %v976 = vrot.slane %v918, %v975
    %v977 = vlaneseq
    %v978 = vshrl.u32 %v977, 7
    %v979 = vsub.s32 2, %v978
    %v980 = vrot.slane %v919, %v979
    %v981 = vlaneseq
    %v982 = vshrl.u32 %v981, 7
    %v983 = vsub.s32 2, %v982
    %v984 = vrot.slane %v920, %v983
    %v985 = vlaneseq
    %v986 = vshrl.u32 %v985, 7
    %v987 = vsub.s32 2, %v986
    %v988 = vrot.slane %v921, %v987
    %v989 = vlaneseq
    %v990 = vshrl.u32 %v989, 7
    %v991 = vsub.s32 2, %v990
    %v992 = vrot.slane %v922, %v991
    %v993 = vsel %vm789, %v976, %v689
    %v994 = vsel %vm789, %v980, %v690
    %v995 = vsel %vm789, %v984, %v691
    %v996 = vsel %vm789, %v988, %v692
    %v997 = vsel %vm789, %v992, %v693
    %v998 = vlaneseq
    %v999 = vshrl.u32 %v998, 7
    %v1000 = vsub.s32 2, %v999
    %v1001 = vrot.slane %v888, %v1000
    %v1002 = vlaneseq
    %v1003 = vshrl.u32 %v1002, 7
    %v1004 = vsub.s32 2, %v1003
    %v1005 = vrot.slane %v889, %v1004
    %v1006 = vlaneseq
    %v1007 = vshrl.u32 %v1006, 7
    %v1008 = vsub.s32 2, %v1007
    %v1009 = vrot.slane %v890, %v1008
    %v1010 = vlaneseq
    %v1011 = vshrl.u32 %v1010, 7
    %v1012 = vsub.s32 2, %v1011
    %v1013 = vrot.slane %v891, %v1012
    %v1014 = vlaneseq
    %v1015 = vshrl.u32 %v1014, 7
    %v1016 = vsub.s32 2, %v1015
    %v1017 = vrot.slane %v892, %v1016
    %v1018 = vsel %vm441, %v1001, %v993
    %v1019 = vsel %vm441, %v1005, %v994
    %v1020 = vsel %vm441, %v1009, %v995
    %v1021 = vsel %vm441, %v1013, %v996
    %v1022 = vsel %vm441, %v1017, %v997
    %v1023 = vsel 0, %v801, %v968
    %v1024 = vsel 0, %v801, %v969
    %v1025 = vsel 1, %v801, %v970
    %v1026 = vsel 0, %v801, %v971
    %v1027 = vsel 0, %v801, %v972
    %v1028 = vsel 1, %v795, %v1023
    %v1029 = vsel 0, %v795, %v1024
    %v1030 = vsel 0, %v795, %v1025
    %v1031 = vsel 0, %v795, %v1026
    %v1032 = vsel 0, %v795, %v1027
    %v1033 = vsel 0, %v805, %v1018
    %v1034 = vsel 0, %v805, %v1019
    %v1035 = vsel 1, %v805, %v1020
    %v1036 = vsel 0, %v805, %v1021
    %v1037 = vsel 0, %v805, %v1022
    %v1038 = vsel 1, %v804, %v1033
    %v1039 = vsel 0, %v804, %v1034
    %v1040 = vsel 0, %v804, %v1035
    %v1041 = vsel 0, %v804, %v1036
    %v1042 = vsel 0, %v804, %v1037
    %v1043 = vmul.f32 %v1028, %v1028
    %v1044 = vmul.f32 %v1038, %v1038
    %v1045 = vadd.f32 %v1043, %v1044
    %v1046 = vrsqrt.pop %v1045
    %v1047 = vmul.f32 %v1045, %v1046
    %vm1048 = vcmp.eq.f32.partialorder %v1045, inf
    %v1049 = vsel %vm1048, %v1045, %v1047
    %vm1050 = vcmp.eq.f32.partialorder %v1045, 0.0
    %v1051 = vand.u32 %v1045, 2147483648
    %v1052 = vsel %vm1050, %v1051, %v1049
    %vm1053 = vcmp.le.f32.partialorder %v1052, 1e-10
    %v1054 = vsel %vm1053, 1.0, %v1052
    %v1055 = vrcp.pop %v1054
    %v1056 = vmul.f32 1.0, %v1055
    %v1057 = vmul.f32 %v1028, %v1056
    %v1058 = vsel %vm1053, 1.0, %v1057
    %v1059 = vmul.f32 %v1038, %v1056
    %v1060 = vsel %vm1053, 0.0, %v1059
    %v1062 = vrot.slane %v1028, 5
    %v1064 = vsub.f32 %v1031, %v1062
    %v1065 = vmul.f32 %v1056, 0.5
    %v1066 = vmul.f32 %v1064, %v1065
    %vm1067 = vcmp.ge.f32.partialorder %v1066, 0.0
    %v1068 = vsel %vm1067, 1.0, -1.0
    %v1069 = vand.u32 2147483647, %v1066
    %v1070 = vmul.f32 %v1066, %v1066
    %v1071 = vadd.f32 %v1070, 1.0
    %v1072 = vrsqrt.pop %v1071
    %v1073 = vmul.f32 %v1071, %v1072
    %vm1074 = vcmp.eq.f32.partialorder %v1071, inf
    %v1075 = vsel %vm1074, %v1071, %v1073
    %vm1076 = vcmp.eq.f32.partialorder %v1071, 0.0
    %v1077 = vand.u32 %v1071, 2147483648
    %v1078 = vsel %vm1076, %v1077, %v1075
    %v1079 = vadd.f32 %v1069, %v1078
    %v1080 = vrcp.pop %v1079
    %v1081 = vmul.f32 %v1068, %v1080
    %v1082 = vmul.f32 %v1081, %v1081
    %v1083 = vadd.f32 %v1082, 1.0
    %v1084 = vrsqrt.pop %v1083
    %v1085 = vmul.f32 %v1081, %v1084
    %v1086 = vsel %vm1053, 0.0, %v1085
    %v1087 = vsel %vm1053, 1.0, %v1084
    %v1088 = vmul.f32 %v1087, 2.0
    %v1089 = vmul.f32 %v1088, %v1086
    %v1090 = vmul.f32 %v1087, %v1087
    %v1091 = vmul.f32 %v1090, %v1062
    %v1092 = vmul.f32 %v1089, %v1052
    %v1093 = vsub.f32 %v1091, %v1092
    %v1094 = vmul.f32 %v1086, %v1086
    %v1095 = vmul.f32 %v1094, %v1031
    %v1096 = vadd.f32 %v1093, %v1095
    %v1097 = vmul.f32 %v1094, %v1062
    %v1098 = vadd.f32 %v1097, %v1092
    %v1099 = vmul.f32 %v1090, %v1031
    %v1100 = vadd.f32 %v1098, %v1099
    %v1101 = vlaneseq
    %v1102 = vshrl.u32 %v1101, 7
    %v1103 = vsub.s32 3, %v1102
    %v1104 = vrot.slane %v1058, %v1103
    %v1105 = vmul.f32 %v1104, %v1028
    %v1106 = vlaneseq
    %v1107 = vshrl.u32 %v1106, 7
    %v1108 = vsub.s32 3, %v1107
    %v1109 = vrot.slane %v1060, %v1108
    %v1110 = vmul.f32 %v1109, %v1038
    %v1111 = vadd.f32 %v1105, %v1110
    %v1112 = vmul.f32 %v1104, %v1038
    %v1113 = vmul.f32 %v1109, %v1028
    %v1114 = vsub.f32 %v1112, %v1113
    %v1115 = vlaneseq
    %v1116 = vshrl.u32 %v1115, 7
    %v1117 = vsub.s32 3, %v1116
    %v1118 = vrot.slane %v1087, %v1117
    %v1119 = vmul.f32 %v1118, %v1111
    %v1120 = vlaneseq
    %v1121 = vshrl.u32 %v1120, 7
    %v1122 = vsub.s32 3, %v1121
    %v1123 = vrot.slane %v1086, %v1122
    %v1124 = vmul.f32 %v1123, %v1031
    %v1125 = vsub.f32 %v1119, %v1124
    %v1126 = vmul.f32 %v1118, %v1114
    %v1127 = vmul.f32 %v1123, %v1041
    %v1128 = vsub.f32 %v1126, %v1127
    %v1129 = vmul.f32 %v1123, %v1111
    %v1130 = vmul.f32 %v1118, %v1031
    %v1131 = vadd.f32 %v1129, %v1130
    %v1132 = vmul.f32 %v1123, %v1114
    %v1133 = vmul.f32 %v1118, %v1041
    %v1134 = vadd.f32 %v1132, %v1133
    %vm1135 = vcmp.eq.s32.totalorder %v325, 3
    %vm1136 = vmor %vm434, %vm1135
    %v1137 = vsel %vm1135, 1, 0
    %vm1138 = vcmp.eq.s32.totalorder %v1137, 1
    %v1139 = vsel %vm1138, 0.0, %v1125
    %v1140 = vlaneseq
    %v1141 = vshrl.u32 %v1140, 7
    %v1142 = vsub.s32 3, %v1141
    %v1143 = vrot.slane %v1096, %v1142
    %v1144 = vsel %vm441, %v1143, %v1139
    %v1145 = vsel %vm441, 0.0, %v1131
    %v1146 = vlaneseq
    %v1147 = vshrl.u32 %v1146, 7
    %v1148 = vsub.s32 3, %v1147
    %v1149 = vrot.slane %v1100, %v1148
    %v1150 = vsel %vm1138, %v1149, %v1145
    %v1151 = vsel %vm1136, 1, 0
    %vm1152 = vcmp.eq.s32.totalorder %v1151, 1
    %v1153 = vsel %vm1152, 0.0, %v1128
    %v1154 = vsel %vm1152, 0.0, %v1134
    %v1159 = vrot.slane %v1029, 5
    %v1160 = vrot.slane %v1030, 5
    %v1161 = vrot.slane %v1031, 5
    %v1162 = vrot.slane %v1032, 5
    %v1167 = vmul.f32 %v1058, %v1062
    %v1168 = vmul.f32 %v1058, %v1159
    %v1169 = vmul.f32 %v1058, %v1160
    %v1170 = vmul.f32 %v1058, %v1161
    %v1171 = vmul.f32 %v1058, %v1162
    %v1177 = vrot.slane %v1038, 5
    %v1178 = vrot.slane %v1039, 5
    %v1179 = vrot.slane %v1040, 5
    %v1180 = vrot.slane %v1041, 5
    %v1181 = vrot.slane %v1042, 5
    %v1187 = vmul.f32 %v1060, %v1177
    %v1188 = vmul.f32 %v1060, %v1178
    %v1189 = vmul.f32 %v1060, %v1179
    %v1190 = vmul.f32 %v1060, %v1180
    %v1191 = vmul.f32 %v1060, %v1181
    %v1192 = vsub.f32 %v1167, %v1187
    %v1193 = vsub.f32 %v1168, %v1188
    %v1194 = vsub.f32 %v1169, %v1189
    %v1195 = vsub.f32 %v1170, %v1190
    %v1196 = vsub.f32 %v1171, %v1191
    %v1197 = vmul.f32 %v1058, %v1177
    %v1198 = vmul.f32 %v1058, %v1178
    %v1199 = vmul.f32 %v1058, %v1179
    %v1200 = vmul.f32 %v1058, %v1180
    %v1201 = vmul.f32 %v1058, %v1181
    %v1202 = vmul.f32 %v1060, %v1062
    %v1203 = vmul.f32 %v1060, %v1159
    %v1204 = vmul.f32 %v1060, %v1160
    %v1205 = vmul.f32 %v1060, %v1161
    %v1206 = vmul.f32 %v1060, %v1162
    %v1207 = vadd.f32 %v1197, %v1202
    %v1208 = vadd.f32 %v1198, %v1203
    %v1209 = vadd.f32 %v1199, %v1204
    %v1210 = vadd.f32 %v1200, %v1205
    %v1211 = vadd.f32 %v1201, %v1206
    %v1212 = vmul.f32 %v1087, %v1192
    %v1213 = vmul.f32 %v1087, %v1193
    %v1214 = vmul.f32 %v1087, %v1194
    %v1215 = vmul.f32 %v1087, %v1195
    %v1216 = vmul.f32 %v1087, %v1196
    %v1217 = vmul.f32 %v1086, %v1028
    %v1218 = vmul.f32 %v1086, %v1029
    %v1219 = vmul.f32 %v1086, %v1030
    %v1220 = vmul.f32 %v1086, %v1031
    %v1221 = vmul.f32 %v1086, %v1032
    %v1222 = vsub.f32 %v1212, %v1217
    %v1223 = vsub.f32 %v1213, %v1218
    %v1224 = vsub.f32 %v1214, %v1219
    %v1225 = vsub.f32 %v1215, %v1220
    %v1226 = vsub.f32 %v1216, %v1221
    %v1227 = vmul.f32 %v1087, %v1207
    %v1228 = vmul.f32 %v1087, %v1208
    %v1229 = vmul.f32 %v1087, %v1209
    %v1230 = vmul.f32 %v1087, %v1210
    %v1231 = vmul.f32 %v1087, %v1211
    %v1232 = vmul.f32 %v1086, %v1038
    %v1233 = vmul.f32 %v1086, %v1039
    %v1234 = vmul.f32 %v1086, %v1040
    %v1235 = vmul.f32 %v1086, %v1041
    %v1236 = vmul.f32 %v1086, %v1042
    %v1237 = vsub.f32 %v1227, %v1232
    %v1238 = vsub.f32 %v1228, %v1233
    %v1239 = vsub.f32 %v1229, %v1234
    %v1240 = vsub.f32 %v1230, %v1235
    %v1241 = vsub.f32 %v1231, %v1236
    %v1242 = vmul.f32 %v1086, %v1192
    %v1243 = vmul.f32 %v1086, %v1193
    %v1244 = vmul.f32 %v1086, %v1194
    %v1245 = vmul.f32 %v1086, %v1195
    %v1246 = vmul.f32 %v1086, %v1196
    %v1247 = vmul.f32 %v1087, %v1028
    %v1248 = vmul.f32 %v1087, %v1029
    %v1249 = vmul.f32 %v1087, %v1030
    %v1250 = vmul.f32 %v1087, %v1031
    %v1251 = vmul.f32 %v1087, %v1032
    %v1252 = vadd.f32 %v1242, %v1247
    %v1253 = vadd.f32 %v1243, %v1248
    %v1254 = vadd.f32 %v1244, %v1249
    %v1255 = vadd.f32 %v1245, %v1250
    %v1256 = vadd.f32 %v1246, %v1251
    %v1257 = vmul.f32 %v1086, %v1207
    %v1258 = vmul.f32 %v1086, %v1208
    %v1259 = vmul.f32 %v1086, %v1209
    %v1260 = vmul.f32 %v1086, %v1210
    %v1261 = vmul.f32 %v1086, %v1211
    %v1262 = vmul.f32 %v1087, %v1038
    %v1263 = vmul.f32 %v1087, %v1039
    %v1264 = vmul.f32 %v1087, %v1040
    %v1265 = vmul.f32 %v1087, %v1041
    %v1266 = vmul.f32 %v1087, %v1042
    %v1267 = vadd.f32 %v1257, %v1262
    %v1268 = vadd.f32 %v1258, %v1263
    %v1269 = vadd.f32 %v1259, %v1264
    %v1270 = vadd.f32 %v1260, %v1265
    %v1271 = vadd.f32 %v1261, %v1266
    %v1272 = vlaneseq
    %v1273 = vshrl.u32 %v1272, 7
    %v1274 = vsub.s32 3, %v1273
    %v1275 = vrot.slane %v1252, %v1274
    %v1276 = vlaneseq
    %v1277 = vshrl.u32 %v1276, 7
    %v1278 = vsub.s32 3, %v1277
    %v1279 = vrot.slane %v1253, %v1278
    %v1280 = vlaneseq
    %v1281 = vshrl.u32 %v1280, 7
    %v1282 = vsub.s32 3, %v1281
    %v1283 = vrot.slane %v1254, %v1282
    %v1284 = vlaneseq
    %v1285 = vshrl.u32 %v1284, 7
    %v1286 = vsub.s32 3, %v1285
    %v1287 = vrot.slane %v1255, %v1286
    %v1288 = vlaneseq
    %v1289 = vshrl.u32 %v1288, 7
    %v1290 = vsub.s32 3, %v1289
    %v1291 = vrot.slane %v1256, %v1290
    %v1292 = vsel %vm1138, %v1275, %v1028
    %v1293 = vsel %vm1138, %v1279, %v1029
    %v1294 = vsel %vm1138, %v1283, %v1030
    %v1295 = vsel %vm1138, %v1287, %v1031
    %v1296 = vsel %vm1138, %v1291, %v1032
    %v1297 = vlaneseq
    %v1298 = vshrl.u32 %v1297, 7
    %v1299 = vsub.s32 3, %v1298
    %v1300 = vrot.slane %v1222, %v1299
    %v1301 = vlaneseq
    %v1302 = vshrl.u32 %v1301, 7
    %v1303 = vsub.s32 3, %v1302
    %v1304 = vrot.slane %v1223, %v1303
    %v1305 = vlaneseq
    %v1306 = vshrl.u32 %v1305, 7
    %v1307 = vsub.s32 3, %v1306
    %v1308 = vrot.slane %v1224, %v1307
    %v1309 = vlaneseq
    %v1310 = vshrl.u32 %v1309, 7
    %v1311 = vsub.s32 3, %v1310
    %v1312 = vrot.slane %v1225, %v1311
    %v1313 = vlaneseq
    %v1314 = vshrl.u32 %v1313, 7
    %v1315 = vsub.s32 3, %v1314
    %v1316 = vrot.slane %v1226, %v1315
    %v1317 = vsel %vm441, %v1300, %v1292
    %v1318 = vsel %vm441, %v1304, %v1293
    %v1319 = vsel %vm441, %v1308, %v1294
    %v1320 = vsel %vm441, %v1312, %v1295
    %v1321 = vsel %vm441, %v1316, %v1296
    %v1322 = vlaneseq
    %v1323 = vshrl.u32 %v1322, 7
    %v1324 = vsub.s32 3, %v1323
    %v1325 = vrot.slane %v1267, %v1324
    %v1326 = vlaneseq
    %v1327 = vshrl.u32 %v1326, 7
    %v1328 = vsub.s32 3, %v1327
    %v1329 = vrot.slane %v1268, %v1328
    %v1330 = vlaneseq
    %v1331 = vshrl.u32 %v1330, 7
    %v1332 = vsub.s32 3, %v1331
    %v1333 = vrot.slane %v1269, %v1332
    %v1334 = vlaneseq
    %v1335 = vshrl.u32 %v1334, 7
    %v1336 = vsub.s32 3, %v1335
    %v1337 = vrot.slane %v1270, %v1336
    %v1338 = vlaneseq
    %v1339 = vshrl.u32 %v1338, 7
    %v1340 = vsub.s32 3, %v1339
    %v1341 = vrot.slane %v1271, %v1340
    %v1342 = vsel %vm1138, %v1325, %v1038
    %v1343 = vsel %vm1138, %v1329, %v1039
    %v1344 = vsel %vm1138, %v1333, %v1040
    %v1345 = vsel %vm1138, %v1337, %v1041
    %v1346 = vsel %vm1138, %v1341, %v1042
    %v1347 = vlaneseq
    %v1348 = vshrl.u32 %v1347, 7
    %v1349 = vsub.s32 3, %v1348
    %v1350 = vrot.slane %v1237, %v1349
    %v1351 = vlaneseq
    %v1352 = vshrl.u32 %v1351, 7
    %v1353 = vsub.s32 3, %v1352
    %v1354 = vrot.slane %v1238, %v1353
    %v1355 = vlaneseq
    %v1356 = vshrl.u32 %v1355, 7
    %v1357 = vsub.s32 3, %v1356
    %v1358 = vrot.slane %v1239, %v1357
    %v1359 = vlaneseq
    %v1360 = vshrl.u32 %v1359, 7
    %v1361 = vsub.s32 3, %v1360
    %v1362 = vrot.slane %v1240, %v1361
    %v1363 = vlaneseq
    %v1364 = vshrl.u32 %v1363, 7
    %v1365 = vsub.s32 3, %v1364
    %v1366 = vrot.slane %v1241, %v1365
    %v1367 = vsel %vm441, %v1350, %v1342
    %v1368 = vsel %vm441, %v1354, %v1343
    %v1369 = vsel %vm441, %v1358, %v1344
    %v1370 = vsel %vm441, %v1362, %v1345
    %v1371 = vsel %vm441, %v1366, %v1346
    %v1372 = vsel 0, %v1150, %v1317
    %v1373 = vsel 0, %v1150, %v1318
    %v1374 = vsel 0, %v1150, %v1319
    %v1375 = vsel 1, %v1150, %v1320
    %v1376 = vsel 0, %v1150, %v1321
    %v1377 = vsel 1, %v1144, %v1372
    %v1378 = vsel 0, %v1144, %v1373
    %v1379 = vsel 0, %v1144, %v1374
    %v1380 = vsel 0, %v1144, %v1375
    %v1381 = vsel 0, %v1144, %v1376
    %v1382 = vsel 0, %v1154, %v1367
    %v1383 = vsel 0, %v1154, %v1368
    %v1384 = vsel 0, %v1154, %v1369
    %v1385 = vsel 1, %v1154, %v1370
    %v1386 = vsel 0, %v1154, %v1371
    %v1387 = vsel 1, %v1153, %v1382
    %v1388 = vsel 0, %v1153, %v1383
    %v1389 = vsel 0, %v1153, %v1384
    %v1390 = vsel 0, %v1153, %v1385
    %v1391 = vsel 0, %v1153, %v1386
    %v1392 = vmul.f32 %v1377, %v1377
    %v1393 = vmul.f32 %v1387, %v1387
    %v1394 = vadd.f32 %v1392, %v1393
    %v1395 = vrsqrt.pop %v1394
    %v1396 = vmul.f32 %v1394, %v1395
    %vm1397 = vcmp.eq.f32.partialorder %v1394, inf
    %v1398 = vsel %vm1397, %v1394, %v1396
    %vm1399 = vcmp.eq.f32.partialorder %v1394, 0.0
    %v1400 = vand.u32 %v1394, 2147483648
    %v1401 = vsel %vm1399, %v1400, %v1398
    %vm1402 = vcmp.le.f32.partialorder %v1401, 1e-10
    %v1403 = vsel %vm1402, 1.0, %v1401
    %v1404 = vrcp.pop %v1403
    %v1405 = vmul.f32 1.0, %v1404
    %v1406 = vmul.f32 %v1377, %v1405
    %v1407 = vsel %vm1402, 1.0, %v1406
    %v1408 = vmul.f32 %v1387, %v1405
    %v1409 = vsel %vm1402, 0.0, %v1408
    %v1411 = vrot.slane %v1377, 4
    %v1413 = vsub.f32 %v1381, %v1411
    %v1414 = vmul.f32 %v1405, 0.5
    %v1415 = vmul.f32 %v1413, %v1414
    %vm1416 = vcmp.ge.f32.partialorder %v1415, 0.0
    %v1417 = vsel %vm1416, 1.0, -1.0
    %v1418 = vand.u32 2147483647, %v1415
    %v1419 = vmul.f32 %v1415, %v1415
    %v1420 = vadd.f32 %v1419, 1.0
    %v1421 = vrsqrt.pop %v1420
    %v1422 = vmul.f32 %v1420, %v1421
    %vm1423 = vcmp.eq.f32.partialorder %v1420, inf
    %v1424 = vsel %vm1423, %v1420, %v1422
    %vm1425 = vcmp.eq.f32.partialorder %v1420, 0.0
    %v1426 = vand.u32 %v1420, 2147483648
    %v1427 = vsel %vm1425, %v1426, %v1424
    %v1428 = vadd.f32 %v1418, %v1427
    %v1429 = vrcp.pop %v1428
    %v1430 = vmul.f32 %v1417, %v1429
    %v1431 = vmul.f32 %v1430, %v1430
    %v1432 = vadd.f32 %v1431, 1.0
    %v1433 = vrsqrt.pop %v1432
    %v1434 = vmul.f32 %v1430, %v1433
    %v1435 = vsel %vm1402, 0.0, %v1434
    %v1436 = vsel %vm1402, 1.0, %v1433
    %v1437 = vmul.f32 %v1436, 2.0
    %v1438 = vmul.f32 %v1437, %v1435
    %v1439 = vmul.f32 %v1436, %v1436
    %v1440 = vmul.f32 %v1439, %v1411
    %v1441 = vmul.f32 %v1438, %v1401
    %v1442 = vsub.f32 %v1440, %v1441
    %v1443 = vmul.f32 %v1435, %v1435
    %v1444 = vmul.f32 %v1443, %v1381
    %v1445 = vadd.f32 %v1442, %v1444
    %v1446 = vmul.f32 %v1443, %v1411
    %v1447 = vadd.f32 %v1446, %v1441
    %v1448 = vmul.f32 %v1439, %v1381
    %v1449 = vadd.f32 %v1447, %v1448
    %v1450 = vlaneseq
    %v1451 = vshrl.u32 %v1450, 7
    %v1452 = vsub.s32 4, %v1451
    %v1453 = vrot.slane %v1407, %v1452
    %v1454 = vmul.f32 %v1453, %v1377
    %v1455 = vlaneseq
    %v1456 = vshrl.u32 %v1455, 7
    %v1457 = vsub.s32 4, %v1456
    %v1458 = vrot.slane %v1409, %v1457
    %v1459 = vmul.f32 %v1458, %v1387
    %v1460 = vadd.f32 %v1454, %v1459
    %v1461 = vmul.f32 %v1453, %v1387
    %v1462 = vmul.f32 %v1458, %v1377
    %v1463 = vsub.f32 %v1461, %v1462
    %v1464 = vlaneseq
    %v1465 = vshrl.u32 %v1464, 7
    %v1466 = vsub.s32 4, %v1465
    %v1467 = vrot.slane %v1436, %v1466
    %v1468 = vmul.f32 %v1467, %v1460
    %v1469 = vlaneseq
    %v1470 = vshrl.u32 %v1469, 7
    %v1471 = vsub.s32 4, %v1470
    %v1472 = vrot.slane %v1435, %v1471
    %v1473 = vmul.f32 %v1472, %v1381
    %v1474 = vsub.f32 %v1468, %v1473
    %v1475 = vmul.f32 %v1467, %v1463
    %v1476 = vmul.f32 %v1472, %v1391
    %v1477 = vsub.f32 %v1475, %v1476
    %v1478 = vmul.f32 %v1472, %v1460
    %v1479 = vmul.f32 %v1467, %v1381
    %v1480 = vadd.f32 %v1478, %v1479
    %v1481 = vmul.f32 %v1472, %v1463
    %v1482 = vmul.f32 %v1467, %v1391
    %v1483 = vadd.f32 %v1481, %v1482
    %vm1484 = vcmp.eq.s32.totalorder %v325, 4
    %vm1485 = vmor %vm434, %vm1484
    %v1486 = vsel %vm1484, 1, 0
    %vm1487 = vcmp.eq.s32.totalorder %v1486, 1
    %v1488 = vsel %vm1487, 0.0, %v1474
    %v1489 = vlaneseq
    %v1490 = vshrl.u32 %v1489, 7
    %v1491 = vsub.s32 4, %v1490
    %v1492 = vrot.slane %v1445, %v1491
    %v1493 = vsel %vm441, %v1492, %v1488
    %v1494 = vsel %vm441, 0.0, %v1480
    %v1495 = vlaneseq
    %v1496 = vshrl.u32 %v1495, 7
    %v1497 = vsub.s32 4, %v1496
    %v1498 = vrot.slane %v1449, %v1497
    %v1499 = vsel %vm1487, %v1498, %v1494
    %v1500 = vsel %vm1485, 1, 0
    %vm1501 = vcmp.eq.s32.totalorder %v1500, 1
    %v1502 = vsel %vm1501, 0.0, %v1477
    %v1503 = vsel %vm1501, 0.0, %v1483
    %v1508 = vrot.slane %v1378, 4
    %v1509 = vrot.slane %v1379, 4
    %v1510 = vrot.slane %v1380, 4
    %v1511 = vrot.slane %v1381, 4
    %v1516 = vmul.f32 %v1407, %v1411
    %v1517 = vmul.f32 %v1407, %v1508
    %v1518 = vmul.f32 %v1407, %v1509
    %v1519 = vmul.f32 %v1407, %v1510
    %v1520 = vmul.f32 %v1407, %v1511
    %v1526 = vrot.slane %v1387, 4
    %v1527 = vrot.slane %v1388, 4
    %v1528 = vrot.slane %v1389, 4
    %v1529 = vrot.slane %v1390, 4
    %v1530 = vrot.slane %v1391, 4
    %v1536 = vmul.f32 %v1409, %v1526
    %v1537 = vmul.f32 %v1409, %v1527
    %v1538 = vmul.f32 %v1409, %v1528
    %v1539 = vmul.f32 %v1409, %v1529
    %v1540 = vmul.f32 %v1409, %v1530
    %v1541 = vsub.f32 %v1516, %v1536
    %v1542 = vsub.f32 %v1517, %v1537
    %v1543 = vsub.f32 %v1518, %v1538
    %v1544 = vsub.f32 %v1519, %v1539
    %v1545 = vsub.f32 %v1520, %v1540
    %v1546 = vmul.f32 %v1407, %v1526
    %v1547 = vmul.f32 %v1407, %v1527
    %v1548 = vmul.f32 %v1407, %v1528
    %v1549 = vmul.f32 %v1407, %v1529
    %v1550 = vmul.f32 %v1407, %v1530
    %v1551 = vmul.f32 %v1409, %v1411
    %v1552 = vmul.f32 %v1409, %v1508
    %v1553 = vmul.f32 %v1409, %v1509
    %v1554 = vmul.f32 %v1409, %v1510
    %v1555 = vmul.f32 %v1409, %v1511
    %v1556 = vadd.f32 %v1546, %v1551
    %v1557 = vadd.f32 %v1547, %v1552
    %v1558 = vadd.f32 %v1548, %v1553
    %v1559 = vadd.f32 %v1549, %v1554
    %v1560 = vadd.f32 %v1550, %v1555
    %v1561 = vmul.f32 %v1436, %v1541
    %v1562 = vmul.f32 %v1436, %v1542
    %v1563 = vmul.f32 %v1436, %v1543
    %v1564 = vmul.f32 %v1436, %v1544
    %v1565 = vmul.f32 %v1436, %v1545
    %v1566 = vmul.f32 %v1435, %v1377
    %v1567 = vmul.f32 %v1435, %v1378
    %v1568 = vmul.f32 %v1435, %v1379
    %v1569 = vmul.f32 %v1435, %v1380
    %v1570 = vmul.f32 %v1435, %v1381
    %v1571 = vsub.f32 %v1561, %v1566
    %v1572 = vsub.f32 %v1562, %v1567
    %v1573 = vsub.f32 %v1563, %v1568
    %v1574 = vsub.f32 %v1564, %v1569
    %v1575 = vsub.f32 %v1565, %v1570
    %v1576 = vmul.f32 %v1436, %v1556
    %v1577 = vmul.f32 %v1436, %v1557
    %v1578 = vmul.f32 %v1436, %v1558
    %v1579 = vmul.f32 %v1436, %v1559
    %v1580 = vmul.f32 %v1436, %v1560
    %v1581 = vmul.f32 %v1435, %v1387
    %v1582 = vmul.f32 %v1435, %v1388
    %v1583 = vmul.f32 %v1435, %v1389
    %v1584 = vmul.f32 %v1435, %v1390
    %v1585 = vmul.f32 %v1435, %v1391
    %v1586 = vsub.f32 %v1576, %v1581
    %v1587 = vsub.f32 %v1577, %v1582
    %v1588 = vsub.f32 %v1578, %v1583
    %v1589 = vsub.f32 %v1579, %v1584
    %v1590 = vsub.f32 %v1580, %v1585
    %v1591 = vmul.f32 %v1435, %v1541
    %v1592 = vmul.f32 %v1435, %v1542
    %v1593 = vmul.f32 %v1435, %v1543
    %v1594 = vmul.f32 %v1435, %v1544
    %v1595 = vmul.f32 %v1435, %v1545
    %v1596 = vmul.f32 %v1436, %v1377
    %v1597 = vmul.f32 %v1436, %v1378
    %v1598 = vmul.f32 %v1436, %v1379
    %v1599 = vmul.f32 %v1436, %v1380
    %v1600 = vmul.f32 %v1436, %v1381
    %v1601 = vadd.f32 %v1591, %v1596
    %v1602 = vadd.f32 %v1592, %v1597
    %v1603 = vadd.f32 %v1593, %v1598
    %v1604 = vadd.f32 %v1594, %v1599
    %v1605 = vadd.f32 %v1595, %v1600
    %v1606 = vmul.f32 %v1435, %v1556
    %v1607 = vmul.f32 %v1435, %v1557
    %v1608 = vmul.f32 %v1435, %v1558
    %v1609 = vmul.f32 %v1435, %v1559
    %v1610 = vmul.f32 %v1435, %v1560
    %v1611 = vmul.f32 %v1436, %v1387
    %v1612 = vmul.f32 %v1436, %v1388
    %v1613 = vmul.f32 %v1436, %v1389
    %v1614 = vmul.f32 %v1436, %v1390
    %v1615 = vmul.f32 %v1436, %v1391
    %v1616 = vadd.f32 %v1606, %v1611
    %v1617 = vadd.f32 %v1607, %v1612
    %v1618 = vadd.f32 %v1608, %v1613
    %v1619 = vadd.f32 %v1609, %v1614
    %v1620 = vadd.f32 %v1610, %v1615
    %v1621 = vlaneseq
    %v1622 = vshrl.u32 %v1621, 7
    %v1623 = vsub.s32 4, %v1622
    %v1624 = vrot.slane %v1601, %v1623
    %v1625 = vlaneseq
    %v1626 = vshrl.u32 %v1625, 7
    %v1627 = vsub.s32 4, %v1626
    %v1628 = vrot.slane %v1602, %v1627
    %v1629 = vlaneseq
    %v1630 = vshrl.u32 %v1629, 7
    %v1631 = vsub.s32 4, %v1630
    %v1632 = vrot.slane %v1603, %v1631
    %v1633 = vlaneseq
    %v1634 = vshrl.u32 %v1633, 7
    %v1635 = vsub.s32 4, %v1634
    %v1636 = vrot.slane %v1604, %v1635
    %v1637 = vlaneseq
    %v1638 = vshrl.u32 %v1637, 7
    %v1639 = vsub.s32 4, %v1638
    %v1640 = vrot.slane %v1605, %v1639
    %v1641 = vsel %vm1487, %v1624, %v1377
    %v1642 = vsel %vm1487, %v1628, %v1378
    %v1643 = vsel %vm1487, %v1632, %v1379
    %v1644 = vsel %vm1487, %v1636, %v1380
    %v1645 = vsel %vm1487, %v1640, %v1381
    %v1646 = vlaneseq
    %v1647 = vshrl.u32 %v1646, 7
    %v1648 = vsub.s32 4, %v1647
    %v1649 = vrot.slane %v1571, %v1648
    %v1650 = vlaneseq
    %v1651 = vshrl.u32 %v1650, 7
    %v1652 = vsub.s32 4, %v1651
    %v1653 = vrot.slane %v1572, %v1652
    %v1654 = vlaneseq
    %v1655 = vshrl.u32 %v1654, 7
    %v1656 = vsub.s32 4, %v1655
    %v1657 = vrot.slane %v1573, %v1656
    %v1658 = vlaneseq
    %v1659 = vshrl.u32 %v1658, 7
    %v1660 = vsub.s32 4, %v1659
    %v1661 = vrot.slane %v1574, %v1660
    %v1662 = vlaneseq
    %v1663 = vshrl.u32 %v1662, 7
    %v1664 = vsub.s32 4, %v1663
    %v1665 = vrot.slane %v1575, %v1664
    %v1666 = vsel %vm441, %v1649, %v1641
    %v1667 = vsel %vm441, %v1653, %v1642
    %v1668 = vsel %vm441, %v1657, %v1643
    %v1669 = vsel %vm441, %v1661, %v1644
    %v1670 = vsel %vm441, %v1665, %v1645
    %v1671 = vlaneseq
    %v1672 = vshrl.u32 %v1671, 7
    %v1673 = vsub.s32 4, %v1672
    %v1674 = vrot.slane %v1616, %v1673
    %v1675 = vlaneseq
    %v1676 = vshrl.u32 %v1675, 7
    %v1677 = vsub.s32 4, %v1676
    %v1678 = vrot.slane %v1617, %v1677
    %v1679 = vlaneseq
    %v1680 = vshrl.u32 %v1679, 7
    %v1681 = vsub.s32 4, %v1680
    %v1682 = vrot.slane %v1618, %v1681
    %v1683 = vlaneseq
    %v1684 = vshrl.u32 %v1683, 7
    %v1685 = vsub.s32 4, %v1684
    %v1686 = vrot.slane %v1619, %v1685
    %v1687 = vlaneseq
    %v1688 = vshrl.u32 %v1687, 7
    %v1689 = vsub.s32 4, %v1688
    %v1690 = vrot.slane %v1620, %v1689
    %v1691 = vsel %vm1487, %v1674, %v1387
    %v1692 = vsel %vm1487, %v1678, %v1388
    %v1693 = vsel %vm1487, %v1682, %v1389
    %v1694 = vsel %vm1487, %v1686, %v1390
    %v1695 = vsel %vm1487, %v1690, %v1391
    %v1696 = vlaneseq
    %v1697 = vshrl.u32 %v1696, 7
    %v1698 = vsub.s32 4, %v1697
    %v1699 = vrot.slane %v1586, %v1698
    %v1700 = vlaneseq
    %v1701 = vshrl.u32 %v1700, 7
    %v1702 = vsub.s32 4, %v1701
    %v1703 = vrot.slane %v1587, %v1702
    %v1704 = vlaneseq
    %v1705 = vshrl.u32 %v1704, 7
    %v1706 = vsub.s32 4, %v1705
    %v1707 = vrot.slane %v1588, %v1706
    %v1708 = vlaneseq
    %v1709 = vshrl.u32 %v1708, 7
    %v1710 = vsub.s32 4, %v1709
    %v1711 = vrot.slane %v1589, %v1710
    %v1712 = vlaneseq
    %v1713 = vshrl.u32 %v1712, 7
    %v1714 = vsub.s32 4, %v1713
    %v1715 = vrot.slane %v1590, %v1714
    %v1716 = vsel %vm441, %v1699, %v1691
    %v1717 = vsel %vm441, %v1703, %v1692
    %v1718 = vsel %vm441, %v1707, %v1693
    %v1719 = vsel %vm441, %v1711, %v1694
    %v1720 = vsel %vm441, %v1715, %v1695
    %v1721 = vsel 0, %v1499, %v1666
    %v1722 = vsel 0, %v1499, %v1667
    %v1723 = vsel 0, %v1499, %v1668
    %v1724 = vsel 0, %v1499, %v1669
    %v1725 = vsel 1, %v1499, %v1670
    %v1726 = vsel 1, %v1493, %v1721
    %v1727 = vsel 0, %v1493, %v1722
    %v1728 = vsel 0, %v1493, %v1723
    %v1729 = vsel 0, %v1493, %v1724
    %v1730 = vsel 0, %v1493, %v1725
    %v1731 = vsel 0, %v1503, %v1716
    %v1732 = vsel 0, %v1503, %v1717
    %v1733 = vsel 0, %v1503, %v1718
    %v1734 = vsel 0, %v1503, %v1719
    %v1735 = vsel 1, %v1503, %v1720
    %v1736 = vsel 1, %v1502, %v1731
    %v1737 = vsel 0, %v1502, %v1732
    %v1738 = vsel 0, %v1502, %v1733
    %v1739 = vsel 0, %v1502, %v1734
    %v1740 = vsel 0, %v1502, %v1735
    %v1741 = vmul.f32 %v1727, %v1727
    %v1742 = vmul.f32 %v1737, %v1737
    %v1743 = vadd.f32 %v1741, %v1742
    %v1744 = vrsqrt.pop %v1743
    %v1745 = vmul.f32 %v1743, %v1744
    %vm1746 = vcmp.eq.f32.partialorder %v1743, inf
    %v1747 = vsel %vm1746, %v1743, %v1745
    %vm1748 = vcmp.eq.f32.partialorder %v1743, 0.0
    %v1749 = vand.u32 %v1743, 2147483648
    %v1750 = vsel %vm1748, %v1749, %v1747
    %vm1751 = vcmp.le.f32.partialorder %v1750, 1e-10
    %v1752 = vsel %vm1751, 1.0, %v1750
    %v1753 = vrcp.pop %v1752
    %v1754 = vmul.f32 1.0, %v1753
    %v1755 = vmul.f32 %v1727, %v1754
    %v1756 = vsel %vm1751, 1.0, %v1755
    %v1757 = vmul.f32 %v1737, %v1754
    %v1758 = vsel %vm1751, 0.0, %v1757
    %v1760 = vrot.slane %v1727, 7
    %v1762 = vsub.f32 %v1728, %v1760
    %v1763 = vmul.f32 %v1754, 0.5
    %v1764 = vmul.f32 %v1762, %v1763
    %vm1765 = vcmp.ge.f32.partialorder %v1764, 0.0
    %v1766 = vsel %vm1765, 1.0, -1.0
    %v1767 = vand.u32 2147483647, %v1764
    %v1768 = vmul.f32 %v1764, %v1764
    %v1769 = vadd.f32 %v1768, 1.0
    %v1770 = vrsqrt.pop %v1769
    %v1771 = vmul.f32 %v1769, %v1770
    %vm1772 = vcmp.eq.f32.partialorder %v1769, inf
    %v1773 = vsel %vm1772, %v1769, %v1771
    %vm1774 = vcmp.eq.f32.partialorder %v1769, 0.0
    %v1775 = vand.u32 %v1769, 2147483648
    %v1776 = vsel %vm1774, %v1775, %v1773
    %v1777 = vadd.f32 %v1767, %v1776
    %v1778 = vrcp.pop %v1777
    %v1779 = vmul.f32 %v1766, %v1778
    %v1780 = vmul.f32 %v1779, %v1779
    %v1781 = vadd.f32 %v1780, 1.0
    %v1782 = vrsqrt.pop %v1781
    %v1783 = vmul.f32 %v1779, %v1782
    %v1784 = vsel %vm1751, 0.0, %v1783
    %v1785 = vsel %vm1751, 1.0, %v1782
    %v1786 = vmul.f32 %v1785, 2.0
    %v1787 = vmul.f32 %v1786, %v1784
    %v1788 = vmul.f32 %v1785, %v1785
    %v1789 = vmul.f32 %v1788, %v1760
    %v1790 = vmul.f32 %v1787, %v1750
    %v1791 = vsub.f32 %v1789, %v1790
    %v1792 = vmul.f32 %v1784, %v1784
    %v1793 = vmul.f32 %v1792, %v1728
    %v1794 = vadd.f32 %v1791, %v1793
    %v1795 = vmul.f32 %v1792, %v1760
    %v1796 = vadd.f32 %v1795, %v1790
    %v1797 = vmul.f32 %v1788, %v1728
    %v1798 = vadd.f32 %v1796, %v1797
    %v1799 = vlaneseq
    %v1800 = vshrl.u32 %v1799, 7
    %v1801 = vsub.s32 2, %v1800
    %v1802 = vrot.slane %v1756, %v1801
    %v1803 = vmul.f32 %v1802, %v1727
    %v1804 = vlaneseq
    %v1805 = vshrl.u32 %v1804, 7
    %v1806 = vsub.s32 2, %v1805
    %v1807 = vrot.slane %v1758, %v1806
    %v1808 = vmul.f32 %v1807, %v1737
    %v1809 = vadd.f32 %v1803, %v1808
    %v1810 = vmul.f32 %v1802, %v1737
    %v1811 = vmul.f32 %v1807, %v1727
    %v1812 = vsub.f32 %v1810, %v1811
    %v1813 = vlaneseq
    %v1814 = vshrl.u32 %v1813, 7
    %v1815 = vsub.s32 2, %v1814
    %v1816 = vrot.slane %v1785, %v1815
    %v1817 = vmul.f32 %v1816, %v1809
    %v1818 = vlaneseq
    %v1819 = vshrl.u32 %v1818, 7
    %v1820 = vsub.s32 2, %v1819
    %v1821 = vrot.slane %v1784, %v1820
    %v1822 = vmul.f32 %v1821, %v1728
    %v1823 = vsub.f32 %v1817, %v1822
    %v1824 = vmul.f32 %v1816, %v1812
    %v1825 = vmul.f32 %v1821, %v1738
    %v1826 = vsub.f32 %v1824, %v1825
    %v1827 = vmul.f32 %v1821, %v1809
    %v1828 = vmul.f32 %v1816, %v1728
    %v1829 = vadd.f32 %v1827, %v1828
    %v1830 = vmul.f32 %v1821, %v1812
    %v1831 = vmul.f32 %v1816, %v1738
    %v1832 = vadd.f32 %v1830, %v1831
    %vm1833 = vmor %vm435, %vm786
    %v1834 = vsel %vm789, 0.0, %v1823
    %v1835 = vlaneseq
    %v1836 = vshrl.u32 %v1835, 7
    %v1837 = vsub.s32 2, %v1836
    %v1838 = vrot.slane %v1794, %v1837
    %v1839 = vsel %vm438, %v1838, %v1834
    %v1840 = vsel %vm438, 0.0, %v1829
    %v1841 = vlaneseq
    %v1842 = vshrl.u32 %v1841, 7
    %v1843 = vsub.s32 2, %v1842
    %v1844 = vrot.slane %v1798, %v1843
    %v1845 = vsel %vm789, %v1844, %v1840
    %v1846 = vsel %vm1833, 1, 0
    %vm1847 = vcmp.eq.s32.totalorder %v1846, 1
    %v1848 = vsel %vm1847, 0.0, %v1826
    %v1849 = vsel %vm1847, 0.0, %v1832
    %v1854 = vrot.slane %v1726, 7
    %v1855 = vrot.slane %v1728, 7
    %v1856 = vrot.slane %v1729, 7
    %v1857 = vrot.slane %v1730, 7
    %v1862 = vmul.f32 %v1756, %v1854
    %v1863 = vmul.f32 %v1756, %v1760
    %v1864 = vmul.f32 %v1756, %v1855
    %v1865 = vmul.f32 %v1756, %v1856
    %v1866 = vmul.f32 %v1756, %v1857
    %v1872 = vrot.slane %v1736, 7
    %v1873 = vrot.slane %v1737, 7
    %v1874 = vrot.slane %v1738, 7
    %v1875 = vrot.slane %v1739, 7
    %v1876 = vrot.slane %v1740, 7
    %v1882 = vmul.f32 %v1758, %v1872
    %v1883 = vmul.f32 %v1758, %v1873
    %v1884 = vmul.f32 %v1758, %v1874
    %v1885 = vmul.f32 %v1758, %v1875
    %v1886 = vmul.f32 %v1758, %v1876
    %v1887 = vsub.f32 %v1862, %v1882
    %v1888 = vsub.f32 %v1863, %v1883
    %v1889 = vsub.f32 %v1864, %v1884
    %v1890 = vsub.f32 %v1865, %v1885
    %v1891 = vsub.f32 %v1866, %v1886
    %v1892 = vmul.f32 %v1756, %v1872
    %v1893 = vmul.f32 %v1756, %v1873
    %v1894 = vmul.f32 %v1756, %v1874
    %v1895 = vmul.f32 %v1756, %v1875
    %v1896 = vmul.f32 %v1756, %v1876
    %v1897 = vmul.f32 %v1758, %v1854
    %v1898 = vmul.f32 %v1758, %v1760
    %v1899 = vmul.f32 %v1758, %v1855
    %v1900 = vmul.f32 %v1758, %v1856
    %v1901 = vmul.f32 %v1758, %v1857
    %v1902 = vadd.f32 %v1892, %v1897
    %v1903 = vadd.f32 %v1893, %v1898
    %v1904 = vadd.f32 %v1894, %v1899
    %v1905 = vadd.f32 %v1895, %v1900
    %v1906 = vadd.f32 %v1896, %v1901
    %v1907 = vmul.f32 %v1785, %v1887
    %v1908 = vmul.f32 %v1785, %v1888
    %v1909 = vmul.f32 %v1785, %v1889
    %v1910 = vmul.f32 %v1785, %v1890
    %v1911 = vmul.f32 %v1785, %v1891
    %v1912 = vmul.f32 %v1784, %v1726
    %v1913 = vmul.f32 %v1784, %v1727
    %v1914 = vmul.f32 %v1784, %v1728
    %v1915 = vmul.f32 %v1784, %v1729
    %v1916 = vmul.f32 %v1784, %v1730
    %v1917 = vsub.f32 %v1907, %v1912
    %v1918 = vsub.f32 %v1908, %v1913
    %v1919 = vsub.f32 %v1909, %v1914
    %v1920 = vsub.f32 %v1910, %v1915
    %v1921 = vsub.f32 %v1911, %v1916
    %v1922 = vmul.f32 %v1785, %v1902
    %v1923 = vmul.f32 %v1785, %v1903
    %v1924 = vmul.f32 %v1785, %v1904
    %v1925 = vmul.f32 %v1785, %v1905
    %v1926 = vmul.f32 %v1785, %v1906
    %v1927 = vmul.f32 %v1784, %v1736
    %v1928 = vmul.f32 %v1784, %v1737
    %v1929 = vmul.f32 %v1784, %v1738
    %v1930 = vmul.f32 %v1784, %v1739
    %v1931 = vmul.f32 %v1784, %v1740
    %v1932 = vsub.f32 %v1922, %v1927
    %v1933 = vsub.f32 %v1923, %v1928
    %v1934 = vsub.f32 %v1924, %v1929
    %v1935 = vsub.f32 %v1925, %v1930
    %v1936 = vsub.f32 %v1926, %v1931
    %v1937 = vmul.f32 %v1784, %v1887
    %v1938 = vmul.f32 %v1784, %v1888
    %v1939 = vmul.f32 %v1784, %v1889
    %v1940 = vmul.f32 %v1784, %v1890
    %v1941 = vmul.f32 %v1784, %v1891
    %v1942 = vmul.f32 %v1785, %v1726
    %v1943 = vmul.f32 %v1785, %v1727
    %v1944 = vmul.f32 %v1785, %v1728
    %v1945 = vmul.f32 %v1785, %v1729
    %v1946 = vmul.f32 %v1785, %v1730
    %v1947 = vadd.f32 %v1937, %v1942
    %v1948 = vadd.f32 %v1938, %v1943
    %v1949 = vadd.f32 %v1939, %v1944
    %v1950 = vadd.f32 %v1940, %v1945
    %v1951 = vadd.f32 %v1941, %v1946
    %v1952 = vmul.f32 %v1784, %v1902
    %v1953 = vmul.f32 %v1784, %v1903
    %v1954 = vmul.f32 %v1784, %v1904
    %v1955 = vmul.f32 %v1784, %v1905
    %v1956 = vmul.f32 %v1784, %v1906
    %v1957 = vmul.f32 %v1785, %v1736
    %v1958 = vmul.f32 %v1785, %v1737
    %v1959 = vmul.f32 %v1785, %v1738
    %v1960 = vmul.f32 %v1785, %v1739
    %v1961 = vmul.f32 %v1785, %v1740
    %v1962 = vadd.f32 %v1952, %v1957
    %v1963 = vadd.f32 %v1953, %v1958
    %v1964 = vadd.f32 %v1954, %v1959
    %v1965 = vadd.f32 %v1955, %v1960
    %v1966 = vadd.f32 %v1956, %v1961
    %v1967 = vlaneseq
    %v1968 = vshrl.u32 %v1967, 7
    %v1969 = vsub.s32 2, %v1968
    %v1970 = vrot.slane %v1947, %v1969
    %v1971 = vlaneseq
    %v1972 = vshrl.u32 %v1971, 7
    %v1973 = vsub.s32 2, %v1972
    %v1974 = vrot.slane %v1948, %v1973
    %v1975 = vlaneseq
    %v1976 = vshrl.u32 %v1975, 7
    %v1977 = vsub.s32 2, %v1976
    %v1978 = vrot.slane %v1949, %v1977
    %v1979 = vlaneseq
    %v1980 = vshrl.u32 %v1979, 7
    %v1981 = vsub.s32 2, %v1980
    %v1982 = vrot.slane %v1950, %v1981
    %v1983 = vlaneseq
    %v1984 = vshrl.u32 %v1983, 7
    %v1985 = vsub.s32 2, %v1984
    %v1986 = vrot.slane %v1951, %v1985
    %v1987 = vsel %vm789, %v1970, %v1726
    %v1988 = vsel %vm789, %v1974, %v1727
    %v1989 = vsel %vm789, %v1978, %v1728
    %v1990 = vsel %vm789, %v1982, %v1729
    %v1991 = vsel %vm789, %v1986, %v1730
    %v1992 = vlaneseq
    %v1993 = vshrl.u32 %v1992, 7
    %v1994 = vsub.s32 2, %v1993
    %v1995 = vrot.slane %v1917, %v1994
    %v1996 = vlaneseq
    %v1997 = vshrl.u32 %v1996, 7
    %v1998 = vsub.s32 2, %v1997
    %v1999 = vrot.slane %v1918, %v1998
    %v2000 = vlaneseq
    %v2001 = vshrl.u32 %v2000, 7
    %v2002 = vsub.s32 2, %v2001
    %v2003 = vrot.slane %v1919, %v2002
    %v2004 = vlaneseq
    %v2005 = vshrl.u32 %v2004, 7
    %v2006 = vsub.s32 2, %v2005
    %v2007 = vrot.slane %v1920, %v2006
    %v2008 = vlaneseq
    %v2009 = vshrl.u32 %v2008, 7
    %v2010 = vsub.s32 2, %v2009
    %v2011 = vrot.slane %v1921, %v2010
    %v2012 = vsel %vm438, %v1995, %v1987
    %v2013 = vsel %vm438, %v1999, %v1988
    %v2014 = vsel %vm438, %v2003, %v1989
    %v2015 = vsel %vm438, %v2007, %v1990
    %v2016 = vsel %vm438, %v2011, %v1991
    %v2017 = vlaneseq
    %v2018 = vshrl.u32 %v2017, 7
    %v2019 = vsub.s32 2, %v2018
    %v2020 = vrot.slane %v1962, %v2019
    %v2021 = vlaneseq
    %v2022 = vshrl.u32 %v2021, 7
    %v2023 = vsub.s32 2, %v2022
    %v2024 = vrot.slane %v1963, %v2023
    %v2025 = vlaneseq
    %v2026 = vshrl.u32 %v2025, 7
    %v2027 = vsub.s32 2, %v2026
    %v2028 = vrot.slane %v1964, %v2027
    %v2029 = vlaneseq
    %v2030 = vshrl.u32 %v2029, 7
    %v2031 = vsub.s32 2, %v2030
    %v2032 = vrot.slane %v1965, %v2031
    %v2033 = vlaneseq
    %v2034 = vshrl.u32 %v2033, 7
    %v2035 = vsub.s32 2, %v2034
    %v2036 = vrot.slane %v1966, %v2035
    %v2037 = vsel %vm789, %v2020, %v1736
    %v2038 = vsel %vm789, %v2024, %v1737
    %v2039 = vsel %vm789, %v2028, %v1738
    %v2040 = vsel %vm789, %v2032, %v1739
    %v2041 = vsel %vm789, %v2036, %v1740
    %v2042 = vlaneseq
    %v2043 = vshrl.u32 %v2042, 7
    %v2044 = vsub.s32 2, %v2043
    %v2045 = vrot.slane %v1932, %v2044
    %v2046 = vlaneseq
    %v2047 = vshrl.u32 %v2046, 7
    %v2048 = vsub.s32 2, %v2047
    %v2049 = vrot.slane %v1933, %v2048
    %v2050 = vlaneseq
    %v2051 = vshrl.u32 %v2050, 7
    %v2052 = vsub.s32 2, %v2051
    %v2053 = vrot.slane %v1934, %v2052
    %v2054 = vlaneseq
    %v2055 = vshrl.u32 %v2054, 7
    %v2056 = vsub.s32 2, %v2055
    %v2057 = vrot.slane %v1935, %v2056
    %v2058 = vlaneseq
    %v2059 = vshrl.u32 %v2058, 7
    %v2060 = vsub.s32 2, %v2059
    %v2061 = vrot.slane %v1936, %v2060
    %v2062 = vsel %vm438, %v2045, %v2037
    %v2063 = vsel %vm438, %v2049, %v2038
    %v2064 = vsel %vm438, %v2053, %v2039
    %v2065 = vsel %vm438, %v2057, %v2040
    %v2066 = vsel %vm438, %v2061, %v2041
    %v2067 = vsel 0, %v1845, %v2012
    %v2068 = vsel 0, %v1845, %v2013
    %v2069 = vsel 1, %v1845, %v2014
    %v2070 = vsel 0, %v1845, %v2015
    %v2071 = vsel 0, %v1845, %v2016
    %v2072 = vsel 0, %v1839, %v2067
    %v2073 = vsel 1, %v1839, %v2068
    %v2074 = vsel 0, %v1839, %v2069
    %v2075 = vsel 0, %v1839, %v2070
    %v2076 = vsel 0, %v1839, %v2071
    %v2077 = vsel 0, %v1849, %v2062
    %v2078 = vsel 0, %v1849, %v2063
    %v2079 = vsel 1, %v1849, %v2064
    %v2080 = vsel 0, %v1849, %v2065
    %v2081 = vsel 0, %v1849, %v2066
    %v2082 = vsel 0, %v1848, %v2077
    %v2083 = vsel 1, %v1848, %v2078
    %v2084 = vsel 0, %v1848, %v2079
    %v2085 = vsel 0, %v1848, %v2080
    %v2086 = vsel 0, %v1848, %v2081
    %v2087 = vmul.f32 %v2073, %v2073
    %v2088 = vmul.f32 %v2083, %v2083
    %v2089 = vadd.f32 %v2087, %v2088
    %v2090 = vrsqrt.pop %v2089
    %v2091 = vmul.f32 %v2089, %v2090
    %vm2092 = vcmp.eq.f32.partialorder %v2089, inf
    %v2093 = vsel %vm2092, %v2089, %v2091
    %vm2094 = vcmp.eq.f32.partialorder %v2089, 0.0
    %v2095 = vand.u32 %v2089, 2147483648
    %v2096 = vsel %vm2094, %v2095, %v2093
    %vm2097 = vcmp.le.f32.partialorder %v2096, 1e-10
    %v2098 = vsel %vm2097, 1.0, %v2096
    %v2099 = vrcp.pop %v2098
    %v2100 = vmul.f32 1.0, %v2099
    %v2101 = vmul.f32 %v2073, %v2100
    %v2102 = vsel %vm2097, 1.0, %v2101
    %v2103 = vmul.f32 %v2083, %v2100
    %v2104 = vsel %vm2097, 0.0, %v2103
    %v2106 = vrot.slane %v2073, 6
    %v2108 = vsub.f32 %v2075, %v2106
    %v2109 = vmul.f32 %v2100, 0.5
    %v2110 = vmul.f32 %v2108, %v2109
    %vm2111 = vcmp.ge.f32.partialorder %v2110, 0.0
    %v2112 = vsel %vm2111, 1.0, -1.0
    %v2113 = vand.u32 2147483647, %v2110
    %v2114 = vmul.f32 %v2110, %v2110
    %v2115 = vadd.f32 %v2114, 1.0
    %v2116 = vrsqrt.pop %v2115
    %v2117 = vmul.f32 %v2115, %v2116
    %vm2118 = vcmp.eq.f32.partialorder %v2115, inf
    %v2119 = vsel %vm2118, %v2115, %v2117
    %vm2120 = vcmp.eq.f32.partialorder %v2115, 0.0
    %v2121 = vand.u32 %v2115, 2147483648
    %v2122 = vsel %vm2120, %v2121, %v2119
    %v2123 = vadd.f32 %v2113, %v2122
    %v2124 = vrcp.pop %v2123
    %v2125 = vmul.f32 %v2112, %v2124
    %v2126 = vmul.f32 %v2125, %v2125
    %v2127 = vadd.f32 %v2126, 1.0
    %v2128 = vrsqrt.pop %v2127
    %v2129 = vmul.f32 %v2125, %v2128
    %v2130 = vsel %vm2097, 0.0, %v2129
    %v2131 = vsel %vm2097, 1.0, %v2128
    %v2132 = vmul.f32 %v2131, 2.0
    %v2133 = vmul.f32 %v2132, %v2130
    %v2134 = vmul.f32 %v2131, %v2131
    %v2135 = vmul.f32 %v2134, %v2106
    %v2136 = vmul.f32 %v2133, %v2096
    %v2137 = vsub.f32 %v2135, %v2136
    %v2138 = vmul.f32 %v2130, %v2130
    %v2139 = vmul.f32 %v2138, %v2075
    %v2140 = vadd.f32 %v2137, %v2139
    %v2141 = vmul.f32 %v2138, %v2106
    %v2142 = vadd.f32 %v2141, %v2136
    %v2143 = vmul.f32 %v2134, %v2075
    %v2144 = vadd.f32 %v2142, %v2143
    %v2145 = vlaneseq
    %v2146 = vshrl.u32 %v2145, 7
    %v2147 = vsub.s32 3, %v2146
    %v2148 = vrot.slane %v2102, %v2147
    %v2149 = vmul.f32 %v2148, %v2073
    %v2150 = vlaneseq
    %v2151 = vshrl.u32 %v2150, 7
    %v2152 = vsub.s32 3, %v2151
    %v2153 = vrot.slane %v2104, %v2152
    %v2154 = vmul.f32 %v2153, %v2083
    %v2155 = vadd.f32 %v2149, %v2154
    %v2156 = vmul.f32 %v2148, %v2083
    %v2157 = vmul.f32 %v2153, %v2073
    %v2158 = vsub.f32 %v2156, %v2157
    %v2159 = vlaneseq
    %v2160 = vshrl.u32 %v2159, 7
    %v2161 = vsub.s32 3, %v2160
    %v2162 = vrot.slane %v2131, %v2161
    %v2163 = vmul.f32 %v2162, %v2155
    %v2164 = vlaneseq
    %v2165 = vshrl.u32 %v2164, 7
    %v2166 = vsub.s32 3, %v2165
    %v2167 = vrot.slane %v2130, %v2166
    %v2168 = vmul.f32 %v2167, %v2075
    %v2169 = vsub.f32 %v2163, %v2168
    %v2170 = vmul.f32 %v2162, %v2158
    %v2171 = vmul.f32 %v2167, %v2085
    %v2172 = vsub.f32 %v2170, %v2171
    %v2173 = vmul.f32 %v2167, %v2155
    %v2174 = vmul.f32 %v2162, %v2075
    %v2175 = vadd.f32 %v2173, %v2174
    %v2176 = vmul.f32 %v2167, %v2158
    %v2177 = vmul.f32 %v2162, %v2085
    %v2178 = vadd.f32 %v2176, %v2177
    %vm2179 = vmor %vm435, %vm1135
    %v2180 = vsel %vm1138, 0.0, %v2169
    %v2181 = vlaneseq
    %v2182 = vshrl.u32 %v2181, 7
    %v2183 = vsub.s32 3, %v2182
    %v2184 = vrot.slane %v2140, %v2183
    %v2185 = vsel %vm438, %v2184, %v2180
    %v2186 = vsel %vm438, 0.0, %v2175
    %v2187 = vlaneseq
    %v2188 = vshrl.u32 %v2187, 7
    %v2189 = vsub.s32 3, %v2188
    %v2190 = vrot.slane %v2144, %v2189
    %v2191 = vsel %vm1138, %v2190, %v2186
    %v2192 = vsel %vm2179, 1, 0
    %vm2193 = vcmp.eq.s32.totalorder %v2192, 1
    %v2194 = vsel %vm2193, 0.0, %v2172
    %v2195 = vsel %vm2193, 0.0, %v2178
    %v2200 = vrot.slane %v2072, 6
    %v2201 = vrot.slane %v2074, 6
    %v2202 = vrot.slane %v2075, 6
    %v2203 = vrot.slane %v2076, 6
    %v2208 = vmul.f32 %v2102, %v2200
    %v2209 = vmul.f32 %v2102, %v2106
    %v2210 = vmul.f32 %v2102, %v2201
    %v2211 = vmul.f32 %v2102, %v2202
    %v2212 = vmul.f32 %v2102, %v2203
    %v2218 = vrot.slane %v2082, 6
    %v2219 = vrot.slane %v2083, 6
    %v2220 = vrot.slane %v2084, 6
    %v2221 = vrot.slane %v2085, 6
    %v2222 = vrot.slane %v2086, 6
    %v2228 = vmul.f32 %v2104, %v2218
    %v2229 = vmul.f32 %v2104, %v2219
    %v2230 = vmul.f32 %v2104, %v2220
    %v2231 = vmul.f32 %v2104, %v2221
    %v2232 = vmul.f32 %v2104, %v2222
    %v2233 = vsub.f32 %v2208, %v2228
    %v2234 = vsub.f32 %v2209, %v2229
    %v2235 = vsub.f32 %v2210, %v2230
    %v2236 = vsub.f32 %v2211, %v2231
    %v2237 = vsub.f32 %v2212, %v2232
    %v2238 = vmul.f32 %v2102, %v2218
    %v2239 = vmul.f32 %v2102, %v2219
    %v2240 = vmul.f32 %v2102, %v2220
    %v2241 = vmul.f32 %v2102, %v2221
    %v2242 = vmul.f32 %v2102, %v2222
    %v2243 = vmul.f32 %v2104, %v2200
    %v2244 = vmul.f32 %v2104, %v2106
    %v2245 = vmul.f32 %v2104, %v2201
    %v2246 = vmul.f32 %v2104, %v2202
    %v2247 = vmul.f32 %v2104, %v2203
    %v2248 = vadd.f32 %v2238, %v2243
    %v2249 = vadd.f32 %v2239, %v2244
    %v2250 = vadd.f32 %v2240, %v2245
    %v2251 = vadd.f32 %v2241, %v2246
    %v2252 = vadd.f32 %v2242, %v2247
    %v2253 = vmul.f32 %v2131, %v2233
    %v2254 = vmul.f32 %v2131, %v2234
    %v2255 = vmul.f32 %v2131, %v2235
    %v2256 = vmul.f32 %v2131, %v2236
    %v2257 = vmul.f32 %v2131, %v2237
    %v2258 = vmul.f32 %v2130, %v2072
    %v2259 = vmul.f32 %v2130, %v2073
    %v2260 = vmul.f32 %v2130, %v2074
    %v2261 = vmul.f32 %v2130, %v2075
    %v2262 = vmul.f32 %v2130, %v2076
    %v2263 = vsub.f32 %v2253, %v2258
    %v2264 = vsub.f32 %v2254, %v2259
    %v2265 = vsub.f32 %v2255, %v2260
    %v2266 = vsub.f32 %v2256, %v2261
    %v2267 = vsub.f32 %v2257, %v2262
    %v2268 = vmul.f32 %v2131, %v2248
    %v2269 = vmul.f32 %v2131, %v2249
    %v2270 = vmul.f32 %v2131, %v2250
    %v2271 = vmul.f32 %v2131, %v2251
    %v2272 = vmul.f32 %v2131, %v2252
    %v2273 = vmul.f32 %v2130, %v2082
    %v2274 = vmul.f32 %v2130, %v2083
    %v2275 = vmul.f32 %v2130, %v2084
    %v2276 = vmul.f32 %v2130, %v2085
    %v2277 = vmul.f32 %v2130, %v2086
    %v2278 = vsub.f32 %v2268, %v2273
    %v2279 = vsub.f32 %v2269, %v2274
    %v2280 = vsub.f32 %v2270, %v2275
    %v2281 = vsub.f32 %v2271, %v2276
    %v2282 = vsub.f32 %v2272, %v2277
    %v2283 = vmul.f32 %v2130, %v2233
    %v2284 = vmul.f32 %v2130, %v2234
    %v2285 = vmul.f32 %v2130, %v2235
    %v2286 = vmul.f32 %v2130, %v2236
    %v2287 = vmul.f32 %v2130, %v2237
    %v2288 = vmul.f32 %v2131, %v2072
    %v2289 = vmul.f32 %v2131, %v2073
    %v2290 = vmul.f32 %v2131, %v2074
    %v2291 = vmul.f32 %v2131, %v2075
    %v2292 = vmul.f32 %v2131, %v2076
    %v2293 = vadd.f32 %v2283, %v2288
    %v2294 = vadd.f32 %v2284, %v2289
    %v2295 = vadd.f32 %v2285, %v2290
    %v2296 = vadd.f32 %v2286, %v2291
    %v2297 = vadd.f32 %v2287, %v2292
    %v2298 = vmul.f32 %v2130, %v2248
    %v2299 = vmul.f32 %v2130, %v2249
    %v2300 = vmul.f32 %v2130, %v2250
    %v2301 = vmul.f32 %v2130, %v2251
    %v2302 = vmul.f32 %v2130, %v2252
    %v2303 = vmul.f32 %v2131, %v2082
    %v2304 = vmul.f32 %v2131, %v2083
    %v2305 = vmul.f32 %v2131, %v2084
    %v2306 = vmul.f32 %v2131, %v2085
    %v2307 = vmul.f32 %v2131, %v2086
    %v2308 = vadd.f32 %v2298, %v2303
    %v2309 = vadd.f32 %v2299, %v2304
    %v2310 = vadd.f32 %v2300, %v2305
    %v2311 = vadd.f32 %v2301, %v2306
    %v2312 = vadd.f32 %v2302, %v2307
    %v2313 = vlaneseq
    %v2314 = vshrl.u32 %v2313, 7
    %v2315 = vsub.s32 3, %v2314
    %v2316 = vrot.slane %v2293, %v2315
    %v2317 = vlaneseq
    %v2318 = vshrl.u32 %v2317, 7
    %v2319 = vsub.s32 3, %v2318
    %v2320 = vrot.slane %v2294, %v2319
    %v2321 = vlaneseq
    %v2322 = vshrl.u32 %v2321, 7
    %v2323 = vsub.s32 3, %v2322
    %v2324 = vrot.slane %v2295, %v2323
    %v2325 = vlaneseq
    %v2326 = vshrl.u32 %v2325, 7
    %v2327 = vsub.s32 3, %v2326
    %v2328 = vrot.slane %v2296, %v2327
    %v2329 = vlaneseq
    %v2330 = vshrl.u32 %v2329, 7
    %v2331 = vsub.s32 3, %v2330
    %v2332 = vrot.slane %v2297, %v2331
    %v2333 = vsel %vm1138, %v2316, %v2072
    %v2334 = vsel %vm1138, %v2320, %v2073
    %v2335 = vsel %vm1138, %v2324, %v2074
    %v2336 = vsel %vm1138, %v2328, %v2075
    %v2337 = vsel %vm1138, %v2332, %v2076
    %v2338 = vlaneseq
    %v2339 = vshrl.u32 %v2338, 7
    %v2340 = vsub.s32 3, %v2339
    %v2341 = vrot.slane %v2263, %v2340
    %v2342 = vlaneseq
    %v2343 = vshrl.u32 %v2342, 7
    %v2344 = vsub.s32 3, %v2343
    %v2345 = vrot.slane %v2264, %v2344
    %v2346 = vlaneseq
    %v2347 = vshrl.u32 %v2346, 7
    %v2348 = vsub.s32 3, %v2347
    %v2349 = vrot.slane %v2265, %v2348
    %v2350 = vlaneseq
    %v2351 = vshrl.u32 %v2350, 7
    %v2352 = vsub.s32 3, %v2351
    %v2353 = vrot.slane %v2266, %v2352
    %v2354 = vlaneseq
    %v2355 = vshrl.u32 %v2354, 7
    %v2356 = vsub.s32 3, %v2355
    %v2357 = vrot.slane %v2267, %v2356
    %v2358 = vsel %vm438, %v2341, %v2333
    %v2359 = vsel %vm438, %v2345, %v2334
    %v2360 = vsel %vm438, %v2349, %v2335
    %v2361 = vsel %vm438, %v2353, %v2336
    %v2362 = vsel %vm438, %v2357, %v2337
    %v2363 = vlaneseq
    %v2364 = vshrl.u32 %v2363, 7
    %v2365 = vsub.s32 3, %v2364
    %v2366 = vrot.slane %v2308, %v2365
    %v2367 = vlaneseq
    %v2368 = vshrl.u32 %v2367, 7
    %v2369 = vsub.s32 3, %v2368
    %v2370 = vrot.slane %v2309, %v2369
    %v2371 = vlaneseq
    %v2372 = vshrl.u32 %v2371, 7
    %v2373 = vsub.s32 3, %v2372
    %v2374 = vrot.slane %v2310, %v2373
    %v2375 = vlaneseq
    %v2376 = vshrl.u32 %v2375, 7
    %v2377 = vsub.s32 3, %v2376
    %v2378 = vrot.slane %v2311, %v2377
    %v2379 = vlaneseq
    %v2380 = vshrl.u32 %v2379, 7
    %v2381 = vsub.s32 3, %v2380
    %v2382 = vrot.slane %v2312, %v2381
    %v2383 = vsel %vm1138, %v2366, %v2082
    %v2384 = vsel %vm1138, %v2370, %v2083
    %v2385 = vsel %vm1138, %v2374, %v2084
    %v2386 = vsel %vm1138, %v2378, %v2085
    %v2387 = vsel %vm1138, %v2382, %v2086
    %v2388 = vlaneseq
    %v2389 = vshrl.u32 %v2388, 7
    %v2390 = vsub.s32 3, %v2389
    %v2391 = vrot.slane %v2278, %v2390
    %v2392 = vlaneseq
    %v2393 = vshrl.u32 %v2392, 7
    %v2394 = vsub.s32 3, %v2393
    %v2395 = vrot.slane %v2279, %v2394
    %v2396 = vlaneseq
    %v2397 = vshrl.u32 %v2396, 7
    %v2398 = vsub.s32 3, %v2397
    %v2399 = vrot.slane %v2280, %v2398
    %v2400 = vlaneseq
    %v2401 = vshrl.u32 %v2400, 7
    %v2402 = vsub.s32 3, %v2401
    %v2403 = vrot.slane %v2281, %v2402
    %v2404 = vlaneseq
    %v2405 = vshrl.u32 %v2404, 7
    %v2406 = vsub.s32 3, %v2405
    %v2407 = vrot.slane %v2282, %v2406
    %v2408 = vsel %vm438, %v2391, %v2383
    %v2409 = vsel %vm438, %v2395, %v2384
    %v2410 = vsel %vm438, %v2399, %v2385
    %v2411 = vsel %vm438, %v2403, %v2386
    %v2412 = vsel %vm438, %v2407, %v2387
    %v2413 = vsel 0, %v2191, %v2358
    %v2414 = vsel 0, %v2191, %v2359
    %v2415 = vsel 0, %v2191, %v2360
    %v2416 = vsel 1, %v2191, %v2361
    %v2417 = vsel 0, %v2191, %v2362
    %v2418 = vsel 0, %v2185, %v2413
    %v2419 = vsel 1, %v2185, %v2414
    %v2420 = vsel 0, %v2185, %v2415
    %v2421 = vsel 0, %v2185, %v2416
    %v2422 = vsel 0, %v2185, %v2417
    %v2423 = vsel 0, %v2195, %v2408
    %v2424 = vsel 0, %v2195, %v2409
    %v2425 = vsel 0, %v2195, %v2410
    %v2426 = vsel 1, %v2195, %v2411
    %v2427 = vsel 0, %v2195, %v2412
    %v2428 = vsel 0, %v2194, %v2423
    %v2429 = vsel 1, %v2194, %v2424
    %v2430 = vsel 0, %v2194, %v2425
    %v2431 = vsel 0, %v2194, %v2426
    %v2432 = vsel 0, %v2194, %v2427
    %v2433 = vmul.f32 %v2419, %v2419
    %v2434 = vmul.f32 %v2429, %v2429
    %v2435 = vadd.f32 %v2433, %v2434
    %v2436 = vrsqrt.pop %v2435
    %v2437 = vmul.f32 %v2435, %v2436
    %vm2438 = vcmp.eq.f32.partialorder %v2435, inf
    %v2439 = vsel %vm2438, %v2435, %v2437
    %vm2440 = vcmp.eq.f32.partialorder %v2435, 0.0
    %v2441 = vand.u32 %v2435, 2147483648
    %v2442 = vsel %vm2440, %v2441, %v2439
    %vm2443 = vcmp.le.f32.partialorder %v2442, 1e-10
    %v2444 = vsel %vm2443, 1.0, %v2442
    %v2445 = vrcp.pop %v2444
    %v2446 = vmul.f32 1.0, %v2445
    %v2447 = vmul.f32 %v2419, %v2446
    %v2448 = vsel %vm2443, 1.0, %v2447
    %v2449 = vmul.f32 %v2429, %v2446
    %v2450 = vsel %vm2443, 0.0, %v2449
    %v2452 = vrot.slane %v2419, 5
    %v2454 = vsub.f32 %v2422, %v2452
    %v2455 = vmul.f32 %v2446, 0.5
    %v2456 = vmul.f32 %v2454, %v2455
    %vm2457 = vcmp.ge.f32.partialorder %v2456, 0.0
    %v2458 = vsel %vm2457, 1.0, -1.0
    %v2459 = vand.u32 2147483647, %v2456
    %v2460 = vmul.f32 %v2456, %v2456
    %v2461 = vadd.f32 %v2460, 1.0
    %v2462 = vrsqrt.pop %v2461
    %v2463 = vmul.f32 %v2461, %v2462
    %vm2464 = vcmp.eq.f32.partialorder %v2461, inf
    %v2465 = vsel %vm2464, %v2461, %v2463
    %vm2466 = vcmp.eq.f32.partialorder %v2461, 0.0
    %v2467 = vand.u32 %v2461, 2147483648
    %v2468 = vsel %vm2466, %v2467, %v2465
    %v2469 = vadd.f32 %v2459, %v2468
    %v2470 = vrcp.pop %v2469
    %v2471 = vmul.f32 %v2458, %v2470
    %v2472 = vmul.f32 %v2471, %v2471
    %v2473 = vadd.f32 %v2472, 1.0
    %v2474 = vrsqrt.pop %v2473
    %v2475 = vmul.f32 %v2471, %v2474
    %v2476 = vsel %vm2443, 0.0, %v2475
    %v2477 = vsel %vm2443, 1.0, %v2474
    %v2478 = vmul.f32 %v2477, 2.0
    %v2479 = vmul.f32 %v2478, %v2476
    %v2480 = vmul.f32 %v2477, %v2477
    %v2481 = vmul.f32 %v2480, %v2452
    %v2482 = vmul.f32 %v2479, %v2442
    %v2483 = vsub.f32 %v2481, %v2482
    %v2484 = vmul.f32 %v2476, %v2476
    %v2485 = vmul.f32 %v2484, %v2422
    %v2486 = vadd.f32 %v2483, %v2485
    %v2487 = vmul.f32 %v2484, %v2452
    %v2488 = vadd.f32 %v2487, %v2482
    %v2489 = vmul.f32 %v2480, %v2422
    %v2490 = vadd.f32 %v2488, %v2489
    %v2491 = vlaneseq
    %v2492 = vshrl.u32 %v2491, 7
    %v2493 = vsub.s32 4, %v2492
    %v2494 = vrot.slane %v2448, %v2493
    %v2495 = vmul.f32 %v2494, %v2419
    %v2496 = vlaneseq
    %v2497 = vshrl.u32 %v2496, 7
    %v2498 = vsub.s32 4, %v2497
    %v2499 = vrot.slane %v2450, %v2498
    %v2500 = vmul.f32 %v2499, %v2429
    %v2501 = vadd.f32 %v2495, %v2500
    %v2502 = vmul.f32 %v2494, %v2429
    %v2503 = vmul.f32 %v2499, %v2419
    %v2504 = vsub.f32 %v2502, %v2503
    %v2505 = vlaneseq
    %v2506 = vshrl.u32 %v2505, 7
    %v2507 = vsub.s32 4, %v2506
    %v2508 = vrot.slane %v2477, %v2507
    %v2509 = vmul.f32 %v2508, %v2501
    %v2510 = vlaneseq
    %v2511 = vshrl.u32 %v2510, 7
    %v2512 = vsub.s32 4, %v2511
    %v2513 = vrot.slane %v2476, %v2512
    %v2514 = vmul.f32 %v2513, %v2422
    %v2515 = vsub.f32 %v2509, %v2514
    %v2516 = vmul.f32 %v2508, %v2504
    %v2517 = vmul.f32 %v2513, %v2432
    %v2518 = vsub.f32 %v2516, %v2517
    %v2519 = vmul.f32 %v2513, %v2501
    %v2520 = vmul.f32 %v2508, %v2422
    %v2521 = vadd.f32 %v2519, %v2520
    %v2522 = vmul.f32 %v2513, %v2504
    %v2523 = vmul.f32 %v2508, %v2432
    %v2524 = vadd.f32 %v2522, %v2523
    %vm2525 = vmor %vm435, %vm1484
    %v2526 = vsel %vm1487, 0.0, %v2515
    %v2527 = vlaneseq
    %v2528 = vshrl.u32 %v2527, 7
    %v2529 = vsub.s32 4, %v2528
    %v2530 = vrot.slane %v2486, %v2529
    %v2531 = vsel %vm438, %v2530, %v2526
    %v2532 = vsel %vm438, 0.0, %v2521
    %v2533 = vlaneseq
    %v2534 = vshrl.u32 %v2533, 7
    %v2535 = vsub.s32 4, %v2534
    %v2536 = vrot.slane %v2490, %v2535
    %v2537 = vsel %vm1487, %v2536, %v2532
    %v2538 = vsel %vm2525, 1, 0
    %vm2539 = vcmp.eq.s32.totalorder %v2538, 1
    %v2540 = vsel %vm2539, 0.0, %v2518
    %v2541 = vsel %vm2539, 0.0, %v2524
    %v2546 = vrot.slane %v2418, 5
    %v2547 = vrot.slane %v2420, 5
    %v2548 = vrot.slane %v2421, 5
    %v2549 = vrot.slane %v2422, 5
    %v2554 = vmul.f32 %v2448, %v2546
    %v2555 = vmul.f32 %v2448, %v2452
    %v2556 = vmul.f32 %v2448, %v2547
    %v2557 = vmul.f32 %v2448, %v2548
    %v2558 = vmul.f32 %v2448, %v2549
    %v2564 = vrot.slane %v2428, 5
    %v2565 = vrot.slane %v2429, 5
    %v2566 = vrot.slane %v2430, 5
    %v2567 = vrot.slane %v2431, 5
    %v2568 = vrot.slane %v2432, 5
    %v2574 = vmul.f32 %v2450, %v2564
    %v2575 = vmul.f32 %v2450, %v2565
    %v2576 = vmul.f32 %v2450, %v2566
    %v2577 = vmul.f32 %v2450, %v2567
    %v2578 = vmul.f32 %v2450, %v2568
    %v2579 = vsub.f32 %v2554, %v2574
    %v2580 = vsub.f32 %v2555, %v2575
    %v2581 = vsub.f32 %v2556, %v2576
    %v2582 = vsub.f32 %v2557, %v2577
    %v2583 = vsub.f32 %v2558, %v2578
    %v2584 = vmul.f32 %v2448, %v2564
    %v2585 = vmul.f32 %v2448, %v2565
    %v2586 = vmul.f32 %v2448, %v2566
    %v2587 = vmul.f32 %v2448, %v2567
    %v2588 = vmul.f32 %v2448, %v2568
    %v2589 = vmul.f32 %v2450, %v2546
    %v2590 = vmul.f32 %v2450, %v2452
    %v2591 = vmul.f32 %v2450, %v2547
    %v2592 = vmul.f32 %v2450, %v2548
    %v2593 = vmul.f32 %v2450, %v2549
    %v2594 = vadd.f32 %v2584, %v2589
    %v2595 = vadd.f32 %v2585, %v2590
    %v2596 = vadd.f32 %v2586, %v2591
    %v2597 = vadd.f32 %v2587, %v2592
    %v2598 = vadd.f32 %v2588, %v2593
    %v2599 = vmul.f32 %v2477, %v2579
    %v2600 = vmul.f32 %v2477, %v2580
    %v2601 = vmul.f32 %v2477, %v2581
    %v2602 = vmul.f32 %v2477, %v2582
    %v2603 = vmul.f32 %v2477, %v2583
    %v2604 = vmul.f32 %v2476, %v2418
    %v2605 = vmul.f32 %v2476, %v2419
    %v2606 = vmul.f32 %v2476, %v2420
    %v2607 = vmul.f32 %v2476, %v2421
    %v2608 = vmul.f32 %v2476, %v2422
    %v2609 = vsub.f32 %v2599, %v2604
    %v2610 = vsub.f32 %v2600, %v2605
    %v2611 = vsub.f32 %v2601, %v2606
    %v2612 = vsub.f32 %v2602, %v2607
    %v2613 = vsub.f32 %v2603, %v2608
    %v2614 = vmul.f32 %v2477, %v2594
    %v2615 = vmul.f32 %v2477, %v2595
    %v2616 = vmul.f32 %v2477, %v2596
    %v2617 = vmul.f32 %v2477, %v2597
    %v2618 = vmul.f32 %v2477, %v2598
    %v2619 = vmul.f32 %v2476, %v2428
    %v2620 = vmul.f32 %v2476, %v2429
    %v2621 = vmul.f32 %v2476, %v2430
    %v2622 = vmul.f32 %v2476, %v2431
    %v2623 = vmul.f32 %v2476, %v2432
    %v2624 = vsub.f32 %v2614, %v2619
    %v2625 = vsub.f32 %v2615, %v2620
    %v2626 = vsub.f32 %v2616, %v2621
    %v2627 = vsub.f32 %v2617, %v2622
    %v2628 = vsub.f32 %v2618, %v2623
    %v2629 = vmul.f32 %v2476, %v2579
    %v2630 = vmul.f32 %v2476, %v2580
    %v2631 = vmul.f32 %v2476, %v2581
    %v2632 = vmul.f32 %v2476, %v2582
    %v2633 = vmul.f32 %v2476, %v2583
    %v2634 = vmul.f32 %v2477, %v2418
    %v2635 = vmul.f32 %v2477, %v2419
    %v2636 = vmul.f32 %v2477, %v2420
    %v2637 = vmul.f32 %v2477, %v2421
    %v2638 = vmul.f32 %v2477, %v2422
    %v2639 = vadd.f32 %v2629, %v2634
    %v2640 = vadd.f32 %v2630, %v2635
    %v2641 = vadd.f32 %v2631, %v2636
    %v2642 = vadd.f32 %v2632, %v2637
    %v2643 = vadd.f32 %v2633, %v2638
    %v2644 = vmul.f32 %v2476, %v2594
    %v2645 = vmul.f32 %v2476, %v2595
    %v2646 = vmul.f32 %v2476, %v2596
    %v2647 = vmul.f32 %v2476, %v2597
    %v2648 = vmul.f32 %v2476, %v2598
    %v2649 = vmul.f32 %v2477, %v2428
    %v2650 = vmul.f32 %v2477, %v2429
    %v2651 = vmul.f32 %v2477, %v2430
    %v2652 = vmul.f32 %v2477, %v2431
    %v2653 = vmul.f32 %v2477, %v2432
    %v2654 = vadd.f32 %v2644, %v2649
    %v2655 = vadd.f32 %v2645, %v2650
    %v2656 = vadd.f32 %v2646, %v2651
    %v2657 = vadd.f32 %v2647, %v2652
    %v2658 = vadd.f32 %v2648, %v2653
    %v2659 = vlaneseq
    %v2660 = vshrl.u32 %v2659, 7
    %v2661 = vsub.s32 4, %v2660
    %v2662 = vrot.slane %v2639, %v2661
    %v2663 = vlaneseq
    %v2664 = vshrl.u32 %v2663, 7
    %v2665 = vsub.s32 4, %v2664
    %v2666 = vrot.slane %v2640, %v2665
    %v2667 = vlaneseq
    %v2668 = vshrl.u32 %v2667, 7
    %v2669 = vsub.s32 4, %v2668
    %v2670 = vrot.slane %v2641, %v2669
    %v2671 = vlaneseq
    %v2672 = vshrl.u32 %v2671, 7
    %v2673 = vsub.s32 4, %v2672
    %v2674 = vrot.slane %v2642, %v2673
    %v2675 = vlaneseq
    %v2676 = vshrl.u32 %v2675, 7
    %v2677 = vsub.s32 4, %v2676
    %v2678 = vrot.slane %v2643, %v2677
    %v2679 = vsel %vm1487, %v2662, %v2418
    %v2680 = vsel %vm1487, %v2666, %v2419
    %v2681 = vsel %vm1487, %v2670, %v2420
    %v2682 = vsel %vm1487, %v2674, %v2421
    %v2683 = vsel %vm1487, %v2678, %v2422
    %v2684 = vlaneseq
    %v2685 = vshrl.u32 %v2684, 7
    %v2686 = vsub.s32 4, %v2685
    %v2687 = vrot.slane %v2609, %v2686
    %v2688 = vlaneseq
    %v2689 = vshrl.u32 %v2688, 7
    %v2690 = vsub.s32 4, %v2689
    %v2691 = vrot.slane %v2610, %v2690
    %v2692 = vlaneseq
    %v2693 = vshrl.u32 %v2692, 7
    %v2694 = vsub.s32 4, %v2693
    %v2695 = vrot.slane %v2611, %v2694
    %v2696 = vlaneseq
    %v2697 = vshrl.u32 %v2696, 7
    %v2698 = vsub.s32 4, %v2697
    %v2699 = vrot.slane %v2612, %v2698
    %v2700 = vlaneseq
    %v2701 = vshrl.u32 %v2700, 7
    %v2702 = vsub.s32 4, %v2701
    %v2703 = vrot.slane %v2613, %v2702
    %v2704 = vsel %vm438, %v2687, %v2679
    %v2705 = vsel %vm438, %v2691, %v2680
    %v2706 = vsel %vm438, %v2695, %v2681
    %v2707 = vsel %vm438, %v2699, %v2682
    %v2708 = vsel %vm438, %v2703, %v2683
    %v2709 = vlaneseq
    %v2710 = vshrl.u32 %v2709, 7
    %v2711 = vsub.s32 4, %v2710
    %v2712 = vrot.slane %v2654, %v2711
    %v2713 = vlaneseq
    %v2714 = vshrl.u32 %v2713, 7
    %v2715 = vsub.s32 4, %v2714
    %v2716 = vrot.slane %v2655, %v2715
    %v2717 = vlaneseq
    %v2718 = vshrl.u32 %v2717, 7
    %v2719 = vsub.s32 4, %v2718
    %v2720 = vrot.slane %v2656, %v2719
    %v2721 = vlaneseq
    %v2722 = vshrl.u32 %v2721, 7
    %v2723 = vsub.s32 4, %v2722
    %v2724 = vrot.slane %v2657, %v2723
    %v2725 = vlaneseq
    %v2726 = vshrl.u32 %v2725, 7
    %v2727 = vsub.s32 4, %v2726
    %v2728 = vrot.slane %v2658, %v2727
    %v2729 = vsel %vm1487, %v2712, %v2428
    %v2730 = vsel %vm1487, %v2716, %v2429
    %v2731 = vsel %vm1487, %v2720, %v2430
    %v2732 = vsel %vm1487, %v2724, %v2431
    %v2733 = vsel %vm1487, %v2728, %v2432
    %v2734 = vlaneseq
    %v2735 = vshrl.u32 %v2734, 7
    %v2736 = vsub.s32 4, %v2735
    %v2737 = vrot.slane %v2624, %v2736
    %v2738 = vlaneseq
    %v2739 = vshrl.u32 %v2738, 7
    %v2740 = vsub.s32 4, %v2739
    %v2741 = vrot.slane %v2625, %v2740
    %v2742 = vlaneseq
    %v2743 = vshrl.u32 %v2742, 7
    %v2744 = vsub.s32 4, %v2743
    %v2745 = vrot.slane %v2626, %v2744
    %v2746 = vlaneseq
    %v2747 = vshrl.u32 %v2746, 7
    %v2748 = vsub.s32 4, %v2747
    %v2749 = vrot.slane %v2627, %v2748
    %v2750 = vlaneseq
    %v2751 = vshrl.u32 %v2750, 7
    %v2752 = vsub.s32 4, %v2751
    %v2753 = vrot.slane %v2628, %v2752
    %v2754 = vsel %vm438, %v2737, %v2729
    %v2755 = vsel %vm438, %v2741, %v2730
    %v2756 = vsel %vm438, %v2745, %v2731
    %v2757 = vsel %vm438, %v2749, %v2732
    %v2758 = vsel %vm438, %v2753, %v2733
    %v2759 = vsel 0, %v2537, %v2704
    %v2760 = vsel 0, %v2537, %v2705
    %v2761 = vsel 0, %v2537, %v2706
    %v2762 = vsel 0, %v2537, %v2707
    %v2763 = vsel 1, %v2537, %v2708
    %v2764 = vsel 0, %v2531, %v2759
    %v2765 = vsel 1, %v2531, %v2760
    %v2766 = vsel 0, %v2531, %v2761
    %v2767 = vsel 0, %v2531, %v2762
    %v2768 = vsel 0, %v2531, %v2763
    %v2769 = vsel 0, %v2541, %v2754
    %v2770 = vsel 0, %v2541, %v2755
    %v2771 = vsel 0, %v2541, %v2756
    %v2772 = vsel 0, %v2541, %v2757
    %v2773 = vsel 1, %v2541, %v2758
    %v2774 = vsel 0, %v2540, %v2769
    %v2775 = vsel 1, %v2540, %v2770
    %v2776 = vsel 0, %v2540, %v2771
    %v2777 = vsel 0, %v2540, %v2772
    %v2778 = vsel 0, %v2540, %v2773
    %v2779 = vmul.f32 %v2766, %v2766
    %v2780 = vmul.f32 %v2776, %v2776
    %v2781 = vadd.f32 %v2779, %v2780
    %v2782 = vrsqrt.pop %v2781
    %v2783 = vmul.f32 %v2781, %v2782
    %vm2784 = vcmp.eq.f32.partialorder %v2781, inf
    %v2785 = vsel %vm2784, %v2781, %v2783
    %vm2786 = vcmp.eq.f32.partialorder %v2781, 0.0
    %v2787 = vand.u32 %v2781, 2147483648
    %v2788 = vsel %vm2786, %v2787, %v2785
    %vm2789 = vcmp.le.f32.partialorder %v2788, 1e-10
    %v2790 = vsel %vm2789, 1.0, %v2788
    %v2791 = vrcp.pop %v2790
    %v2792 = vmul.f32 1.0, %v2791
    %v2793 = vmul.f32 %v2766, %v2792
    %v2794 = vsel %vm2789, 1.0, %v2793
    %v2795 = vmul.f32 %v2776, %v2792
    %v2796 = vsel %vm2789, 0.0, %v2795
    %v2798 = vrot.slane %v2766, 7
    %v2800 = vsub.f32 %v2767, %v2798
    %v2801 = vmul.f32 %v2792, 0.5
    %v2802 = vmul.f32 %v2800, %v2801
    %vm2803 = vcmp.ge.f32.partialorder %v2802, 0.0
    %v2804 = vsel %vm2803, 1.0, -1.0
    %v2805 = vand.u32 2147483647, %v2802
    %v2806 = vmul.f32 %v2802, %v2802
    %v2807 = vadd.f32 %v2806, 1.0
    %v2808 = vrsqrt.pop %v2807
    %v2809 = vmul.f32 %v2807, %v2808
    %vm2810 = vcmp.eq.f32.partialorder %v2807, inf
    %v2811 = vsel %vm2810, %v2807, %v2809
    %vm2812 = vcmp.eq.f32.partialorder %v2807, 0.0
    %v2813 = vand.u32 %v2807, 2147483648
    %v2814 = vsel %vm2812, %v2813, %v2811
    %v2815 = vadd.f32 %v2805, %v2814
    %v2816 = vrcp.pop %v2815
    %v2817 = vmul.f32 %v2804, %v2816
    %v2818 = vmul.f32 %v2817, %v2817
    %v2819 = vadd.f32 %v2818, 1.0
    %v2820 = vrsqrt.pop %v2819
    %v2821 = vmul.f32 %v2817, %v2820
    %v2822 = vsel %vm2789, 0.0, %v2821
    %v2823 = vsel %vm2789, 1.0, %v2820
    %v2824 = vmul.f32 %v2823, 2.0
    %v2825 = vmul.f32 %v2824, %v2822
    %v2826 = vmul.f32 %v2823, %v2823
    %v2827 = vmul.f32 %v2826, %v2798
    %v2828 = vmul.f32 %v2825, %v2788
    %v2829 = vsub.f32 %v2827, %v2828
    %v2830 = vmul.f32 %v2822, %v2822
    %v2831 = vmul.f32 %v2830, %v2767
    %v2832 = vadd.f32 %v2829, %v2831
    %v2833 = vmul.f32 %v2830, %v2798
    %v2834 = vadd.f32 %v2833, %v2828
    %v2835 = vmul.f32 %v2826, %v2767
    %v2836 = vadd.f32 %v2834, %v2835
    %v2837 = vlaneseq
    %v2838 = vshrl.u32 %v2837, 7
    %v2839 = vsub.s32 3, %v2838
    %v2840 = vrot.slane %v2794, %v2839
    %v2841 = vmul.f32 %v2840, %v2766
    %v2842 = vlaneseq
    %v2843 = vshrl.u32 %v2842, 7
    %v2844 = vsub.s32 3, %v2843
    %v2845 = vrot.slane %v2796, %v2844
    %v2846 = vmul.f32 %v2845, %v2776
    %v2847 = vadd.f32 %v2841, %v2846
    %v2848 = vmul.f32 %v2840, %v2776
    %v2849 = vmul.f32 %v2845, %v2766
    %v2850 = vsub.f32 %v2848, %v2849
    %v2851 = vlaneseq
    %v2852 = vshrl.u32 %v2851, 7
    %v2853 = vsub.s32 3, %v2852
    %v2854 = vrot.slane %v2823, %v2853
    %v2855 = vmul.f32 %v2854, %v2847
    %v2856 = vlaneseq
    %v2857 = vshrl.u32 %v2856, 7
    %v2858 = vsub.s32 3, %v2857
    %v2859 = vrot.slane %v2822, %v2858
    %v2860 = vmul.f32 %v2859, %v2767
    %v2861 = vsub.f32 %v2855, %v2860
    %v2862 = vmul.f32 %v2854, %v2850
    %v2863 = vmul.f32 %v2859, %v2777
    %v2864 = vsub.f32 %v2862, %v2863
    %v2865 = vmul.f32 %v2859, %v2847
    %v2866 = vmul.f32 %v2854, %v2767
    %v2867 = vadd.f32 %v2865, %v2866
    %v2868 = vmul.f32 %v2859, %v2850
    %v2869 = vmul.f32 %v2854, %v2777
    %v2870 = vadd.f32 %v2868, %v2869
    %vm2871 = vmor %vm786, %vm1135
    %v2872 = vsel %vm1138, 0.0, %v2861
    %v2873 = vlaneseq
    %v2874 = vshrl.u32 %v2873, 7
    %v2875 = vsub.s32 3, %v2874
    %v2876 = vrot.slane %v2832, %v2875
    %v2877 = vsel %vm789, %v2876, %v2872
    %v2878 = vsel %vm789, 0.0, %v2867
    %v2879 = vlaneseq
    %v2880 = vshrl.u32 %v2879, 7
    %v2881 = vsub.s32 3, %v2880
    %v2882 = vrot.slane %v2836, %v2881
    %v2883 = vsel %vm1138, %v2882, %v2878
    %v2884 = vsel %vm2871, 1, 0
    %vm2885 = vcmp.eq.s32.totalorder %v2884, 1
    %v2886 = vsel %vm2885, 0.0, %v2864
    %v2887 = vsel %vm2885, 0.0, %v2870
    %v2892 = vrot.slane %v2764, 7
    %v2893 = vrot.slane %v2765, 7
    %v2894 = vrot.slane %v2767, 7
    %v2895 = vrot.slane %v2768, 7
    %v2900 = vmul.f32 %v2794, %v2892
    %v2901 = vmul.f32 %v2794, %v2893
    %v2902 = vmul.f32 %v2794, %v2798
    %v2903 = vmul.f32 %v2794, %v2894
    %v2904 = vmul.f32 %v2794, %v2895
    %v2910 = vrot.slane %v2774, 7
    %v2911 = vrot.slane %v2775, 7
    %v2912 = vrot.slane %v2776, 7
    %v2913 = vrot.slane %v2777, 7
    %v2914 = vrot.slane %v2778, 7
    %v2920 = vmul.f32 %v2796, %v2910
    %v2921 = vmul.f32 %v2796, %v2911
    %v2922 = vmul.f32 %v2796, %v2912
    %v2923 = vmul.f32 %v2796, %v2913
    %v2924 = vmul.f32 %v2796, %v2914
    %v2925 = vsub.f32 %v2900, %v2920
    %v2926 = vsub.f32 %v2901, %v2921
    %v2927 = vsub.f32 %v2902, %v2922
    %v2928 = vsub.f32 %v2903, %v2923
    %v2929 = vsub.f32 %v2904, %v2924
    %v2930 = vmul.f32 %v2794, %v2910
    %v2931 = vmul.f32 %v2794, %v2911
    %v2932 = vmul.f32 %v2794, %v2912
    %v2933 = vmul.f32 %v2794, %v2913
    %v2934 = vmul.f32 %v2794, %v2914
    %v2935 = vmul.f32 %v2796, %v2892
    %v2936 = vmul.f32 %v2796, %v2893
    %v2937 = vmul.f32 %v2796, %v2798
    %v2938 = vmul.f32 %v2796, %v2894
    %v2939 = vmul.f32 %v2796, %v2895
    %v2940 = vadd.f32 %v2930, %v2935
    %v2941 = vadd.f32 %v2931, %v2936
    %v2942 = vadd.f32 %v2932, %v2937
    %v2943 = vadd.f32 %v2933, %v2938
    %v2944 = vadd.f32 %v2934, %v2939
    %v2945 = vmul.f32 %v2823, %v2925
    %v2946 = vmul.f32 %v2823, %v2926
    %v2947 = vmul.f32 %v2823, %v2927
    %v2948 = vmul.f32 %v2823, %v2928
    %v2949 = vmul.f32 %v2823, %v2929
    %v2950 = vmul.f32 %v2822, %v2764
    %v2951 = vmul.f32 %v2822, %v2765
    %v2952 = vmul.f32 %v2822, %v2766
    %v2953 = vmul.f32 %v2822, %v2767
    %v2954 = vmul.f32 %v2822, %v2768
    %v2955 = vsub.f32 %v2945, %v2950
    %v2956 = vsub.f32 %v2946, %v2951
    %v2957 = vsub.f32 %v2947, %v2952
    %v2958 = vsub.f32 %v2948, %v2953
    %v2959 = vsub.f32 %v2949, %v2954
    %v2960 = vmul.f32 %v2823, %v2940
    %v2961 = vmul.f32 %v2823, %v2941
    %v2962 = vmul.f32 %v2823, %v2942
    %v2963 = vmul.f32 %v2823, %v2943
    %v2964 = vmul.f32 %v2823, %v2944
    %v2965 = vmul.f32 %v2822, %v2774
    %v2966 = vmul.f32 %v2822, %v2775
    %v2967 = vmul.f32 %v2822, %v2776
    %v2968 = vmul.f32 %v2822, %v2777
    %v2969 = vmul.f32 %v2822, %v2778
    %v2970 = vsub.f32 %v2960, %v2965
    %v2971 = vsub.f32 %v2961, %v2966
    %v2972 = vsub.f32 %v2962, %v2967
    %v2973 = vsub.f32 %v2963, %v2968
    %v2974 = vsub.f32 %v2964, %v2969
    %v2975 = vmul.f32 %v2822, %v2925
    %v2976 = vmul.f32 %v2822, %v2926
    %v2977 = vmul.f32 %v2822, %v2927
    %v2978 = vmul.f32 %v2822, %v2928
    %v2979 = vmul.f32 %v2822, %v2929
    %v2980 = vmul.f32 %v2823, %v2764
    %v2981 = vmul.f32 %v2823, %v2765
    %v2982 = vmul.f32 %v2823, %v2766
    %v2983 = vmul.f32 %v2823, %v2767
    %v2984 = vmul.f32 %v2823, %v2768
    %v2985 = vadd.f32 %v2975, %v2980
    %v2986 = vadd.f32 %v2976, %v2981
    %v2987 = vadd.f32 %v2977, %v2982
    %v2988 = vadd.f32 %v2978, %v2983
    %v2989 = vadd.f32 %v2979, %v2984
    %v2990 = vmul.f32 %v2822, %v2940
    %v2991 = vmul.f32 %v2822, %v2941
    %v2992 = vmul.f32 %v2822, %v2942
    %v2993 = vmul.f32 %v2822, %v2943
    %v2994 = vmul.f32 %v2822, %v2944
    %v2995 = vmul.f32 %v2823, %v2774
    %v2996 = vmul.f32 %v2823, %v2775
    %v2997 = vmul.f32 %v2823, %v2776
    %v2998 = vmul.f32 %v2823, %v2777
    %v2999 = vmul.f32 %v2823, %v2778
    %v3000 = vadd.f32 %v2990, %v2995
    %v3001 = vadd.f32 %v2991, %v2996
    %v3002 = vadd.f32 %v2992, %v2997
    %v3003 = vadd.f32 %v2993, %v2998
    %v3004 = vadd.f32 %v2994, %v2999
    %v3005 = vlaneseq
    %v3006 = vshrl.u32 %v3005, 7
    %v3007 = vsub.s32 3, %v3006
    %v3008 = vrot.slane %v2985, %v3007
    %v3009 = vlaneseq
    %v3010 = vshrl.u32 %v3009, 7
    %v3011 = vsub.s32 3, %v3010
    %v3012 = vrot.slane %v2986, %v3011
    %v3013 = vlaneseq
    %v3014 = vshrl.u32 %v3013, 7
    %v3015 = vsub.s32 3, %v3014
    %v3016 = vrot.slane %v2987, %v3015
    %v3017 = vlaneseq
    %v3018 = vshrl.u32 %v3017, 7
    %v3019 = vsub.s32 3, %v3018
    %v3020 = vrot.slane %v2988, %v3019
    %v3021 = vlaneseq
    %v3022 = vshrl.u32 %v3021, 7
    %v3023 = vsub.s32 3, %v3022
    %v3024 = vrot.slane %v2989, %v3023
    %v3025 = vsel %vm1138, %v3008, %v2764
    %v3026 = vsel %vm1138, %v3012, %v2765
    %v3027 = vsel %vm1138, %v3016, %v2766
    %v3028 = vsel %vm1138, %v3020, %v2767
    %v3029 = vsel %vm1138, %v3024, %v2768
    %v3030 = vlaneseq
    %v3031 = vshrl.u32 %v3030, 7
    %v3032 = vsub.s32 3, %v3031
    %v3033 = vrot.slane %v2955, %v3032
    %v3034 = vlaneseq
    %v3035 = vshrl.u32 %v3034, 7
    %v3036 = vsub.s32 3, %v3035
    %v3037 = vrot.slane %v2956, %v3036
    %v3038 = vlaneseq
    %v3039 = vshrl.u32 %v3038, 7
    %v3040 = vsub.s32 3, %v3039
    %v3041 = vrot.slane %v2957, %v3040
    %v3042 = vlaneseq
    %v3043 = vshrl.u32 %v3042, 7
    %v3044 = vsub.s32 3, %v3043
    %v3045 = vrot.slane %v2958, %v3044
    %v3046 = vlaneseq
    %v3047 = vshrl.u32 %v3046, 7
    %v3048 = vsub.s32 3, %v3047
    %v3049 = vrot.slane %v2959, %v3048
    %v3050 = vsel %vm789, %v3033, %v3025
    %v3051 = vsel %vm789, %v3037, %v3026
    %v3052 = vsel %vm789, %v3041, %v3027
    %v3053 = vsel %vm789, %v3045, %v3028
    %v3054 = vsel %vm789, %v3049, %v3029
    %v3055 = vlaneseq
    %v3056 = vshrl.u32 %v3055, 7
    %v3057 = vsub.s32 3, %v3056
    %v3058 = vrot.slane %v3000, %v3057
    %v3059 = vlaneseq
    %v3060 = vshrl.u32 %v3059, 7
    %v3061 = vsub.s32 3, %v3060
    %v3062 = vrot.slane %v3001, %v3061
    %v3063 = vlaneseq
    %v3064 = vshrl.u32 %v3063, 7
    %v3065 = vsub.s32 3, %v3064
    %v3066 = vrot.slane %v3002, %v3065
    %v3067 = vlaneseq
    %v3068 = vshrl.u32 %v3067, 7
    %v3069 = vsub.s32 3, %v3068
    %v3070 = vrot.slane %v3003, %v3069
    %v3071 = vlaneseq
    %v3072 = vshrl.u32 %v3071, 7
    %v3073 = vsub.s32 3, %v3072
    %v3074 = vrot.slane %v3004, %v3073
    %v3075 = vsel %vm1138, %v3058, %v2774
    %v3076 = vsel %vm1138, %v3062, %v2775
    %v3077 = vsel %vm1138, %v3066, %v2776
    %v3078 = vsel %vm1138, %v3070, %v2777
    %v3079 = vsel %vm1138, %v3074, %v2778
    %v3080 = vlaneseq
    %v3081 = vshrl.u32 %v3080, 7
    %v3082 = vsub.s32 3, %v3081
    %v3083 = vrot.slane %v2970, %v3082
    %v3084 = vlaneseq
    %v3085 = vshrl.u32 %v3084, 7
    %v3086 = vsub.s32 3, %v3085
    %v3087 = vrot.slane %v2971, %v3086
    %v3088 = vlaneseq
    %v3089 = vshrl.u32 %v3088, 7
    %v3090 = vsub.s32 3, %v3089
    %v3091 = vrot.slane %v2972, %v3090
    %v3092 = vlaneseq
    %v3093 = vshrl.u32 %v3092, 7
    %v3094 = vsub.s32 3, %v3093
    %v3095 = vrot.slane %v2973, %v3094
    %v3096 = vlaneseq
    %v3097 = vshrl.u32 %v3096, 7
    %v3098 = vsub.s32 3, %v3097
    %v3099 = vrot.slane %v2974, %v3098
    %v3100 = vsel %vm789, %v3083, %v3075
    %v3101 = vsel %vm789, %v3087, %v3076
    %v3102 = vsel %vm789, %v3091, %v3077
    %v3103 = vsel %vm789, %v3095, %v3078
    %v3104 = vsel %vm789, %v3099, %v3079
    %v3105 = vsel 0, %v2883, %v3050
    %v3106 = vsel 0, %v2883, %v3051
    %v3107 = vsel 0, %v2883, %v3052
    %v3108 = vsel 1, %v2883, %v3053
    %v3109 = vsel 0, %v2883, %v3054
    %v3110 = vsel 0, %v2877, %v3105
    %v3111 = vsel 0, %v2877, %v3106
    %v3112 = vsel 1, %v2877, %v3107
    %v3113 = vsel 0, %v2877, %v3108
    %v3114 = vsel 0, %v2877, %v3109
    %v3115 = vsel 0, %v2887, %v3100
    %v3116 = vsel 0, %v2887, %v3101
    %v3117 = vsel 0, %v2887, %v3102
    %v3118 = vsel 1, %v2887, %v3103
    %v3119 = vsel 0, %v2887, %v3104
    %v3120 = vsel 0, %v2886, %v3115
    %v3121 = vsel 0, %v2886, %v3116
    %v3122 = vsel 1, %v2886, %v3117
    %v3123 = vsel 0, %v2886, %v3118
    %v3124 = vsel 0, %v2886, %v3119
    %v3125 = vmul.f32 %v3112, %v3112
    %v3126 = vmul.f32 %v3122, %v3122
    %v3127 = vadd.f32 %v3125, %v3126
    %v3128 = vrsqrt.pop %v3127
    %v3129 = vmul.f32 %v3127, %v3128
    %vm3130 = vcmp.eq.f32.partialorder %v3127, inf
    %v3131 = vsel %vm3130, %v3127, %v3129
    %vm3132 = vcmp.eq.f32.partialorder %v3127, 0.0
    %v3133 = vand.u32 %v3127, 2147483648
    %v3134 = vsel %vm3132, %v3133, %v3131
    %vm3135 = vcmp.le.f32.partialorder %v3134, 1e-10
    %v3136 = vsel %vm3135, 1.0, %v3134
    %v3137 = vrcp.pop %v3136
    %v3138 = vmul.f32 1.0, %v3137
    %v3139 = vmul.f32 %v3112, %v3138
    %v3140 = vsel %vm3135, 1.0, %v3139
    %v3141 = vmul.f32 %v3122, %v3138
    %v3142 = vsel %vm3135, 0.0, %v3141
    %v3144 = vrot.slane %v3112, 6
    %v3146 = vsub.f32 %v3114, %v3144
    %v3147 = vmul.f32 %v3138, 0.5
    %v3148 = vmul.f32 %v3146, %v3147
    %vm3149 = vcmp.ge.f32.partialorder %v3148, 0.0
    %v3150 = vsel %vm3149, 1.0, -1.0
    %v3151 = vand.u32 2147483647, %v3148
    %v3152 = vmul.f32 %v3148, %v3148
    %v3153 = vadd.f32 %v3152, 1.0
    %v3154 = vrsqrt.pop %v3153
    %v3155 = vmul.f32 %v3153, %v3154
    %vm3156 = vcmp.eq.f32.partialorder %v3153, inf
    %v3157 = vsel %vm3156, %v3153, %v3155
    %vm3158 = vcmp.eq.f32.partialorder %v3153, 0.0
    %v3159 = vand.u32 %v3153, 2147483648
    %v3160 = vsel %vm3158, %v3159, %v3157
    %v3161 = vadd.f32 %v3151, %v3160
    %v3162 = vrcp.pop %v3161
    %v3163 = vmul.f32 %v3150, %v3162
    %v3164 = vmul.f32 %v3163, %v3163
    %v3165 = vadd.f32 %v3164, 1.0
    %v3166 = vrsqrt.pop %v3165
    %v3167 = vmul.f32 %v3163, %v3166
    %v3168 = vsel %vm3135, 0.0, %v3167
    %v3169 = vsel %vm3135, 1.0, %v3166
    %v3170 = vmul.f32 %v3169, 2.0
    %v3171 = vmul.f32 %v3170, %v3168
    %v3172 = vmul.f32 %v3169, %v3169
    %v3173 = vmul.f32 %v3172, %v3144
    %v3174 = vmul.f32 %v3171, %v3134
    %v3175 = vsub.f32 %v3173, %v3174
    %v3176 = vmul.f32 %v3168, %v3168
    %v3177 = vmul.f32 %v3176, %v3114
    %v3178 = vadd.f32 %v3175, %v3177
    %v3179 = vmul.f32 %v3176, %v3144
    %v3180 = vadd.f32 %v3179, %v3174
    %v3181 = vmul.f32 %v3172, %v3114
    %v3182 = vadd.f32 %v3180, %v3181
    %v3183 = vlaneseq
    %v3184 = vshrl.u32 %v3183, 7
    %v3185 = vsub.s32 4, %v3184
    %v3186 = vrot.slane %v3140, %v3185
    %v3187 = vmul.f32 %v3186, %v3112
    %v3188 = vlaneseq
    %v3189 = vshrl.u32 %v3188, 7
    %v3190 = vsub.s32 4, %v3189
    %v3191 = vrot.slane %v3142, %v3190
    %v3192 = vmul.f32 %v3191, %v3122
    %v3193 = vadd.f32 %v3187, %v3192
    %v3194 = vmul.f32 %v3186, %v3122
    %v3195 = vmul.f32 %v3191, %v3112
    %v3196 = vsub.f32 %v3194, %v3195
    %v3197 = vlaneseq
    %v3198 = vshrl.u32 %v3197, 7
    %v3199 = vsub.s32 4, %v3198
    %v3200 = vrot.slane %v3169, %v3199
    %v3201 = vmul.f32 %v3200, %v3193
    %v3202 = vlaneseq
    %v3203 = vshrl.u32 %v3202, 7
    %v3204 = vsub.s32 4, %v3203
    %v3205 = vrot.slane %v3168, %v3204
    %v3206 = vmul.f32 %v3205, %v3114
    %v3207 = vsub.f32 %v3201, %v3206
    %v3208 = vmul.f32 %v3200, %v3196
    %v3209 = vmul.f32 %v3205, %v3124
    %v3210 = vsub.f32 %v3208, %v3209
    %v3211 = vmul.f32 %v3205, %v3193
    %v3212 = vmul.f32 %v3200, %v3114
    %v3213 = vadd.f32 %v3211, %v3212
    %v3214 = vmul.f32 %v3205, %v3196
    %v3215 = vmul.f32 %v3200, %v3124
    %v3216 = vadd.f32 %v3214, %v3215
    %vm3217 = vmor %vm786, %vm1484
    %v3218 = vsel %vm1487, 0.0, %v3207
    %v3219 = vlaneseq
    %v3220 = vshrl.u32 %v3219, 7
    %v3221 = vsub.s32 4, %v3220
    %v3222 = vrot.slane %v3178, %v3221
    %v3223 = vsel %vm789, %v3222, %v3218
    %v3224 = vsel %vm789, 0.0, %v3213
    %v3225 = vlaneseq
    %v3226 = vshrl.u32 %v3225, 7
    %v3227 = vsub.s32 4, %v3226
    %v3228 = vrot.slane %v3182, %v3227
    %v3229 = vsel %vm1487, %v3228, %v3224
    %v3230 = vsel %vm3217, 1, 0
    %vm3231 = vcmp.eq.s32.totalorder %v3230, 1
    %v3232 = vsel %vm3231, 0.0, %v3210
    %v3233 = vsel %vm3231, 0.0, %v3216
    %v3238 = vrot.slane %v3110, 6
    %v3239 = vrot.slane %v3111, 6
    %v3240 = vrot.slane %v3113, 6
    %v3241 = vrot.slane %v3114, 6
    %v3246 = vmul.f32 %v3140, %v3238
    %v3247 = vmul.f32 %v3140, %v3239
    %v3248 = vmul.f32 %v3140, %v3144
    %v3249 = vmul.f32 %v3140, %v3240
    %v3250 = vmul.f32 %v3140, %v3241
    %v3256 = vrot.slane %v3120, 6
    %v3257 = vrot.slane %v3121, 6
    %v3258 = vrot.slane %v3122, 6
    %v3259 = vrot.slane %v3123, 6
    %v3260 = vrot.slane %v3124, 6
    %v3266 = vmul.f32 %v3142, %v3256
    %v3267 = vmul.f32 %v3142, %v3257
    %v3268 = vmul.f32 %v3142, %v3258
    %v3269 = vmul.f32 %v3142, %v3259
    %v3270 = vmul.f32 %v3142, %v3260
    %v3271 = vsub.f32 %v3246, %v3266
    %v3272 = vsub.f32 %v3247, %v3267
    %v3273 = vsub.f32 %v3248, %v3268
    %v3274 = vsub.f32 %v3249, %v3269
    %v3275 = vsub.f32 %v3250, %v3270
    %v3276 = vmul.f32 %v3140, %v3256
    %v3277 = vmul.f32 %v3140, %v3257
    %v3278 = vmul.f32 %v3140, %v3258
    %v3279 = vmul.f32 %v3140, %v3259
    %v3280 = vmul.f32 %v3140, %v3260
    %v3281 = vmul.f32 %v3142, %v3238
    %v3282 = vmul.f32 %v3142, %v3239
    %v3283 = vmul.f32 %v3142, %v3144
    %v3284 = vmul.f32 %v3142, %v3240
    %v3285 = vmul.f32 %v3142, %v3241
    %v3286 = vadd.f32 %v3276, %v3281
    %v3287 = vadd.f32 %v3277, %v3282
    %v3288 = vadd.f32 %v3278, %v3283
    %v3289 = vadd.f32 %v3279, %v3284
    %v3290 = vadd.f32 %v3280, %v3285
    %v3291 = vmul.f32 %v3169, %v3271
    %v3292 = vmul.f32 %v3169, %v3272
    %v3293 = vmul.f32 %v3169, %v3273
    %v3294 = vmul.f32 %v3169, %v3274
    %v3295 = vmul.f32 %v3169, %v3275
    %v3296 = vmul.f32 %v3168, %v3110
    %v3297 = vmul.f32 %v3168, %v3111
    %v3298 = vmul.f32 %v3168, %v3112
    %v3299 = vmul.f32 %v3168, %v3113
    %v3300 = vmul.f32 %v3168, %v3114
    %v3301 = vsub.f32 %v3291, %v3296
    %v3302 = vsub.f32 %v3292, %v3297
    %v3303 = vsub.f32 %v3293, %v3298
    %v3304 = vsub.f32 %v3294, %v3299
    %v3305 = vsub.f32 %v3295, %v3300
    %v3306 = vmul.f32 %v3169, %v3286
    %v3307 = vmul.f32 %v3169, %v3287
    %v3308 = vmul.f32 %v3169, %v3288
    %v3309 = vmul.f32 %v3169, %v3289
    %v3310 = vmul.f32 %v3169, %v3290
    %v3311 = vmul.f32 %v3168, %v3120
    %v3312 = vmul.f32 %v3168, %v3121
    %v3313 = vmul.f32 %v3168, %v3122
    %v3314 = vmul.f32 %v3168, %v3123
    %v3315 = vmul.f32 %v3168, %v3124
    %v3316 = vsub.f32 %v3306, %v3311
    %v3317 = vsub.f32 %v3307, %v3312
    %v3318 = vsub.f32 %v3308, %v3313
    %v3319 = vsub.f32 %v3309, %v3314
    %v3320 = vsub.f32 %v3310, %v3315
    %v3321 = vmul.f32 %v3168, %v3271
    %v3322 = vmul.f32 %v3168, %v3272
    %v3323 = vmul.f32 %v3168, %v3273
    %v3324 = vmul.f32 %v3168, %v3274
    %v3325 = vmul.f32 %v3168, %v3275
    %v3326 = vmul.f32 %v3169, %v3110
    %v3327 = vmul.f32 %v3169, %v3111
    %v3328 = vmul.f32 %v3169, %v3112
    %v3329 = vmul.f32 %v3169, %v3113
    %v3330 = vmul.f32 %v3169, %v3114
    %v3331 = vadd.f32 %v3321, %v3326
    %v3332 = vadd.f32 %v3322, %v3327
    %v3333 = vadd.f32 %v3323, %v3328
    %v3334 = vadd.f32 %v3324, %v3329
    %v3335 = vadd.f32 %v3325, %v3330
    %v3336 = vmul.f32 %v3168, %v3286
    %v3337 = vmul.f32 %v3168, %v3287
    %v3338 = vmul.f32 %v3168, %v3288
    %v3339 = vmul.f32 %v3168, %v3289
    %v3340 = vmul.f32 %v3168, %v3290
    %v3341 = vmul.f32 %v3169, %v3120
    %v3342 = vmul.f32 %v3169, %v3121
    %v3343 = vmul.f32 %v3169, %v3122
    %v3344 = vmul.f32 %v3169, %v3123
    %v3345 = vmul.f32 %v3169, %v3124
    %v3346 = vadd.f32 %v3336, %v3341
    %v3347 = vadd.f32 %v3337, %v3342
    %v3348 = vadd.f32 %v3338, %v3343
    %v3349 = vadd.f32 %v3339, %v3344
    %v3350 = vadd.f32 %v3340, %v3345
    %v3351 = vlaneseq
    %v3352 = vshrl.u32 %v3351, 7
    %v3353 = vsub.s32 4, %v3352
    %v3354 = vrot.slane %v3331, %v3353
    %v3355 = vlaneseq
    %v3356 = vshrl.u32 %v3355, 7
    %v3357 = vsub.s32 4, %v3356
    %v3358 = vrot.slane %v3332, %v3357
    %v3359 = vlaneseq
    %v3360 = vshrl.u32 %v3359, 7
    %v3361 = vsub.s32 4, %v3360
    %v3362 = vrot.slane %v3333, %v3361
    %v3363 = vlaneseq
    %v3364 = vshrl.u32 %v3363, 7
    %v3365 = vsub.s32 4, %v3364
    %v3366 = vrot.slane %v3334, %v3365
    %v3367 = vlaneseq
    %v3368 = vshrl.u32 %v3367, 7
    %v3369 = vsub.s32 4, %v3368
    %v3370 = vrot.slane %v3335, %v3369
    %v3371 = vsel %vm1487, %v3354, %v3110
    %v3372 = vsel %vm1487, %v3358, %v3111
    %v3373 = vsel %vm1487, %v3362, %v3112
    %v3374 = vsel %vm1487, %v3366, %v3113
    %v3375 = vsel %vm1487, %v3370, %v3114
    %v3376 = vlaneseq
    %v3377 = vshrl.u32 %v3376, 7
    %v3378 = vsub.s32 4, %v3377
    %v3379 = vrot.slane %v3301, %v3378
    %v3380 = vlaneseq
    %v3381 = vshrl.u32 %v3380, 7
    %v3382 = vsub.s32 4, %v3381
    %v3383 = vrot.slane %v3302, %v3382
    %v3384 = vlaneseq
    %v3385 = vshrl.u32 %v3384, 7
    %v3386 = vsub.s32 4, %v3385
    %v3387 = vrot.slane %v3303, %v3386
    %v3388 = vlaneseq
    %v3389 = vshrl.u32 %v3388, 7
    %v3390 = vsub.s32 4, %v3389
    %v3391 = vrot.slane %v3304, %v3390
    %v3392 = vlaneseq
    %v3393 = vshrl.u32 %v3392, 7
    %v3394 = vsub.s32 4, %v3393
    %v3395 = vrot.slane %v3305, %v3394
    %v3396 = vsel %vm789, %v3379, %v3371
    %v3397 = vsel %vm789, %v3383, %v3372
    %v3398 = vsel %vm789, %v3387, %v3373
    %v3399 = vsel %vm789, %v3391, %v3374
    %v3400 = vsel %vm789, %v3395, %v3375
    %v3401 = vlaneseq
    %v3402 = vshrl.u32 %v3401, 7
    %v3403 = vsub.s32 4, %v3402
    %v3404 = vrot.slane %v3346, %v3403
    %v3405 = vlaneseq
    %v3406 = vshrl.u32 %v3405, 7
    %v3407 = vsub.s32 4, %v3406
    %v3408 = vrot.slane %v3347, %v3407
    %v3409 = vlaneseq
    %v3410 = vshrl.u32 %v3409, 7
    %v3411 = vsub.s32 4, %v3410
    %v3412 = vrot.slane %v3348, %v3411
    %v3413 = vlaneseq
    %v3414 = vshrl.u32 %v3413, 7
    %v3415 = vsub.s32 4, %v3414
    %v3416 = vrot.slane %v3349, %v3415
    %v3417 = vlaneseq
    %v3418 = vshrl.u32 %v3417, 7
    %v3419 = vsub.s32 4, %v3418
    %v3420 = vrot.slane %v3350, %v3419
    %v3421 = vsel %vm1487, %v3404, %v3120
    %v3422 = vsel %vm1487, %v3408, %v3121
    %v3423 = vsel %vm1487, %v3412, %v3122
    %v3424 = vsel %vm1487, %v3416, %v3123
    %v3425 = vsel %vm1487, %v3420, %v3124
    %v3426 = vlaneseq
    %v3427 = vshrl.u32 %v3426, 7
    %v3428 = vsub.s32 4, %v3427
    %v3429 = vrot.slane %v3316, %v3428
    %v3430 = vlaneseq
    %v3431 = vshrl.u32 %v3430, 7
    %v3432 = vsub.s32 4, %v3431
    %v3433 = vrot.slane %v3317, %v3432
    %v3434 = vlaneseq
    %v3435 = vshrl.u32 %v3434, 7
    %v3436 = vsub.s32 4, %v3435
    %v3437 = vrot.slane %v3318, %v3436
    %v3438 = vlaneseq
    %v3439 = vshrl.u32 %v3438, 7
    %v3440 = vsub.s32 4, %v3439
    %v3441 = vrot.slane %v3319, %v3440
    %v3442 = vlaneseq
    %v3443 = vshrl.u32 %v3442, 7
    %v3444 = vsub.s32 4, %v3443
    %v3445 = vrot.slane %v3320, %v3444
    %v3446 = vsel %vm789, %v3429, %v3421
    %v3447 = vsel %vm789, %v3433, %v3422
    %v3448 = vsel %vm789, %v3437, %v3423
    %v3449 = vsel %vm789, %v3441, %v3424
    %v3450 = vsel %vm789, %v3445, %v3425
    %v3451 = vsel 0, %v3229, %v3396
    %v3452 = vsel 0, %v3229, %v3397
    %v3453 = vsel 0, %v3229, %v3398
    %v3454 = vsel 0, %v3229, %v3399
    %v3455 = vsel 1, %v3229, %v3400
    %v3456 = vsel 0, %v3223, %v3451
    %v3457 = vsel 0, %v3223, %v3452
    %v3458 = vsel 1, %v3223, %v3453
    %v3459 = vsel 0, %v3223, %v3454
    %v3460 = vsel 0, %v3223, %v3455
    %v3461 = vsel 0, %v3233, %v3446
    %v3462 = vsel 0, %v3233, %v3447
    %v3463 = vsel 0, %v3233, %v3448
    %v3464 = vsel 0, %v3233, %v3449
    %v3465 = vsel 1, %v3233, %v3450
    %v3466 = vsel 0, %v3232, %v3461
    %v3467 = vsel 0, %v3232, %v3462
    %v3468 = vsel 1, %v3232, %v3463
    %v3469 = vsel 0, %v3232, %v3464
    %v3470 = vsel 0, %v3232, %v3465
    %v3471 = vmul.f32 %v3459, %v3459
    %v3472 = vmul.f32 %v3469, %v3469
    %v3473 = vadd.f32 %v3471, %v3472
    %v3474 = vrsqrt.pop %v3473
    %v3475 = vmul.f32 %v3473, %v3474
    %vm3476 = vcmp.eq.f32.partialorder %v3473, inf
    %v3477 = vsel %vm3476, %v3473, %v3475
    %vm3478 = vcmp.eq.f32.partialorder %v3473, 0.0
    %v3479 = vand.u32 %v3473, 2147483648
    %v3480 = vsel %vm3478, %v3479, %v3477
    %vm3481 = vcmp.le.f32.partialorder %v3480, 1e-10
    %v3482 = vsel %vm3481, 1.0, %v3480
    %v3483 = vrcp.pop %v3482
    %v3484 = vmul.f32 1.0, %v3483
    %v3485 = vmul.f32 %v3459, %v3484
    %v3486 = vsel %vm3481, 1.0, %v3485
    %v3487 = vmul.f32 %v3469, %v3484
    %v3488 = vsel %vm3481, 0.0, %v3487
    %v3490 = vrot.slane %v3459, 7
    %v3492 = vsub.f32 %v3460, %v3490
    %v3493 = vmul.f32 %v3484, 0.5
    %v3494 = vmul.f32 %v3492, %v3493
    %vm3495 = vcmp.ge.f32.partialorder %v3494, 0.0
    %v3496 = vsel %vm3495, 1.0, -1.0
    %v3497 = vand.u32 2147483647, %v3494
    %v3498 = vmul.f32 %v3494, %v3494
    %v3499 = vadd.f32 %v3498, 1.0
    %v3500 = vrsqrt.pop %v3499
    %v3501 = vmul.f32 %v3499, %v3500
    %vm3502 = vcmp.eq.f32.partialorder %v3499, inf
    %v3503 = vsel %vm3502, %v3499, %v3501
    %vm3504 = vcmp.eq.f32.partialorder %v3499, 0.0
    %v3505 = vand.u32 %v3499, 2147483648
    %v3506 = vsel %vm3504, %v3505, %v3503
    %v3507 = vadd.f32 %v3497, %v3506
    %v3508 = vrcp.pop %v3507
    %v3509 = vmul.f32 %v3496, %v3508
    %v3510 = vmul.f32 %v3509, %v3509
    %v3511 = vadd.f32 %v3510, 1.0
    %v3512 = vrsqrt.pop %v3511
    %v3513 = vmul.f32 %v3509, %v3512
    %v3514 = vsel %vm3481, 0.0, %v3513
    %v3515 = vsel %vm3481, 1.0, %v3512
    %v3516 = vmul.f32 %v3515, 2.0
    %v3517 = vmul.f32 %v3516, %v3514
    %v3518 = vmul.f32 %v3515, %v3515
    %v3519 = vmul.f32 %v3518, %v3490
    %v3520 = vmul.f32 %v3517, %v3480
    %v3521 = vsub.f32 %v3519, %v3520
    %v3522 = vmul.f32 %v3514, %v3514
    %v3523 = vmul.f32 %v3522, %v3460
    %v3524 = vadd.f32 %v3521, %v3523
    %v3525 = vmul.f32 %v3522, %v3490
    %v3526 = vadd.f32 %v3525, %v3520
    %v3527 = vmul.f32 %v3518, %v3460
    %v3528 = vadd.f32 %v3526, %v3527
    %v3529 = vlaneseq
    %v3530 = vshrl.u32 %v3529, 7
    %v3531 = vsub.s32 4, %v3530
    %v3532 = vrot.slane %v3486, %v3531
    %v3533 = vmul.f32 %v3532, %v3459
    %v3534 = vlaneseq
    %v3535 = vshrl.u32 %v3534, 7
    %v3536 = vsub.s32 4, %v3535
    %v3537 = vrot.slane %v3488, %v3536
    %v3538 = vmul.f32 %v3537, %v3469
    %v3539 = vadd.f32 %v3533, %v3538
    %v3540 = vmul.f32 %v3532, %v3469
    %v3541 = vmul.f32 %v3537, %v3459
    %v3542 = vsub.f32 %v3540, %v3541
    %v3543 = vlaneseq
    %v3544 = vshrl.u32 %v3543, 7
    %v3545 = vsub.s32 4, %v3544
    %v3546 = vrot.slane %v3515, %v3545
    %v3547 = vmul.f32 %v3546, %v3539
    %v3548 = vlaneseq
    %v3549 = vshrl.u32 %v3548, 7
    %v3550 = vsub.s32 4, %v3549
    %v3551 = vrot.slane %v3514, %v3550
    %v3552 = vmul.f32 %v3551, %v3460
    %v3553 = vsub.f32 %v3547, %v3552
    %v3554 = vmul.f32 %v3546, %v3542
    %v3555 = vmul.f32 %v3551, %v3470
    %v3556 = vsub.f32 %v3554, %v3555
    %v3557 = vmul.f32 %v3551, %v3539
    %v3558 = vmul.f32 %v3546, %v3460
    %v3559 = vadd.f32 %v3557, %v3558
    %v3560 = vmul.f32 %v3551, %v3542
    %v3561 = vmul.f32 %v3546, %v3470
    %v3562 = vadd.f32 %v3560, %v3561
    %vm3563 = vmor %vm1135, %vm1484
    %v3564 = vsel %vm1487, 0.0, %v3553
    %v3565 = vlaneseq
    %v3566 = vshrl.u32 %v3565, 7
    %v3567 = vsub.s32 4, %v3566
    %v3568 = vrot.slane %v3524, %v3567
    %v3569 = vsel %vm1138, %v3568, %v3564
    %v3570 = vsel %vm1138, 0.0, %v3559
    %v3571 = vlaneseq
    %v3572 = vshrl.u32 %v3571, 7
    %v3573 = vsub.s32 4, %v3572
    %v3574 = vrot.slane %v3528, %v3573
    %v3575 = vsel %vm1487, %v3574, %v3570
    %v3576 = vsel %vm3563, 1, 0
    %vm3577 = vcmp.eq.s32.totalorder %v3576, 1
    %v3578 = vsel %vm3577, 0.0, %v3556
    %v3579 = vsel %vm3577, 0.0, %v3562
    %v3584 = vrot.slane %v3456, 7
    %v3585 = vrot.slane %v3457, 7
    %v3586 = vrot.slane %v3458, 7
    %v3587 = vrot.slane %v3460, 7
    %v3592 = vmul.f32 %v3486, %v3584
    %v3593 = vmul.f32 %v3486, %v3585
    %v3594 = vmul.f32 %v3486, %v3586
    %v3595 = vmul.f32 %v3486, %v3490
    %v3596 = vmul.f32 %v3486, %v3587
    %v3602 = vrot.slane %v3466, 7
    %v3603 = vrot.slane %v3467, 7
    %v3604 = vrot.slane %v3468, 7
    %v3605 = vrot.slane %v3469, 7
    %v3606 = vrot.slane %v3470, 7
    %v3612 = vmul.f32 %v3488, %v3602
    %v3613 = vmul.f32 %v3488, %v3603
    %v3614 = vmul.f32 %v3488, %v3604
    %v3615 = vmul.f32 %v3488, %v3605
    %v3616 = vmul.f32 %v3488, %v3606
    %v3617 = vsub.f32 %v3592, %v3612
    %v3618 = vsub.f32 %v3593, %v3613
    %v3619 = vsub.f32 %v3594, %v3614
    %v3620 = vsub.f32 %v3595, %v3615
    %v3621 = vsub.f32 %v3596, %v3616
    %v3622 = vmul.f32 %v3486, %v3602
    %v3623 = vmul.f32 %v3486, %v3603
    %v3624 = vmul.f32 %v3486, %v3604
    %v3625 = vmul.f32 %v3486, %v3605
    %v3626 = vmul.f32 %v3486, %v3606
    %v3627 = vmul.f32 %v3488, %v3584
    %v3628 = vmul.f32 %v3488, %v3585
    %v3629 = vmul.f32 %v3488, %v3586
    %v3630 = vmul.f32 %v3488, %v3490
    %v3631 = vmul.f32 %v3488, %v3587
    %v3632 = vadd.f32 %v3622, %v3627
    %v3633 = vadd.f32 %v3623, %v3628
    %v3634 = vadd.f32 %v3624, %v3629
    %v3635 = vadd.f32 %v3625, %v3630
    %v3636 = vadd.f32 %v3626, %v3631
    %v3637 = vmul.f32 %v3515, %v3617
    %v3638 = vmul.f32 %v3515, %v3618
    %v3639 = vmul.f32 %v3515, %v3619
    %v3640 = vmul.f32 %v3515, %v3620
    %v3641 = vmul.f32 %v3515, %v3621
    %v3642 = vmul.f32 %v3514, %v3456
    %v3643 = vmul.f32 %v3514, %v3457
    %v3644 = vmul.f32 %v3514, %v3458
    %v3645 = vmul.f32 %v3514, %v3459
    %v3646 = vmul.f32 %v3514, %v3460
    %v3647 = vsub.f32 %v3637, %v3642
    %v3648 = vsub.f32 %v3638, %v3643
    %v3649 = vsub.f32 %v3639, %v3644
    %v3650 = vsub.f32 %v3640, %v3645
    %v3651 = vsub.f32 %v3641, %v3646
    %v3652 = vmul.f32 %v3515, %v3632
    %v3653 = vmul.f32 %v3515, %v3633
    %v3654 = vmul.f32 %v3515, %v3634
    %v3655 = vmul.f32 %v3515, %v3635
    %v3656 = vmul.f32 %v3515, %v3636
    %v3657 = vmul.f32 %v3514, %v3466
    %v3658 = vmul.f32 %v3514, %v3467
    %v3659 = vmul.f32 %v3514, %v3468
    %v3660 = vmul.f32 %v3514, %v3469
    %v3661 = vmul.f32 %v3514, %v3470
    %v3662 = vsub.f32 %v3652, %v3657
    %v3663 = vsub.f32 %v3653, %v3658
    %v3664 = vsub.f32 %v3654, %v3659
    %v3665 = vsub.f32 %v3655, %v3660
    %v3666 = vsub.f32 %v3656, %v3661
    %v3667 = vmul.f32 %v3514, %v3617
    %v3668 = vmul.f32 %v3514, %v3618
    %v3669 = vmul.f32 %v3514, %v3619
    %v3670 = vmul.f32 %v3514, %v3620
    %v3671 = vmul.f32 %v3514, %v3621
    %v3672 = vmul.f32 %v3515, %v3456
    %v3673 = vmul.f32 %v3515, %v3457
    %v3674 = vmul.f32 %v3515, %v3458
    %v3675 = vmul.f32 %v3515, %v3459
    %v3676 = vmul.f32 %v3515, %v3460
    %v3677 = vadd.f32 %v3667, %v3672
    %v3678 = vadd.f32 %v3668, %v3673
    %v3679 = vadd.f32 %v3669, %v3674
    %v3680 = vadd.f32 %v3670, %v3675
    %v3681 = vadd.f32 %v3671, %v3676
    %v3682 = vmul.f32 %v3514, %v3632
    %v3683 = vmul.f32 %v3514, %v3633
    %v3684 = vmul.f32 %v3514, %v3634
    %v3685 = vmul.f32 %v3514, %v3635
    %v3686 = vmul.f32 %v3514, %v3636
    %v3687 = vmul.f32 %v3515, %v3466
    %v3688 = vmul.f32 %v3515, %v3467
    %v3689 = vmul.f32 %v3515, %v3468
    %v3690 = vmul.f32 %v3515, %v3469
    %v3691 = vmul.f32 %v3515, %v3470
    %v3692 = vadd.f32 %v3682, %v3687
    %v3693 = vadd.f32 %v3683, %v3688
    %v3694 = vadd.f32 %v3684, %v3689
    %v3695 = vadd.f32 %v3685, %v3690
    %v3696 = vadd.f32 %v3686, %v3691
    %v3697 = vlaneseq
    %v3698 = vshrl.u32 %v3697, 7
    %v3699 = vsub.s32 4, %v3698
    %v3700 = vrot.slane %v3677, %v3699
    %v3701 = vlaneseq
    %v3702 = vshrl.u32 %v3701, 7
    %v3703 = vsub.s32 4, %v3702
    %v3704 = vrot.slane %v3678, %v3703
    %v3705 = vlaneseq
    %v3706 = vshrl.u32 %v3705, 7
    %v3707 = vsub.s32 4, %v3706
    %v3708 = vrot.slane %v3679, %v3707
    %v3709 = vlaneseq
    %v3710 = vshrl.u32 %v3709, 7
    %v3711 = vsub.s32 4, %v3710
    %v3712 = vrot.slane %v3680, %v3711
    %v3713 = vlaneseq
    %v3714 = vshrl.u32 %v3713, 7
    %v3715 = vsub.s32 4, %v3714
    %v3716 = vrot.slane %v3681, %v3715
    %v3717 = vsel %vm1487, %v3700, %v3456
    %v3718 = vsel %vm1487, %v3704, %v3457
    %v3719 = vsel %vm1487, %v3708, %v3458
    %v3720 = vsel %vm1487, %v3712, %v3459
    %v3721 = vsel %vm1487, %v3716, %v3460
    %v3722 = vlaneseq
    %v3723 = vshrl.u32 %v3722, 7
    %v3724 = vsub.s32 4, %v3723
    %v3725 = vrot.slane %v3647, %v3724
    %v3726 = vlaneseq
    %v3727 = vshrl.u32 %v3726, 7
    %v3728 = vsub.s32 4, %v3727
    %v3729 = vrot.slane %v3648, %v3728
    %v3730 = vlaneseq
    %v3731 = vshrl.u32 %v3730, 7
    %v3732 = vsub.s32 4, %v3731
    %v3733 = vrot.slane %v3649, %v3732
    %v3734 = vlaneseq
    %v3735 = vshrl.u32 %v3734, 7
    %v3736 = vsub.s32 4, %v3735
    %v3737 = vrot.slane %v3650, %v3736
    %v3738 = vlaneseq
    %v3739 = vshrl.u32 %v3738, 7
    %v3740 = vsub.s32 4, %v3739
    %v3741 = vrot.slane %v3651, %v3740
    %v3742 = vsel %vm1138, %v3725, %v3717
    %v3743 = vsel %vm1138, %v3729, %v3718
    %v3744 = vsel %vm1138, %v3733, %v3719
    %v3745 = vsel %vm1138, %v3737, %v3720
    %v3746 = vsel %vm1138, %v3741, %v3721
    %v3747 = vlaneseq
    %v3748 = vshrl.u32 %v3747, 7
    %v3749 = vsub.s32 4, %v3748
    %v3750 = vrot.slane %v3692, %v3749
    %v3751 = vlaneseq
    %v3752 = vshrl.u32 %v3751, 7
    %v3753 = vsub.s32 4, %v3752
    %v3754 = vrot.slane %v3693, %v3753
    %v3755 = vlaneseq
    %v3756 = vshrl.u32 %v3755, 7
    %v3757 = vsub.s32 4, %v3756
    %v3758 = vrot.slane %v3694, %v3757
    %v3759 = vlaneseq
    %v3760 = vshrl.u32 %v3759, 7
    %v3761 = vsub.s32 4, %v3760
    %v3762 = vrot.slane %v3695, %v3761
    %v3763 = vlaneseq
    %v3764 = vshrl.u32 %v3763, 7
    %v3765 = vsub.s32 4, %v3764
    %v3766 = vrot.slane %v3696, %v3765
    %v3767 = vsel %vm1487, %v3750, %v3466
    %v3768 = vsel %vm1487, %v3754, %v3467
    %v3769 = vsel %vm1487, %v3758, %v3468
    %v3770 = vsel %vm1487, %v3762, %v3469
    %v3771 = vsel %vm1487, %v3766, %v3470
    %v3772 = vlaneseq
    %v3773 = vshrl.u32 %v3772, 7
    %v3774 = vsub.s32 4, %v3773
    %v3775 = vrot.slane %v3662, %v3774
    %v3776 = vlaneseq
    %v3777 = vshrl.u32 %v3776, 7
    %v3778 = vsub.s32 4, %v3777
    %v3779 = vrot.slane %v3663, %v3778
    %v3780 = vlaneseq
    %v3781 = vshrl.u32 %v3780, 7
    %v3782 = vsub.s32 4, %v3781
    %v3783 = vrot.slane %v3664, %v3782
    %v3784 = vlaneseq
    %v3785 = vshrl.u32 %v3784, 7
    %v3786 = vsub.s32 4, %v3785
    %v3787 = vrot.slane %v3665, %v3786
    %v3788 = vlaneseq
    %v3789 = vshrl.u32 %v3788, 7
    %v3790 = vsub.s32 4, %v3789
    %v3791 = vrot.slane %v3666, %v3790
    %v3792 = vsel %vm1138, %v3775, %v3767
    %v3793 = vsel %vm1138, %v3779, %v3768
    %v3794 = vsel %vm1138, %v3783, %v3769
    %v3795 = vsel %vm1138, %v3787, %v3770
    %v3796 = vsel %vm1138, %v3791, %v3771
    %v3797 = vsel 0, %v3575, %v3742
    %v3798 = vsel 0, %v3575, %v3743
    %v3799 = vsel 0, %v3575, %v3744
    %v3800 = vsel 0, %v3575, %v3745
    %v3801 = vsel 1, %v3575, %v3746
    %v3802 = vsel 0, %v3569, %v3797
    %v3803 = vsel 0, %v3569, %v3798
    %v3804 = vsel 0, %v3569, %v3799
    %v3805 = vsel 1, %v3569, %v3800
    %v3806 = vsel 0, %v3569, %v3801
    %v3807 = vsel 0, %v3579, %v3792
    %v3808 = vsel 0, %v3579, %v3793
    %v3809 = vsel 0, %v3579, %v3794
    %v3810 = vsel 0, %v3579, %v3795
    %v3811 = vsel 1, %v3579, %v3796
    %v3812 = vsel 0, %v3578, %v3807
    %v3813 = vsel 0, %v3578, %v3808
    %v3814 = vsel 0, %v3578, %v3809
    %v3815 = vsel 1, %v3578, %v3810
    %v3816 = vsel 0, %v3578, %v3811
  $region26: #{_tb_eigenvalues.1} parent=0 // loop_footer
    %s331 = sadd.s32 1, %s327
  $region27: #{_tb_eigenvalues.1} parent=0 // loop_footer_branch
    %326 = sbr.rel target = $region23
  $region28: #{_tb_eigenvalues.1} parent=0 // loop_exit
    _
  %3817 = vst [vmem:[%s5] sm:$0x1] %v332
  %3818 = vst [vmem:[%s5] sm:$0x2] %v333
  %3819 = vst [vmem:[%s5] sm:$0x4] %v334
  %3820 = vst [vmem:[%s5] sm:$0x8] %v335
  %3821 = vst [vmem:[%s5] sm:$0x10] %v336
  // Predicated region
  $region29: #{_tb_eigenvalues.1} parent=0 // pred_check
    _
  $region30: #{_tb_eigenvalues.1} parent=0 // pred_check_branch
    %3823 = sbr.rel (0) target = $region32
  $region31: #{_tb_eigenvalues.1} parent=0 // pred_region
    _
  $region32: #{_tb_eigenvalues.1} parent=0 // pred_fallthru
    _
  // Predicated region
  $region33: #{_tb_eigenvalues.1} parent=0 // pred_check
    _
  $region34: #{_tb_eigenvalues.1} parent=0 // pred_check_branch
    %3825 = sbr.rel (0) target = $region36
  $region35: #{_tb_eigenvalues.1} parent=0 // pred_region
    _
  $region36: #{_tb_eigenvalues.1} parent=0 // pred_fallthru
    _

</llo_original>
